<compile_context>
chip_gen: v5e
topology: v5e:2x2
jax: 0.10.0
libtpu: 0.0.40
codegen_flags: <defaults>
</compile_context>

<pallas_src>
import jax
import jax.numpy as jnp
import numpy as np
from jax.experimental import pallas as pl
from jax.experimental.pallas import tpu as pltpu


# Permutation mapping torch's NCHW flatten (c*49 + y*7 + x) onto our HWC flatten
# ((y*7 + x)*64 + c) of the (7,7,64) conv-tower output.
def _fc1_perm():
    yy, xx, cc = np.meshgrid(np.arange(7), np.arange(7), np.arange(64), indexing="ij")
    return np.asarray((cc * 49 + yy * 7 + xx).reshape(-1), dtype=np.int32)


FC1_PERM = _fc1_perm()


# ----------------------------------------------------------------------------
# Kernel 1: fused conv1 + ReLU + pool + conv2 + ReLU + pool  (B images / step)
# ----------------------------------------------------------------------------
def _conv_tower_kernel(x1_ref, w1_ref, b1_ref, w2_ref, b2_ref, o_ref,
                       p1_scr, c1_scr, c2_scr, vp1_scr, vp2_scr):
    B = x1_ref.shape[0]
    w1 = w1_ref[...]            # (9, 32)   packed conv1 taps
    b1 = b1_ref[...]            # (1, 32)
    w2 = w2_ref[...]            # (288, 64) packed conv2 taps ((dy*3+dx)*32 + cin)
    b2 = b2_ref[...]            # (1, 64)

    # Zero the flat padded layer-1 scratch once per grid step: the pad ring and tail
    # rows stay zero; interior rows are fully overwritten for every image.
    p1_scr[...] = jnp.zeros_like(p1_scr)

    for b in range(B):                                   # static unroll over images
        # ---- layer 1: one MXU matmul for the whole image (glue-side im2col, K=9)
        c1_scr[...] = jnp.dot(x1_ref[b], w1,
                              preferred_element_type=jnp.float32)       # (784, 32)

        # fused bias + ReLU + 2x2/2 max-pool, one pooled row per unrolled step.
        # c1_scr row index = y*28 + x.  Pooled row r lands at padded row r+1,
        # cols 1..14 of the flat (16x16, 32) scratch (flat sublane = row*16 + col).
        for r in range(14):
            top = c1_scr[pl.ds((2 * r) * 28, 28), :]       # conv row 2r   (28, 32)
            bot = c1_scr[pl.ds((2 * r + 1) * 28, 28), :]   # conv row 2r+1 (28, 32)
            vp1_scr[...] = jnp.maximum(top, bot)
            hp = jnp.maximum(vp1_scr[pl.ds(0, 14, stride=2), :],
                             vp1_scr[pl.ds(1, 14, stride=2), :])        # (14, 32)
            p1_scr[pl.ds((r + 1) * 16 + 1, 14), :] = jnp.maximum(hp + b1, 0.0)

        # ---- layer 2: row-wise im2col over the flat padded scratch -> one matmul.
        # Patch row t = i*16 + j (j=14,15 are discarded filler); piece (dy,dx) is the
        # scratch shifted by dy*16 + dx, so each piece is one contiguous 224-row slice.
        patch = jnp.concatenate(
            [p1_scr[pl.ds(dy * 16 + dx, 224), :]
             for dy in range(3) for dx in range(3)],
            axis=-1)                                                    # (224, 288)
        c2_scr[...] = jnp.dot(patch, w2,
                              preferred_element_type=jnp.float32)       # (224, 64)

        # fused bias + ReLU + 2x2/2 max-pool -> (7, 64) pooled rows, stored directly
        # into the (B, 7, 7, 64) output block.
        for r in range(7):
            top = c2_scr[pl.ds((2 * r) * 16, 14), :]       # conv2 row 2r   (14, 64)
            bot = c2_scr[pl.ds((2 * r + 1) * 16, 14), :]   # conv2 row 2r+1 (14, 64)
            vp2_scr[...] = jnp.maximum(top, bot)
            hp = jnp.maximum(vp2_scr[pl.ds(0, 7, stride=2), :],
                             vp2_scr[pl.ds(1, 7, stride=2), :])         # (7, 64)
            o_ref[b, r] = jnp.maximum(hp + b2, 0.0)


def conv_tower(x1, w1p, b1, w2p, b2, b_blk):
    """x1: (Np, 784, 9) layer-1 im2col; returns (Np, 7, 7, 64) pooled conv2 output."""
    n_pad = x1.shape[0]
    return pl.pallas_call(
        _conv_tower_kernel,
        out_shape=jax.ShapeDtypeStruct((n_pad, 7, 7, 64), jnp.float32),
        grid_spec=pltpu.PrefetchScalarGridSpec(
            num_scalar_prefetch=0,
            grid=(n_pad // b_blk,),
            in_specs=[
                pl.BlockSpec((b_blk, 784, 9), lambda n: (n, 0, 0)),
                pl.BlockSpec((9, 32), lambda n: (0, 0)),
                pl.BlockSpec((1, 32), lambda n: (0, 0)),
                pl.BlockSpec((288, 64), lambda n: (0, 0)),
                pl.BlockSpec((1, 64), lambda n: (0, 0)),
            ],
            out_specs=pl.BlockSpec((b_blk, 7, 7, 64), lambda n: (n, 0, 0, 0)),
            scratch_shapes=[
                pltpu.VMEM((264, 32), jnp.float32),   # flat padded layer-1 output
                pltpu.VMEM((784, 32), jnp.float32),   # layer-1 conv (pre-pool)
                pltpu.VMEM((224, 64), jnp.float32),   # layer-2 conv (pre-pool)
                pltpu.VMEM((28, 32), jnp.float32),    # layer-1 vertical-pool row
                pltpu.VMEM((14, 64), jnp.float32),    # layer-2 vertical-pool row
            ],
        ),
        compiler_params=pltpu.CompilerParams(dimension_semantics=("parallel",)),
    )(x1, w1p, b1, w2p, b2)


# ----------------------------------------------------------------------------
# Kernel 2: fused MLP head  relu(x @ W1p + b1) @ W2^T + b2, tiled over N
# ----------------------------------------------------------------------------
def _mlp_kernel(x_ref, w1_ref, b1_ref, w2_ref, b2_ref, o_ref):
    h = jnp.dot(x_ref[...], w1_ref[...],
                preferred_element_type=jnp.float32) + b1_ref[...]
    h = jnp.maximum(h, 0.0)                                        # ReLU (fc1)
    o_ref[...] = (jnp.dot(h, w2_ref[...],
                          preferred_element_type=jnp.float32)
                  + b2_ref[...]).astype(o_ref.dtype)


def mlp_head(x, w1t, b1, w2t, b2, block_n):
    n = x.shape[0]
    return pl.pallas_call(
        _mlp_kernel,
        out_shape=jax.ShapeDtypeStruct((n, 10), jnp.float32),
        grid_spec=pltpu.PrefetchScalarGridSpec(
            num_scalar_prefetch=0,
            grid=(n // block_n,),
            in_specs=[
                pl.BlockSpec((block_n, 3136), lambda i: (i, 0)),
                pl.BlockSpec((3136, 128), lambda i: (0, 0)),
                pl.BlockSpec((1, 128), lambda i: (0, 0)),
                pl.BlockSpec((128, 10), lambda i: (0, 0)),
                pl.BlockSpec((1, 10), lambda i: (0, 0)),
            ],
            out_specs=pl.BlockSpec((block_n, 10), lambda i: (i, 0)),
        ),
        compiler_params=pltpu.CompilerParams(dimension_semantics=("parallel",)),
    )(x, w1t, b1, w2t, b2)


# ----------------------------------------------------------------------------
# Full forward pass (Pallas hot path + cheap XLA glue)
# ----------------------------------------------------------------------------
@jax.jit
def big_forward_pallas(x_nchw, p):
    N = x_nchw.shape[0]
    x = x_nchw[:, 0]                                         # (N, 28, 28), Cin = 1
    xp = jnp.pad(x, ((0, 0), (1, 1), (1, 1)))                # spatial pad=1 (glue)

    # layer-1 im2col in glue: 9 real taps, no channel zero-padding.
    x1 = jnp.stack([xp[:, dy:dy + 28, dx:dx + 28]
                    for dy in range(3) for dx in range(3)], axis=-1)    # (N,28,28,9)
    x1 = x1.reshape(N, 28 * 28, 9)

    # batch blocking for the conv tower.
    b_blk = N if N < 8 else 8
    n_pad = ((N + b_blk - 1) // b_blk) * b_blk
    if n_pad != N:
        x1 = jnp.pad(x1, ((0, n_pad - N), (0, 0), (0, 0)))

    w1p = p["w1_hwio"].reshape(9, 32)                        # (dy*3+dx, cout)
    w2p = p["w2_hwio"].reshape(9 * 32, 64)                   # ((dy*3+dx)*32+cin, cout)
    feat = conv_tower(x1, w1p, p["b1"].reshape(1, 32),
                      w2p, p["b2"].reshape(1, 64), b_blk)    # (n_pad, 7, 7, 64)
    feat = feat[:N].reshape(N, 7 * 7 * 64)                   # HWC flatten

    # fc1 columns permuted once so the head consumes HWC-flattened features directly
    # (matches torch's x.view(N,-1) on NCHW without any activation transpose).
    w1t = jnp.transpose(p["fw1"])[FC1_PERM, :]               # (3136, 128)
    w2t = jnp.transpose(p["fw2"])                            # (128, 10)

    bm = N if N <= 128 else 128
    nm = ((N + bm - 1) // bm) * bm
    if nm != N:
        feat = jnp.pad(feat, ((0, nm - N), (0, 0)))
    out = mlp_head(feat, w1t, p["fb1"].reshape(1, 128),
                   w2t, p["fb2"].reshape(1, 10), bm)         # (nm, 10)
    return out[:N]


# Pure-JAX reference (mirrors the PyTorch forward in eval mode) for validation.
def big_forward_reference(x_nchw, p):
    def conv(x, w_oihw, bias):
        y = jax.lax.conv_general_dilated(
            x, w_oihw, window_strides=(1, 1), padding=((1, 1), (1, 1)),
            dimension_numbers=("NCHW", "OIHW", "NCHW"))
        return y + bias[None, :, None, None]

    def pool(x):
        return jax.lax.reduce_window(x, -jnp.inf, jax.lax.max,
                                     (1, 1, 2, 2), (1, 1, 2, 2), "VALID")

    x = pool(jnp.maximum(conv(x_nchw, p["w1_oihw"], p["b1"]), 0.0))
    x = pool(jnp.maximum(conv(x, p["w2_oihw"], p["b2"]), 0.0))
    x = x.reshape(x.shape[0], -1)
    x = jnp.maximum(x @ p["fw1"].T + p["fb1"], 0.0)
    return x @ p["fw2"].T + p["fb2"]


def init_params(key):
    ks = jax.random.split(key, 8)

    def uni(k, shape, fan_in):
        bound = 1.0 / np.sqrt(fan_in)
        return jax.random.uniform(k, shape, jnp.float32, -bound, bound)

    w1_oihw = uni(ks[0], (32, 1, 3, 3), 1 * 9)
    b1 = uni(ks[1], (32,), 1 * 9)
    w2_oihw = uni(ks[2], (64, 32, 3, 3), 32 * 9)
    b2 = uni(ks[3], (64,), 32 * 9)
    fw1 = uni(ks[4], (128, 64 * 7 * 7), 64 * 7 * 7)
    fb1 = uni(ks[5], (128,), 64 * 7 * 7)
    fw2 = uni(ks[6], (10, 128), 128)
    fb2 = uni(ks[7], (10,), 128)
    return {
        "w1_oihw": w1_oihw, "w1_hwio": jnp.transpose(w1_oihw, (2, 3, 1, 0)), "b1": b1,
        "w2_oihw": w2_oihw, "w2_hwio": jnp.transpose(w2_oihw, (2, 3, 1, 0)), "b2": b2,
        "fw1": fw1, "fb1": fb1, "fw2": fw2, "fb2": fb2,
    }


if __name__ == "__main__":
    key = jax.random.PRNGKey(0)
    pkey, xkey = jax.random.split(key)
    params = init_params(pkey)
    # Input shape implied by fc1 = Linear(64*7*7, 128): 1x28x28 images.
    x = jax.random.normal(xkey, (2, 1, 28, 28), jnp.float32)

    out = big_forward_pallas(x, params)
    out = jax.block_until_ready(out)

    ref = jax.block_until_ready(big_forward_reference(x, params))
    assert out.shape == (2, 10) and out.dtype == jnp.float32
    np.testing.assert_allclose(np.asarray(out), np.asarray(ref), rtol=2e-3, atol=2e-3)
    print("KERNEL_OK")
</pallas_src>

<mosaic_0001>
module attributes {stable_mosaic.version = 11 : i64} {
  func.func @_conv_tower_kernel(%arg0: i32, %arg1: memref<2x784x9xf32, #tpu.memory_space<vmem>>, %arg2: memref<9x32xf32, #tpu.memory_space<vmem>>, %arg3: memref<1x32xf32, #tpu.memory_space<vmem>>, %arg4: memref<288x64xf32, #tpu.memory_space<vmem>>, %arg5: memref<1x64xf32, #tpu.memory_space<vmem>>, %arg6: memref<2x7x7x64xf32, #tpu.memory_space<vmem>>, %arg7: memref<264x32xf32, #tpu.memory_space<vmem>>, %arg8: memref<784x32xf32, #tpu.memory_space<vmem>>, %arg9: memref<224x64xf32, #tpu.memory_space<vmem>>, %arg10: memref<28x32xf32, #tpu.memory_space<vmem>>, %arg11: memref<14x64xf32, #tpu.memory_space<vmem>>) attributes {dimension_semantics = [#tpu.dimension_semantics<parallel>], iteration_bounds = array<i64: 1>, scalar_prefetch = 0 : i64, scratch_operands = 5 : i64, tpu.core_type = #tpu.core_type<tc>, window_params = [{transform_indices = @transform_0, window_bounds = array<i64: 2, 784, 9>}, {pipeline_mode = #tpu.pipeline_mode<synchronous>, transform_indices = @transform_1, window_bounds = array<i64: 9, 32>}, {pipeline_mode = #tpu.pipeline_mode<synchronous>, transform_indices = @transform_2, window_bounds = array<i64: 1, 32>}, {pipeline_mode = #tpu.pipeline_mode<synchronous>, transform_indices = @transform_3, window_bounds = array<i64: 288, 64>}, {pipeline_mode = #tpu.pipeline_mode<synchronous>, transform_indices = @transform_4, window_bounds = array<i64: 1, 64>}, {transform_indices = @transform_5, window_bounds = array<i64: 2, 7, 7, 64>}]} {
    %c0 = arith.constant 0 : index
    %c0_0 = arith.constant 0 : index
    %0 = vector.load %arg2[%c0, %c0_0] : memref<9x32xf32, #tpu.memory_space<vmem>>, vector<9x32xf32>
    %c0_1 = arith.constant 0 : index
    %c0_2 = arith.constant 0 : index
    %1 = vector.load %arg3[%c0_1, %c0_2] : memref<1x32xf32, #tpu.memory_space<vmem>>, vector<1x32xf32>
    %c0_3 = arith.constant 0 : index
    %c0_4 = arith.constant 0 : index
    %2 = vector.load %arg4[%c0_3, %c0_4] : memref<288x64xf32, #tpu.memory_space<vmem>>, vector<288x64xf32>
    %c0_5 = arith.constant 0 : index
    %c0_6 = arith.constant 0 : index
    %3 = vector.load %arg5[%c0_5, %c0_6] : memref<1x64xf32, #tpu.memory_space<vmem>>, vector<1x64xf32>
    %cst = arith.constant 0.000000e+00 : f32
    %4 = vector.broadcast %cst : f32 to vector<264x32xf32>
    %c0_7 = arith.constant 0 : index
    %c0_8 = arith.constant 0 : index
    %5 = vector.load %arg7[%c0_7, %c0_8] : memref<264x32xf32, #tpu.memory_space<vmem>>, vector<264x32xf32>
    tpu.vector_store %arg7[%c0_7, %c0_8], %4 {strides = array<i32>} : memref<264x32xf32, #tpu.memory_space<vmem>>, vector<264x32xf32>,
    %c0_9 = arith.constant 0 : index
    %c0_10 = arith.constant 0 : index
    %c0_11 = arith.constant 0 : index
    %6 = vector.load %arg1[%c0_9, %c0_10, %c0_11] : memref<2x784x9xf32, #tpu.memory_space<vmem>>, vector<1x784x9xf32>
    %7 = vector.shape_cast %6 : vector<1x784x9xf32> to vector<784x9xf32>
    %cst_12 = arith.constant dense<0.000000e+00> : vector<784x32xf32>
    %8 = tpu.matmul %7, %0, %cst_12 {dimension_numbers = #tpu.dot_dimension_numbers<[1], [0], [0], [1], [0, 0, 1, 1], [], []>} : vector<784x9xf32>, vector<9x32xf32>, vector<784x32xf32> -> vector<784x32xf32>
    %c0_13 = arith.constant 0 : index
    %c0_14 = arith.constant 0 : index
    %9 = vector.load %arg8[%c0_13, %c0_14] : memref<784x32xf32, #tpu.memory_space<vmem>>, vector<784x32xf32>
    tpu.vector_store %arg8[%c0_13, %c0_14], %8 {strides = array<i32>} : memref<784x32xf32, #tpu.memory_space<vmem>>, vector<784x32xf32>,
    %c0_15 = arith.constant 0 : index
    %c0_16 = arith.constant 0 : index
    %10 = vector.load %arg8[%c0_15, %c0_16] : memref<784x32xf32, #tpu.memory_space<vmem>>, vector<28x32xf32>
    %c28 = arith.constant 28 : index
    %c0_17 = arith.constant 0 : index
    %11 = vector.load %arg8[%c28, %c0_17] : memref<784x32xf32, #tpu.memory_space<vmem>>, vector<28x32xf32>
    %12 = arith.maximumf %10, %11 : vector<28x32xf32>
    %c0_18 = arith.constant 0 : index
    %c0_19 = arith.constant 0 : index
    %13 = vector.load %arg10[%c0_18, %c0_19] : memref<28x32xf32, #tpu.memory_space<vmem>>, vector<28x32xf32>
    tpu.vector_store %arg10[%c0_18, %c0_19], %12 {strides = array<i32>} : memref<28x32xf32, #tpu.memory_space<vmem>>, vector<28x32xf32>,
    %c0_20 = arith.constant 0 : index
    %c0_21 = arith.constant 0 : index
    %14 = tpu.strided_load %arg10[%c0_20, %c0_21] {strides = array<i32: 2, 1>} : memref<28x32xf32, #tpu.memory_space<vmem>>, vector<14x32xf32>
    %c1 = arith.constant 1 : index
    %c0_22 = arith.constant 0 : index
    %15 = tpu.strided_load %arg10[%c1, %c0_22] {strides = array<i32: 2, 1>} : memref<28x32xf32, #tpu.memory_space<vmem>>, vector<14x32xf32>
    %16 = arith.maximumf %14, %15 : vector<14x32xf32>
    %17 = vector.broadcast %1 : vector<1x32xf32> to vector<14x32xf32>
    %18 = arith.addf %16, %17 : vector<14x32xf32>
    %cst_23 = arith.constant 0.000000e+00 : f32
    %19 = vector.broadcast %cst_23 : f32 to vector<14x32xf32>
    %20 = arith.maximumf %18, %19 : vector<14x32xf32>
    %c17 = arith.constant 17 : index
    %c0_24 = arith.constant 0 : index
    %21 = vector.load %arg7[%c17, %c0_24] : memref<264x32xf32, #tpu.memory_space<vmem>>, vector<14x32xf32>
    tpu.vector_store %arg7[%c17, %c0_24], %20 {strides = array<i32>} : memref<264x32xf32, #tpu.memory_space<vmem>>, vector<14x32xf32>,
    %c56 = arith.constant 56 : index
    %c0_25 = arith.constant 0 : index
    %22 = vector.load %arg8[%c56, %c0_25] : memref<784x32xf32, #tpu.memory_space<vmem>>, vector<28x32xf32>
    %c84 = arith.constant 84 : index
    %c0_26 = arith.constant 0 : index
    %23 = vector.load %arg8[%c84, %c0_26] : memref<784x32xf32, #tpu.memory_space<vmem>>, vector<28x32xf32>
    %24 = arith.maximumf %22, %23 : vector<28x32xf32>
    %c0_27 = arith.constant 0 : index
    %c0_28 = arith.constant 0 : index
    %25 = vector.load %arg10[%c0_27, %c0_28] : memref<28x32xf32, #tpu.memory_space<vmem>>, vector<28x32xf32>
    tpu.vector_store %arg10[%c0_27, %c0_28], %24 {strides = array<i32>} : memref<28x32xf32, #tpu.memory_space<vmem>>, vector<28x32xf32>,
    %c0_29 = arith.constant 0 : index
    %c0_30 = arith.constant 0 : index
    %26 = tpu.strided_load %arg10[%c0_29, %c0_30] {strides = array<i32: 2, 1>} : memref<28x32xf32, #tpu.memory_space<vmem>>, vector<14x32xf32>
    %c1_31 = arith.constant 1 : index
    %c0_32 = arith.constant 0 : index
    %27 = tpu.strided_load %arg10[%c1_31, %c0_32] {strides = array<i32: 2, 1>} : memref<28x32xf32, #tpu.memory_space<vmem>>, vector<14x32xf32>
    %28 = arith.maximumf %26, %27 : vector<14x32xf32>
    %29 = vector.broadcast %1 : vector<1x32xf32> to vector<14x32xf32>
    %30 = arith.addf %28, %29 : vector<14x32xf32>
    %cst_33 = arith.constant 0.000000e+00 : f32
    %31 = vector.broadcast %cst_33 : f32 to vector<14x32xf32>
    %32 = arith.maximumf %30, %31 : vector<14x32xf32>
    %c33 = arith.constant 33 : index
    %c0_34 = arith.constant 0 : index
    %33 = vector.load %arg7[%c33, %c0_34] : memref<264x32xf32, #tpu.memory_space<vmem>>, vector<14x32xf32>
    tpu.vector_store %arg7[%c33, %c0_34], %32 {strides = array<i32>} : memref<264x32xf32, #tpu.memory_space<vmem>>, vector<14x32xf32>,
    %c112 = arith.constant 112 : index
    %c0_35 = arith.constant 0 : index
    %34 = vector.load %arg8[%c112, %c0_35] : memref<784x32xf32, #tpu.memory_space<vmem>>, vector<28x32xf32>
    %c140 = arith.constant 140 : index
    %c0_36 = arith.constant 0 : index
    %35 = vector.load %arg8[%c140, %c0_36] : memref<784x32xf32, #tpu.memory_space<vmem>>, vector<28x32xf32>
    %36 = arith.maximumf %34, %35 : vector<28x32xf32>
    %c0_37 = arith.constant 0 : index
    %c0_38 = arith.constant 0 : index
    %37 = vector.load %arg10[%c0_37, %c0_38] : memref<28x32xf32, #tpu.memory_space<vmem>>, vector<28x32xf32>
    tpu.vector_store %arg10[%c0_37, %c0_38], %36 {strides = array<i32>} : memref<28x32xf32, #tpu.memory_space<vmem>>, vector<28x32xf32>,
    %c0_39 = arith.constant 0 : index
    %c0_40 = arith.constant 0 : index
    %38 = tpu.strided_load %arg10[%c0_39, %c0_40] {strides = array<i32: 2, 1>} : memref<28x32xf32, #tpu.memory_space<vmem>>, vector<14x32xf32>
    %c1_41 = arith.constant 1 : index
    %c0_42 = arith.constant 0 : index
    %39 = tpu.strided_load %arg10[%c1_41, %c0_42] {strides = array<i32: 2, 1>} : memref<28x32xf32, #tpu.memory_space<vmem>>, vector<14x32xf32>
    %40 = arith.maximumf %38, %39 : vector<14x32xf32>
    %41 = vector.broadcast %1 : vector<1x32xf32> to vector<14x32xf32>
    %42 = arith.addf %40, %41 : vector<14x32xf32>
    %cst_43 = arith.constant 0.000000e+00 : f32
    %43 = vector.broadcast %cst_43 : f32 to vector<14x32xf32>
    %44 = arith.maximumf %42, %43 : vector<14x32xf32>
    %c49 = arith.constant 49 : index
    %c0_44 = arith.constant 0 : index
    %45 = vector.load %arg7[%c49, %c0_44] : memref<264x32xf32, #tpu.memory_space<vmem>>, vector<14x32xf32>
    tpu.vector_store %arg7[%c49, %c0_44], %44 {strides = array<i32>} : memref<264x32xf32, #tpu.memory_space<vmem>>, vector<14x32xf32>,
    %c168 = arith.constant 168 : index
    %c0_45 = arith.constant 0 : index
    %46 = vector.load %arg8[%c168, %c0_45] : memref<784x32xf32, #tpu.memory_space<vmem>>, vector<28x32xf32>
    %c196 = arith.constant 196 : index
    %c0_46 = arith.constant 0 : index
    %47 = vector.load %arg8[%c196, %c0_46] : memref<784x32xf32, #tpu.memory_space<vmem>>, vector<28x32xf32>
    %48 = arith.maximumf %46, %47 : vector<28x32xf32>
    %c0_47 = arith.constant 0 : index
    %c0_48 = arith.constant 0 : index
    %49 = vector.load %arg10[%c0_47, %c0_48] : memref<28x32xf32, #tpu.memory_space<vmem>>, vector<28x32xf32>
    tpu.vector_store %arg10[%c0_47, %c0_48], %48 {strides = array<i32>} : memref<28x32xf32, #tpu.memory_space<vmem>>, vector<28x32xf32>,
    %c0_49 = arith.constant 0 : index
    %c0_50 = arith.constant 0 : index
    %50 = tpu.strided_load %arg10[%c0_49, %c0_50] {strides = array<i32: 2, 1>} : memref<28x32xf32, #tpu.memory_space<vmem>>, vector<14x32xf32>
    %c1_51 = arith.constant 1 : index
    %c0_52 = arith.constant 0 : index
    %51 = tpu.strided_load %arg10[%c1_51, %c0_52] {strides = array<i32: 2, 1>} : memref<28x32xf32, #tpu.memory_space<vmem>>, vector<14x32xf32>
    %52 = arith.maximumf %50, %51 : vector<14x32xf32>
    %53 = vector.broadcast %1 : vector<1x32xf32> to vector<14x32xf32>
    %54 = arith.addf %52, %53 : vector<14x32xf32>
    %cst_53 = arith.constant 0.000000e+00 : f32
    %55 = vector.broadcast %cst_53 : f32 to vector<14x32xf32>
    %56 = arith.maximumf %54, %55 : vector<14x32xf32>
    %c65 = arith.constant 65 : index
    %c0_54 = arith.constant 0 : index
    %57 = vector.load %arg7[%c65, %c0_54] : memref<264x32xf32, #tpu.memory_space<vmem>>, vector<14x32xf32>
    tpu.vector_store %arg7[%c65, %c0_54], %56 {strides = array<i32>} : memref<264x32xf32, #tpu.memory_space<vmem>>, vector<14x32xf32>,
    %c224 = arith.constant 224 : index
    %c0_55 = arith.constant 0 : index
    %58 = vector.load %arg8[%c224, %c0_55] : memref<784x32xf32, #tpu.memory_space<vmem>>, vector<28x32xf32>
    %c252 = arith.constant 252 : index
    %c0_56 = arith.constant 0 : index
    %59 = vector.load %arg8[%c252, %c0_56] : memref<784x32xf32, #tpu.memory_space<vmem>>, vector<28x32xf32>
    %60 = arith.maximumf %58, %59 : vector<28x32xf32>
    %c0_57 = arith.constant 0 : index
    %c0_58 = arith.constant 0 : index
    %61 = vector.load %arg10[%c0_57, %c0_58] : memref<28x32xf32, #tpu.memory_space<vmem>>, vector<28x32xf32>
    tpu.vector_store %arg10[%c0_57, %c0_58], %60 {strides = array<i32>} : memref<28x32xf32, #tpu.memory_space<vmem>>, vector<28x32xf32>,
    %c0_59 = arith.constant 0 : index
    %c0_60 = arith.constant 0 : index
    %62 = tpu.strided_load %arg10[%c0_59, %c0_60] {strides = array<i32: 2, 1>} : memref<28x32xf32, #tpu.memory_space<vmem>>, vector<14x32xf32>
    %c1_61 = arith.constant 1 : index
    %c0_62 = arith.constant 0 : index
    %63 = tpu.strided_load %arg10[%c1_61, %c0_62] {strides = array<i32: 2, 1>} : memref<28x32xf32, #tpu.memory_space<vmem>>, vector<14x32xf32>
    %64 = arith.maximumf %62, %63 : vector<14x32xf32>
    %65 = vector.broadcast %1 : vector<1x32xf32> to vector<14x32xf32>
    %66 = arith.addf %64, %65 : vector<14x32xf32>
    %cst_63 = arith.constant 0.000000e+00 : f32
    %67 = vector.broadcast %cst_63 : f32 to vector<14x32xf32>
    %68 = arith.maximumf %66, %67 : vector<14x32xf32>
    %c81 = arith.constant 81 : index
    %c0_64 = arith.constant 0 : index
    %69 = vector.load %arg7[%c81, %c0_64] : memref<264x32xf32, #tpu.memory_space<vmem>>, vector<14x32xf32>
    tpu.vector_store %arg7[%c81, %c0_64], %68 {strides = array<i32>} : memref<264x32xf32, #tpu.memory_space<vmem>>, vector<14x32xf32>,
    %c280 = arith.constant 280 : index
    %c0_65 = arith.constant 0 : index
    %70 = vector.load %arg8[%c280, %c0_65] : memref<784x32xf32, #tpu.memory_space<vmem>>, vector<28x32xf32>
    %c308 = arith.constant 308 : index
    %c0_66 = arith.constant 0 : index
    %71 = vector.load %arg8[%c308, %c0_66] : memref<784x32xf32, #tpu.memory_space<vmem>>, vector<28x32xf32>
    %72 = arith.maximumf %70, %71 : vector<28x32xf32>
    %c0_67 = arith.constant 0 : index
    %c0_68 = arith.constant 0 : index
    %73 = vector.load %arg10[%c0_67, %c0_68] : memref<28x32xf32, #tpu.memory_space<vmem>>, vector<28x32xf32>
    tpu.vector_store %arg10[%c0_67, %c0_68], %72 {strides = array<i32>} : memref<28x32xf32, #tpu.memory_space<vmem>>, vector<28x32xf32>,
    %c0_69 = arith.constant 0 : index
    %c0_70 = arith.constant 0 : index
    %74 = tpu.strided_load %arg10[%c0_69, %c0_70] {strides = array<i32: 2, 1>} : memref<28x32xf32, #tpu.memory_space<vmem>>, vector<14x32xf32>
    %c1_71 = arith.constant 1 : index
    %c0_72 = arith.constant 0 : index
    %75 = tpu.strided_load %arg10[%c1_71, %c0_72] {strides = array<i32: 2, 1>} : memref<28x32xf32, #tpu.memory_space<vmem>>, vector<14x32xf32>
    %76 = arith.maximumf %74, %75 : vector<14x32xf32>
    %77 = vector.broadcast %1 : vector<1x32xf32> to vector<14x32xf32>
    %78 = arith.addf %76, %77 : vector<14x32xf32>
    %cst_73 = arith.constant 0.000000e+00 : f32
    %79 = vector.broadcast %cst_73 : f32 to vector<14x32xf32>
    %80 = arith.maximumf %78, %79 : vector<14x32xf32>
    %c97 = arith.constant 97 : index
    %c0_74 = arith.constant 0 : index
    %81 = vector.load %arg7[%c97, %c0_74] : memref<264x32xf32, #tpu.memory_space<vmem>>, vector<14x32xf32>
    tpu.vector_store %arg7[%c97, %c0_74], %80 {strides = array<i32>} : memref<264x32xf32, #tpu.memory_space<vmem>>, vector<14x32xf32>,
    %c336 = arith.constant 336 : index
    %c0_75 = arith.constant 0 : index
    %82 = vector.load %arg8[%c336, %c0_75] : memref<784x32xf32, #tpu.memory_space<vmem>>, vector<28x32xf32>
    %c364 = arith.constant 364 : index
    %c0_76 = arith.constant 0 : index
    %83 = vector.load %arg8[%c364, %c0_76] : memref<784x32xf32, #tpu.memory_space<vmem>>, vector<28x32xf32>
    %84 = arith.maximumf %82, %83 : vector<28x32xf32>
    %c0_77 = arith.constant 0 : index
    %c0_78 = arith.constant 0 : index
    %85 = vector.load %arg10[%c0_77, %c0_78] : memref<28x32xf32, #tpu.memory_space<vmem>>, vector<28x32xf32>
    tpu.vector_store %arg10[%c0_77, %c0_78], %84 {strides = array<i32>} : memref<28x32xf32, #tpu.memory_space<vmem>>, vector<28x32xf32>,
    %c0_79 = arith.constant 0 : index
    %c0_80 = arith.constant 0 : index
    %86 = tpu.strided_load %arg10[%c0_79, %c0_80] {strides = array<i32: 2, 1>} : memref<28x32xf32, #tpu.memory_space<vmem>>, vector<14x32xf32>
    %c1_81 = arith.constant 1 : index
    %c0_82 = arith.constant 0 : index
    %87 = tpu.strided_load %arg10[%c1_81, %c0_82] {strides = array<i32: 2, 1>} : memref<28x32xf32, #tpu.memory_space<vmem>>, vector<14x32xf32>
    %88 = arith.maximumf %86, %87 : vector<14x32xf32>
    %89 = vector.broadcast %1 : vector<1x32xf32> to vector<14x32xf32>
    %90 = arith.addf %88, %89 : vector<14x32xf32>
    %cst_83 = arith.constant 0.000000e+00 : f32
    %91 = vector.broadcast %cst_83 : f32 to vector<14x32xf32>
    %92 = arith.maximumf %90, %91 : vector<14x32xf32>
    %c113 = arith.constant 113 : index
    %c0_84 = arith.constant 0 : index
    %93 = vector.load %arg7[%c113, %c0_84] : memref<264x32xf32, #tpu.memory_space<vmem>>, vector<14x32xf32>
    tpu.vector_store %arg7[%c113, %c0_84], %92 {strides = array<i32>} : memref<264x32xf32, #tpu.memory_space<vmem>>, vector<14x32xf32>,
    %c392 = arith.constant 392 : index
    %c0_85 = arith.constant 0 : index
    %94 = vector.load %arg8[%c392, %c0_85] : memref<784x32xf32, #tpu.memory_space<vmem>>, vector<28x32xf32>
    %c420 = arith.constant 420 : index
    %c0_86 = arith.constant 0 : index
    %95 = vector.load %arg8[%c420, %c0_86] : memref<784x32xf32, #tpu.memory_space<vmem>>, vector<28x32xf32>
    %96 = arith.maximumf %94, %95 : vector<28x32xf32>
    %c0_87 = arith.constant 0 : index
    %c0_88 = arith.constant 0 : index
    %97 = vector.load %arg10[%c0_87, %c0_88] : memref<28x32xf32, #tpu.memory_space<vmem>>, vector<28x32xf32>
    tpu.vector_store %arg10[%c0_87, %c0_88], %96 {strides = array<i32>} : memref<28x32xf32, #tpu.memory_space<vmem>>, vector<28x32xf32>,
    %c0_89 = arith.constant 0 : index
    %c0_90 = arith.constant 0 : index
    %98 = tpu.strided_load %arg10[%c0_89, %c0_90] {strides = array<i32: 2, 1>} : memref<28x32xf32, #tpu.memory_space<vmem>>, vector<14x32xf32>
    %c1_91 = arith.constant 1 : index
    %c0_92 = arith.constant 0 : index
    %99 = tpu.strided_load %arg10[%c1_91, %c0_92] {strides = array<i32: 2, 1>} : memref<28x32xf32, #tpu.memory_space<vmem>>, vector<14x32xf32>
    %100 = arith.maximumf %98, %99 : vector<14x32xf32>
    %101 = vector.broadcast %1 : vector<1x32xf32> to vector<14x32xf32>
    %102 = arith.addf %100, %101 : vector<14x32xf32>
    %cst_93 = arith.constant 0.000000e+00 : f32
    %103 = vector.broadcast %cst_93 : f32 to vector<14x32xf32>
    %104 = arith.maximumf %102, %103 : vector<14x32xf32>
    %c129 = arith.constant 129 : index
    %c0_94 = arith.constant 0 : index
    %105 = vector.load %arg7[%c129, %c0_94] : memref<264x32xf32, #tpu.memory_space<vmem>>, vector<14x32xf32>
    tpu.vector_store %arg7[%c129, %c0_94], %104 {strides = array<i32>} : memref<264x32xf32, #tpu.memory_space<vmem>>, vector<14x32xf32>,
    %c448 = arith.constant 448 : index
    %c0_95 = arith.constant 0 : index
    %106 = vector.load %arg8[%c448, %c0_95] : memref<784x32xf32, #tpu.memory_space<vmem>>, vector<28x32xf32>
    %c476 = arith.constant 476 : index
    %c0_96 = arith.constant 0 : index
    %107 = vector.load %arg8[%c476, %c0_96] : memref<784x32xf32, #tpu.memory_space<vmem>>, vector<28x32xf32>
    %108 = arith.maximumf %106, %107 : vector<28x32xf32>
    %c0_97 = arith.constant 0 : index
    %c0_98 = arith.constant 0 : index
    %109 = vector.load %arg10[%c0_97, %c0_98] : memref<28x32xf32, #tpu.memory_space<vmem>>, vector<28x32xf32>
    tpu.vector_store %arg10[%c0_97, %c0_98], %108 {strides = array<i32>} : memref<28x32xf32, #tpu.memory_space<vmem>>, vector<28x32xf32>,
    %c0_99 = arith.constant 0 : index
    %c0_100 = arith.constant 0 : index
    %110 = tpu.strided_load %arg10[%c0_99, %c0_100] {strides = array<i32: 2, 1>} : memref<28x32xf32, #tpu.memory_space<vmem>>, vector<14x32xf32>
    %c1_101 = arith.constant 1 : index
    %c0_102 = arith.constant 0 : index
    %111 = tpu.strided_load %arg10[%c1_101, %c0_102] {strides = array<i32: 2, 1>} : memref<28x32xf32, #tpu.memory_space<vmem>>, vector<14x32xf32>
    %112 = arith.maximumf %110, %111 : vector<14x32xf32>
    %113 = vector.broadcast %1 : vector<1x32xf32> to vector<14x32xf32>
    %114 = arith.addf %112, %113 : vector<14x32xf32>
    %cst_103 = arith.constant 0.000000e+00 : f32
    %115 = vector.broadcast %cst_103 : f32 to vector<14x32xf32>
    %116 = arith.maximumf %114, %115 : vector<14x32xf32>
    %c145 = arith.constant 145 : index
    %c0_104 = arith.constant 0 : index
    %117 = vector.load %arg7[%c145, %c0_104] : memref<264x32xf32, #tpu.memory_space<vmem>>, vector<14x32xf32>
    tpu.vector_store %arg7[%c145, %c0_104], %116 {strides = array<i32>} : memref<264x32xf32, #tpu.memory_space<vmem>>, vector<14x32xf32>,
    %c504 = arith.constant 504 : index
    %c0_105 = arith.constant 0 : index
    %118 = vector.load %arg8[%c504, %c0_105] : memref<784x32xf32, #tpu.memory_space<vmem>>, vector<28x32xf32>
    %c532 = arith.constant 532 : index
    %c0_106 = arith.constant 0 : index
    %119 = vector.load %arg8[%c532, %c0_106] : memref<784x32xf32, #tpu.memory_space<vmem>>, vector<28x32xf32>
    %120 = arith.maximumf %118, %119 : vector<28x32xf32>
    %c0_107 = arith.constant 0 : index
    %c0_108 = arith.constant 0 : index
    %121 = vector.load %arg10[%c0_107, %c0_108] : memref<28x32xf32, #tpu.memory_space<vmem>>, vector<28x32xf32>
    tpu.vector_store %arg10[%c0_107, %c0_108], %120 {strides = array<i32>} : memref<28x32xf32, #tpu.memory_space<vmem>>, vector<28x32xf32>,
    %c0_109 = arith.constant 0 : index
    %c0_110 = arith.constant 0 : index
    %122 = tpu.strided_load %arg10[%c0_109, %c0_110] {strides = array<i32: 2, 1>} : memref<28x32xf32, #tpu.memory_space<vmem>>, vector<14x32xf32>
    %c1_111 = arith.constant 1 : index
    %c0_112 = arith.constant 0 : index
    %123 = tpu.strided_load %arg10[%c1_111, %c0_112] {strides = array<i32: 2, 1>} : memref<28x32xf32, #tpu.memory_space<vmem>>, vector<14x32xf32>
    %124 = arith.maximumf %122, %123 : vector<14x32xf32>
    %125 = vector.broadcast %1 : vector<1x32xf32> to vector<14x32xf32>
    %126 = arith.addf %124, %125 : vector<14x32xf32>
    %cst_113 = arith.constant 0.000000e+00 : f32
    %127 = vector.broadcast %cst_113 : f32 to vector<14x32xf32>
    %128 = arith.maximumf %126, %127 : vector<14x32xf32>
    %c161 = arith.constant 161 : index
    %c0_114 = arith.constant 0 : index
    %129 = vector.load %arg7[%c161, %c0_114] : memref<264x32xf32, #tpu.memory_space<vmem>>, vector<14x32xf32>
    tpu.vector_store %arg7[%c161, %c0_114], %128 {strides = array<i32>} : memref<264x32xf32, #tpu.memory_space<vmem>>, vector<14x32xf32>,
    %c560 = arith.constant 560 : index
    %c0_115 = arith.constant 0 : index
    %130 = vector.load %arg8[%c560, %c0_115] : memref<784x32xf32, #tpu.memory_space<vmem>>, vector<28x32xf32>
    %c588 = arith.constant 588 : index
    %c0_116 = arith.constant 0 : index
    %131 = vector.load %arg8[%c588, %c0_116] : memref<784x32xf32, #tpu.memory_space<vmem>>, vector<28x32xf32>
    %132 = arith.maximumf %130, %131 : vector<28x32xf32>
    %c0_117 = arith.constant 0 : index
    %c0_118 = arith.constant 0 : index
    %133 = vector.load %arg10[%c0_117, %c0_118] : memref<28x32xf32, #tpu.memory_space<vmem>>, vector<28x32xf32>
    tpu.vector_store %arg10[%c0_117, %c0_118], %132 {strides = array<i32>} : memref<28x32xf32, #tpu.memory_space<vmem>>, vector<28x32xf32>,
    %c0_119 = arith.constant 0 : index
    %c0_120 = arith.constant 0 : index
    %134 = tpu.strided_load %arg10[%c0_119, %c0_120] {strides = array<i32: 2, 1>} : memref<28x32xf32, #tpu.memory_space<vmem>>, vector<14x32xf32>
    %c1_121 = arith.constant 1 : index
    %c0_122 = arith.constant 0 : index
    %135 = tpu.strided_load %arg10[%c1_121, %c0_122] {strides = array<i32: 2, 1>} : memref<28x32xf32, #tpu.memory_space<vmem>>, vector<14x32xf32>
    %136 = arith.maximumf %134, %135 : vector<14x32xf32>
    %137 = vector.broadcast %1 : vector<1x32xf32> to vector<14x32xf32>
    %138 = arith.addf %136, %137 : vector<14x32xf32>
    %cst_123 = arith.constant 0.000000e+00 : f32
    %139 = vector.broadcast %cst_123 : f32 to vector<14x32xf32>
    %140 = arith.maximumf %138, %139 : vector<14x32xf32>
    %c177 = arith.constant 177 : index
    %c0_124 = arith.constant 0 : index
    %141 = vector.load %arg7[%c177, %c0_124] : memref<264x32xf32, #tpu.memory_space<vmem>>, vector<14x32xf32>
    tpu.vector_store %arg7[%c177, %c0_124], %140 {strides = array<i32>} : memref<264x32xf32, #tpu.memory_space<vmem>>, vector<14x32xf32>,
    %c616 = arith.constant 616 : index
    %c0_125 = arith.constant 0 : index
    %142 = vector.load %arg8[%c616, %c0_125] : memref<784x32xf32, #tpu.memory_space<vmem>>, vector<28x32xf32>
    %c644 = arith.constant 644 : index
    %c0_126 = arith.constant 0 : index
    %143 = vector.load %arg8[%c644, %c0_126] : memref<784x32xf32, #tpu.memory_space<vmem>>, vector<28x32xf32>
    %144 = arith.maximumf %142, %143 : vector<28x32xf32>
    %c0_127 = arith.constant 0 : index
    %c0_128 = arith.constant 0 : index
    %145 = vector.load %arg10[%c0_127, %c0_128] : memref<28x32xf32, #tpu.memory_space<vmem>>, vector<28x32xf32>
    tpu.vector_store %arg10[%c0_127, %c0_128], %144 {strides = array<i32>} : memref<28x32xf32, #tpu.memory_space<vmem>>, vector<28x32xf32>,
    %c0_129 = arith.constant 0 : index
    %c0_130 = arith.constant 0 : index
    %146 = tpu.strided_load %arg10[%c0_129, %c0_130] {strides = array<i32: 2, 1>} : memref<28x32xf32, #tpu.memory_space<vmem>>, vector<14x32xf32>
    %c1_131 = arith.constant 1 : index
    %c0_132 = arith.constant 0 : index
    %147 = tpu.strided_load %arg10[%c1_131, %c0_132] {strides = array<i32: 2, 1>} : memref<28x32xf32, #tpu.memory_space<vmem>>, vector<14x32xf32>
    %148 = arith.maximumf %146, %147 : vector<14x32xf32>
    %149 = vector.broadcast %1 : vector<1x32xf32> to vector<14x32xf32>
    %150 = arith.addf %148, %149 : vector<14x32xf32>
    %cst_133 = arith.constant 0.000000e+00 : f32
    %151 = vector.broadcast %cst_133 : f32 to vector<14x32xf32>
    %152 = arith.maximumf %150, %151 : vector<14x32xf32>
    %c193 = arith.constant 193 : index
    %c0_134 = arith.constant 0 : index
    %153 = vector.load %arg7[%c193, %c0_134] : memref<264x32xf32, #tpu.memory_space<vmem>>, vector<14x32xf32>
    tpu.vector_store %arg7[%c193, %c0_134], %152 {strides = array<i32>} : memref<264x32xf32, #tpu.memory_space<vmem>>, vector<14x32xf32>,
    %c672 = arith.constant 672 : index
    %c0_135 = arith.constant 0 : index
    %154 = vector.load %arg8[%c672, %c0_135] : memref<784x32xf32, #tpu.memory_space<vmem>>, vector<28x32xf32>
    %c700 = arith.constant 700 : index
    %c0_136 = arith.constant 0 : index
    %155 = vector.load %arg8[%c700, %c0_136] : memref<784x32xf32, #tpu.memory_space<vmem>>, vector<28x32xf32>
    %156 = arith.maximumf %154, %155 : vector<28x32xf32>
    %c0_137 = arith.constant 0 : index
    %c0_138 = arith.constant 0 : index
    %157 = vector.load %arg10[%c0_137, %c0_138] : memref<28x32xf32, #tpu.memory_space<vmem>>, vector<28x32xf32>
    tpu.vector_store %arg10[%c0_137, %c0_138], %156 {strides = array<i32>} : memref<28x32xf32, #tpu.memory_space<vmem>>, vector<28x32xf32>,
    %c0_139 = arith.constant 0 : index
    %c0_140 = arith.constant 0 : index
    %158 = tpu.strided_load %arg10[%c0_139, %c0_140] {strides = array<i32: 2, 1>} : memref<28x32xf32, #tpu.memory_space<vmem>>, vector<14x32xf32>
    %c1_141 = arith.constant 1 : index
    %c0_142 = arith.constant 0 : index
    %159 = tpu.strided_load %arg10[%c1_141, %c0_142] {strides = array<i32: 2, 1>} : memref<28x32xf32, #tpu.memory_space<vmem>>, vector<14x32xf32>
    %160 = arith.maximumf %158, %159 : vector<14x32xf32>
    %161 = vector.broadcast %1 : vector<1x32xf32> to vector<14x32xf32>
    %162 = arith.addf %160, %161 : vector<14x32xf32>
    %cst_143 = arith.constant 0.000000e+00 : f32
    %163 = vector.broadcast %cst_143 : f32 to vector<14x32xf32>
    %164 = arith.maximumf %162, %163 : vector<14x32xf32>
    %c209 = arith.constant 209 : index
    %c0_144 = arith.constant 0 : index
    %165 = vector.load %arg7[%c209, %c0_144] : memref<264x32xf32, #tpu.memory_space<vmem>>, vector<14x32xf32>
    tpu.vector_store %arg7[%c209, %c0_144], %164 {strides = array<i32>} : memref<264x32xf32, #tpu.memory_space<vmem>>, vector<14x32xf32>,
    %c728 = arith.constant 728 : index
    %c0_145 = arith.constant 0 : index
    %166 = vector.load %arg8[%c728, %c0_145] : memref<784x32xf32, #tpu.memory_space<vmem>>, vector<28x32xf32>
    %c756 = arith.constant 756 : index
    %c0_146 = arith.constant 0 : index
    %167 = vector.load %arg8[%c756, %c0_146] : memref<784x32xf32, #tpu.memory_space<vmem>>, vector<28x32xf32>
    %168 = arith.maximumf %166, %167 : vector<28x32xf32>
    %c0_147 = arith.constant 0 : index
    %c0_148 = arith.constant 0 : index
    %169 = vector.load %arg10[%c0_147, %c0_148] : memref<28x32xf32, #tpu.memory_space<vmem>>, vector<28x32xf32>
    tpu.vector_store %arg10[%c0_147, %c0_148], %168 {strides = array<i32>} : memref<28x32xf32, #tpu.memory_space<vmem>>, vector<28x32xf32>,
    %c0_149 = arith.constant 0 : index
    %c0_150 = arith.constant 0 : index
    %170 = tpu.strided_load %arg10[%c0_149, %c0_150] {strides = array<i32: 2, 1>} : memref<28x32xf32, #tpu.memory_space<vmem>>, vector<14x32xf32>
    %c1_151 = arith.constant 1 : index
    %c0_152 = arith.constant 0 : index
    %171 = tpu.strided_load %arg10[%c1_151, %c0_152] {strides = array<i32: 2, 1>} : memref<28x32xf32, #tpu.memory_space<vmem>>, vector<14x32xf32>
    %172 = arith.maximumf %170, %171 : vector<14x32xf32>
    %173 = vector.broadcast %1 : vector<1x32xf32> to vector<14x32xf32>
    %174 = arith.addf %172, %173 : vector<14x32xf32>
    %cst_153 = arith.constant 0.000000e+00 : f32
    %175 = vector.broadcast %cst_153 : f32 to vector<14x32xf32>
    %176 = arith.maximumf %174, %175 : vector<14x32xf32>
    %c225 = arith.constant 225 : index
    %c0_154 = arith.constant 0 : index
    %177 = vector.load %arg7[%c225, %c0_154] : memref<264x32xf32, #tpu.memory_space<vmem>>, vector<14x32xf32>
    tpu.vector_store %arg7[%c225, %c0_154], %176 {strides = array<i32>} : memref<264x32xf32, #tpu.memory_space<vmem>>, vector<14x32xf32>,
    %c0_155 = arith.constant 0 : index
    %c0_156 = arith.constant 0 : index
    %178 = vector.load %arg7[%c0_155, %c0_156] : memref<264x32xf32, #tpu.memory_space<vmem>>, vector<224x32xf32>
    %c1_157 = arith.constant 1 : index
    %c0_158 = arith.constant 0 : index
    %179 = vector.load %arg7[%c1_157, %c0_158] : memref<264x32xf32, #tpu.memory_space<vmem>>, vector<224x32xf32>
    %c2 = arith.constant 2 : index
    %c0_159 = arith.constant 0 : index
    %180 = vector.load %arg7[%c2, %c0_159] : memref<264x32xf32, #tpu.memory_space<vmem>>, vector<224x32xf32>
    %c16 = arith.constant 16 : index
    %c0_160 = arith.constant 0 : index
    %181 = vector.load %arg7[%c16, %c0_160] : memref<264x32xf32, #tpu.memory_space<vmem>>, vector<224x32xf32>
    %c17_161 = arith.constant 17 : index
    %c0_162 = arith.constant 0 : index
    %182 = vector.load %arg7[%c17_161, %c0_162] : memref<264x32xf32, #tpu.memory_space<vmem>>, vector<224x32xf32>
    %c18 = arith.constant 18 : index
    %c0_163 = arith.constant 0 : index
    %183 = vector.load %arg7[%c18, %c0_163] : memref<264x32xf32, #tpu.memory_space<vmem>>, vector<224x32xf32>
    %c32 = arith.constant 32 : index
    %c0_164 = arith.constant 0 : index
    %184 = vector.load %arg7[%c32, %c0_164] : memref<264x32xf32, #tpu.memory_space<vmem>>, vector<224x32xf32>
    %c33_165 = arith.constant 33 : index
    %c0_166 = arith.constant 0 : index
    %185 = vector.load %arg7[%c33_165, %c0_166] : memref<264x32xf32, #tpu.memory_space<vmem>>, vector<224x32xf32>
    %c34 = arith.constant 34 : index
    %c0_167 = arith.constant 0 : index
    %186 = vector.load %arg7[%c34, %c0_167] : memref<264x32xf32, #tpu.memory_space<vmem>>, vector<224x32xf32>
    %187 = tpu.concatenate %178, %179, %180, %181, %182, %183, %184, %185, %186 in 1 : vector<224x32xf32>, vector<224x32xf32>, vector<224x32xf32>, vector<224x32xf32>, vector<224x32xf32>, vector<224x32xf32>, vector<224x32xf32>, vector<224x32xf32>, vector<224x32xf32> -> vector<224x288xf32>
    %cst_168 = arith.constant dense<0.000000e+00> : vector<224x64xf32>
    %188 = tpu.matmul %187, %2, %cst_168 {dimension_numbers = #tpu.dot_dimension_numbers<[1], [0], [0], [1], [0, 0, 1, 1], [], []>} : vector<224x288xf32>, vector<288x64xf32>, vector<224x64xf32> -> vector<224x64xf32>
    %c0_169 = arith.constant 0 : index
    %c0_170 = arith.constant 0 : index
    %189 = vector.load %arg9[%c0_169, %c0_170] : memref<224x64xf32, #tpu.memory_space<vmem>>, vector<224x64xf32>
    tpu.vector_store %arg9[%c0_169, %c0_170], %188 {strides = array<i32>} : memref<224x64xf32, #tpu.memory_space<vmem>>, vector<224x64xf32>,
    %c0_171 = arith.constant 0 : index
    %c0_172 = arith.constant 0 : index
    %190 = vector.load %arg9[%c0_171, %c0_172] : memref<224x64xf32, #tpu.memory_space<vmem>>, vector<14x64xf32>
    %c16_173 = arith.constant 16 : index
    %c0_174 = arith.constant 0 : index
    %191 = vector.load %arg9[%c16_173, %c0_174] : memref<224x64xf32, #tpu.memory_space<vmem>>, vector<14x64xf32>
    %192 = arith.maximumf %190, %191 : vector<14x64xf32>
    %c0_175 = arith.constant 0 : index
    %c0_176 = arith.constant 0 : index
    %193 = vector.load %arg11[%c0_175, %c0_176] : memref<14x64xf32, #tpu.memory_space<vmem>>, vector<14x64xf32>
    tpu.vector_store %arg11[%c0_175, %c0_176], %192 {strides = array<i32>} : memref<14x64xf32, #tpu.memory_space<vmem>>, vector<14x64xf32>,
    %c0_177 = arith.constant 0 : index
    %c0_178 = arith.constant 0 : index
    %194 = tpu.strided_load %arg11[%c0_177, %c0_178] {strides = array<i32: 2, 1>} : memref<14x64xf32, #tpu.memory_space<vmem>>, vector<7x64xf32>
    %c1_179 = arith.constant 1 : index
    %c0_180 = arith.constant 0 : index
    %195 = tpu.strided_load %arg11[%c1_179, %c0_180] {strides = array<i32: 2, 1>} : memref<14x64xf32, #tpu.memory_space<vmem>>, vector<7x64xf32>
    %196 = arith.maximumf %194, %195 : vector<7x64xf32>
    %197 = vector.broadcast %3 : vector<1x64xf32> to vector<7x64xf32>
    %198 = arith.addf %196, %197 : vector<7x64xf32>
    %cst_181 = arith.constant 0.000000e+00 : f32
    %199 = vector.broadcast %cst_181 : f32 to vector<7x64xf32>
    %200 = arith.maximumf %198, %199 : vector<7x64xf32>
    %c0_182 = arith.constant 0 : index
    %c0_183 = arith.constant 0 : index
    %c0_184 = arith.constant 0 : index
    %c0_185 = arith.constant 0 : index
    %201 = vector.load %arg6[%c0_182, %c0_183, %c0_184, %c0_185] : memref<2x7x7x64xf32, #tpu.memory_space<vmem>>, vector<1x1x7x64xf32>
    %202 = vector.shape_cast %201 : vector<1x1x7x64xf32> to vector<7x64xf32>
    %203 = vector.shape_cast %200 : vector<7x64xf32> to vector<1x1x7x64xf32>
    tpu.vector_store %arg6[%c0_182, %c0_183, %c0_184, %c0_185], %203 {strides = array<i32>} : memref<2x7x7x64xf32, #tpu.memory_space<vmem>>, vector<1x1x7x64xf32>,
    %c32_186 = arith.constant 32 : index
    %c0_187 = arith.constant 0 : index
    %204 = vector.load %arg9[%c32_186, %c0_187] : memref<224x64xf32, #tpu.memory_space<vmem>>, vector<14x64xf32>
    %c48 = arith.constant 48 : index
    %c0_188 = arith.constant 0 : index
    %205 = vector.load %arg9[%c48, %c0_188] : memref<224x64xf32, #tpu.memory_space<vmem>>, vector<14x64xf32>
    %206 = arith.maximumf %204, %205 : vector<14x64xf32>
    %c0_189 = arith.constant 0 : index
    %c0_190 = arith.constant 0 : index
    %207 = vector.load %arg11[%c0_189, %c0_190] : memref<14x64xf32, #tpu.memory_space<vmem>>, vector<14x64xf32>
    tpu.vector_store %arg11[%c0_189, %c0_190], %206 {strides = array<i32>} : memref<14x64xf32, #tpu.memory_space<vmem>>, vector<14x64xf32>,
    %c0_191 = arith.constant 0 : index
    %c0_192 = arith.constant 0 : index
    %208 = tpu.strided_load %arg11[%c0_191, %c0_192] {strides = array<i32: 2, 1>} : memref<14x64xf32, #tpu.memory_space<vmem>>, vector<7x64xf32>
    %c1_193 = arith.constant 1 : index
    %c0_194 = arith.constant 0 : index
    %209 = tpu.strided_load %arg11[%c1_193, %c0_194] {strides = array<i32: 2, 1>} : memref<14x64xf32, #tpu.memory_space<vmem>>, vector<7x64xf32>
    %210 = arith.maximumf %208, %209 : vector<7x64xf32>
    %211 = vector.broadcast %3 : vector<1x64xf32> to vector<7x64xf32>
    %212 = arith.addf %210, %211 : vector<7x64xf32>
    %cst_195 = arith.constant 0.000000e+00 : f32
    %213 = vector.broadcast %cst_195 : f32 to vector<7x64xf32>
    %214 = arith.maximumf %212, %213 : vector<7x64xf32>
    %c0_196 = arith.constant 0 : index
    %c1_197 = arith.constant 1 : index
    %c0_198 = arith.constant 0 : index
    %c0_199 = arith.constant 0 : index
    %215 = vector.load %arg6[%c0_196, %c1_197, %c0_198, %c0_199] : memref<2x7x7x64xf32, #tpu.memory_space<vmem>>, vector<1x1x7x64xf32>
    %216 = vector.shape_cast %215 : vector<1x1x7x64xf32> to vector<7x64xf32>
    %217 = vector.shape_cast %214 : vector<7x64xf32> to vector<1x1x7x64xf32>
    tpu.vector_store %arg6[%c0_196, %c1_197, %c0_198, %c0_199], %217 {strides = array<i32>} : memref<2x7x7x64xf32, #tpu.memory_space<vmem>>, vector<1x1x7x64xf32>,
    %c64 = arith.constant 64 : index
    %c0_200 = arith.constant 0 : index
    %218 = vector.load %arg9[%c64, %c0_200] : memref<224x64xf32, #tpu.memory_space<vmem>>, vector<14x64xf32>
    %c80 = arith.constant 80 : index
    %c0_201 = arith.constant 0 : index
    %219 = vector.load %arg9[%c80, %c0_201] : memref<224x64xf32, #tpu.memory_space<vmem>>, vector<14x64xf32>
    %220 = arith.maximumf %218, %219 : vector<14x64xf32>
    %c0_202 = arith.constant 0 : index
    %c0_203 = arith.constant 0 : index
    %221 = vector.load %arg11[%c0_202, %c0_203] : memref<14x64xf32, #tpu.memory_space<vmem>>, vector<14x64xf32>
    tpu.vector_store %arg11[%c0_202, %c0_203], %220 {strides = array<i32>} : memref<14x64xf32, #tpu.memory_space<vmem>>, vector<14x64xf32>,
    %c0_204 = arith.constant 0 : index
    %c0_205 = arith.constant 0 : index
    %222 = tpu.strided_load %arg11[%c0_204, %c0_205] {strides = array<i32: 2, 1>} : memref<14x64xf32, #tpu.memory_space<vmem>>, vector<7x64xf32>
    %c1_206 = arith.constant 1 : index
    %c0_207 = arith.constant 0 : index
    %223 = tpu.strided_load %arg11[%c1_206, %c0_207] {strides = array<i32: 2, 1>} : memref<14x64xf32, #tpu.memory_space<vmem>>, vector<7x64xf32>
    %224 = arith.maximumf %222, %223 : vector<7x64xf32>
    %225 = vector.broadcast %3 : vector<1x64xf32> to vector<7x64xf32>
    %226 = arith.addf %224, %225 : vector<7x64xf32>
    %cst_208 = arith.constant 0.000000e+00 : f32
    %227 = vector.broadcast %cst_208 : f32 to vector<7x64xf32>
    %228 = arith.maximumf %226, %227 : vector<7x64xf32>
    %c0_209 = arith.constant 0 : index
    %c2_210 = arith.constant 2 : index
    %c0_211 = arith.constant 0 : index
    %c0_212 = arith.constant 0 : index
    %229 = vector.load %arg6[%c0_209, %c2_210, %c0_211, %c0_212] : memref<2x7x7x64xf32, #tpu.memory_space<vmem>>, vector<1x1x7x64xf32>
    %230 = vector.shape_cast %229 : vector<1x1x7x64xf32> to vector<7x64xf32>
    %231 = vector.shape_cast %228 : vector<7x64xf32> to vector<1x1x7x64xf32>
    tpu.vector_store %arg6[%c0_209, %c2_210, %c0_211, %c0_212], %231 {strides = array<i32>} : memref<2x7x7x64xf32, #tpu.memory_space<vmem>>, vector<1x1x7x64xf32>,
    %c96 = arith.constant 96 : index
    %c0_213 = arith.constant 0 : index
    %232 = vector.load %arg9[%c96, %c0_213] : memref<224x64xf32, #tpu.memory_space<vmem>>, vector<14x64xf32>
    %c112_214 = arith.constant 112 : index
    %c0_215 = arith.constant 0 : index
    %233 = vector.load %arg9[%c112_214, %c0_215] : memref<224x64xf32, #tpu.memory_space<vmem>>, vector<14x64xf32>
    %234 = arith.maximumf %232, %233 : vector<14x64xf32>
    %c0_216 = arith.constant 0 : index
    %c0_217 = arith.constant 0 : index
    %235 = vector.load %arg11[%c0_216, %c0_217] : memref<14x64xf32, #tpu.memory_space<vmem>>, vector<14x64xf32>
    tpu.vector_store %arg11[%c0_216, %c0_217], %234 {strides = array<i32>} : memref<14x64xf32, #tpu.memory_space<vmem>>, vector<14x64xf32>,
    %c0_218 = arith.constant 0 : index
    %c0_219 = arith.constant 0 : index
    %236 = tpu.strided_load %arg11[%c0_218, %c0_219] {strides = array<i32: 2, 1>} : memref<14x64xf32, #tpu.memory_space<vmem>>, vector<7x64xf32>
    %c1_220 = arith.constant 1 : index
    %c0_221 = arith.constant 0 : index
    %237 = tpu.strided_load %arg11[%c1_220, %c0_221] {strides = array<i32: 2, 1>} : memref<14x64xf32, #tpu.memory_space<vmem>>, vector<7x64xf32>
    %238 = arith.maximumf %236, %237 : vector<7x64xf32>
    %239 = vector.broadcast %3 : vector<1x64xf32> to vector<7x64xf32>
    %240 = arith.addf %238, %239 : vector<7x64xf32>
    %cst_222 = arith.constant 0.000000e+00 : f32
    %241 = vector.broadcast %cst_222 : f32 to vector<7x64xf32>
    %242 = arith.maximumf %240, %241 : vector<7x64xf32>
    %c0_223 = arith.constant 0 : index
    %c3 = arith.constant 3 : index
    %c0_224 = arith.constant 0 : index
    %c0_225 = arith.constant 0 : index
    %243 = vector.load %arg6[%c0_223, %c3, %c0_224, %c0_225] : memref<2x7x7x64xf32, #tpu.memory_space<vmem>>, vector<1x1x7x64xf32>
    %244 = vector.shape_cast %243 : vector<1x1x7x64xf32> to vector<7x64xf32>
    %245 = vector.shape_cast %242 : vector<7x64xf32> to vector<1x1x7x64xf32>
    tpu.vector_store %arg6[%c0_223, %c3, %c0_224, %c0_225], %245 {strides = array<i32>} : memref<2x7x7x64xf32, #tpu.memory_space<vmem>>, vector<1x1x7x64xf32>,
    %c128 = arith.constant 128 : index
    %c0_226 = arith.constant 0 : index
    %246 = vector.load %arg9[%c128, %c0_226] : memref<224x64xf32, #tpu.memory_space<vmem>>, vector<14x64xf32>
    %c144 = arith.constant 144 : index
    %c0_227 = arith.constant 0 : index
    %247 = vector.load %arg9[%c144, %c0_227] : memref<224x64xf32, #tpu.memory_space<vmem>>, vector<14x64xf32>
    %248 = arith.maximumf %246, %247 : vector<14x64xf32>
    %c0_228 = arith.constant 0 : index
    %c0_229 = arith.constant 0 : index
    %249 = vector.load %arg11[%c0_228, %c0_229] : memref<14x64xf32, #tpu.memory_space<vmem>>, vector<14x64xf32>
    tpu.vector_store %arg11[%c0_228, %c0_229], %248 {strides = array<i32>} : memref<14x64xf32, #tpu.memory_space<vmem>>, vector<14x64xf32>,
    %c0_230 = arith.constant 0 : index
    %c0_231 = arith.constant 0 : index
    %250 = tpu.strided_load %arg11[%c0_230, %c0_231] {strides = array<i32: 2, 1>} : memref<14x64xf32, #tpu.memory_space<vmem>>, vector<7x64xf32>
    %c1_232 = arith.constant 1 : index
    %c0_233 = arith.constant 0 : index
    %251 = tpu.strided_load %arg11[%c1_232, %c0_233] {strides = array<i32: 2, 1>} : memref<14x64xf32, #tpu.memory_space<vmem>>, vector<7x64xf32>
    %252 = arith.maximumf %250, %251 : vector<7x64xf32>
    %253 = vector.broadcast %3 : vector<1x64xf32> to vector<7x64xf32>
    %254 = arith.addf %252, %253 : vector<7x64xf32>
    %cst_234 = arith.constant 0.000000e+00 : f32
    %255 = vector.broadcast %cst_234 : f32 to vector<7x64xf32>
    %256 = arith.maximumf %254, %255 : vector<7x64xf32>
    %c0_235 = arith.constant 0 : index
    %c4 = arith.constant 4 : index
    %c0_236 = arith.constant 0 : index
    %c0_237 = arith.constant 0 : index
    %257 = vector.load %arg6[%c0_235, %c4, %c0_236, %c0_237] : memref<2x7x7x64xf32, #tpu.memory_space<vmem>>, vector<1x1x7x64xf32>
    %258 = vector.shape_cast %257 : vector<1x1x7x64xf32> to vector<7x64xf32>
    %259 = vector.shape_cast %256 : vector<7x64xf32> to vector<1x1x7x64xf32>
    tpu.vector_store %arg6[%c0_235, %c4, %c0_236, %c0_237], %259 {strides = array<i32>} : memref<2x7x7x64xf32, #tpu.memory_space<vmem>>, vector<1x1x7x64xf32>,
    %c160 = arith.constant 160 : index
    %c0_238 = arith.constant 0 : index
    %260 = vector.load %arg9[%c160, %c0_238] : memref<224x64xf32, #tpu.memory_space<vmem>>, vector<14x64xf32>
    %c176 = arith.constant 176 : index
    %c0_239 = arith.constant 0 : index
    %261 = vector.load %arg9[%c176, %c0_239] : memref<224x64xf32, #tpu.memory_space<vmem>>, vector<14x64xf32>
    %262 = arith.maximumf %260, %261 : vector<14x64xf32>
    %c0_240 = arith.constant 0 : index
    %c0_241 = arith.constant 0 : index
    %263 = vector.load %arg11[%c0_240, %c0_241] : memref<14x64xf32, #tpu.memory_space<vmem>>, vector<14x64xf32>
    tpu.vector_store %arg11[%c0_240, %c0_241], %262 {strides = array<i32>} : memref<14x64xf32, #tpu.memory_space<vmem>>, vector<14x64xf32>,
    %c0_242 = arith.constant 0 : index
    %c0_243 = arith.constant 0 : index
    %264 = tpu.strided_load %arg11[%c0_242, %c0_243] {strides = array<i32: 2, 1>} : memref<14x64xf32, #tpu.memory_space<vmem>>, vector<7x64xf32>
    %c1_244 = arith.constant 1 : index
    %c0_245 = arith.constant 0 : index
    %265 = tpu.strided_load %arg11[%c1_244, %c0_245] {strides = array<i32: 2, 1>} : memref<14x64xf32, #tpu.memory_space<vmem>>, vector<7x64xf32>
    %266 = arith.maximumf %264, %265 : vector<7x64xf32>
    %267 = vector.broadcast %3 : vector<1x64xf32> to vector<7x64xf32>
    %268 = arith.addf %266, %267 : vector<7x64xf32>
    %cst_246 = arith.constant 0.000000e+00 : f32
    %269 = vector.broadcast %cst_246 : f32 to vector<7x64xf32>
    %270 = arith.maximumf %268, %269 : vector<7x64xf32>
    %c0_247 = arith.constant 0 : index
    %c5 = arith.constant 5 : index
    %c0_248 = arith.constant 0 : index
    %c0_249 = arith.constant 0 : index
    %271 = vector.load %arg6[%c0_247, %c5, %c0_248, %c0_249] : memref<2x7x7x64xf32, #tpu.memory_space<vmem>>, vector<1x1x7x64xf32>
    %272 = vector.shape_cast %271 : vector<1x1x7x64xf32> to vector<7x64xf32>
    %273 = vector.shape_cast %270 : vector<7x64xf32> to vector<1x1x7x64xf32>
    tpu.vector_store %arg6[%c0_247, %c5, %c0_248, %c0_249], %273 {strides = array<i32>} : memref<2x7x7x64xf32, #tpu.memory_space<vmem>>, vector<1x1x7x64xf32>,
    %c192 = arith.constant 192 : index
    %c0_250 = arith.constant 0 : index
    %274 = vector.load %arg9[%c192, %c0_250] : memref<224x64xf32, #tpu.memory_space<vmem>>, vector<14x64xf32>
    %c208 = arith.constant 208 : index
    %c0_251 = arith.constant 0 : index
    %275 = vector.load %arg9[%c208, %c0_251] : memref<224x64xf32, #tpu.memory_space<vmem>>, vector<14x64xf32>
    %276 = arith.maximumf %274, %275 : vector<14x64xf32>
    %c0_252 = arith.constant 0 : index
    %c0_253 = arith.constant 0 : index
    %277 = vector.load %arg11[%c0_252, %c0_253] : memref<14x64xf32, #tpu.memory_space<vmem>>, vector<14x64xf32>
    tpu.vector_store %arg11[%c0_252, %c0_253], %276 {strides = array<i32>} : memref<14x64xf32, #tpu.memory_space<vmem>>, vector<14x64xf32>,
    %c0_254 = arith.constant 0 : index
    %c0_255 = arith.constant 0 : index
    %278 = tpu.strided_load %arg11[%c0_254, %c0_255] {strides = array<i32: 2, 1>} : memref<14x64xf32, #tpu.memory_space<vmem>>, vector<7x64xf32>
    %c1_256 = arith.constant 1 : index
    %c0_257 = arith.constant 0 : index
    %279 = tpu.strided_load %arg11[%c1_256, %c0_257] {strides = array<i32: 2, 1>} : memref<14x64xf32, #tpu.memory_space<vmem>>, vector<7x64xf32>
    %280 = arith.maximumf %278, %279 : vector<7x64xf32>
    %281 = vector.broadcast %3 : vector<1x64xf32> to vector<7x64xf32>
    %282 = arith.addf %280, %281 : vector<7x64xf32>
    %cst_258 = arith.constant 0.000000e+00 : f32
    %283 = vector.broadcast %cst_258 : f32 to vector<7x64xf32>
    %284 = arith.maximumf %282, %283 : vector<7x64xf32>
    %c0_259 = arith.constant 0 : index
    %c6 = arith.constant 6 : index
    %c0_260 = arith.constant 0 : index
    %c0_261 = arith.constant 0 : index
    %285 = vector.load %arg6[%c0_259, %c6, %c0_260, %c0_261] : memref<2x7x7x64xf32, #tpu.memory_space<vmem>>, vector<1x1x7x64xf32>
    %286 = vector.shape_cast %285 : vector<1x1x7x64xf32> to vector<7x64xf32>
    %287 = vector.shape_cast %284 : vector<7x64xf32> to vector<1x1x7x64xf32>
    tpu.vector_store %arg6[%c0_259, %c6, %c0_260, %c0_261], %287 {strides = array<i32>} : memref<2x7x7x64xf32, #tpu.memory_space<vmem>>, vector<1x1x7x64xf32>,
    %c1_262 = arith.constant 1 : index
    %c0_263 = arith.constant 0 : index
    %c0_264 = arith.constant 0 : index
    %288 = vector.load %arg1[%c1_262, %c0_263, %c0_264] : memref<2x784x9xf32, #tpu.memory_space<vmem>>, vector<1x784x9xf32>
    %289 = vector.shape_cast %288 : vector<1x784x9xf32> to vector<784x9xf32>
    %cst_265 = arith.constant dense<0.000000e+00> : vector<784x32xf32>
    %290 = tpu.matmul %289, %0, %cst_265 {dimension_numbers = #tpu.dot_dimension_numbers<[1], [0], [0], [1], [0, 0, 1, 1], [], []>} : vector<784x9xf32>, vector<9x32xf32>, vector<784x32xf32> -> vector<784x32xf32>
    %c0_266 = arith.constant 0 : index
    %c0_267 = arith.constant 0 : index
    %291 = vector.load %arg8[%c0_266, %c0_267] : memref<784x32xf32, #tpu.memory_space<vmem>>, vector<784x32xf32>
    tpu.vector_store %arg8[%c0_266, %c0_267], %290 {strides = array<i32>} : memref<784x32xf32, #tpu.memory_space<vmem>>, vector<784x32xf32>,
    %c0_268 = arith.constant 0 : index
    %c0_269 = arith.constant 0 : index
    %292 = vector.load %arg8[%c0_268, %c0_269] : memref<784x32xf32, #tpu.memory_space<vmem>>, vector<28x32xf32>
    %c28_270 = arith.constant 28 : index
    %c0_271 = arith.constant 0 : index
    %293 = vector.load %arg8[%c28_270, %c0_271] : memref<784x32xf32, #tpu.memory_space<vmem>>, vector<28x32xf32>
    %294 = arith.maximumf %292, %293 : vector<28x32xf32>
    %c0_272 = arith.constant 0 : index
    %c0_273 = arith.constant 0 : index
    %295 = vector.load %arg10[%c0_272, %c0_273] : memref<28x32xf32, #tpu.memory_space<vmem>>, vector<28x32xf32>
    tpu.vector_store %arg10[%c0_272, %c0_273], %294 {strides = array<i32>} : memref<28x32xf32, #tpu.memory_space<vmem>>, vector<28x32xf32>,
    %c0_274 = arith.constant 0 : index
    %c0_275 = arith.constant 0 : index
    %296 = tpu.strided_load %arg10[%c0_274, %c0_275] {strides = array<i32: 2, 1>} : memref<28x32xf32, #tpu.memory_space<vmem>>, vector<14x32xf32>
    %c1_276 = arith.constant 1 : index
    %c0_277 = arith.constant 0 : index
    %297 = tpu.strided_load %arg10[%c1_276, %c0_277] {strides = array<i32: 2, 1>} : memref<28x32xf32, #tpu.memory_space<vmem>>, vector<14x32xf32>
    %298 = arith.maximumf %296, %297 : vector<14x32xf32>
    %299 = vector.broadcast %1 : vector<1x32xf32> to vector<14x32xf32>
    %300 = arith.addf %298, %299 : vector<14x32xf32>
    %cst_278 = arith.constant 0.000000e+00 : f32
    %301 = vector.broadcast %cst_278 : f32 to vector<14x32xf32>
    %302 = arith.maximumf %300, %301 : vector<14x32xf32>
    %c17_279 = arith.constant 17 : index
    %c0_280 = arith.constant 0 : index
    %303 = vector.load %arg7[%c17_279, %c0_280] : memref<264x32xf32, #tpu.memory_space<vmem>>, vector<14x32xf32>
    tpu.vector_store %arg7[%c17_279, %c0_280], %302 {strides = array<i32>} : memref<264x32xf32, #tpu.memory_space<vmem>>, vector<14x32xf32>,
    %c56_281 = arith.constant 56 : index
    %c0_282 = arith.constant 0 : index
    %304 = vector.load %arg8[%c56_281, %c0_282] : memref<784x32xf32, #tpu.memory_space<vmem>>, vector<28x32xf32>
    %c84_283 = arith.constant 84 : index
    %c0_284 = arith.constant 0 : index
    %305 = vector.load %arg8[%c84_283, %c0_284] : memref<784x32xf32, #tpu.memory_space<vmem>>, vector<28x32xf32>
    %306 = arith.maximumf %304, %305 : vector<28x32xf32>
    %c0_285 = arith.constant 0 : index
    %c0_286 = arith.constant 0 : index
    %307 = vector.load %arg10[%c0_285, %c0_286] : memref<28x32xf32, #tpu.memory_space<vmem>>, vector<28x32xf32>
    tpu.vector_store %arg10[%c0_285, %c0_286], %306 {strides = array<i32>} : memref<28x32xf32, #tpu.memory_space<vmem>>, vector<28x32xf32>,
    %c0_287 = arith.constant 0 : index
    %c0_288 = arith.constant 0 : index
    %308 = tpu.strided_load %arg10[%c0_287, %c0_288] {strides = array<i32: 2, 1>} : memref<28x32xf32, #tpu.memory_space<vmem>>, vector<14x32xf32>
    %c1_289 = arith.constant 1 : index
    %c0_290 = arith.constant 0 : index
    %309 = tpu.strided_load %arg10[%c1_289, %c0_290] {strides = array<i32: 2, 1>} : memref<28x32xf32, #tpu.memory_space<vmem>>, vector<14x32xf32>
    %310 = arith.maximumf %308, %309 : vector<14x32xf32>
    %311 = vector.broadcast %1 : vector<1x32xf32> to vector<14x32xf32>
    %312 = arith.addf %310, %311 : vector<14x32xf32>
    %cst_291 = arith.constant 0.000000e+00 : f32
    %313 = vector.broadcast %cst_291 : f32 to vector<14x32xf32>
    %314 = arith.maximumf %312, %313 : vector<14x32xf32>
    %c33_292 = arith.constant 33 : index
    %c0_293 = arith.constant 0 : index
    %315 = vector.load %arg7[%c33_292, %c0_293] : memref<264x32xf32, #tpu.memory_space<vmem>>, vector<14x32xf32>
    tpu.vector_store %arg7[%c33_292, %c0_293], %314 {strides = array<i32>} : memref<264x32xf32, #tpu.memory_space<vmem>>, vector<14x32xf32>,
    %c112_294 = arith.constant 112 : index
    %c0_295 = arith.constant 0 : index
    %316 = vector.load %arg8[%c112_294, %c0_295] : memref<784x32xf32, #tpu.memory_space<vmem>>, vector<28x32xf32>
    %c140_296 = arith.constant 140 : index
    %c0_297 = arith.constant 0 : index
    %317 = vector.load %arg8[%c140_296, %c0_297] : memref<784x32xf32, #tpu.memory_space<vmem>>, vector<28x32xf32>
    %318 = arith.maximumf %316, %317 : vector<28x32xf32>
    %c0_298 = arith.constant 0 : index
    %c0_299 = arith.constant 0 : index
    %319 = vector.load %arg10[%c0_298, %c0_299] : memref<28x32xf32, #tpu.memory_space<vmem>>, vector<28x32xf32>
    tpu.vector_store %arg10[%c0_298, %c0_299], %318 {strides = array<i32>} : memref<28x32xf32, #tpu.memory_space<vmem>>, vector<28x32xf32>,
    %c0_300 = arith.constant 0 : index
    %c0_301 = arith.constant 0 : index
    %320 = tpu.strided_load %arg10[%c0_300, %c0_301] {strides = array<i32: 2, 1>} : memref<28x32xf32, #tpu.memory_space<vmem>>, vector<14x32xf32>
    %c1_302 = arith.constant 1 : index
    %c0_303 = arith.constant 0 : index
    %321 = tpu.strided_load %arg10[%c1_302, %c0_303] {strides = array<i32: 2, 1>} : memref<28x32xf32, #tpu.memory_space<vmem>>, vector<14x32xf32>
    %322 = arith.maximumf %320, %321 : vector<14x32xf32>
    %323 = vector.broadcast %1 : vector<1x32xf32> to vector<14x32xf32>
    %324 = arith.addf %322, %323 : vector<14x32xf32>
    %cst_304 = arith.constant 0.000000e+00 : f32
    %325 = vector.broadcast %cst_304 : f32 to vector<14x32xf32>
    %326 = arith.maximumf %324, %325 : vector<14x32xf32>
    %c49_305 = arith.constant 49 : index
    %c0_306 = arith.constant 0 : index
    %327 = vector.load %arg7[%c49_305, %c0_306] : memref<264x32xf32, #tpu.memory_space<vmem>>, vector<14x32xf32>
    tpu.vector_store %arg7[%c49_305, %c0_306], %326 {strides = array<i32>} : memref<264x32xf32, #tpu.memory_space<vmem>>, vector<14x32xf32>,
    %c168_307 = arith.constant 168 : index
    %c0_308 = arith.constant 0 : index
    %328 = vector.load %arg8[%c168_307, %c0_308] : memref<784x32xf32, #tpu.memory_space<vmem>>, vector<28x32xf32>
    %c196_309 = arith.constant 196 : index
    %c0_310 = arith.constant 0 : index
    %329 = vector.load %arg8[%c196_309, %c0_310] : memref<784x32xf32, #tpu.memory_space<vmem>>, vector<28x32xf32>
    %330 = arith.maximumf %328, %329 : vector<28x32xf32>
    %c0_311 = arith.constant 0 : index
    %c0_312 = arith.constant 0 : index
    %331 = vector.load %arg10[%c0_311, %c0_312] : memref<28x32xf32, #tpu.memory_space<vmem>>, vector<28x32xf32>
    tpu.vector_store %arg10[%c0_311, %c0_312], %330 {strides = array<i32>} : memref<28x32xf32, #tpu.memory_space<vmem>>, vector<28x32xf32>,
    %c0_313 = arith.constant 0 : index
    %c0_314 = arith.constant 0 : index
    %332 = tpu.strided_load %arg10[%c0_313, %c0_314] {strides = array<i32: 2, 1>} : memref<28x32xf32, #tpu.memory_space<vmem>>, vector<14x32xf32>
    %c1_315 = arith.constant 1 : index
    %c0_316 = arith.constant 0 : index
    %333 = tpu.strided_load %arg10[%c1_315, %c0_316] {strides = array<i32: 2, 1>} : memref<28x32xf32, #tpu.memory_space<vmem>>, vector<14x32xf32>
    %334 = arith.maximumf %332, %333 : vector<14x32xf32>
    %335 = vector.broadcast %1 : vector<1x32xf32> to vector<14x32xf32>
    %336 = arith.addf %334, %335 : vector<14x32xf32>
    %cst_317 = arith.constant 0.000000e+00 : f32
    %337 = vector.broadcast %cst_317 : f32 to vector<14x32xf32>
    %338 = arith.maximumf %336, %337 : vector<14x32xf32>
    %c65_318 = arith.constant 65 : index
    %c0_319 = arith.constant 0 : index
    %339 = vector.load %arg7[%c65_318, %c0_319] : memref<264x32xf32, #tpu.memory_space<vmem>>, vector<14x32xf32>
    tpu.vector_store %arg7[%c65_318, %c0_319], %338 {strides = array<i32>} : memref<264x32xf32, #tpu.memory_space<vmem>>, vector<14x32xf32>,
    %c224_320 = arith.constant 224 : index
    %c0_321 = arith.constant 0 : index
    %340 = vector.load %arg8[%c224_320, %c0_321] : memref<784x32xf32, #tpu.memory_space<vmem>>, vector<28x32xf32>
    %c252_322 = arith.constant 252 : index
    %c0_323 = arith.constant 0 : index
    %341 = vector.load %arg8[%c252_322, %c0_323] : memref<784x32xf32, #tpu.memory_space<vmem>>, vector<28x32xf32>
    %342 = arith.maximumf %340, %341 : vector<28x32xf32>
    %c0_324 = arith.constant 0 : index
    %c0_325 = arith.constant 0 : index
    %343 = vector.load %arg10[%c0_324, %c0_325] : memref<28x32xf32, #tpu.memory_space<vmem>>, vector<28x32xf32>
    tpu.vector_store %arg10[%c0_324, %c0_325], %342 {strides = array<i32>} : memref<28x32xf32, #tpu.memory_space<vmem>>, vector<28x32xf32>,
    %c0_326 = arith.constant 0 : index
    %c0_327 = arith.constant 0 : index
    %344 = tpu.strided_load %arg10[%c0_326, %c0_327] {strides = array<i32: 2, 1>} : memref<28x32xf32, #tpu.memory_space<vmem>>, vector<14x32xf32>
    %c1_328 = arith.constant 1 : index
    %c0_329 = arith.constant 0 : index
    %345 = tpu.strided_load %arg10[%c1_328, %c0_329] {strides = array<i32: 2, 1>} : memref<28x32xf32, #tpu.memory_space<vmem>>, vector<14x32xf32>
    %346 = arith.maximumf %344, %345 : vector<14x32xf32>
    %347 = vector.broadcast %1 : vector<1x32xf32> to vector<14x32xf32>
    %348 = arith.addf %346, %347 : vector<14x32xf32>
    %cst_330 = arith.constant 0.000000e+00 : f32
    %349 = vector.broadcast %cst_330 : f32 to vector<14x32xf32>
    %350 = arith.maximumf %348, %349 : vector<14x32xf32>
    %c81_331 = arith.constant 81 : index
    %c0_332 = arith.constant 0 : index
    %351 = vector.load %arg7[%c81_331, %c0_332] : memref<264x32xf32, #tpu.memory_space<vmem>>, vector<14x32xf32>
    tpu.vector_store %arg7[%c81_331, %c0_332], %350 {strides = array<i32>} : memref<264x32xf32, #tpu.memory_space<vmem>>, vector<14x32xf32>,
    %c280_333 = arith.constant 280 : index
    %c0_334 = arith.constant 0 : index
    %352 = vector.load %arg8[%c280_333, %c0_334] : memref<784x32xf32, #tpu.memory_space<vmem>>, vector<28x32xf32>
    %c308_335 = arith.constant 308 : index
    %c0_336 = arith.constant 0 : index
    %353 = vector.load %arg8[%c308_335, %c0_336] : memref<784x32xf32, #tpu.memory_space<vmem>>, vector<28x32xf32>
    %354 = arith.maximumf %352, %353 : vector<28x32xf32>
    %c0_337 = arith.constant 0 : index
    %c0_338 = arith.constant 0 : index
    %355 = vector.load %arg10[%c0_337, %c0_338] : memref<28x32xf32, #tpu.memory_space<vmem>>, vector<28x32xf32>
    tpu.vector_store %arg10[%c0_337, %c0_338], %354 {strides = array<i32>} : memref<28x32xf32, #tpu.memory_space<vmem>>, vector<28x32xf32>,
    %c0_339 = arith.constant 0 : index
    %c0_340 = arith.constant 0 : index
    %356 = tpu.strided_load %arg10[%c0_339, %c0_340] {strides = array<i32: 2, 1>} : memref<28x32xf32, #tpu.memory_space<vmem>>, vector<14x32xf32>
    %c1_341 = arith.constant 1 : index
    %c0_342 = arith.constant 0 : index
    %357 = tpu.strided_load %arg10[%c1_341, %c0_342] {strides = array<i32: 2, 1>} : memref<28x32xf32, #tpu.memory_space<vmem>>, vector<14x32xf32>
    %358 = arith.maximumf %356, %357 : vector<14x32xf32>
    %359 = vector.broadcast %1 : vector<1x32xf32> to vector<14x32xf32>
    %360 = arith.addf %358, %359 : vector<14x32xf32>
    %cst_343 = arith.constant 0.000000e+00 : f32
    %361 = vector.broadcast %cst_343 : f32 to vector<14x32xf32>
    %362 = arith.maximumf %360, %361 : vector<14x32xf32>
    %c97_344 = arith.constant 97 : index
    %c0_345 = arith.constant 0 : index
    %363 = vector.load %arg7[%c97_344, %c0_345] : memref<264x32xf32, #tpu.memory_space<vmem>>, vector<14x32xf32>
    tpu.vector_store %arg7[%c97_344, %c0_345], %362 {strides = array<i32>} : memref<264x32xf32, #tpu.memory_space<vmem>>, vector<14x32xf32>,
    %c336_346 = arith.constant 336 : index
    %c0_347 = arith.constant 0 : index
    %364 = vector.load %arg8[%c336_346, %c0_347] : memref<784x32xf32, #tpu.memory_space<vmem>>, vector<28x32xf32>
    %c364_348 = arith.constant 364 : index
    %c0_349 = arith.constant 0 : index
    %365 = vector.load %arg8[%c364_348, %c0_349] : memref<784x32xf32, #tpu.memory_space<vmem>>, vector<28x32xf32>
    %366 = arith.maximumf %364, %365 : vector<28x32xf32>
    %c0_350 = arith.constant 0 : index
    %c0_351 = arith.constant 0 : index
    %367 = vector.load %arg10[%c0_350, %c0_351] : memref<28x32xf32, #tpu.memory_space<vmem>>, vector<28x32xf32>
    tpu.vector_store %arg10[%c0_350, %c0_351], %366 {strides = array<i32>} : memref<28x32xf32, #tpu.memory_space<vmem>>, vector<28x32xf32>,
    %c0_352 = arith.constant 0 : index
    %c0_353 = arith.constant 0 : index
    %368 = tpu.strided_load %arg10[%c0_352, %c0_353] {strides = array<i32: 2, 1>} : memref<28x32xf32, #tpu.memory_space<vmem>>, vector<14x32xf32>
    %c1_354 = arith.constant 1 : index
    %c0_355 = arith.constant 0 : index
    %369 = tpu.strided_load %arg10[%c1_354, %c0_355] {strides = array<i32: 2, 1>} : memref<28x32xf32, #tpu.memory_space<vmem>>, vector<14x32xf32>
    %370 = arith.maximumf %368, %369 : vector<14x32xf32>
    %371 = vector.broadcast %1 : vector<1x32xf32> to vector<14x32xf32>
    %372 = arith.addf %370, %371 : vector<14x32xf32>
    %cst_356 = arith.constant 0.000000e+00 : f32
    %373 = vector.broadcast %cst_356 : f32 to vector<14x32xf32>
    %374 = arith.maximumf %372, %373 : vector<14x32xf32>
    %c113_357 = arith.constant 113 : index
    %c0_358 = arith.constant 0 : index
    %375 = vector.load %arg7[%c113_357, %c0_358] : memref<264x32xf32, #tpu.memory_space<vmem>>, vector<14x32xf32>
    tpu.vector_store %arg7[%c113_357, %c0_358], %374 {strides = array<i32>} : memref<264x32xf32, #tpu.memory_space<vmem>>, vector<14x32xf32>,
    %c392_359 = arith.constant 392 : index
    %c0_360 = arith.constant 0 : index
    %376 = vector.load %arg8[%c392_359, %c0_360] : memref<784x32xf32, #tpu.memory_space<vmem>>, vector<28x32xf32>
    %c420_361 = arith.constant 420 : index
    %c0_362 = arith.constant 0 : index
    %377 = vector.load %arg8[%c420_361, %c0_362] : memref<784x32xf32, #tpu.memory_space<vmem>>, vector<28x32xf32>
    %378 = arith.maximumf %376, %377 : vector<28x32xf32>
    %c0_363 = arith.constant 0 : index
    %c0_364 = arith.constant 0 : index
    %379 = vector.load %arg10[%c0_363, %c0_364] : memref<28x32xf32, #tpu.memory_space<vmem>>, vector<28x32xf32>
    tpu.vector_store %arg10[%c0_363, %c0_364], %378 {strides = array<i32>} : memref<28x32xf32, #tpu.memory_space<vmem>>, vector<28x32xf32>,
    %c0_365 = arith.constant 0 : index
    %c0_366 = arith.constant 0 : index
    %380 = tpu.strided_load %arg10[%c0_365, %c0_366] {strides = array<i32: 2, 1>} : memref<28x32xf32, #tpu.memory_space<vmem>>, vector<14x32xf32>
    %c1_367 = arith.constant 1 : index
    %c0_368 = arith.constant 0 : index
    %381 = tpu.strided_load %arg10[%c1_367, %c0_368] {strides = array<i32: 2, 1>} : memref<28x32xf32, #tpu.memory_space<vmem>>, vector<14x32xf32>
    %382 = arith.maximumf %380, %381 : vector<14x32xf32>
    %383 = vector.broadcast %1 : vector<1x32xf32> to vector<14x32xf32>
    %384 = arith.addf %382, %383 : vector<14x32xf32>
    %cst_369 = arith.constant 0.000000e+00 : f32
    %385 = vector.broadcast %cst_369 : f32 to vector<14x32xf32>
    %386 = arith.maximumf %384, %385 : vector<14x32xf32>
    %c129_370 = arith.constant 129 : index
    %c0_371 = arith.constant 0 : index
    %387 = vector.load %arg7[%c129_370, %c0_371] : memref<264x32xf32, #tpu.memory_space<vmem>>, vector<14x32xf32>
    tpu.vector_store %arg7[%c129_370, %c0_371], %386 {strides = array<i32>} : memref<264x32xf32, #tpu.memory_space<vmem>>, vector<14x32xf32>,
    %c448_372 = arith.constant 448 : index
    %c0_373 = arith.constant 0 : index
    %388 = vector.load %arg8[%c448_372, %c0_373] : memref<784x32xf32, #tpu.memory_space<vmem>>, vector<28x32xf32>
    %c476_374 = arith.constant 476 : index
    %c0_375 = arith.constant 0 : index
    %389 = vector.load %arg8[%c476_374, %c0_375] : memref<784x32xf32, #tpu.memory_space<vmem>>, vector<28x32xf32>
    %390 = arith.maximumf %388, %389 : vector<28x32xf32>
    %c0_376 = arith.constant 0 : index
    %c0_377 = arith.constant 0 : index
    %391 = vector.load %arg10[%c0_376, %c0_377] : memref<28x32xf32, #tpu.memory_space<vmem>>, vector<28x32xf32>
    tpu.vector_store %arg10[%c0_376, %c0_377], %390 {strides = array<i32>} : memref<28x32xf32, #tpu.memory_space<vmem>>, vector<28x32xf32>,
    %c0_378 = arith.constant 0 : index
    %c0_379 = arith.constant 0 : index
    %392 = tpu.strided_load %arg10[%c0_378, %c0_379] {strides = array<i32: 2, 1>} : memref<28x32xf32, #tpu.memory_space<vmem>>, vector<14x32xf32>
    %c1_380 = arith.constant 1 : index
    %c0_381 = arith.constant 0 : index
    %393 = tpu.strided_load %arg10[%c1_380, %c0_381] {strides = array<i32: 2, 1>} : memref<28x32xf32, #tpu.memory_space<vmem>>, vector<14x32xf32>
    %394 = arith.maximumf %392, %393 : vector<14x32xf32>
    %395 = vector.broadcast %1 : vector<1x32xf32> to vector<14x32xf32>
    %396 = arith.addf %394, %395 : vector<14x32xf32>
    %cst_382 = arith.constant 0.000000e+00 : f32
    %397 = vector.broadcast %cst_382 : f32 to vector<14x32xf32>
    %398 = arith.maximumf %396, %397 : vector<14x32xf32>
    %c145_383 = arith.constant 145 : index
    %c0_384 = arith.constant 0 : index
    %399 = vector.load %arg7[%c145_383, %c0_384] : memref<264x32xf32, #tpu.memory_space<vmem>>, vector<14x32xf32>
    tpu.vector_store %arg7[%c145_383, %c0_384], %398 {strides = array<i32>} : memref<264x32xf32, #tpu.memory_space<vmem>>, vector<14x32xf32>,
    %c504_385 = arith.constant 504 : index
    %c0_386 = arith.constant 0 : index
    %400 = vector.load %arg8[%c504_385, %c0_386] : memref<784x32xf32, #tpu.memory_space<vmem>>, vector<28x32xf32>
    %c532_387 = arith.constant 532 : index
    %c0_388 = arith.constant 0 : index
    %401 = vector.load %arg8[%c532_387, %c0_388] : memref<784x32xf32, #tpu.memory_space<vmem>>, vector<28x32xf32>
    %402 = arith.maximumf %400, %401 : vector<28x32xf32>
    %c0_389 = arith.constant 0 : index
    %c0_390 = arith.constant 0 : index
    %403 = vector.load %arg10[%c0_389, %c0_390] : memref<28x32xf32, #tpu.memory_space<vmem>>, vector<28x32xf32>
    tpu.vector_store %arg10[%c0_389, %c0_390], %402 {strides = array<i32>} : memref<28x32xf32, #tpu.memory_space<vmem>>, vector<28x32xf32>,
    %c0_391 = arith.constant 0 : index
    %c0_392 = arith.constant 0 : index
    %404 = tpu.strided_load %arg10[%c0_391, %c0_392] {strides = array<i32: 2, 1>} : memref<28x32xf32, #tpu.memory_space<vmem>>, vector<14x32xf32>
    %c1_393 = arith.constant 1 : index
    %c0_394 = arith.constant 0 : index
    %405 = tpu.strided_load %arg10[%c1_393, %c0_394] {strides = array<i32: 2, 1>} : memref<28x32xf32, #tpu.memory_space<vmem>>, vector<14x32xf32>
    %406 = arith.maximumf %404, %405 : vector<14x32xf32>
    %407 = vector.broadcast %1 : vector<1x32xf32> to vector<14x32xf32>
    %408 = arith.addf %406, %407 : vector<14x32xf32>
    %cst_395 = arith.constant 0.000000e+00 : f32
    %409 = vector.broadcast %cst_395 : f32 to vector<14x32xf32>
    %410 = arith.maximumf %408, %409 : vector<14x32xf32>
    %c161_396 = arith.constant 161 : index
    %c0_397 = arith.constant 0 : index
    %411 = vector.load %arg7[%c161_396, %c0_397] : memref<264x32xf32, #tpu.memory_space<vmem>>, vector<14x32xf32>
    tpu.vector_store %arg7[%c161_396, %c0_397], %410 {strides = array<i32>} : memref<264x32xf32, #tpu.memory_space<vmem>>, vector<14x32xf32>,
    %c560_398 = arith.constant 560 : index
    %c0_399 = arith.constant 0 : index
    %412 = vector.load %arg8[%c560_398, %c0_399] : memref<784x32xf32, #tpu.memory_space<vmem>>, vector<28x32xf32>
    %c588_400 = arith.constant 588 : index
    %c0_401 = arith.constant 0 : index
    %413 = vector.load %arg8[%c588_400, %c0_401] : memref<784x32xf32, #tpu.memory_space<vmem>>, vector<28x32xf32>
    %414 = arith.maximumf %412, %413 : vector<28x32xf32>
    %c0_402 = arith.constant 0 : index
    %c0_403 = arith.constant 0 : index
    %415 = vector.load %arg10[%c0_402, %c0_403] : memref<28x32xf32, #tpu.memory_space<vmem>>, vector<28x32xf32>
    tpu.vector_store %arg10[%c0_402, %c0_403], %414 {strides = array<i32>} : memref<28x32xf32, #tpu.memory_space<vmem>>, vector<28x32xf32>,
    %c0_404 = arith.constant 0 : index
    %c0_405 = arith.constant 0 : index
    %416 = tpu.strided_load %arg10[%c0_404, %c0_405] {strides = array<i32: 2, 1>} : memref<28x32xf32, #tpu.memory_space<vmem>>, vector<14x32xf32>
    %c1_406 = arith.constant 1 : index
    %c0_407 = arith.constant 0 : index
    %417 = tpu.strided_load %arg10[%c1_406, %c0_407] {strides = array<i32: 2, 1>} : memref<28x32xf32, #tpu.memory_space<vmem>>, vector<14x32xf32>
    %418 = arith.maximumf %416, %417 : vector<14x32xf32>
    %419 = vector.broadcast %1 : vector<1x32xf32> to vector<14x32xf32>
    %420 = arith.addf %418, %419 : vector<14x32xf32>
    %cst_408 = arith.constant 0.000000e+00 : f32
    %421 = vector.broadcast %cst_408 : f32 to vector<14x32xf32>
    %422 = arith.maximumf %420, %421 : vector<14x32xf32>
    %c177_409 = arith.constant 177 : index
    %c0_410 = arith.constant 0 : index
    %423 = vector.load %arg7[%c177_409, %c0_410] : memref<264x32xf32, #tpu.memory_space<vmem>>, vector<14x32xf32>
    tpu.vector_store %arg7[%c177_409, %c0_410], %422 {strides = array<i32>} : memref<264x32xf32, #tpu.memory_space<vmem>>, vector<14x32xf32>,
    %c616_411 = arith.constant 616 : index
    %c0_412 = arith.constant 0 : index
    %424 = vector.load %arg8[%c616_411, %c0_412] : memref<784x32xf32, #tpu.memory_space<vmem>>, vector<28x32xf32>
    %c644_413 = arith.constant 644 : index
    %c0_414 = arith.constant 0 : index
    %425 = vector.load %arg8[%c644_413, %c0_414] : memref<784x32xf32, #tpu.memory_space<vmem>>, vector<28x32xf32>
    %426 = arith.maximumf %424, %425 : vector<28x32xf32>
    %c0_415 = arith.constant 0 : index
    %c0_416 = arith.constant 0 : index
    %427 = vector.load %arg10[%c0_415, %c0_416] : memref<28x32xf32, #tpu.memory_space<vmem>>, vector<28x32xf32>
    tpu.vector_store %arg10[%c0_415, %c0_416], %426 {strides = array<i32>} : memref<28x32xf32, #tpu.memory_space<vmem>>, vector<28x32xf32>,
    %c0_417 = arith.constant 0 : index
    %c0_418 = arith.constant 0 : index
    %428 = tpu.strided_load %arg10[%c0_417, %c0_418] {strides = array<i32: 2, 1>} : memref<28x32xf32, #tpu.memory_space<vmem>>, vector<14x32xf32>
    %c1_419 = arith.constant 1 : index
    %c0_420 = arith.constant 0 : index
    %429 = tpu.strided_load %arg10[%c1_419, %c0_420] {strides = array<i32: 2, 1>} : memref<28x32xf32, #tpu.memory_space<vmem>>, vector<14x32xf32>
    %430 = arith.maximumf %428, %429 : vector<14x32xf32>
    %431 = vector.broadcast %1 : vector<1x32xf32> to vector<14x32xf32>
    %432 = arith.addf %430, %431 : vector<14x32xf32>
    %cst_421 = arith.constant 0.000000e+00 : f32
    %433 = vector.broadcast %cst_421 : f32 to vector<14x32xf32>
    %434 = arith.maximumf %432, %433 : vector<14x32xf32>
    %c193_422 = arith.constant 193 : index
    %c0_423 = arith.constant 0 : index
    %435 = vector.load %arg7[%c193_422, %c0_423] : memref<264x32xf32, #tpu.memory_space<vmem>>, vector<14x32xf32>
    tpu.vector_store %arg7[%c193_422, %c0_423], %434 {strides = array<i32>} : memref<264x32xf32, #tpu.memory_space<vmem>>, vector<14x32xf32>,
    %c672_424 = arith.constant 672 : index
    %c0_425 = arith.constant 0 : index
    %436 = vector.load %arg8[%c672_424, %c0_425] : memref<784x32xf32, #tpu.memory_space<vmem>>, vector<28x32xf32>
    %c700_426 = arith.constant 700 : index
    %c0_427 = arith.constant 0 : index
    %437 = vector.load %arg8[%c700_426, %c0_427] : memref<784x32xf32, #tpu.memory_space<vmem>>, vector<28x32xf32>
    %438 = arith.maximumf %436, %437 : vector<28x32xf32>
    %c0_428 = arith.constant 0 : index
    %c0_429 = arith.constant 0 : index
    %439 = vector.load %arg10[%c0_428, %c0_429] : memref<28x32xf32, #tpu.memory_space<vmem>>, vector<28x32xf32>
    tpu.vector_store %arg10[%c0_428, %c0_429], %438 {strides = array<i32>} : memref<28x32xf32, #tpu.memory_space<vmem>>, vector<28x32xf32>,
    %c0_430 = arith.constant 0 : index
    %c0_431 = arith.constant 0 : index
    %440 = tpu.strided_load %arg10[%c0_430, %c0_431] {strides = array<i32: 2, 1>} : memref<28x32xf32, #tpu.memory_space<vmem>>, vector<14x32xf32>
    %c1_432 = arith.constant 1 : index
    %c0_433 = arith.constant 0 : index
    %441 = tpu.strided_load %arg10[%c1_432, %c0_433] {strides = array<i32: 2, 1>} : memref<28x32xf32, #tpu.memory_space<vmem>>, vector<14x32xf32>
    %442 = arith.maximumf %440, %441 : vector<14x32xf32>
    %443 = vector.broadcast %1 : vector<1x32xf32> to vector<14x32xf32>
    %444 = arith.addf %442, %443 : vector<14x32xf32>
    %cst_434 = arith.constant 0.000000e+00 : f32
    %445 = vector.broadcast %cst_434 : f32 to vector<14x32xf32>
    %446 = arith.maximumf %444, %445 : vector<14x32xf32>
    %c209_435 = arith.constant 209 : index
    %c0_436 = arith.constant 0 : index
    %447 = vector.load %arg7[%c209_435, %c0_436] : memref<264x32xf32, #tpu.memory_space<vmem>>, vector<14x32xf32>
    tpu.vector_store %arg7[%c209_435, %c0_436], %446 {strides = array<i32>} : memref<264x32xf32, #tpu.memory_space<vmem>>, vector<14x32xf32>,
    %c728_437 = arith.constant 728 : index
    %c0_438 = arith.constant 0 : index
    %448 = vector.load %arg8[%c728_437, %c0_438] : memref<784x32xf32, #tpu.memory_space<vmem>>, vector<28x32xf32>
    %c756_439 = arith.constant 756 : index
    %c0_440 = arith.constant 0 : index
    %449 = vector.load %arg8[%c756_439, %c0_440] : memref<784x32xf32, #tpu.memory_space<vmem>>, vector<28x32xf32>
    %450 = arith.maximumf %448, %449 : vector<28x32xf32>
    %c0_441 = arith.constant 0 : index
    %c0_442 = arith.constant 0 : index
    %451 = vector.load %arg10[%c0_441, %c0_442] : memref<28x32xf32, #tpu.memory_space<vmem>>, vector<28x32xf32>
    tpu.vector_store %arg10[%c0_441, %c0_442], %450 {strides = array<i32>} : memref<28x32xf32, #tpu.memory_space<vmem>>, vector<28x32xf32>,
    %c0_443 = arith.constant 0 : index
    %c0_444 = arith.constant 0 : index
    %452 = tpu.strided_load %arg10[%c0_443, %c0_444] {strides = array<i32: 2, 1>} : memref<28x32xf32, #tpu.memory_space<vmem>>, vector<14x32xf32>
    %c1_445 = arith.constant 1 : index
    %c0_446 = arith.constant 0 : index
    %453 = tpu.strided_load %arg10[%c1_445, %c0_446] {strides = array<i32: 2, 1>} : memref<28x32xf32, #tpu.memory_space<vmem>>, vector<14x32xf32>
    %454 = arith.maximumf %452, %453 : vector<14x32xf32>
    %455 = vector.broadcast %1 : vector<1x32xf32> to vector<14x32xf32>
    %456 = arith.addf %454, %455 : vector<14x32xf32>
    %cst_447 = arith.constant 0.000000e+00 : f32
    %457 = vector.broadcast %cst_447 : f32 to vector<14x32xf32>
    %458 = arith.maximumf %456, %457 : vector<14x32xf32>
    %c225_448 = arith.constant 225 : index
    %c0_449 = arith.constant 0 : index
    %459 = vector.load %arg7[%c225_448, %c0_449] : memref<264x32xf32, #tpu.memory_space<vmem>>, vector<14x32xf32>
    tpu.vector_store %arg7[%c225_448, %c0_449], %458 {strides = array<i32>} : memref<264x32xf32, #tpu.memory_space<vmem>>, vector<14x32xf32>,
    %c0_450 = arith.constant 0 : index
    %c0_451 = arith.constant 0 : index
    %460 = vector.load %arg7[%c0_450, %c0_451] : memref<264x32xf32, #tpu.memory_space<vmem>>, vector<224x32xf32>
    %c1_452 = arith.constant 1 : index
    %c0_453 = arith.constant 0 : index
    %461 = vector.load %arg7[%c1_452, %c0_453] : memref<264x32xf32, #tpu.memory_space<vmem>>, vector<224x32xf32>
    %c2_454 = arith.constant 2 : index
    %c0_455 = arith.constant 0 : index
    %462 = vector.load %arg7[%c2_454, %c0_455] : memref<264x32xf32, #tpu.memory_space<vmem>>, vector<224x32xf32>
    %c16_456 = arith.constant 16 : index
    %c0_457 = arith.constant 0 : index
    %463 = vector.load %arg7[%c16_456, %c0_457] : memref<264x32xf32, #tpu.memory_space<vmem>>, vector<224x32xf32>
    %c17_458 = arith.constant 17 : index
    %c0_459 = arith.constant 0 : index
    %464 = vector.load %arg7[%c17_458, %c0_459] : memref<264x32xf32, #tpu.memory_space<vmem>>, vector<224x32xf32>
    %c18_460 = arith.constant 18 : index
    %c0_461 = arith.constant 0 : index
    %465 = vector.load %arg7[%c18_460, %c0_461] : memref<264x32xf32, #tpu.memory_space<vmem>>, vector<224x32xf32>
    %c32_462 = arith.constant 32 : index
    %c0_463 = arith.constant 0 : index
    %466 = vector.load %arg7[%c32_462, %c0_463] : memref<264x32xf32, #tpu.memory_space<vmem>>, vector<224x32xf32>
    %c33_464 = arith.constant 33 : index
    %c0_465 = arith.constant 0 : index
    %467 = vector.load %arg7[%c33_464, %c0_465] : memref<264x32xf32, #tpu.memory_space<vmem>>, vector<224x32xf32>
    %c34_466 = arith.constant 34 : index
    %c0_467 = arith.constant 0 : index
    %468 = vector.load %arg7[%c34_466, %c0_467] : memref<264x32xf32, #tpu.memory_space<vmem>>, vector<224x32xf32>
    %469 = tpu.concatenate %460, %461, %462, %463, %464, %465, %466, %467, %468 in 1 : vector<224x32xf32>, vector<224x32xf32>, vector<224x32xf32>, vector<224x32xf32>, vector<224x32xf32>, vector<224x32xf32>, vector<224x32xf32>, vector<224x32xf32>, vector<224x32xf32> -> vector<224x288xf32>
    %cst_468 = arith.constant dense<0.000000e+00> : vector<224x64xf32>
    %470 = tpu.matmul %469, %2, %cst_468 {dimension_numbers = #tpu.dot_dimension_numbers<[1], [0], [0], [1], [0, 0, 1, 1], [], []>} : vector<224x288xf32>, vector<288x64xf32>, vector<224x64xf32> -> vector<224x64xf32>
    %c0_469 = arith.constant 0 : index
    %c0_470 = arith.constant 0 : index
    %471 = vector.load %arg9[%c0_469, %c0_470] : memref<224x64xf32, #tpu.memory_space<vmem>>, vector<224x64xf32>
    tpu.vector_store %arg9[%c0_469, %c0_470], %470 {strides = array<i32>} : memref<224x64xf32, #tpu.memory_space<vmem>>, vector<224x64xf32>,
    %c0_471 = arith.constant 0 : index
    %c0_472 = arith.constant 0 : index
    %472 = vector.load %arg9[%c0_471, %c0_472] : memref<224x64xf32, #tpu.memory_space<vmem>>, vector<14x64xf32>
    %c16_473 = arith.constant 16 : index
    %c0_474 = arith.constant 0 : index
    %473 = vector.load %arg9[%c16_473, %c0_474] : memref<224x64xf32, #tpu.memory_space<vmem>>, vector<14x64xf32>
    %474 = arith.maximumf %472, %473 : vector<14x64xf32>
    %c0_475 = arith.constant 0 : index
    %c0_476 = arith.constant 0 : index
    %475 = vector.load %arg11[%c0_475, %c0_476] : memref<14x64xf32, #tpu.memory_space<vmem>>, vector<14x64xf32>
    tpu.vector_store %arg11[%c0_475, %c0_476], %474 {strides = array<i32>} : memref<14x64xf32, #tpu.memory_space<vmem>>, vector<14x64xf32>,
    %c0_477 = arith.constant 0 : index
    %c0_478 = arith.constant 0 : index
    %476 = tpu.strided_load %arg11[%c0_477, %c0_478] {strides = array<i32: 2, 1>} : memref<14x64xf32, #tpu.memory_space<vmem>>, vector<7x64xf32>
    %c1_479 = arith.constant 1 : index
    %c0_480 = arith.constant 0 : index
    %477 = tpu.strided_load %arg11[%c1_479, %c0_480] {strides = array<i32: 2, 1>} : memref<14x64xf32, #tpu.memory_space<vmem>>, vector<7x64xf32>
    %478 = arith.maximumf %476, %477 : vector<7x64xf32>
    %479 = vector.broadcast %3 : vector<1x64xf32> to vector<7x64xf32>
    %480 = arith.addf %478, %479 : vector<7x64xf32>
    %cst_481 = arith.constant 0.000000e+00 : f32
    %481 = vector.broadcast %cst_481 : f32 to vector<7x64xf32>
    %482 = arith.maximumf %480, %481 : vector<7x64xf32>
    %c1_482 = arith.constant 1 : index
    %c0_483 = arith.constant 0 : index
    %c0_484 = arith.constant 0 : index
    %c0_485 = arith.constant 0 : index
    %483 = vector.load %arg6[%c1_482, %c0_483, %c0_484, %c0_485] : memref<2x7x7x64xf32, #tpu.memory_space<vmem>>, vector<1x1x7x64xf32>
    %484 = vector.shape_cast %483 : vector<1x1x7x64xf32> to vector<7x64xf32>
    %485 = vector.shape_cast %482 : vector<7x64xf32> to vector<1x1x7x64xf32>
    tpu.vector_store %arg6[%c1_482, %c0_483, %c0_484, %c0_485], %485 {strides = array<i32>} : memref<2x7x7x64xf32, #tpu.memory_space<vmem>>, vector<1x1x7x64xf32>,
    %c32_486 = arith.constant 32 : index
    %c0_487 = arith.constant 0 : index
    %486 = vector.load %arg9[%c32_486, %c0_487] : memref<224x64xf32, #tpu.memory_space<vmem>>, vector<14x64xf32>
    %c48_488 = arith.constant 48 : index
    %c0_489 = arith.constant 0 : index
    %487 = vector.load %arg9[%c48_488, %c0_489] : memref<224x64xf32, #tpu.memory_space<vmem>>, vector<14x64xf32>
    %488 = arith.maximumf %486, %487 : vector<14x64xf32>
    %c0_490 = arith.constant 0 : index
    %c0_491 = arith.constant 0 : index
    %489 = vector.load %arg11[%c0_490, %c0_491] : memref<14x64xf32, #tpu.memory_space<vmem>>, vector<14x64xf32>
    tpu.vector_store %arg11[%c0_490, %c0_491], %488 {strides = array<i32>} : memref<14x64xf32, #tpu.memory_space<vmem>>, vector<14x64xf32>,
    %c0_492 = arith.constant 0 : index
    %c0_493 = arith.constant 0 : index
    %490 = tpu.strided_load %arg11[%c0_492, %c0_493] {strides = array<i32: 2, 1>} : memref<14x64xf32, #tpu.memory_space<vmem>>, vector<7x64xf32>
    %c1_494 = arith.constant 1 : index
    %c0_495 = arith.constant 0 : index
    %491 = tpu.strided_load %arg11[%c1_494, %c0_495] {strides = array<i32: 2, 1>} : memref<14x64xf32, #tpu.memory_space<vmem>>, vector<7x64xf32>
    %492 = arith.maximumf %490, %491 : vector<7x64xf32>
    %493 = vector.broadcast %3 : vector<1x64xf32> to vector<7x64xf32>
    %494 = arith.addf %492, %493 : vector<7x64xf32>
    %cst_496 = arith.constant 0.000000e+00 : f32
    %495 = vector.broadcast %cst_496 : f32 to vector<7x64xf32>
    %496 = arith.maximumf %494, %495 : vector<7x64xf32>
    %c1_497 = arith.constant 1 : index
    %c1_498 = arith.constant 1 : index
    %c0_499 = arith.constant 0 : index
    %c0_500 = arith.constant 0 : index
    %497 = vector.load %arg6[%c1_497, %c1_498, %c0_499, %c0_500] : memref<2x7x7x64xf32, #tpu.memory_space<vmem>>, vector<1x1x7x64xf32>
    %498 = vector.shape_cast %497 : vector<1x1x7x64xf32> to vector<7x64xf32>
    %499 = vector.shape_cast %496 : vector<7x64xf32> to vector<1x1x7x64xf32>
    tpu.vector_store %arg6[%c1_497, %c1_498, %c0_499, %c0_500], %499 {strides = array<i32>} : memref<2x7x7x64xf32, #tpu.memory_space<vmem>>, vector<1x1x7x64xf32>,
    %c64_501 = arith.constant 64 : index
    %c0_502 = arith.constant 0 : index
    %500 = vector.load %arg9[%c64_501, %c0_502] : memref<224x64xf32, #tpu.memory_space<vmem>>, vector<14x64xf32>
    %c80_503 = arith.constant 80 : index
    %c0_504 = arith.constant 0 : index
    %501 = vector.load %arg9[%c80_503, %c0_504] : memref<224x64xf32, #tpu.memory_space<vmem>>, vector<14x64xf32>
    %502 = arith.maximumf %500, %501 : vector<14x64xf32>
    %c0_505 = arith.constant 0 : index
    %c0_506 = arith.constant 0 : index
    %503 = vector.load %arg11[%c0_505, %c0_506] : memref<14x64xf32, #tpu.memory_space<vmem>>, vector<14x64xf32>
    tpu.vector_store %arg11[%c0_505, %c0_506], %502 {strides = array<i32>} : memref<14x64xf32, #tpu.memory_space<vmem>>, vector<14x64xf32>,
    %c0_507 = arith.constant 0 : index
    %c0_508 = arith.constant 0 : index
    %504 = tpu.strided_load %arg11[%c0_507, %c0_508] {strides = array<i32: 2, 1>} : memref<14x64xf32, #tpu.memory_space<vmem>>, vector<7x64xf32>
    %c1_509 = arith.constant 1 : index
    %c0_510 = arith.constant 0 : index
    %505 = tpu.strided_load %arg11[%c1_509, %c0_510] {strides = array<i32: 2, 1>} : memref<14x64xf32, #tpu.memory_space<vmem>>, vector<7x64xf32>
    %506 = arith.maximumf %504, %505 : vector<7x64xf32>
    %507 = vector.broadcast %3 : vector<1x64xf32> to vector<7x64xf32>
    %508 = arith.addf %506, %507 : vector<7x64xf32>
    %cst_511 = arith.constant 0.000000e+00 : f32
    %509 = vector.broadcast %cst_511 : f32 to vector<7x64xf32>
    %510 = arith.maximumf %508, %509 : vector<7x64xf32>
    %c1_512 = arith.constant 1 : index
    %c2_513 = arith.constant 2 : index
    %c0_514 = arith.constant 0 : index
    %c0_515 = arith.constant 0 : index
    %511 = vector.load %arg6[%c1_512, %c2_513, %c0_514, %c0_515] : memref<2x7x7x64xf32, #tpu.memory_space<vmem>>, vector<1x1x7x64xf32>
    %512 = vector.shape_cast %511 : vector<1x1x7x64xf32> to vector<7x64xf32>
    %513 = vector.shape_cast %510 : vector<7x64xf32> to vector<1x1x7x64xf32>
    tpu.vector_store %arg6[%c1_512, %c2_513, %c0_514, %c0_515], %513 {strides = array<i32>} : memref<2x7x7x64xf32, #tpu.memory_space<vmem>>, vector<1x1x7x64xf32>,
    %c96_516 = arith.constant 96 : index
    %c0_517 = arith.constant 0 : index
    %514 = vector.load %arg9[%c96_516, %c0_517] : memref<224x64xf32, #tpu.memory_space<vmem>>, vector<14x64xf32>
    %c112_518 = arith.constant 112 : index
    %c0_519 = arith.constant 0 : index
    %515 = vector.load %arg9[%c112_518, %c0_519] : memref<224x64xf32, #tpu.memory_space<vmem>>, vector<14x64xf32>
    %516 = arith.maximumf %514, %515 : vector<14x64xf32>
    %c0_520 = arith.constant 0 : index
    %c0_521 = arith.constant 0 : index
    %517 = vector.load %arg11[%c0_520, %c0_521] : memref<14x64xf32, #tpu.memory_space<vmem>>, vector<14x64xf32>
    tpu.vector_store %arg11[%c0_520, %c0_521], %516 {strides = array<i32>} : memref<14x64xf32, #tpu.memory_space<vmem>>, vector<14x64xf32>,
    %c0_522 = arith.constant 0 : index
    %c0_523 = arith.constant 0 : index
    %518 = tpu.strided_load %arg11[%c0_522, %c0_523] {strides = array<i32: 2, 1>} : memref<14x64xf32, #tpu.memory_space<vmem>>, vector<7x64xf32>
    %c1_524 = arith.constant 1 : index
    %c0_525 = arith.constant 0 : index
    %519 = tpu.strided_load %arg11[%c1_524, %c0_525] {strides = array<i32: 2, 1>} : memref<14x64xf32, #tpu.memory_space<vmem>>, vector<7x64xf32>
    %520 = arith.maximumf %518, %519 : vector<7x64xf32>
    %521 = vector.broadcast %3 : vector<1x64xf32> to vector<7x64xf32>
    %522 = arith.addf %520, %521 : vector<7x64xf32>
    %cst_526 = arith.constant 0.000000e+00 : f32
    %523 = vector.broadcast %cst_526 : f32 to vector<7x64xf32>
    %524 = arith.maximumf %522, %523 : vector<7x64xf32>
    %c1_527 = arith.constant 1 : index
    %c3_528 = arith.constant 3 : index
    %c0_529 = arith.constant 0 : index
    %c0_530 = arith.constant 0 : index
    %525 = vector.load %arg6[%c1_527, %c3_528, %c0_529, %c0_530] : memref<2x7x7x64xf32, #tpu.memory_space<vmem>>, vector<1x1x7x64xf32>
    %526 = vector.shape_cast %525 : vector<1x1x7x64xf32> to vector<7x64xf32>
    %527 = vector.shape_cast %524 : vector<7x64xf32> to vector<1x1x7x64xf32>
    tpu.vector_store %arg6[%c1_527, %c3_528, %c0_529, %c0_530], %527 {strides = array<i32>} : memref<2x7x7x64xf32, #tpu.memory_space<vmem>>, vector<1x1x7x64xf32>,
    %c128_531 = arith.constant 128 : index
    %c0_532 = arith.constant 0 : index
    %528 = vector.load %arg9[%c128_531, %c0_532] : memref<224x64xf32, #tpu.memory_space<vmem>>, vector<14x64xf32>
    %c144_533 = arith.constant 144 : index
    %c0_534 = arith.constant 0 : index
    %529 = vector.load %arg9[%c144_533, %c0_534] : memref<224x64xf32, #tpu.memory_space<vmem>>, vector<14x64xf32>
    %530 = arith.maximumf %528, %529 : vector<14x64xf32>
    %c0_535 = arith.constant 0 : index
    %c0_536 = arith.constant 0 : index
    %531 = vector.load %arg11[%c0_535, %c0_536] : memref<14x64xf32, #tpu.memory_space<vmem>>, vector<14x64xf32>
    tpu.vector_store %arg11[%c0_535, %c0_536], %530 {strides = array<i32>} : memref<14x64xf32, #tpu.memory_space<vmem>>, vector<14x64xf32>,
    %c0_537 = arith.constant 0 : index
    %c0_538 = arith.constant 0 : index
    %532 = tpu.strided_load %arg11[%c0_537, %c0_538] {strides = array<i32: 2, 1>} : memref<14x64xf32, #tpu.memory_space<vmem>>, vector<7x64xf32>
    %c1_539 = arith.constant 1 : index
    %c0_540 = arith.constant 0 : index
    %533 = tpu.strided_load %arg11[%c1_539, %c0_540] {strides = array<i32: 2, 1>} : memref<14x64xf32, #tpu.memory_space<vmem>>, vector<7x64xf32>
    %534 = arith.maximumf %532, %533 : vector<7x64xf32>
    %535 = vector.broadcast %3 : vector<1x64xf32> to vector<7x64xf32>
    %536 = arith.addf %534, %535 : vector<7x64xf32>
    %cst_541 = arith.constant 0.000000e+00 : f32
    %537 = vector.broadcast %cst_541 : f32 to vector<7x64xf32>
    %538 = arith.maximumf %536, %537 : vector<7x64xf32>
    %c1_542 = arith.constant 1 : index
    %c4_543 = arith.constant 4 : index
    %c0_544 = arith.constant 0 : index
    %c0_545 = arith.constant 0 : index
    %539 = vector.load %arg6[%c1_542, %c4_543, %c0_544, %c0_545] : memref<2x7x7x64xf32, #tpu.memory_space<vmem>>, vector<1x1x7x64xf32>
    %540 = vector.shape_cast %539 : vector<1x1x7x64xf32> to vector<7x64xf32>
    %541 = vector.shape_cast %538 : vector<7x64xf32> to vector<1x1x7x64xf32>
    tpu.vector_store %arg6[%c1_542, %c4_543, %c0_544, %c0_545], %541 {strides = array<i32>} : memref<2x7x7x64xf32, #tpu.memory_space<vmem>>, vector<1x1x7x64xf32>,
    %c160_546 = arith.constant 160 : index
    %c0_547 = arith.constant 0 : index
    %542 = vector.load %arg9[%c160_546, %c0_547] : memref<224x64xf32, #tpu.memory_space<vmem>>, vector<14x64xf32>
    %c176_548 = arith.constant 176 : index
    %c0_549 = arith.constant 0 : index
    %543 = vector.load %arg9[%c176_548, %c0_549] : memref<224x64xf32, #tpu.memory_space<vmem>>, vector<14x64xf32>
    %544 = arith.maximumf %542, %543 : vector<14x64xf32>
    %c0_550 = arith.constant 0 : index
    %c0_551 = arith.constant 0 : index
    %545 = vector.load %arg11[%c0_550, %c0_551] : memref<14x64xf32, #tpu.memory_space<vmem>>, vector<14x64xf32>
    tpu.vector_store %arg11[%c0_550, %c0_551], %544 {strides = array<i32>} : memref<14x64xf32, #tpu.memory_space<vmem>>, vector<14x64xf32>,
    %c0_552 = arith.constant 0 : index
    %c0_553 = arith.constant 0 : index
    %546 = tpu.strided_load %arg11[%c0_552, %c0_553] {strides = array<i32: 2, 1>} : memref<14x64xf32, #tpu.memory_space<vmem>>, vector<7x64xf32>
    %c1_554 = arith.constant 1 : index
    %c0_555 = arith.constant 0 : index
    %547 = tpu.strided_load %arg11[%c1_554, %c0_555] {strides = array<i32: 2, 1>} : memref<14x64xf32, #tpu.memory_space<vmem>>, vector<7x64xf32>
    %548 = arith.maximumf %546, %547 : vector<7x64xf32>
    %549 = vector.broadcast %3 : vector<1x64xf32> to vector<7x64xf32>
    %550 = arith.addf %548, %549 : vector<7x64xf32>
    %cst_556 = arith.constant 0.000000e+00 : f32
    %551 = vector.broadcast %cst_556 : f32 to vector<7x64xf32>
    %552 = arith.maximumf %550, %551 : vector<7x64xf32>
    %c1_557 = arith.constant 1 : index
    %c5_558 = arith.constant 5 : index
    %c0_559 = arith.constant 0 : index
    %c0_560 = arith.constant 0 : index
    %553 = vector.load %arg6[%c1_557, %c5_558, %c0_559, %c0_560] : memref<2x7x7x64xf32, #tpu.memory_space<vmem>>, vector<1x1x7x64xf32>
    %554 = vector.shape_cast %553 : vector<1x1x7x64xf32> to vector<7x64xf32>
    %555 = vector.shape_cast %552 : vector<7x64xf32> to vector<1x1x7x64xf32>
    tpu.vector_store %arg6[%c1_557, %c5_558, %c0_559, %c0_560], %555 {strides = array<i32>} : memref<2x7x7x64xf32, #tpu.memory_space<vmem>>, vector<1x1x7x64xf32>,
    %c192_561 = arith.constant 192 : index
    %c0_562 = arith.constant 0 : index
    %556 = vector.load %arg9[%c192_561, %c0_562] : memref<224x64xf32, #tpu.memory_space<vmem>>, vector<14x64xf32>
    %c208_563 = arith.constant 208 : index
    %c0_564 = arith.constant 0 : index
    %557 = vector.load %arg9[%c208_563, %c0_564] : memref<224x64xf32, #tpu.memory_space<vmem>>, vector<14x64xf32>
    %558 = arith.maximumf %556, %557 : vector<14x64xf32>
    %c0_565 = arith.constant 0 : index
    %c0_566 = arith.constant 0 : index
    %559 = vector.load %arg11[%c0_565, %c0_566] : memref<14x64xf32, #tpu.memory_space<vmem>>, vector<14x64xf32>
    tpu.vector_store %arg11[%c0_565, %c0_566], %558 {strides = array<i32>} : memref<14x64xf32, #tpu.memory_space<vmem>>, vector<14x64xf32>,
    %c0_567 = arith.constant 0 : index
    %c0_568 = arith.constant 0 : index
    %560 = tpu.strided_load %arg11[%c0_567, %c0_568] {strides = array<i32: 2, 1>} : memref<14x64xf32, #tpu.memory_space<vmem>>, vector<7x64xf32>
    %c1_569 = arith.constant 1 : index
    %c0_570 = arith.constant 0 : index
    %561 = tpu.strided_load %arg11[%c1_569, %c0_570] {strides = array<i32: 2, 1>} : memref<14x64xf32, #tpu.memory_space<vmem>>, vector<7x64xf32>
    %562 = arith.maximumf %560, %561 : vector<7x64xf32>
    %563 = vector.broadcast %3 : vector<1x64xf32> to vector<7x64xf32>
    %564 = arith.addf %562, %563 : vector<7x64xf32>
    %cst_571 = arith.constant 0.000000e+00 : f32
    %565 = vector.broadcast %cst_571 : f32 to vector<7x64xf32>
    %566 = arith.maximumf %564, %565 : vector<7x64xf32>
    %c1_572 = arith.constant 1 : index
    %c6_573 = arith.constant 6 : index
    %c0_574 = arith.constant 0 : index
    %c0_575 = arith.constant 0 : index
    %567 = vector.load %arg6[%c1_572, %c6_573, %c0_574, %c0_575] : memref<2x7x7x64xf32, #tpu.memory_space<vmem>>, vector<1x1x7x64xf32>
    %568 = vector.shape_cast %567 : vector<1x1x7x64xf32> to vector<7x64xf32>
    %569 = vector.shape_cast %566 : vector<7x64xf32> to vector<1x1x7x64xf32>
    tpu.vector_store %arg6[%c1_572, %c6_573, %c0_574, %c0_575], %569 {strides = array<i32>} : memref<2x7x7x64xf32, #tpu.memory_space<vmem>>, vector<1x1x7x64xf32>,
    return
  }
  func.func @transform_0(%arg0: i32) -> (i32, i32, i32) {
    %c0_i32 = arith.constant 0 : i32
    %c0_i32_0 = arith.constant 0 : i32
    %c0_i32_1 = arith.constant 0 : i32
    return %arg0, %c0_i32, %c0_i32_0 : i32, i32, i32
  }
  func.func @transform_1(%arg0: i32) -> (i32, i32) {
    %c0_i32 = arith.constant 0 : i32
    %c0_i32_0 = arith.constant 0 : i32
    %c0_i32_1 = arith.constant 0 : i32
    return %c0_i32, %c0_i32_0 : i32, i32
  }
  func.func @transform_2(%arg0: i32) -> (i32, i32) {
    %c0_i32 = arith.constant 0 : i32
    %c0_i32_0 = arith.constant 0 : i32
    %c0_i32_1 = arith.constant 0 : i32
    return %c0_i32, %c0_i32_0 : i32, i32
  }
  func.func @transform_3(%arg0: i32) -> (i32, i32) {
    %c0_i32 = arith.constant 0 : i32
    %c0_i32_0 = arith.constant 0 : i32
    %c0_i32_1 = arith.constant 0 : i32
    return %c0_i32, %c0_i32_0 : i32, i32
  }
  func.func @transform_4(%arg0: i32) -> (i32, i32) {
    %c0_i32 = arith.constant 0 : i32
    %c0_i32_0 = arith.constant 0 : i32
    %c0_i32_1 = arith.constant 0 : i32
    return %c0_i32, %c0_i32_0 : i32, i32
  }
  func.func @transform_5(%arg0: i32) -> (i32, i32, i32, i32) {
    %c0_i32 = arith.constant 0 : i32
    %c0_i32_0 = arith.constant 0 : i32
    %c0_i32_1 = arith.constant 0 : i32
    %c0_i32_2 = arith.constant 0 : i32
    return %arg0, %c0_i32, %c0_i32_0, %c0_i32_1 : i32, i32, i32, i32
  }
}

module attributes {stable_mosaic.version = 11 : i64} {
  func.func @_mlp_kernel(%arg0: i32, %arg1: memref<2x3136xf32, #tpu.memory_space<vmem>>, %arg2: memref<3136x128xf32, #tpu.memory_space<vmem>>, %arg3: memref<1x128xf32, #tpu.memory_space<vmem>>, %arg4: memref<128x10xf32, #tpu.memory_space<vmem>>, %arg5: memref<1x10xf32, #tpu.memory_space<vmem>>, %arg6: memref<2x10xf32, #tpu.memory_space<vmem>>) attributes {dimension_semantics = [#tpu.dimension_semantics<parallel>], iteration_bounds = array<i64: 1>, scalar_prefetch = 0 : i64, scratch_operands = 0 : i64, tpu.core_type = #tpu.core_type<tc>, window_params = [{transform_indices = @transform_0, window_bounds = array<i64: 2, 3136>}, {pipeline_mode = #tpu.pipeline_mode<synchronous>, transform_indices = @transform_1, window_bounds = array<i64: 3136, 128>}, {pipeline_mode = #tpu.pipeline_mode<synchronous>, transform_indices = @transform_2, window_bounds = array<i64: 1, 128>}, {pipeline_mode = #tpu.pipeline_mode<synchronous>, transform_indices = @transform_3, window_bounds = array<i64: 128, 10>}, {pipeline_mode = #tpu.pipeline_mode<synchronous>, transform_indices = @transform_4, window_bounds = array<i64: 1, 10>}, {transform_indices = @transform_5, window_bounds = array<i64: 2, 10>}]} {
    %c0 = arith.constant 0 : index
    %c0_0 = arith.constant 0 : index
    %0 = vector.load %arg1[%c0, %c0_0] : memref<2x3136xf32, #tpu.memory_space<vmem>>, vector<2x3136xf32>
    %c0_1 = arith.constant 0 : index
    %c0_2 = arith.constant 0 : index
    %1 = vector.load %arg2[%c0_1, %c0_2] : memref<3136x128xf32, #tpu.memory_space<vmem>>, vector<3136x128xf32>
    %cst = arith.constant dense<0.000000e+00> : vector<2x128xf32>
    %2 = tpu.matmul %0, %1, %cst {dimension_numbers = #tpu.dot_dimension_numbers<[1], [0], [0], [1], [0, 0, 1, 1], [], []>} : vector<2x3136xf32>, vector<3136x128xf32>, vector<2x128xf32> -> vector<2x128xf32>
    %c0_3 = arith.constant 0 : index
    %c0_4 = arith.constant 0 : index
    %3 = vector.load %arg3[%c0_3, %c0_4] : memref<1x128xf32, #tpu.memory_space<vmem>>, vector<1x128xf32>
    %4 = vector.broadcast %3 : vector<1x128xf32> to vector<2x128xf32>
    %5 = arith.addf %2, %4 : vector<2x128xf32>
    %cst_5 = arith.constant 0.000000e+00 : f32
    %6 = vector.broadcast %cst_5 : f32 to vector<2x128xf32>
    %7 = arith.maximumf %5, %6 : vector<2x128xf32>
    %c0_6 = arith.constant 0 : index
    %c0_7 = arith.constant 0 : index
    %8 = vector.load %arg4[%c0_6, %c0_7] : memref<128x10xf32, #tpu.memory_space<vmem>>, vector<128x10xf32>
    %cst_8 = arith.constant dense<0.000000e+00> : vector<2x10xf32>
    %9 = tpu.matmul %7, %8, %cst_8 {dimension_numbers = #tpu.dot_dimension_numbers<[1], [0], [0], [1], [0, 0, 1, 1], [], []>} : vector<2x128xf32>, vector<128x10xf32>, vector<2x10xf32> -> vector<2x10xf32>
    %c0_9 = arith.constant 0 : index
    %c0_10 = arith.constant 0 : index
    %10 = vector.load %arg5[%c0_9, %c0_10] : memref<1x10xf32, #tpu.memory_space<vmem>>, vector<1x10xf32>
    %11 = vector.broadcast %10 : vector<1x10xf32> to vector<2x10xf32>
    %12 = arith.addf %9, %11 : vector<2x10xf32>
    %c0_11 = arith.constant 0 : index
    %c0_12 = arith.constant 0 : index
    %13 = vector.load %arg6[%c0_11, %c0_12] : memref<2x10xf32, #tpu.memory_space<vmem>>, vector<2x10xf32>
    tpu.vector_store %arg6[%c0_11, %c0_12], %12 {strides = array<i32>} : memref<2x10xf32, #tpu.memory_space<vmem>>, vector<2x10xf32>,
    return
  }
  func.func @transform_0(%arg0: i32) -> (i32, i32) {
    %c0_i32 = arith.constant 0 : i32
    %c0_i32_0 = arith.constant 0 : i32
    return %arg0, %c0_i32 : i32, i32
  }
  func.func @transform_1(%arg0: i32) -> (i32, i32) {
    %c0_i32 = arith.constant 0 : i32
    %c0_i32_0 = arith.constant 0 : i32
    %c0_i32_1 = arith.constant 0 : i32
    return %c0_i32, %c0_i32_0 : i32, i32
  }
  func.func @transform_2(%arg0: i32) -> (i32, i32) {
    %c0_i32 = arith.constant 0 : i32
    %c0_i32_0 = arith.constant 0 : i32
    %c0_i32_1 = arith.constant 0 : i32
    return %c0_i32, %c0_i32_0 : i32, i32
  }
  func.func @transform_3(%arg0: i32) -> (i32, i32) {
    %c0_i32 = arith.constant 0 : i32
    %c0_i32_0 = arith.constant 0 : i32
    %c0_i32_1 = arith.constant 0 : i32
    return %c0_i32, %c0_i32_0 : i32, i32
  }
  func.func @transform_4(%arg0: i32) -> (i32, i32) {
    %c0_i32 = arith.constant 0 : i32
    %c0_i32_0 = arith.constant 0 : i32
    %c0_i32_1 = arith.constant 0 : i32
    return %c0_i32, %c0_i32_0 : i32, i32
  }
  func.func @transform_5(%arg0: i32) -> (i32, i32) {
    %c0_i32 = arith.constant 0 : i32
    %c0_i32_0 = arith.constant 0 : i32
    return %arg0, %c0_i32 : i32, i32
  }
}

</mosaic_0001>

<llo_original>
// kernel: big_forward_pallas.3
$region0: #{big_forward_pallas.3}
  #allocation0 [shape = 'u32[]', space=smem, size = 0x4, offset = 0x4, fixed_abs, tag = 'smem constant byte address 0x4 - core index']
  #allocation1 [shape = 'u32[72,128]{1,0:T(1,128)}', space=vmem, size = 0x9000, scoped, tag = 'internal scratch']
  %s0 = inlined_call_operand.vmem [shape: f32[2,3136], index: 0, kind: input, shape index: {}]
  %s1 = inlined_call_operand.vmem [shape: f32[3136,128], index: 1, kind: input, shape index: {}]
  %s2 = inlined_call_operand.vmem [shape: f32[1,128], index: 2, kind: input, shape index: {}]
  %s3 = inlined_call_operand.vmem [shape: f32[128,10], index: 3, kind: input, shape index: {}]
  %s4 = inlined_call_operand.vmem [shape: f32[1,10], index: 4, kind: input, shape index: {}]
  %s5 = inlined_call_operand.hbm [shape: f32[2,10], index: 5, kind: output, shape index: {}]
  %s6 = sld [smem:[#allocation0]]
  $region30: #{big_forward_pallas.3} parent=0
    _
  %s8 = ssub.s32 1, %s6
  %s9 = scalar_select 0, %s8, %s6
  $region1: #{big_forward_pallas.3} parent=0
    #allocation2 [shape = 'u8[1024]{0}', space=vmem, size = 0x400, scoped, tag = 'output window, operand 0, single buffered']
    #allocation3 [shape = 's32[1]{0}', space=sflag, size = 0x4, scoped, tag = 'scoped memory for big_forward_pallas.3']
    %10 = vsyncpa [#allocation3], 0
    // Predicated region
    $region2: #{big_forward_pallas.3} parent=1 // pred_check
      _
    $region3: #{big_forward_pallas.3} parent=1 // pred_check_branch
      %12 = sbr.rel (0) target = $region5
    $region4: #{big_forward_pallas.3} parent=1 // pred_region
      _
    $region5: #{big_forward_pallas.3} parent=1 // pred_fallthru
      _
    // Predicated region
    $region6: #{big_forward_pallas.3} parent=1 // pred_check
      _
    $region7: #{big_forward_pallas.3} parent=1 // pred_check_branch
      %14 = sbr.rel (0) target = $region9
    $region8: #{big_forward_pallas.3} parent=1 // pred_region
      _
    $region9: #{big_forward_pallas.3} parent=1 // pred_fallthru
      _
    // Predicated region
    $region10: #{big_forward_pallas.3} parent=1 // pred_check
      _
    $region11: #{big_forward_pallas.3} parent=1 // pred_check_branch
      %16 = sbr.rel (0) target = $region13
    $region12: #{big_forward_pallas.3} parent=1 // pred_region
      _
    $region13: #{big_forward_pallas.3} parent=1 // pred_fallthru
      _
    // Predicated region
    $region14: #{big_forward_pallas.3} parent=1 // pred_check
      _
    $region15: #{big_forward_pallas.3} parent=1 // pred_check_branch
      %18 = sbr.rel (0) target = $region17
    $region16: #{big_forward_pallas.3} parent=1 // pred_region
      _
    $region17: #{big_forward_pallas.3} parent=1 // pred_fallthru
      _
    // Predicated region
    $region18: #{big_forward_pallas.3} parent=1 // pred_check
      _
    $region19: #{big_forward_pallas.3} parent=1 // pred_check_branch
      %20 = sbr.rel (0) target = $region21
    $region20: #{big_forward_pallas.3} parent=1 // pred_region
      _
    $region21: #{big_forward_pallas.3} parent=1 // pred_fallthru
      _
    %v21 = vld [vmem:[%s0] sm:$0xff]
    %v22 = vld [vmem:[%s0 + $0x8] sm:$0xff]
    %v23 = vld [vmem:[%s0 + $0x10] sm:$0xff]
    %v24 = vld [vmem:[%s0 + $0x18] sm:$0xff]
    %v25 = vld [vmem:[%s0 + $0x20] sm:$0xff]
    %v26 = vld [vmem:[%s0 + $0x28] sm:$0xff]
    %v27 = vld [vmem:[%s0 + $0x30] sm:$0x3]
    %v28 = vld [vmem:[%s1] sm:$0xff]
    %v29 = vld [vmem:[%s1 + $0x8] sm:$0xff]
    %v30 = vld [vmem:[%s1 + $0x10] sm:$0xff]
    %v31 = vld [vmem:[%s1 + $0x18] sm:$0xff]
    %v32 = vld [vmem:[%s1 + $0x20] sm:$0xff]
    %v33 = vld [vmem:[%s1 + $0x28] sm:$0xff]
    %v34 = vld [vmem:[%s1 + $0x30] sm:$0xff]
    %v35 = vld [vmem:[%s1 + $0x38] sm:$0xff]
    %v36 = vld [vmem:[%s1 + $0x40] sm:$0xff]
    %v37 = vld [vmem:[%s1 + $0x48] sm:$0xff]
    %v38 = vld [vmem:[%s1 + $0x50] sm:$0xff]
    %v39 = vld [vmem:[%s1 + $0x58] sm:$0xff]
    %v40 = vld [vmem:[%s1 + $0x60] sm:$0xff]
    %v41 = vld [vmem:[%s1 + $0x68] sm:$0xff]
    %v42 = vld [vmem:[%s1 + $0x70] sm:$0xff]
    %v43 = vld [vmem:[%s1 + $0x78] sm:$0xff]
    %v44 = vld [vmem:[%s1 + $0x80] sm:$0xff]
    %v45 = vld [vmem:[%s1 + $0x88] sm:$0xff]
    %v46 = vld [vmem:[%s1 + $0x90] sm:$0xff]
    %v47 = vld [vmem:[%s1 + $0x98] sm:$0xff]
    %v48 = vld [vmem:[%s1 + $0xa0] sm:$0xff]
    %v49 = vld [vmem:[%s1 + $0xa8] sm:$0xff]
    %v50 = vld [vmem:[%s1 + $0xb0] sm:$0xff]
    %v51 = vld [vmem:[%s1 + $0xb8] sm:$0xff]
    %v52 = vld [vmem:[%s1 + $0xc0] sm:$0xff]
    %v53 = vld [vmem:[%s1 + $0xc8] sm:$0xff]
    %v54 = vld [vmem:[%s1 + $0xd0] sm:$0xff]
    %v55 = vld [vmem:[%s1 + $0xd8] sm:$0xff]
    %v56 = vld [vmem:[%s1 + $0xe0] sm:$0xff]
    %v57 = vld [vmem:[%s1 + $0xe8] sm:$0xff]
    %v58 = vld [vmem:[%s1 + $0xf0] sm:$0xff]
    %v59 = vld [vmem:[%s1 + $0xf8] sm:$0xff]
    %v60 = vld [vmem:[%s1 + $0x100] sm:$0xff]
    %v61 = vld [vmem:[%s1 + $0x108] sm:$0xff]
    %v62 = vld [vmem:[%s1 + $0x110] sm:$0xff]
    %v63 = vld [vmem:[%s1 + $0x118] sm:$0xff]
    %v64 = vld [vmem:[%s1 + $0x120] sm:$0xff]
    %v65 = vld [vmem:[%s1 + $0x128] sm:$0xff]
    %v66 = vld [vmem:[%s1 + $0x130] sm:$0xff]
    %v67 = vld [vmem:[%s1 + $0x138] sm:$0xff]
    %v68 = vld [vmem:[%s1 + $0x140] sm:$0xff]
    %v69 = vld [vmem:[%s1 + $0x148] sm:$0xff]
    %v70 = vld [vmem:[%s1 + $0x150] sm:$0xff]
    %v71 = vld [vmem:[%s1 + $0x158] sm:$0xff]
    %v72 = vld [vmem:[%s1 + $0x160] sm:$0xff]
    %v73 = vld [vmem:[%s1 + $0x168] sm:$0xff]
    %v74 = vld [vmem:[%s1 + $0x170] sm:$0xff]
    %v75 = vld [vmem:[%s1 + $0x178] sm:$0xff]
    %v76 = vld [vmem:[%s1 + $0x180] sm:$0xff]
    %v77 = vld [vmem:[%s1 + $0x188] sm:$0xff]
    %v78 = vld [vmem:[%s1 + $0x190] sm:$0xff]
    %v79 = vld [vmem:[%s1 + $0x198] sm:$0xff]
    %v80 = vld [vmem:[%s1 + $0x1a0] sm:$0xff]
    %v81 = vld [vmem:[%s1 + $0x1a8] sm:$0xff]
    %v82 = vld [vmem:[%s1 + $0x1b0] sm:$0xff]
    %v83 = vld [vmem:[%s1 + $0x1b8] sm:$0xff]
    %v84 = vld [vmem:[%s1 + $0x1c0] sm:$0xff]
    %v85 = vld [vmem:[%s1 + $0x1c8] sm:$0xff]
    %v86 = vld [vmem:[%s1 + $0x1d0] sm:$0xff]
    %v87 = vld [vmem:[%s1 + $0x1d8] sm:$0xff]
    %v88 = vld [vmem:[%s1 + $0x1e0] sm:$0xff]
    %v89 = vld [vmem:[%s1 + $0x1e8] sm:$0xff]
    %v90 = vld [vmem:[%s1 + $0x1f0] sm:$0xff]
    %v91 = vld [vmem:[%s1 + $0x1f8] sm:$0xff]
    %v92 = vld [vmem:[%s1 + $0x200] sm:$0xff]
    %v93 = vld [vmem:[%s1 + $0x208] sm:$0xff]
    %v94 = vld [vmem:[%s1 + $0x210] sm:$0xff]
    %v95 = vld [vmem:[%s1 + $0x218] sm:$0xff]
    %v96 = vld [vmem:[%s1 + $0x220] sm:$0xff]
    %v97 = vld [vmem:[%s1 + $0x228] sm:$0xff]
    %v98 = vld [vmem:[%s1 + $0x230] sm:$0xff]
    %v99 = vld [vmem:[%s1 + $0x238] sm:$0xff]
    %v100 = vld [vmem:[%s1 + $0x240] sm:$0xff]
    %v101 = vld [vmem:[%s1 + $0x248] sm:$0xff]
    %v102 = vld [vmem:[%s1 + $0x250] sm:$0xff]
    %v103 = vld [vmem:[%s1 + $0x258] sm:$0xff]
    %v104 = vld [vmem:[%s1 + $0x260] sm:$0xff]
    %v105 = vld [vmem:[%s1 + $0x268] sm:$0xff]
    %v106 = vld [vmem:[%s1 + $0x270] sm:$0xff]
    %v107 = vld [vmem:[%s1 + $0x278] sm:$0xff]
    %v108 = vld [vmem:[%s1 + $0x280] sm:$0xff]
    %v109 = vld [vmem:[%s1 + $0x288] sm:$0xff]
    %v110 = vld [vmem:[%s1 + $0x290] sm:$0xff]
    %v111 = vld [vmem:[%s1 + $0x298] sm:$0xff]
    %v112 = vld [vmem:[%s1 + $0x2a0] sm:$0xff]
    %v113 = vld [vmem:[%s1 + $0x2a8] sm:$0xff]
    %v114 = vld [vmem:[%s1 + $0x2b0] sm:$0xff]
    %v115 = vld [vmem:[%s1 + $0x2b8] sm:$0xff]
    %v116 = vld [vmem:[%s1 + $0x2c0] sm:$0xff]
    %v117 = vld [vmem:[%s1 + $0x2c8] sm:$0xff]
    %v118 = vld [vmem:[%s1 + $0x2d0] sm:$0xff]
    %v119 = vld [vmem:[%s1 + $0x2d8] sm:$0xff]
    %v120 = vld [vmem:[%s1 + $0x2e0] sm:$0xff]
    %v121 = vld [vmem:[%s1 + $0x2e8] sm:$0xff]
    %v122 = vld [vmem:[%s1 + $0x2f0] sm:$0xff]
    %v123 = vld [vmem:[%s1 + $0x2f8] sm:$0xff]
    %v124 = vld [vmem:[%s1 + $0x300] sm:$0xff]
    %v125 = vld [vmem:[%s1 + $0x308] sm:$0xff]
    %v126 = vld [vmem:[%s1 + $0x310] sm:$0xff]
    %v127 = vld [vmem:[%s1 + $0x318] sm:$0xff]
    %v128 = vld [vmem:[%s1 + $0x320] sm:$0xff]
    %v129 = vld [vmem:[%s1 + $0x328] sm:$0xff]
    %v130 = vld [vmem:[%s1 + $0x330] sm:$0xff]
    %v131 = vld [vmem:[%s1 + $0x338] sm:$0xff]
    %v132 = vld [vmem:[%s1 + $0x340] sm:$0xff]
    %v133 = vld [vmem:[%s1 + $0x348] sm:$0xff]
    %v134 = vld [vmem:[%s1 + $0x350] sm:$0xff]
    %v135 = vld [vmem:[%s1 + $0x358] sm:$0xff]
    %v136 = vld [vmem:[%s1 + $0x360] sm:$0xff]
    %v137 = vld [vmem:[%s1 + $0x368] sm:$0xff]
    %v138 = vld [vmem:[%s1 + $0x370] sm:$0xff]
    %v139 = vld [vmem:[%s1 + $0x378] sm:$0xff]
    %v140 = vld [vmem:[%s1 + $0x380] sm:$0xff]
    %v141 = vld [vmem:[%s1 + $0x388] sm:$0xff]
    %v142 = vld [vmem:[%s1 + $0x390] sm:$0xff]
    %v143 = vld [vmem:[%s1 + $0x398] sm:$0xff]
    %v144 = vld [vmem:[%s1 + $0x3a0] sm:$0xff]
    %v145 = vld [vmem:[%s1 + $0x3a8] sm:$0xff]
    %v146 = vld [vmem:[%s1 + $0x3b0] sm:$0xff]
    %v147 = vld [vmem:[%s1 + $0x3b8] sm:$0xff]
    %v148 = vld [vmem:[%s1 + $0x3c0] sm:$0xff]
    %v149 = vld [vmem:[%s1 + $0x3c8] sm:$0xff]
    %v150 = vld [vmem:[%s1 + $0x3d0] sm:$0xff]
    %v151 = vld [vmem:[%s1 + $0x3d8] sm:$0xff]
    %v152 = vld [vmem:[%s1 + $0x3e0] sm:$0xff]
    %v153 = vld [vmem:[%s1 + $0x3e8] sm:$0xff]
    %v154 = vld [vmem:[%s1 + $0x3f0] sm:$0xff]
    %v155 = vld [vmem:[%s1 + $0x3f8] sm:$0xff]
    %v156 = vld [vmem:[%s1 + $0x400] sm:$0xff]
    %v157 = vld [vmem:[%s1 + $0x408] sm:$0xff]
    %v158 = vld [vmem:[%s1 + $0x410] sm:$0xff]
    %v159 = vld [vmem:[%s1 + $0x418] sm:$0xff]
    %v160 = vld [vmem:[%s1 + $0x420] sm:$0xff]
    %v161 = vld [vmem:[%s1 + $0x428] sm:$0xff]
    %v162 = vld [vmem:[%s1 + $0x430] sm:$0xff]
    %v163 = vld [vmem:[%s1 + $0x438] sm:$0xff]
    %v164 = vld [vmem:[%s1 + $0x440] sm:$0xff]
    %v165 = vld [vmem:[%s1 + $0x448] sm:$0xff]
    %v166 = vld [vmem:[%s1 + $0x450] sm:$0xff]
    %v167 = vld [vmem:[%s1 + $0x458] sm:$0xff]
    %v168 = vld [vmem:[%s1 + $0x460] sm:$0xff]
    %v169 = vld [vmem:[%s1 + $0x468] sm:$0xff]
    %v170 = vld [vmem:[%s1 + $0x470] sm:$0xff]
    %v171 = vld [vmem:[%s1 + $0x478] sm:$0xff]
    %v172 = vld [vmem:[%s1 + $0x480] sm:$0xff]
    %v173 = vld [vmem:[%s1 + $0x488] sm:$0xff]
    %v174 = vld [vmem:[%s1 + $0x490] sm:$0xff]
    %v175 = vld [vmem:[%s1 + $0x498] sm:$0xff]
    %v176 = vld [vmem:[%s1 + $0x4a0] sm:$0xff]
    %v177 = vld [vmem:[%s1 + $0x4a8] sm:$0xff]
    %v178 = vld [vmem:[%s1 + $0x4b0] sm:$0xff]
    %v179 = vld [vmem:[%s1 + $0x4b8] sm:$0xff]
    %v180 = vld [vmem:[%s1 + $0x4c0] sm:$0xff]
    %v181 = vld [vmem:[%s1 + $0x4c8] sm:$0xff]
    %v182 = vld [vmem:[%s1 + $0x4d0] sm:$0xff]
    %v183 = vld [vmem:[%s1 + $0x4d8] sm:$0xff]
    %v184 = vld [vmem:[%s1 + $0x4e0] sm:$0xff]
    %v185 = vld [vmem:[%s1 + $0x4e8] sm:$0xff]
    %v186 = vld [vmem:[%s1 + $0x4f0] sm:$0xff]
    %v187 = vld [vmem:[%s1 + $0x4f8] sm:$0xff]
    %v188 = vld [vmem:[%s1 + $0x500] sm:$0xff]
    %v189 = vld [vmem:[%s1 + $0x508] sm:$0xff]
    %v190 = vld [vmem:[%s1 + $0x510] sm:$0xff]
    %v191 = vld [vmem:[%s1 + $0x518] sm:$0xff]
    %v192 = vld [vmem:[%s1 + $0x520] sm:$0xff]
    %v193 = vld [vmem:[%s1 + $0x528] sm:$0xff]
    %v194 = vld [vmem:[%s1 + $0x530] sm:$0xff]
    %v195 = vld [vmem:[%s1 + $0x538] sm:$0xff]
    %v196 = vld [vmem:[%s1 + $0x540] sm:$0xff]
    %v197 = vld [vmem:[%s1 + $0x548] sm:$0xff]
    %v198 = vld [vmem:[%s1 + $0x550] sm:$0xff]
    %v199 = vld [vmem:[%s1 + $0x558] sm:$0xff]
    %v200 = vld [vmem:[%s1 + $0x560] sm:$0xff]
    %v201 = vld [vmem:[%s1 + $0x568] sm:$0xff]
    %v202 = vld [vmem:[%s1 + $0x570] sm:$0xff]
    %v203 = vld [vmem:[%s1 + $0x578] sm:$0xff]
    %v204 = vld [vmem:[%s1 + $0x580] sm:$0xff]
    %v205 = vld [vmem:[%s1 + $0x588] sm:$0xff]
    %v206 = vld [vmem:[%s1 + $0x590] sm:$0xff]
    %v207 = vld [vmem:[%s1 + $0x598] sm:$0xff]
    %v208 = vld [vmem:[%s1 + $0x5a0] sm:$0xff]
    %v209 = vld [vmem:[%s1 + $0x5a8] sm:$0xff]
    %v210 = vld [vmem:[%s1 + $0x5b0] sm:$0xff]
    %v211 = vld [vmem:[%s1 + $0x5b8] sm:$0xff]
    %v212 = vld [vmem:[%s1 + $0x5c0] sm:$0xff]
    %v213 = vld [vmem:[%s1 + $0x5c8] sm:$0xff]
    %v214 = vld [vmem:[%s1 + $0x5d0] sm:$0xff]
    %v215 = vld [vmem:[%s1 + $0x5d8] sm:$0xff]
    %v216 = vld [vmem:[%s1 + $0x5e0] sm:$0xff]
    %v217 = vld [vmem:[%s1 + $0x5e8] sm:$0xff]
    %v218 = vld [vmem:[%s1 + $0x5f0] sm:$0xff]
    %v219 = vld [vmem:[%s1 + $0x5f8] sm:$0xff]
    %v220 = vld [vmem:[%s1 + $0x600] sm:$0xff]
    %v221 = vld [vmem:[%s1 + $0x608] sm:$0xff]
    %v222 = vld [vmem:[%s1 + $0x610] sm:$0xff]
    %v223 = vld [vmem:[%s1 + $0x618] sm:$0xff]
    %v224 = vld [vmem:[%s1 + $0x620] sm:$0xff]
    %v225 = vld [vmem:[%s1 + $0x628] sm:$0xff]
    %v226 = vld [vmem:[%s1 + $0x630] sm:$0xff]
    %v227 = vld [vmem:[%s1 + $0x638] sm:$0xff]
    %v228 = vld [vmem:[%s1 + $0x640] sm:$0xff]
    %v229 = vld [vmem:[%s1 + $0x648] sm:$0xff]
    %v230 = vld [vmem:[%s1 + $0x650] sm:$0xff]
    %v231 = vld [vmem:[%s1 + $0x658] sm:$0xff]
    %v232 = vld [vmem:[%s1 + $0x660] sm:$0xff]
    %v233 = vld [vmem:[%s1 + $0x668] sm:$0xff]
    %v234 = vld [vmem:[%s1 + $0x670] sm:$0xff]
    %v235 = vld [vmem:[%s1 + $0x678] sm:$0xff]
    %v236 = vld [vmem:[%s1 + $0x680] sm:$0xff]
    %v237 = vld [vmem:[%s1 + $0x688] sm:$0xff]
    %v238 = vld [vmem:[%s1 + $0x690] sm:$0xff]
    %v239 = vld [vmem:[%s1 + $0x698] sm:$0xff]
    %v240 = vld [vmem:[%s1 + $0x6a0] sm:$0xff]
    %v241 = vld [vmem:[%s1 + $0x6a8] sm:$0xff]
    %v242 = vld [vmem:[%s1 + $0x6b0] sm:$0xff]
    %v243 = vld [vmem:[%s1 + $0x6b8] sm:$0xff]
    %v244 = vld [vmem:[%s1 + $0x6c0] sm:$0xff]
    %v245 = vld [vmem:[%s1 + $0x6c8] sm:$0xff]
    %v246 = vld [vmem:[%s1 + $0x6d0] sm:$0xff]
    %v247 = vld [vmem:[%s1 + $0x6d8] sm:$0xff]
    %v248 = vld [vmem:[%s1 + $0x6e0] sm:$0xff]
    %v249 = vld [vmem:[%s1 + $0x6e8] sm:$0xff]
    %v250 = vld [vmem:[%s1 + $0x6f0] sm:$0xff]
    %v251 = vld [vmem:[%s1 + $0x6f8] sm:$0xff]
    %v252 = vld [vmem:[%s1 + $0x700] sm:$0xff]
    %v253 = vld [vmem:[%s1 + $0x708] sm:$0xff]
    %v254 = vld [vmem:[%s1 + $0x710] sm:$0xff]
    %v255 = vld [vmem:[%s1 + $0x718] sm:$0xff]
    %v256 = vld [vmem:[%s1 + $0x720] sm:$0xff]
    %v257 = vld [vmem:[%s1 + $0x728] sm:$0xff]
    %v258 = vld [vmem:[%s1 + $0x730] sm:$0xff]
    %v259 = vld [vmem:[%s1 + $0x738] sm:$0xff]
    %v260 = vld [vmem:[%s1 + $0x740] sm:$0xff]
    %v261 = vld [vmem:[%s1 + $0x748] sm:$0xff]
    %v262 = vld [vmem:[%s1 + $0x750] sm:$0xff]
    %v263 = vld [vmem:[%s1 + $0x758] sm:$0xff]
    %v264 = vld [vmem:[%s1 + $0x760] sm:$0xff]
    %v265 = vld [vmem:[%s1 + $0x768] sm:$0xff]
    %v266 = vld [vmem:[%s1 + $0x770] sm:$0xff]
    %v267 = vld [vmem:[%s1 + $0x778] sm:$0xff]
    %v268 = vld [vmem:[%s1 + $0x780] sm:$0xff]
    %v269 = vld [vmem:[%s1 + $0x788] sm:$0xff]
    %v270 = vld [vmem:[%s1 + $0x790] sm:$0xff]
    %v271 = vld [vmem:[%s1 + $0x798] sm:$0xff]
    %v272 = vld [vmem:[%s1 + $0x7a0] sm:$0xff]
    %v273 = vld [vmem:[%s1 + $0x7a8] sm:$0xff]
    %v274 = vld [vmem:[%s1 + $0x7b0] sm:$0xff]
    %v275 = vld [vmem:[%s1 + $0x7b8] sm:$0xff]
    %v276 = vld [vmem:[%s1 + $0x7c0] sm:$0xff]
    %v277 = vld [vmem:[%s1 + $0x7c8] sm:$0xff]
    %v278 = vld [vmem:[%s1 + $0x7d0] sm:$0xff]
    %v279 = vld [vmem:[%s1 + $0x7d8] sm:$0xff]
    %v280 = vld [vmem:[%s1 + $0x7e0] sm:$0xff]
    %v281 = vld [vmem:[%s1 + $0x7e8] sm:$0xff]
    %v282 = vld [vmem:[%s1 + $0x7f0] sm:$0xff]
    %v283 = vld [vmem:[%s1 + $0x7f8] sm:$0xff]
    %v284 = vld [vmem:[%s1 + $0x800] sm:$0xff]
    %v285 = vld [vmem:[%s1 + $0x808] sm:$0xff]
    %v286 = vld [vmem:[%s1 + $0x810] sm:$0xff]
    %v287 = vld [vmem:[%s1 + $0x818] sm:$0xff]
    %v288 = vld [vmem:[%s1 + $0x820] sm:$0xff]
    %v289 = vld [vmem:[%s1 + $0x828] sm:$0xff]
    %v290 = vld [vmem:[%s1 + $0x830] sm:$0xff]
    %v291 = vld [vmem:[%s1 + $0x838] sm:$0xff]
    %v292 = vld [vmem:[%s1 + $0x840] sm:$0xff]
    %v293 = vld [vmem:[%s1 + $0x848] sm:$0xff]
    %v294 = vld [vmem:[%s1 + $0x850] sm:$0xff]
    %v295 = vld [vmem:[%s1 + $0x858] sm:$0xff]
    %v296 = vld [vmem:[%s1 + $0x860] sm:$0xff]
    %v297 = vld [vmem:[%s1 + $0x868] sm:$0xff]
    %v298 = vld [vmem:[%s1 + $0x870] sm:$0xff]
    %v299 = vld [vmem:[%s1 + $0x878] sm:$0xff]
    %v300 = vld [vmem:[%s1 + $0x880] sm:$0xff]
    %v301 = vld [vmem:[%s1 + $0x888] sm:$0xff]
    %v302 = vld [vmem:[%s1 + $0x890] sm:$0xff]
    %v303 = vld [vmem:[%s1 + $0x898] sm:$0xff]
    %v304 = vld [vmem:[%s1 + $0x8a0] sm:$0xff]
    %v305 = vld [vmem:[%s1 + $0x8a8] sm:$0xff]
    %v306 = vld [vmem:[%s1 + $0x8b0] sm:$0xff]
    %v307 = vld [vmem:[%s1 + $0x8b8] sm:$0xff]
    %v308 = vld [vmem:[%s1 + $0x8c0] sm:$0xff]
    %v309 = vld [vmem:[%s1 + $0x8c8] sm:$0xff]
    %v310 = vld [vmem:[%s1 + $0x8d0] sm:$0xff]
    %v311 = vld [vmem:[%s1 + $0x8d8] sm:$0xff]
    %v312 = vld [vmem:[%s1 + $0x8e0] sm:$0xff]
    %v313 = vld [vmem:[%s1 + $0x8e8] sm:$0xff]
    %v314 = vld [vmem:[%s1 + $0x8f0] sm:$0xff]
    %v315 = vld [vmem:[%s1 + $0x8f8] sm:$0xff]
    %v316 = vld [vmem:[%s1 + $0x900] sm:$0xff]
    %v317 = vld [vmem:[%s1 + $0x908] sm:$0xff]
    %v318 = vld [vmem:[%s1 + $0x910] sm:$0xff]
    %v319 = vld [vmem:[%s1 + $0x918] sm:$0xff]
    %v320 = vld [vmem:[%s1 + $0x920] sm:$0xff]
    %v321 = vld [vmem:[%s1 + $0x928] sm:$0xff]
    %v322 = vld [vmem:[%s1 + $0x930] sm:$0xff]
    %v323 = vld [vmem:[%s1 + $0x938] sm:$0xff]
    %v324 = vld [vmem:[%s1 + $0x940] sm:$0xff]
    %v325 = vld [vmem:[%s1 + $0x948] sm:$0xff]
    %v326 = vld [vmem:[%s1 + $0x950] sm:$0xff]
    %v327 = vld [vmem:[%s1 + $0x958] sm:$0xff]
    %v328 = vld [vmem:[%s1 + $0x960] sm:$0xff]
    %v329 = vld [vmem:[%s1 + $0x968] sm:$0xff]
    %v330 = vld [vmem:[%s1 + $0x970] sm:$0xff]
    %v331 = vld [vmem:[%s1 + $0x978] sm:$0xff]
    %v332 = vld [vmem:[%s1 + $0x980] sm:$0xff]
    %v333 = vld [vmem:[%s1 + $0x988] sm:$0xff]
    %v334 = vld [vmem:[%s1 + $0x990] sm:$0xff]
    %v335 = vld [vmem:[%s1 + $0x998] sm:$0xff]
    %v336 = vld [vmem:[%s1 + $0x9a0] sm:$0xff]
    %v337 = vld [vmem:[%s1 + $0x9a8] sm:$0xff]
    %v338 = vld [vmem:[%s1 + $0x9b0] sm:$0xff]
    %v339 = vld [vmem:[%s1 + $0x9b8] sm:$0xff]
    %v340 = vld [vmem:[%s1 + $0x9c0] sm:$0xff]
    %v341 = vld [vmem:[%s1 + $0x9c8] sm:$0xff]
    %v342 = vld [vmem:[%s1 + $0x9d0] sm:$0xff]
    %v343 = vld [vmem:[%s1 + $0x9d8] sm:$0xff]
    %v344 = vld [vmem:[%s1 + $0x9e0] sm:$0xff]
    %v345 = vld [vmem:[%s1 + $0x9e8] sm:$0xff]
    %v346 = vld [vmem:[%s1 + $0x9f0] sm:$0xff]
    %v347 = vld [vmem:[%s1 + $0x9f8] sm:$0xff]
    %v348 = vld [vmem:[%s1 + $0xa00] sm:$0xff]
    %v349 = vld [vmem:[%s1 + $0xa08] sm:$0xff]
    %v350 = vld [vmem:[%s1 + $0xa10] sm:$0xff]
    %v351 = vld [vmem:[%s1 + $0xa18] sm:$0xff]
    %v352 = vld [vmem:[%s1 + $0xa20] sm:$0xff]
    %v353 = vld [vmem:[%s1 + $0xa28] sm:$0xff]
    %v354 = vld [vmem:[%s1 + $0xa30] sm:$0xff]
    %v355 = vld [vmem:[%s1 + $0xa38] sm:$0xff]
    %v356 = vld [vmem:[%s1 + $0xa40] sm:$0xff]
    %v357 = vld [vmem:[%s1 + $0xa48] sm:$0xff]
    %v358 = vld [vmem:[%s1 + $0xa50] sm:$0xff]
    %v359 = vld [vmem:[%s1 + $0xa58] sm:$0xff]
    %v360 = vld [vmem:[%s1 + $0xa60] sm:$0xff]
    %v361 = vld [vmem:[%s1 + $0xa68] sm:$0xff]
    %v362 = vld [vmem:[%s1 + $0xa70] sm:$0xff]
    %v363 = vld [vmem:[%s1 + $0xa78] sm:$0xff]
    %v364 = vld [vmem:[%s1 + $0xa80] sm:$0xff]
    %v365 = vld [vmem:[%s1 + $0xa88] sm:$0xff]
    %v366 = vld [vmem:[%s1 + $0xa90] sm:$0xff]
    %v367 = vld [vmem:[%s1 + $0xa98] sm:$0xff]
    %v368 = vld [vmem:[%s1 + $0xaa0] sm:$0xff]
    %v369 = vld [vmem:[%s1 + $0xaa8] sm:$0xff]
    %v370 = vld [vmem:[%s1 + $0xab0] sm:$0xff]
    %v371 = vld [vmem:[%s1 + $0xab8] sm:$0xff]
    %v372 = vld [vmem:[%s1 + $0xac0] sm:$0xff]
    %v373 = vld [vmem:[%s1 + $0xac8] sm:$0xff]
    %v374 = vld [vmem:[%s1 + $0xad0] sm:$0xff]
    %v375 = vld [vmem:[%s1 + $0xad8] sm:$0xff]
    %v376 = vld [vmem:[%s1 + $0xae0] sm:$0xff]
    %v377 = vld [vmem:[%s1 + $0xae8] sm:$0xff]
    %v378 = vld [vmem:[%s1 + $0xaf0] sm:$0xff]
    %v379 = vld [vmem:[%s1 + $0xaf8] sm:$0xff]
    %v380 = vld [vmem:[%s1 + $0xb00] sm:$0xff]
    %v381 = vld [vmem:[%s1 + $0xb08] sm:$0xff]
    %v382 = vld [vmem:[%s1 + $0xb10] sm:$0xff]
    %v383 = vld [vmem:[%s1 + $0xb18] sm:$0xff]
    %v384 = vld [vmem:[%s1 + $0xb20] sm:$0xff]
    %v385 = vld [vmem:[%s1 + $0xb28] sm:$0xff]
    %v386 = vld [vmem:[%s1 + $0xb30] sm:$0xff]
    %v387 = vld [vmem:[%s1 + $0xb38] sm:$0xff]
    %v388 = vld [vmem:[%s1 + $0xb40] sm:$0xff]
    %v389 = vld [vmem:[%s1 + $0xb48] sm:$0xff]
    %v390 = vld [vmem:[%s1 + $0xb50] sm:$0xff]
    %v391 = vld [vmem:[%s1 + $0xb58] sm:$0xff]
    %v392 = vld [vmem:[%s1 + $0xb60] sm:$0xff]
    %v393 = vld [vmem:[%s1 + $0xb68] sm:$0xff]
    %v394 = vld [vmem:[%s1 + $0xb70] sm:$0xff]
    %v395 = vld [vmem:[%s1 + $0xb78] sm:$0xff]
    %v396 = vld [vmem:[%s1 + $0xb80] sm:$0xff]
    %v397 = vld [vmem:[%s1 + $0xb88] sm:$0xff]
    %v398 = vld [vmem:[%s1 + $0xb90] sm:$0xff]
    %v399 = vld [vmem:[%s1 + $0xb98] sm:$0xff]
    %v400 = vld [vmem:[%s1 + $0xba0] sm:$0xff]
    %v401 = vld [vmem:[%s1 + $0xba8] sm:$0xff]
    %v402 = vld [vmem:[%s1 + $0xbb0] sm:$0xff]
    %v403 = vld [vmem:[%s1 + $0xbb8] sm:$0xff]
    %v404 = vld [vmem:[%s1 + $0xbc0] sm:$0xff]
    %v405 = vld [vmem:[%s1 + $0xbc8] sm:$0xff]
    %v406 = vld [vmem:[%s1 + $0xbd0] sm:$0xff]
    %v407 = vld [vmem:[%s1 + $0xbd8] sm:$0xff]
    %v408 = vld [vmem:[%s1 + $0xbe0] sm:$0xff]
    %v409 = vld [vmem:[%s1 + $0xbe8] sm:$0xff]
    %v410 = vld [vmem:[%s1 + $0xbf0] sm:$0xff]
    %v411 = vld [vmem:[%s1 + $0xbf8] sm:$0xff]
    %v412 = vld [vmem:[%s1 + $0xc00] sm:$0xff]
    %v413 = vld [vmem:[%s1 + $0xc08] sm:$0xff]
    %v414 = vld [vmem:[%s1 + $0xc10] sm:$0xff]
    %v415 = vld [vmem:[%s1 + $0xc18] sm:$0xff]
    %v416 = vld [vmem:[%s1 + $0xc20] sm:$0xff]
    %v417 = vld [vmem:[%s1 + $0xc28] sm:$0xff]
    %v418 = vld [vmem:[%s1 + $0xc30] sm:$0xff]
    %v419 = vld [vmem:[%s1 + $0xc38] sm:$0xff]
    %v420 = vld [vmem:[%s2] sm:$0x1]
    %v422 = vperm.slane %v420, 0
    %431 = vst [vmem:[#allocation1] ss:$4 sm:$0xff] %v21
    %s432 = scalar_lea.vmem [#allocation1], 32
    %433 = vst [vmem:[%s432] ss:$4 sm:$0xff] %v22
    %v434 = vld.sshfl [vmem:[#allocation1] sm:$0xff pattern:$0x73625140]
    %v435 = vld.sshfl [vmem:[#allocation1 + $0x8] sm:$0xff pattern:$0x73625140]
    %v436 = vld.sshfl [vmem:[#allocation1 + $0x10] sm:$0xff pattern:$0x73625140]
    %v437 = vld.sshfl [vmem:[#allocation1 + $0x18] sm:$0xff pattern:$0x73625140]
    %v438 = vld.sshfl [vmem:[#allocation1 + $0x20] sm:$0xff pattern:$0x73625140]
    %v439 = vld.sshfl [vmem:[#allocation1 + $0x28] sm:$0xff pattern:$0x73625140]
    %v440 = vld.sshfl [vmem:[#allocation1 + $0x30] sm:$0xff pattern:$0x73625140]
    %v441 = vld.sshfl [vmem:[#allocation1 + $0x38] sm:$0xff pattern:$0x73625140]
    %442 = vst [vmem:[#allocation1] ss:$4 sm:$0xff] %v23
    %443 = vst [vmem:[%s432] ss:$4 sm:$0xff] %v24
    %v444 = vld.sshfl [vmem:[#allocation1] sm:$0xff pattern:$0x73625140]
    %v445 = vld.sshfl [vmem:[#allocation1 + $0x8] sm:$0xff pattern:$0x73625140]
    %v446 = vld.sshfl [vmem:[#allocation1 + $0x10] sm:$0xff pattern:$0x73625140]
    %v447 = vld.sshfl [vmem:[#allocation1 + $0x18] sm:$0xff pattern:$0x73625140]
    %v448 = vld.sshfl [vmem:[#allocation1 + $0x20] sm:$0xff pattern:$0x73625140]
    %v449 = vld.sshfl [vmem:[#allocation1 + $0x28] sm:$0xff pattern:$0x73625140]
    %v450 = vld.sshfl [vmem:[#allocation1 + $0x30] sm:$0xff pattern:$0x73625140]
    %v451 = vld.sshfl [vmem:[#allocation1 + $0x38] sm:$0xff pattern:$0x73625140]
    %452 = vst [vmem:[#allocation1] ss:$4 sm:$0xff] %v25
    %453 = vst [vmem:[%s432] ss:$4 sm:$0xff] %v26
    %v454 = vld.sshfl [vmem:[#allocation1] sm:$0xff pattern:$0x73625140]
    %v455 = vld.sshfl [vmem:[#allocation1 + $0x8] sm:$0xff pattern:$0x73625140]
    %v456 = vld.sshfl [vmem:[#allocation1 + $0x10] sm:$0xff pattern:$0x73625140]
    %v457 = vld.sshfl [vmem:[#allocation1 + $0x18] sm:$0xff pattern:$0x73625140]
    %v458 = vld.sshfl [vmem:[#allocation1 + $0x20] sm:$0xff pattern:$0x73625140]
    %v459 = vld.sshfl [vmem:[#allocation1 + $0x28] sm:$0xff pattern:$0x73625140]
    %v460 = vld.sshfl [vmem:[#allocation1 + $0x30] sm:$0xff pattern:$0x73625140]
    %v461 = vld.sshfl [vmem:[#allocation1 + $0x38] sm:$0xff pattern:$0x73625140]
    %462 = vst [vmem:[#allocation1] ss:$4 sm:$0xff] %v27
    %v463 = vld.sshfl [vmem:[#allocation1] sm:$0xff pattern:$0x73625140]
    %vm488 = vcmask 523264
    %v489 = vsel %vm488, %v463, 0
    %491 = vmatpush.msra.mxu0 %v43
    %492 = vmatpush.msra.mxu0 %v42
    %493 = vmatpush.msra.mxu0 %v41
    %494 = vmatpush.msra.mxu0 %v40
    %495 = vmatpush.msra.mxu0 %v39
    %496 = vmatpush.msra.mxu0 %v38
    %497 = vmatpush.msra.mxu0 %v37
    %498 = vmatpush.msra.mxu0 %v36
    %499 = vmatpush.msra.mxu0 %v35
    %500 = vmatpush.msra.mxu0 %v34
    %501 = vmatpush.msra.mxu0 %v33
    %502 = vmatpush.msra.mxu0 %v32
    %503 = vmatpush.msra.mxu0 %v31
    %504 = vmatpush.msra.mxu0 %v30
    %505 = vmatpush.msra.mxu0 %v29
    %506 = vmatpush.msra.mxu0 %v28
    %507 = vmatmul.f32.gmra.mxu0 %v434
    %v508 = vpop.f32.mrf.mxu0
    %v509 = vadd.f32 %v422, %v508
    %510 = vdwg.mxu0
    %511 = vmatpush.msra.mxu0 %v59
    %512 = vmatpush.msra.mxu0 %v58
    %513 = vmatpush.msra.mxu0 %v57
    %514 = vmatpush.msra.mxu0 %v56
    %515 = vmatpush.msra.mxu0 %v55
    %516 = vmatpush.msra.mxu0 %v54
    %517 = vmatpush.msra.mxu0 %v53
    %518 = vmatpush.msra.mxu0 %v52
    %519 = vmatpush.msra.mxu0 %v51
    %520 = vmatpush.msra.mxu0 %v50
    %521 = vmatpush.msra.mxu0 %v49
    %522 = vmatpush.msra.mxu0 %v48
    %523 = vmatpush.msra.mxu0 %v47
    %524 = vmatpush.msra.mxu0 %v46
    %525 = vmatpush.msra.mxu0 %v45
    %526 = vmatpush.msra.mxu0 %v44
    %527 = vmatmul.f32.gmra.mxu0 %v435
    %v528 = vpop.f32.mrf.mxu0
    %v529 = vadd.f32 %v509, %v528
    %530 = vdwg.mxu0
    %531 = vmatpush.msra.mxu0 %v75
    %532 = vmatpush.msra.mxu0 %v74
    %533 = vmatpush.msra.mxu0 %v73
    %534 = vmatpush.msra.mxu0 %v72
    %535 = vmatpush.msra.mxu0 %v71
    %536 = vmatpush.msra.mxu0 %v70
    %537 = vmatpush.msra.mxu0 %v69
    %538 = vmatpush.msra.mxu0 %v68
    %539 = vmatpush.msra.mxu0 %v67
    %540 = vmatpush.msra.mxu0 %v66
    %541 = vmatpush.msra.mxu0 %v65
    %542 = vmatpush.msra.mxu0 %v64
    %543 = vmatpush.msra.mxu0 %v63
    %544 = vmatpush.msra.mxu0 %v62
    %545 = vmatpush.msra.mxu0 %v61
    %546 = vmatpush.msra.mxu0 %v60
    %547 = vmatmul.f32.gmra.mxu0 %v436
    %v548 = vpop.f32.mrf.mxu0
    %v549 = vadd.f32 %v529, %v548
    %550 = vdwg.mxu0
    %551 = vmatpush.msra.mxu0 %v91
    %552 = vmatpush.msra.mxu0 %v90
    %553 = vmatpush.msra.mxu0 %v89
    %554 = vmatpush.msra.mxu0 %v88
    %555 = vmatpush.msra.mxu0 %v87
    %556 = vmatpush.msra.mxu0 %v86
    %557 = vmatpush.msra.mxu0 %v85
    %558 = vmatpush.msra.mxu0 %v84
    %559 = vmatpush.msra.mxu0 %v83
    %560 = vmatpush.msra.mxu0 %v82
    %561 = vmatpush.msra.mxu0 %v81
    %562 = vmatpush.msra.mxu0 %v80
    %563 = vmatpush.msra.mxu0 %v79
    %564 = vmatpush.msra.mxu0 %v78
    %565 = vmatpush.msra.mxu0 %v77
    %566 = vmatpush.msra.mxu0 %v76
    %567 = vmatmul.f32.gmra.mxu0 %v437
    %v568 = vpop.f32.mrf.mxu0
    %v569 = vadd.f32 %v549, %v568
    %570 = vdwg.mxu0
    %571 = vmatpush.msra.mxu0 %v107
    %572 = vmatpush.msra.mxu0 %v106
    %573 = vmatpush.msra.mxu0 %v105
    %574 = vmatpush.msra.mxu0 %v104
    %575 = vmatpush.msra.mxu0 %v103
    %576 = vmatpush.msra.mxu0 %v102
    %577 = vmatpush.msra.mxu0 %v101
    %578 = vmatpush.msra.mxu0 %v100
    %579 = vmatpush.msra.mxu0 %v99
    %580 = vmatpush.msra.mxu0 %v98
    %581 = vmatpush.msra.mxu0 %v97
    %582 = vmatpush.msra.mxu0 %v96
    %583 = vmatpush.msra.mxu0 %v95
    %584 = vmatpush.msra.mxu0 %v94
    %585 = vmatpush.msra.mxu0 %v93
    %586 = vmatpush.msra.mxu0 %v92
    %587 = vmatmul.f32.gmra.mxu0 %v438
    %v588 = vpop.f32.mrf.mxu0
    %v589 = vadd.f32 %v569, %v588
    %590 = vdwg.mxu0
    %591 = vmatpush.msra.mxu0 %v123
    %592 = vmatpush.msra.mxu0 %v122
    %593 = vmatpush.msra.mxu0 %v121
    %594 = vmatpush.msra.mxu0 %v120
    %595 = vmatpush.msra.mxu0 %v119
    %596 = vmatpush.msra.mxu0 %v118
    %597 = vmatpush.msra.mxu0 %v117
    %598 = vmatpush.msra.mxu0 %v116
    %599 = vmatpush.msra.mxu0 %v115
    %600 = vmatpush.msra.mxu0 %v114
    %601 = vmatpush.msra.mxu0 %v113
    %602 = vmatpush.msra.mxu0 %v112
    %603 = vmatpush.msra.mxu0 %v111
    %604 = vmatpush.msra.mxu0 %v110
    %605 = vmatpush.msra.mxu0 %v109
    %606 = vmatpush.msra.mxu0 %v108
    %607 = vmatmul.f32.gmra.mxu0 %v439
    %v608 = vpop.f32.mrf.mxu0
    %v609 = vadd.f32 %v589, %v608
    %610 = vdwg.mxu0
    %611 = vmatpush.msra.mxu0 %v139
    %612 = vmatpush.msra.mxu0 %v138
    %613 = vmatpush.msra.mxu0 %v137
    %614 = vmatpush.msra.mxu0 %v136
    %615 = vmatpush.msra.mxu0 %v135
    %616 = vmatpush.msra.mxu0 %v134
    %617 = vmatpush.msra.mxu0 %v133
    %618 = vmatpush.msra.mxu0 %v132
    %619 = vmatpush.msra.mxu0 %v131
    %620 = vmatpush.msra.mxu0 %v130
    %621 = vmatpush.msra.mxu0 %v129
    %622 = vmatpush.msra.mxu0 %v128
    %623 = vmatpush.msra.mxu0 %v127
    %624 = vmatpush.msra.mxu0 %v126
    %625 = vmatpush.msra.mxu0 %v125
    %626 = vmatpush.msra.mxu0 %v124
    %627 = vmatmul.f32.gmra.mxu0 %v440
    %v628 = vpop.f32.mrf.mxu0
    %v629 = vadd.f32 %v609, %v628
    %630 = vdwg.mxu0
    %631 = vmatpush.msra.mxu0 %v155
    %632 = vmatpush.msra.mxu0 %v154
    %633 = vmatpush.msra.mxu0 %v153
    %634 = vmatpush.msra.mxu0 %v152
    %635 = vmatpush.msra.mxu0 %v151
    %636 = vmatpush.msra.mxu0 %v150
    %637 = vmatpush.msra.mxu0 %v149
    %638 = vmatpush.msra.mxu0 %v148
    %639 = vmatpush.msra.mxu0 %v147
    %640 = vmatpush.msra.mxu0 %v146
    %641 = vmatpush.msra.mxu0 %v145
    %642 = vmatpush.msra.mxu0 %v144
    %643 = vmatpush.msra.mxu0 %v143
    %644 = vmatpush.msra.mxu0 %v142
    %645 = vmatpush.msra.mxu0 %v141
    %646 = vmatpush.msra.mxu0 %v140
    %647 = vmatmul.f32.gmra.mxu0 %v441
    %v648 = vpop.f32.mrf.mxu0
    %v649 = vadd.f32 %v629, %v648
    %650 = vdwg.mxu0
    %651 = vmatpush.msra.mxu0 %v171
    %652 = vmatpush.msra.mxu0 %v170
    %653 = vmatpush.msra.mxu0 %v169
    %654 = vmatpush.msra.mxu0 %v168
    %655 = vmatpush.msra.mxu0 %v167
    %656 = vmatpush.msra.mxu0 %v166
    %657 = vmatpush.msra.mxu0 %v165
    %658 = vmatpush.msra.mxu0 %v164
    %659 = vmatpush.msra.mxu0 %v163
    %660 = vmatpush.msra.mxu0 %v162
    %661 = vmatpush.msra.mxu0 %v161
    %662 = vmatpush.msra.mxu0 %v160
    %663 = vmatpush.msra.mxu0 %v159
    %664 = vmatpush.msra.mxu0 %v158
    %665 = vmatpush.msra.mxu0 %v157
    %666 = vmatpush.msra.mxu0 %v156
    %667 = vmatmul.f32.gmra.mxu0 %v444
    %v668 = vpop.f32.mrf.mxu0
    %v669 = vadd.f32 %v649, %v668
    %670 = vdwg.mxu0
    %671 = vmatpush.msra.mxu0 %v187
    %672 = vmatpush.msra.mxu0 %v186
    %673 = vmatpush.msra.mxu0 %v185
    %674 = vmatpush.msra.mxu0 %v184
    %675 = vmatpush.msra.mxu0 %v183
    %676 = vmatpush.msra.mxu0 %v182
    %677 = vmatpush.msra.mxu0 %v181
    %678 = vmatpush.msra.mxu0 %v180
    %679 = vmatpush.msra.mxu0 %v179
    %680 = vmatpush.msra.mxu0 %v178
    %681 = vmatpush.msra.mxu0 %v177
    %682 = vmatpush.msra.mxu0 %v176
    %683 = vmatpush.msra.mxu0 %v175
    %684 = vmatpush.msra.mxu0 %v174
    %685 = vmatpush.msra.mxu0 %v173
    %686 = vmatpush.msra.mxu0 %v172
    %687 = vmatmul.f32.gmra.mxu0 %v445
    %v688 = vpop.f32.mrf.mxu0
    %v689 = vadd.f32 %v669, %v688
    %690 = vdwg.mxu0
    %691 = vmatpush.msra.mxu0 %v203
    %692 = vmatpush.msra.mxu0 %v202
    %693 = vmatpush.msra.mxu0 %v201
    %694 = vmatpush.msra.mxu0 %v200
    %695 = vmatpush.msra.mxu0 %v199
    %696 = vmatpush.msra.mxu0 %v198
    %697 = vmatpush.msra.mxu0 %v197
    %698 = vmatpush.msra.mxu0 %v196
    %699 = vmatpush.msra.mxu0 %v195
    %700 = vmatpush.msra.mxu0 %v194
    %701 = vmatpush.msra.mxu0 %v193
    %702 = vmatpush.msra.mxu0 %v192
    %703 = vmatpush.msra.mxu0 %v191
    %704 = vmatpush.msra.mxu0 %v190
    %705 = vmatpush.msra.mxu0 %v189
    %706 = vmatpush.msra.mxu0 %v188
    %707 = vmatmul.f32.gmra.mxu0 %v446
    %v708 = vpop.f32.mrf.mxu0
    %v709 = vadd.f32 %v689, %v708
    %710 = vdwg.mxu0
    %711 = vmatpush.msra.mxu0 %v219
    %712 = vmatpush.msra.mxu0 %v218
    %713 = vmatpush.msra.mxu0 %v217
    %714 = vmatpush.msra.mxu0 %v216
    %715 = vmatpush.msra.mxu0 %v215
    %716 = vmatpush.msra.mxu0 %v214
    %717 = vmatpush.msra.mxu0 %v213
    %718 = vmatpush.msra.mxu0 %v212
    %719 = vmatpush.msra.mxu0 %v211
    %720 = vmatpush.msra.mxu0 %v210
    %721 = vmatpush.msra.mxu0 %v209
    %722 = vmatpush.msra.mxu0 %v208
    %723 = vmatpush.msra.mxu0 %v207
    %724 = vmatpush.msra.mxu0 %v206
    %725 = vmatpush.msra.mxu0 %v205
    %726 = vmatpush.msra.mxu0 %v204
    %727 = vmatmul.f32.gmra.mxu0 %v447
    %v728 = vpop.f32.mrf.mxu0
    %v729 = vadd.f32 %v709, %v728
    %730 = vdwg.mxu0
    %731 = vmatpush.msra.mxu0 %v235
    %732 = vmatpush.msra.mxu0 %v234
    %733 = vmatpush.msra.mxu0 %v233
    %734 = vmatpush.msra.mxu0 %v232
    %735 = vmatpush.msra.mxu0 %v231
    %736 = vmatpush.msra.mxu0 %v230
    %737 = vmatpush.msra.mxu0 %v229
    %738 = vmatpush.msra.mxu0 %v228
    %739 = vmatpush.msra.mxu0 %v227
    %740 = vmatpush.msra.mxu0 %v226
    %741 = vmatpush.msra.mxu0 %v225
    %742 = vmatpush.msra.mxu0 %v224
    %743 = vmatpush.msra.mxu0 %v223
    %744 = vmatpush.msra.mxu0 %v222
    %745 = vmatpush.msra.mxu0 %v221
    %746 = vmatpush.msra.mxu0 %v220
    %747 = vmatmul.f32.gmra.mxu0 %v448
    %v748 = vpop.f32.mrf.mxu0
    %v749 = vadd.f32 %v729, %v748
    %750 = vdwg.mxu0
    %751 = vmatpush.msra.mxu0 %v251
    %752 = vmatpush.msra.mxu0 %v250
    %753 = vmatpush.msra.mxu0 %v249
    %754 = vmatpush.msra.mxu0 %v248
    %755 = vmatpush.msra.mxu0 %v247
    %756 = vmatpush.msra.mxu0 %v246
    %757 = vmatpush.msra.mxu0 %v245
    %758 = vmatpush.msra.mxu0 %v244
    %759 = vmatpush.msra.mxu0 %v243
    %760 = vmatpush.msra.mxu0 %v242
    %761 = vmatpush.msra.mxu0 %v241
    %762 = vmatpush.msra.mxu0 %v240
    %763 = vmatpush.msra.mxu0 %v239
    %764 = vmatpush.msra.mxu0 %v238
    %765 = vmatpush.msra.mxu0 %v237
    %766 = vmatpush.msra.mxu0 %v236
    %767 = vmatmul.f32.gmra.mxu0 %v449
    %v768 = vpop.f32.mrf.mxu0
    %v769 = vadd.f32 %v749, %v768
    %770 = vdwg.mxu0
    %771 = vmatpush.msra.mxu0 %v267
    %772 = vmatpush.msra.mxu0 %v266
    %773 = vmatpush.msra.mxu0 %v265
    %774 = vmatpush.msra.mxu0 %v264
    %775 = vmatpush.msra.mxu0 %v263
    %776 = vmatpush.msra.mxu0 %v262
    %777 = vmatpush.msra.mxu0 %v261
    %778 = vmatpush.msra.mxu0 %v260
    %779 = vmatpush.msra.mxu0 %v259
    %780 = vmatpush.msra.mxu0 %v258
    %781 = vmatpush.msra.mxu0 %v257
    %782 = vmatpush.msra.mxu0 %v256
    %783 = vmatpush.msra.mxu0 %v255
    %784 = vmatpush.msra.mxu0 %v254
    %785 = vmatpush.msra.mxu0 %v253
    %786 = vmatpush.msra.mxu0 %v252
    %787 = vmatmul.f32.gmra.mxu0 %v450
    %v788 = vpop.f32.mrf.mxu0
    %v789 = vadd.f32 %v769, %v788
    %790 = vdwg.mxu0
    %791 = vmatpush.msra.mxu0 %v283
    %792 = vmatpush.msra.mxu0 %v282
    %793 = vmatpush.msra.mxu0 %v281
    %794 = vmatpush.msra.mxu0 %v280
    %795 = vmatpush.msra.mxu0 %v279
    %796 = vmatpush.msra.mxu0 %v278
    %797 = vmatpush.msra.mxu0 %v277
    %798 = vmatpush.msra.mxu0 %v276
    %799 = vmatpush.msra.mxu0 %v275
    %800 = vmatpush.msra.mxu0 %v274
    %801 = vmatpush.msra.mxu0 %v273
    %802 = vmatpush.msra.mxu0 %v272
    %803 = vmatpush.msra.mxu0 %v271
    %804 = vmatpush.msra.mxu0 %v270
    %805 = vmatpush.msra.mxu0 %v269
    %806 = vmatpush.msra.mxu0 %v268
    %807 = vmatmul.f32.gmra.mxu0 %v451
    %v808 = vpop.f32.mrf.mxu0
    %v809 = vadd.f32 %v789, %v808
    %810 = vdwg.mxu0
    %811 = vmatpush.msra.mxu0 %v299
    %812 = vmatpush.msra.mxu0 %v298
    %813 = vmatpush.msra.mxu0 %v297
    %814 = vmatpush.msra.mxu0 %v296
    %815 = vmatpush.msra.mxu0 %v295
    %816 = vmatpush.msra.mxu0 %v294
    %817 = vmatpush.msra.mxu0 %v293
    %818 = vmatpush.msra.mxu0 %v292
    %819 = vmatpush.msra.mxu0 %v291
    %820 = vmatpush.msra.mxu0 %v290
    %821 = vmatpush.msra.mxu0 %v289
    %822 = vmatpush.msra.mxu0 %v288
    %823 = vmatpush.msra.mxu0 %v287
    %824 = vmatpush.msra.mxu0 %v286
    %825 = vmatpush.msra.mxu0 %v285
    %826 = vmatpush.msra.mxu0 %v284
    %827 = vmatmul.f32.gmra.mxu0 %v454
    %v828 = vpop.f32.mrf.mxu0
    %v829 = vadd.f32 %v809, %v828
    %830 = vdwg.mxu0
    %831 = vmatpush.msra.mxu0 %v315
    %832 = vmatpush.msra.mxu0 %v314
    %833 = vmatpush.msra.mxu0 %v313
    %834 = vmatpush.msra.mxu0 %v312
    %835 = vmatpush.msra.mxu0 %v311
    %836 = vmatpush.msra.mxu0 %v310
    %837 = vmatpush.msra.mxu0 %v309
    %838 = vmatpush.msra.mxu0 %v308
    %839 = vmatpush.msra.mxu0 %v307
    %840 = vmatpush.msra.mxu0 %v306
    %841 = vmatpush.msra.mxu0 %v305
    %842 = vmatpush.msra.mxu0 %v304
    %843 = vmatpush.msra.mxu0 %v303
    %844 = vmatpush.msra.mxu0 %v302
    %845 = vmatpush.msra.mxu0 %v301
    %846 = vmatpush.msra.mxu0 %v300
    %847 = vmatmul.f32.gmra.mxu0 %v455
    %v848 = vpop.f32.mrf.mxu0
    %v849 = vadd.f32 %v829, %v848
    %850 = vdwg.mxu0
    %851 = vmatpush.msra.mxu0 %v331
    %852 = vmatpush.msra.mxu0 %v330
    %853 = vmatpush.msra.mxu0 %v329
    %854 = vmatpush.msra.mxu0 %v328
    %855 = vmatpush.msra.mxu0 %v327
    %856 = vmatpush.msra.mxu0 %v326
    %857 = vmatpush.msra.mxu0 %v325
    %858 = vmatpush.msra.mxu0 %v324
    %859 = vmatpush.msra.mxu0 %v323
    %860 = vmatpush.msra.mxu0 %v322
    %861 = vmatpush.msra.mxu0 %v321
    %862 = vmatpush.msra.mxu0 %v320
    %863 = vmatpush.msra.mxu0 %v319
    %864 = vmatpush.msra.mxu0 %v318
    %865 = vmatpush.msra.mxu0 %v317
    %866 = vmatpush.msra.mxu0 %v316
    %867 = vmatmul.f32.gmra.mxu0 %v456
    %v868 = vpop.f32.mrf.mxu0
    %v869 = vadd.f32 %v849, %v868
    %870 = vdwg.mxu0
    %871 = vmatpush.msra.mxu0 %v347
    %872 = vmatpush.msra.mxu0 %v346
    %873 = vmatpush.msra.mxu0 %v345
    %874 = vmatpush.msra.mxu0 %v344
    %875 = vmatpush.msra.mxu0 %v343
    %876 = vmatpush.msra.mxu0 %v342
    %877 = vmatpush.msra.mxu0 %v341
    %878 = vmatpush.msra.mxu0 %v340
    %879 = vmatpush.msra.mxu0 %v339
    %880 = vmatpush.msra.mxu0 %v338
    %881 = vmatpush.msra.mxu0 %v337
    %882 = vmatpush.msra.mxu0 %v336
    %883 = vmatpush.msra.mxu0 %v335
    %884 = vmatpush.msra.mxu0 %v334
    %885 = vmatpush.msra.mxu0 %v333
    %886 = vmatpush.msra.mxu0 %v332
    %887 = vmatmul.f32.gmra.mxu0 %v457
    %v888 = vpop.f32.mrf.mxu0
    %v889 = vadd.f32 %v869, %v888
    %890 = vdwg.mxu0
    %891 = vmatpush.msra.mxu0 %v363
    %892 = vmatpush.msra.mxu0 %v362
    %893 = vmatpush.msra.mxu0 %v361
    %894 = vmatpush.msra.mxu0 %v360
    %895 = vmatpush.msra.mxu0 %v359
    %896 = vmatpush.msra.mxu0 %v358
    %897 = vmatpush.msra.mxu0 %v357
    %898 = vmatpush.msra.mxu0 %v356
    %899 = vmatpush.msra.mxu0 %v355
    %900 = vmatpush.msra.mxu0 %v354
    %901 = vmatpush.msra.mxu0 %v353
    %902 = vmatpush.msra.mxu0 %v352
    %903 = vmatpush.msra.mxu0 %v351
    %904 = vmatpush.msra.mxu0 %v350
    %905 = vmatpush.msra.mxu0 %v349
    %906 = vmatpush.msra.mxu0 %v348
    %907 = vmatmul.f32.gmra.mxu0 %v458
    %v908 = vpop.f32.mrf.mxu0
    %v909 = vadd.f32 %v889, %v908
    %910 = vdwg.mxu0
    %911 = vmatpush.msra.mxu0 %v379
    %912 = vmatpush.msra.mxu0 %v378
    %913 = vmatpush.msra.mxu0 %v377
    %914 = vmatpush.msra.mxu0 %v376
    %915 = vmatpush.msra.mxu0 %v375
    %916 = vmatpush.msra.mxu0 %v374
    %917 = vmatpush.msra.mxu0 %v373
    %918 = vmatpush.msra.mxu0 %v372
    %919 = vmatpush.msra.mxu0 %v371
    %920 = vmatpush.msra.mxu0 %v370
    %921 = vmatpush.msra.mxu0 %v369
    %922 = vmatpush.msra.mxu0 %v368
    %923 = vmatpush.msra.mxu0 %v367
    %924 = vmatpush.msra.mxu0 %v366
    %925 = vmatpush.msra.mxu0 %v365
    %926 = vmatpush.msra.mxu0 %v364
    %927 = vmatmul.f32.gmra.mxu0 %v459
    %v928 = vpop.f32.mrf.mxu0
    %v929 = vadd.f32 %v909, %v928
    %930 = vdwg.mxu0
    %931 = vmatpush.msra.mxu0 %v395
    %932 = vmatpush.msra.mxu0 %v394
    %933 = vmatpush.msra.mxu0 %v393
    %934 = vmatpush.msra.mxu0 %v392
    %935 = vmatpush.msra.mxu0 %v391
    %936 = vmatpush.msra.mxu0 %v390
    %937 = vmatpush.msra.mxu0 %v389
    %938 = vmatpush.msra.mxu0 %v388
    %939 = vmatpush.msra.mxu0 %v387
    %940 = vmatpush.msra.mxu0 %v386
    %941 = vmatpush.msra.mxu0 %v385
    %942 = vmatpush.msra.mxu0 %v384
    %943 = vmatpush.msra.mxu0 %v383
    %944 = vmatpush.msra.mxu0 %v382
    %945 = vmatpush.msra.mxu0 %v381
    %946 = vmatpush.msra.mxu0 %v380
    %947 = vmatmul.f32.gmra.mxu0 %v460
    %v948 = vpop.f32.mrf.mxu0
    %v949 = vadd.f32 %v929, %v948
    %950 = vdwg.mxu0
    %951 = vmatpush.msra.mxu0 %v411
    %952 = vmatpush.msra.mxu0 %v410
    %953 = vmatpush.msra.mxu0 %v409
    %954 = vmatpush.msra.mxu0 %v408
    %955 = vmatpush.msra.mxu0 %v407
    %956 = vmatpush.msra.mxu0 %v406
    %957 = vmatpush.msra.mxu0 %v405
    %958 = vmatpush.msra.mxu0 %v404
    %959 = vmatpush.msra.mxu0 %v403
    %960 = vmatpush.msra.mxu0 %v402
    %961 = vmatpush.msra.mxu0 %v401
    %962 = vmatpush.msra.mxu0 %v400
    %963 = vmatpush.msra.mxu0 %v399
    %964 = vmatpush.msra.mxu0 %v398
    %965 = vmatpush.msra.mxu0 %v397
    %966 = vmatpush.msra.mxu0 %v396
    %967 = vmatmul.f32.gmra.mxu0 %v461
    %v968 = vpop.f32.mrf.mxu0
    %v969 = vadd.f32 %v949, %v968
    %970 = vdwg.mxu0
    %971 = vmatpush.msra.mxu0 0.0
    %972 = vmatpush.msra.mxu0 0.0
    %973 = vmatpush.msra.mxu0 0.0
    %974 = vmatpush.msra.mxu0 0.0
    %975 = vmatpush.msra.mxu0 0.0
    %976 = vmatpush.msra.mxu0 0.0
    %977 = vmatpush.msra.mxu0 0.0
    %978 = vmatpush.msra.mxu0 0.0
    %979 = vmatpush.msra.mxu0 %v419
    %980 = vmatpush.msra.mxu0 %v418
    %981 = vmatpush.msra.mxu0 %v417
    %982 = vmatpush.msra.mxu0 %v416
    %983 = vmatpush.msra.mxu0 %v415
    %984 = vmatpush.msra.mxu0 %v414
    %985 = vmatpush.msra.mxu0 %v413
    %986 = vmatpush.msra.mxu0 %v412
    %987 = vmatmul.f32.gmra.mxu0 %v489
    %v988 = vpop.f32.mrf.mxu0
    %v989 = vadd.f32 %v969, %v988
    %990 = vdwg.mxu0
    %v991 = vmax.f32 %v989, 0.0
    %v992 = vld [vmem:[%s3] sm:$0xff]
    %v993 = vld [vmem:[%s3 + $0x8] sm:$0xff]
    %v994 = vld [vmem:[%s3 + $0x10] sm:$0xff]
    %v995 = vld [vmem:[%s3 + $0x18] sm:$0xff]
    %v996 = vld [vmem:[%s3 + $0x20] sm:$0xff]
    %v997 = vld [vmem:[%s3 + $0x28] sm:$0xff]
    %v998 = vld [vmem:[%s3 + $0x30] sm:$0xff]
    %v999 = vld [vmem:[%s3 + $0x38] sm:$0xff]
    %v1000 = vld [vmem:[%s3 + $0x40] sm:$0xff]
    %v1001 = vld [vmem:[%s3 + $0x48] sm:$0xff]
    %v1002 = vld [vmem:[%s3 + $0x50] sm:$0xff]
    %v1003 = vld [vmem:[%s3 + $0x58] sm:$0xff]
    %v1004 = vld [vmem:[%s3 + $0x60] sm:$0xff]
    %v1005 = vld [vmem:[%s3 + $0x68] sm:$0xff]
    %v1006 = vld [vmem:[%s3 + $0x70] sm:$0xff]
    %v1007 = vld [vmem:[%s3 + $0x78] sm:$0xff]
    %v1008 = vld [vmem:[%s4] sm:$0x1]
    %v1010 = vperm.slane %v1008, 0
    %1012 = vmatpush.msra.mxu0 %v1007
    %1013 = vmatpush.msra.mxu0 %v1006
    %1014 = vmatpush.msra.mxu0 %v1005
    %1015 = vmatpush.msra.mxu0 %v1004
    %1016 = vmatpush.msra.mxu0 %v1003
    %1017 = vmatpush.msra.mxu0 %v1002
    %1018 = vmatpush.msra.mxu0 %v1001
    %1019 = vmatpush.msra.mxu0 %v1000
    %1020 = vmatpush.msra.mxu0 %v999
    %1021 = vmatpush.msra.mxu0 %v998
    %1022 = vmatpush.msra.mxu0 %v997
    %1023 = vmatpush.msra.mxu0 %v996
    %1024 = vmatpush.msra.mxu0 %v995
    %1025 = vmatpush.msra.mxu0 %v994
    %1026 = vmatpush.msra.mxu0 %v993
    %1027 = vmatpush.msra.mxu0 %v992
    %1028 = vmatmul.f32.gmra.mxu0 %v991
    %v1029 = vpop.f32.mrf.mxu0
    %v1030 = vadd.f32 %v1010, %v1029
    %1031 = vdwg.mxu0
    %vm1032 = vcmask 74752
    %1033 = vst.msk [vmem:[#allocation2] sm:$0x3] %vm1032, %v1030
    // Predicated region
    $region22: #{big_forward_pallas.3} parent=1 // pred_check
      _
    $region23: #{big_forward_pallas.3} parent=1 // pred_check_branch
      %1035 = sbr.rel (0) target = $region25
    $region24: #{big_forward_pallas.3} parent=1 // pred_region
      %1037 = vsyncadd [#allocation3], 0
      %s1039 = sshll.u32 [#allocation2], 4
      %s1040 = int_to_ptr.vmem [resolvable:$true] %s1039
      %s1041 = sshll.u32 %s5, 4
      %s1042 = int_to_ptr.hbm [resolvable:$true] %s1041
      %1044 = dma.vmem_to_hbm [thread:$0]  %s1040, 32, %s1042, [#allocation3]
    $region25: #{big_forward_pallas.3} parent=1 // pred_fallthru
      _
    // Predicated region
    $region26: #{big_forward_pallas.3} parent=1 // pred_check
      _
    $region27: #{big_forward_pallas.3} parent=1 // pred_check_branch
      %1046 = sbr.rel (0) target = $region29
    $region28: #{big_forward_pallas.3} parent=1 // pred_region
      %1048 = dma.done [#allocation3], 32
    $region29: #{big_forward_pallas.3} parent=1 // pred_fallthru
      _
    %1049 = vsyncpa [#allocation3], 1

// kernel: big_forward_pallas.2
$region0: #{big_forward_pallas.2}
  #allocation0 [shape = 'u32[]', space=smem, size = 0x4, offset = 0x4, fixed_abs, tag = 'smem constant byte address 0x4 - core index']
  #allocation1 [shape = 'u32[72,128]{1,0:T(1,128)}', space=vmem, size = 0x9000, scoped, tag = 'internal scratch']
  #allocation2 [shape = 'f32[264,32]{1,0:T(8,128)}', space=vmem, size = 0x21000, scoped, tag = 'scratch operand']
  #allocation3 [shape = 'f32[784,32]{1,0:T(8,128)}', space=vmem, size = 0x62000, scoped, tag = 'scratch operand']
  #allocation4 [shape = 'f32[224,64]{1,0:T(8,128)}', space=vmem, size = 0x1c000, scoped, tag = 'scratch operand']
  #allocation5 [shape = 'f32[28,32]{1,0:T(8,128)}', space=vmem, size = 0x4000, scoped, tag = 'scratch operand']
  #allocation6 [shape = 'f32[14,64]{1,0:T(8,128)}', space=vmem, size = 0x2000, scoped, tag = 'scratch operand']
  %s0 = inlined_call_operand.vmem [shape: f32[2,784,9], index: 0, kind: input, shape index: {}]
  %s1 = inlined_call_operand.vmem [shape: f32[9,32], index: 1, kind: input, shape index: {}]
  %s2 = inlined_call_operand.vmem [shape: f32[1,32], index: 2, kind: input, shape index: {}]
  %s3 = inlined_call_operand.vmem [shape: f32[288,64], index: 3, kind: input, shape index: {}]
  %s4 = inlined_call_operand.vmem [shape: f32[1,64], index: 4, kind: input, shape index: {}]
  %s5 = inlined_call_operand.vmem [shape: f32[2,7,7,64], index: 5, kind: output, shape index: {}]
  %s6 = sld [smem:[#allocation0]]
  $region30: #{big_forward_pallas.2} parent=0
    _
  %s8 = ssub.s32 1, %s6
  %s9 = scalar_select 0, %s8, %s6
  // Predicated region
  $region2: #{big_forward_pallas.2} parent=0 // pred_check
    _
  $region3: #{big_forward_pallas.2} parent=0 // pred_check_branch
    %11 = sbr.rel (0) target = $region5
  $region4: #{big_forward_pallas.2} parent=0 // pred_region
    _
  $region5: #{big_forward_pallas.2} parent=0 // pred_fallthru
    _
  // Predicated region
  $region6: #{big_forward_pallas.2} parent=0 // pred_check
    _
  $region7: #{big_forward_pallas.2} parent=0 // pred_check_branch
    %13 = sbr.rel (0) target = $region9
  $region8: #{big_forward_pallas.2} parent=0 // pred_region
    _
  $region9: #{big_forward_pallas.2} parent=0 // pred_fallthru
    _
  // Predicated region
  $region10: #{big_forward_pallas.2} parent=0 // pred_check
    _
  $region11: #{big_forward_pallas.2} parent=0 // pred_check_branch
    %15 = sbr.rel (0) target = $region13
  $region12: #{big_forward_pallas.2} parent=0 // pred_region
    _
  $region13: #{big_forward_pallas.2} parent=0 // pred_fallthru
    _
  // Predicated region
  $region14: #{big_forward_pallas.2} parent=0 // pred_check
    _
  $region15: #{big_forward_pallas.2} parent=0 // pred_check_branch
    %17 = sbr.rel (0) target = $region17
  $region16: #{big_forward_pallas.2} parent=0 // pred_region
    _
  $region17: #{big_forward_pallas.2} parent=0 // pred_fallthru
    _
  // Predicated region
  $region18: #{big_forward_pallas.2} parent=0 // pred_check
    _
  $region19: #{big_forward_pallas.2} parent=0 // pred_check_branch
    %19 = sbr.rel (0) target = $region21
  $region20: #{big_forward_pallas.2} parent=0 // pred_region
    _
  $region21: #{big_forward_pallas.2} parent=0 // pred_fallthru
    _
  %v20 = vld [vmem:[%s1] sm:$0xff]
  %v21 = vld [vmem:[%s1 + $0x8] sm:$0x1]
  %v22 = vld [vmem:[%s2] sm:$0x1]
  %v23 = vld [vmem:[%s3] sm:$0xff]
  %v24 = vld [vmem:[%s3 + $0x8] sm:$0xff]
  %v25 = vld [vmem:[%s3 + $0x10] sm:$0xff]
  %v26 = vld [vmem:[%s3 + $0x18] sm:$0xff]
  %v27 = vld [vmem:[%s3 + $0x20] sm:$0xff]
  %v28 = vld [vmem:[%s3 + $0x28] sm:$0xff]
  %v29 = vld [vmem:[%s3 + $0x30] sm:$0xff]
  %v30 = vld [vmem:[%s3 + $0x38] sm:$0xff]
  %v31 = vld [vmem:[%s3 + $0x40] sm:$0xff]
  %v32 = vld [vmem:[%s3 + $0x48] sm:$0xff]
  %v33 = vld [vmem:[%s3 + $0x50] sm:$0xff]
  %v34 = vld [vmem:[%s3 + $0x58] sm:$0xff]
  %v35 = vld [vmem:[%s3 + $0x60] sm:$0xff]
  %v36 = vld [vmem:[%s3 + $0x68] sm:$0xff]
  %v37 = vld [vmem:[%s3 + $0x70] sm:$0xff]
  %v38 = vld [vmem:[%s3 + $0x78] sm:$0xff]
  %v39 = vld [vmem:[%s3 + $0x80] sm:$0xff]
  %v40 = vld [vmem:[%s3 + $0x88] sm:$0xff]
  %v41 = vld [vmem:[%s3 + $0x90] sm:$0xff]
  %v42 = vld [vmem:[%s3 + $0x98] sm:$0xff]
  %v43 = vld [vmem:[%s3 + $0xa0] sm:$0xff]
  %v44 = vld [vmem:[%s3 + $0xa8] sm:$0xff]
  %v45 = vld [vmem:[%s3 + $0xb0] sm:$0xff]
  %v46 = vld [vmem:[%s3 + $0xb8] sm:$0xff]
  %v47 = vld [vmem:[%s3 + $0xc0] sm:$0xff]
  %v48 = vld [vmem:[%s3 + $0xc8] sm:$0xff]
  %v49 = vld [vmem:[%s3 + $0xd0] sm:$0xff]
  %v50 = vld [vmem:[%s3 + $0xd8] sm:$0xff]
  %v51 = vld [vmem:[%s3 + $0xe0] sm:$0xff]
  %v52 = vld [vmem:[%s3 + $0xe8] sm:$0xff]
  %v53 = vld [vmem:[%s3 + $0xf0] sm:$0xff]
  %v54 = vld [vmem:[%s3 + $0xf8] sm:$0xff]
  %v55 = vld [vmem:[%s3 + $0x100] sm:$0xff]
  %v56 = vld [vmem:[%s3 + $0x108] sm:$0xff]
  %v57 = vld [vmem:[%s3 + $0x110] sm:$0xff]
  %v58 = vld [vmem:[%s3 + $0x118] sm:$0xff]
  %v59 = vld [vmem:[%s4] sm:$0x1]
  %vm60 = vcmask 261120
  %61 = vst.msk [vmem:[#allocation2] sm:$0xff] %vm60, 0.0
  %62 = vst.msk [vmem:[#allocation2 + $0x8] sm:$0xff] %vm60, 0.0
  %63 = vst.msk [vmem:[#allocation2 + $0x10] sm:$0xff] %vm60, 0.0
  %64 = vst.msk [vmem:[#allocation2 + $0x18] sm:$0xff] %vm60, 0.0
  %65 = vst.msk [vmem:[#allocation2 + $0x20] sm:$0xff] %vm60, 0.0
  %66 = vst.msk [vmem:[#allocation2 + $0x28] sm:$0xff] %vm60, 0.0
  %67 = vst.msk [vmem:[#allocation2 + $0x30] sm:$0xff] %vm60, 0.0
  %68 = vst.msk [vmem:[#allocation2 + $0x38] sm:$0xff] %vm60, 0.0
  %69 = vst.msk [vmem:[#allocation2 + $0x40] sm:$0xff] %vm60, 0.0
  %70 = vst.msk [vmem:[#allocation2 + $0x48] sm:$0xff] %vm60, 0.0
  %71 = vst.msk [vmem:[#allocation2 + $0x50] sm:$0xff] %vm60, 0.0
  %72 = vst.msk [vmem:[#allocation2 + $0x58] sm:$0xff] %vm60, 0.0
  %73 = vst.msk [vmem:[#allocation2 + $0x60] sm:$0xff] %vm60, 0.0
  %74 = vst.msk [vmem:[#allocation2 + $0x68] sm:$0xff] %vm60, 0.0
  %75 = vst.msk [vmem:[#allocation2 + $0x70] sm:$0xff] %vm60, 0.0
  %76 = vst.msk [vmem:[#allocation2 + $0x78] sm:$0xff] %vm60, 0.0
  %77 = vst.msk [vmem:[#allocation2 + $0x80] sm:$0xff] %vm60, 0.0
  %78 = vst.msk [vmem:[#allocation2 + $0x88] sm:$0xff] %vm60, 0.0
  %79 = vst.msk [vmem:[#allocation2 + $0x90] sm:$0xff] %vm60, 0.0
  %80 = vst.msk [vmem:[#allocation2 + $0x98] sm:$0xff] %vm60, 0.0
  %81 = vst.msk [vmem:[#allocation2 + $0xa0] sm:$0xff] %vm60, 0.0
  %82 = vst.msk [vmem:[#allocation2 + $0xa8] sm:$0xff] %vm60, 0.0
  %83 = vst.msk [vmem:[#allocation2 + $0xb0] sm:$0xff] %vm60, 0.0
  %84 = vst.msk [vmem:[#allocation2 + $0xb8] sm:$0xff] %vm60, 0.0
  %85 = vst.msk [vmem:[#allocation2 + $0xc0] sm:$0xff] %vm60, 0.0
  %86 = vst.msk [vmem:[#allocation2 + $0xc8] sm:$0xff] %vm60, 0.0
  %87 = vst.msk [vmem:[#allocation2 + $0xd0] sm:$0xff] %vm60, 0.0
  %88 = vst.msk [vmem:[#allocation2 + $0xd8] sm:$0xff] %vm60, 0.0
  %89 = vst.msk [vmem:[#allocation2 + $0xe0] sm:$0xff] %vm60, 0.0
  %90 = vst.msk [vmem:[#allocation2 + $0xe8] sm:$0xff] %vm60, 0.0
  %91 = vst.msk [vmem:[#allocation2 + $0xf0] sm:$0xff] %vm60, 0.0
  %92 = vst.msk [vmem:[#allocation2 + $0xf8] sm:$0xff] %vm60, 0.0
  %93 = vst.msk [vmem:[#allocation2 + $0x100] sm:$0xff] %vm60, 0.0
  %v94 = vld [vmem:[%s0] sm:$0xff]
  %v95 = vld [vmem:[%s0 + $0x8] sm:$0xff]
  %v96 = vld [vmem:[%s0 + $0x10] sm:$0xff]
  %v97 = vld [vmem:[%s0 + $0x18] sm:$0xff]
  %v98 = vld [vmem:[%s0 + $0x20] sm:$0xff]
  %v99 = vld [vmem:[%s0 + $0x28] sm:$0xff]
  %v100 = vld [vmem:[%s0 + $0x30] sm:$0xff]
  %v101 = vld [vmem:[%s0 + $0x38] sm:$0xff]
  %v102 = vld [vmem:[%s0 + $0x40] sm:$0xff]
  %v103 = vld [vmem:[%s0 + $0x48] sm:$0xff]
  %v104 = vld [vmem:[%s0 + $0x50] sm:$0xff]
  %v105 = vld [vmem:[%s0 + $0x58] sm:$0xff]
  %v106 = vld [vmem:[%s0 + $0x60] sm:$0xff]
  %v107 = vld [vmem:[%s0 + $0x68] sm:$0xff]
  %v108 = vld [vmem:[%s0 + $0x70] sm:$0xff]
  %v109 = vld [vmem:[%s0 + $0x78] sm:$0xff]
  %v110 = vld [vmem:[%s0 + $0x80] sm:$0xff]
  %v111 = vld [vmem:[%s0 + $0x88] sm:$0xff]
  %v112 = vld [vmem:[%s0 + $0x90] sm:$0xff]
  %v113 = vld [vmem:[%s0 + $0x98] sm:$0xff]
  %v114 = vld [vmem:[%s0 + $0xa0] sm:$0xff]
  %v115 = vld [vmem:[%s0 + $0xa8] sm:$0xff]
  %v116 = vld [vmem:[%s0 + $0xb0] sm:$0xff]
  %v117 = vld [vmem:[%s0 + $0xb8] sm:$0xff]
  %v118 = vld [vmem:[%s0 + $0xc0] sm:$0xff]
  %v119 = vld [vmem:[%s0 + $0xc8] sm:$0xff]
  %v120 = vld [vmem:[%s0 + $0xd0] sm:$0xff]
  %v121 = vld [vmem:[%s0 + $0xd8] sm:$0xff]
  %v122 = vld [vmem:[%s0 + $0xe0] sm:$0xff]
  %v123 = vld [vmem:[%s0 + $0xe8] sm:$0xff]
  %v124 = vld [vmem:[%s0 + $0xf0] sm:$0xff]
  %v125 = vld [vmem:[%s0 + $0xf8] sm:$0xff]
  %v126 = vld [vmem:[%s0 + $0x100] sm:$0xff]
  %v127 = vld [vmem:[%s0 + $0x108] sm:$0xff]
  %v128 = vld [vmem:[%s0 + $0x110] sm:$0xff]
  %v129 = vld [vmem:[%s0 + $0x118] sm:$0xff]
  %v130 = vld [vmem:[%s0 + $0x120] sm:$0xff]
  %v131 = vld [vmem:[%s0 + $0x128] sm:$0xff]
  %v132 = vld [vmem:[%s0 + $0x130] sm:$0xff]
  %v133 = vld [vmem:[%s0 + $0x138] sm:$0xff]
  %v134 = vld [vmem:[%s0 + $0x140] sm:$0xff]
  %v135 = vld [vmem:[%s0 + $0x148] sm:$0xff]
  %v136 = vld [vmem:[%s0 + $0x150] sm:$0xff]
  %v137 = vld [vmem:[%s0 + $0x158] sm:$0xff]
  %v138 = vld [vmem:[%s0 + $0x160] sm:$0xff]
  %v139 = vld [vmem:[%s0 + $0x168] sm:$0xff]
  %v140 = vld [vmem:[%s0 + $0x170] sm:$0xff]
  %v141 = vld [vmem:[%s0 + $0x178] sm:$0xff]
  %v142 = vld [vmem:[%s0 + $0x180] sm:$0xff]
  %v143 = vld [vmem:[%s0 + $0x188] sm:$0xff]
  %v144 = vld [vmem:[%s0 + $0x190] sm:$0xff]
  %v145 = vld [vmem:[%s0 + $0x198] sm:$0xff]
  %v146 = vld [vmem:[%s0 + $0x1a0] sm:$0xff]
  %v147 = vld [vmem:[%s0 + $0x1a8] sm:$0xff]
  %v148 = vld [vmem:[%s0 + $0x1b0] sm:$0xff]
  %v149 = vld [vmem:[%s0 + $0x1b8] sm:$0xff]
  %v150 = vld [vmem:[%s0 + $0x1c0] sm:$0xff]
  %v151 = vld [vmem:[%s0 + $0x1c8] sm:$0xff]
  %v152 = vld [vmem:[%s0 + $0x1d0] sm:$0xff]
  %v153 = vld [vmem:[%s0 + $0x1d8] sm:$0xff]
  %v154 = vld [vmem:[%s0 + $0x1e0] sm:$0xff]
  %v155 = vld [vmem:[%s0 + $0x1e8] sm:$0xff]
  %v156 = vld [vmem:[%s0 + $0x1f0] sm:$0xff]
  %v157 = vld [vmem:[%s0 + $0x1f8] sm:$0xff]
  %v158 = vld [vmem:[%s0 + $0x200] sm:$0xff]
  %v159 = vld [vmem:[%s0 + $0x208] sm:$0xff]
  %v160 = vld [vmem:[%s0 + $0x210] sm:$0xff]
  %v161 = vld [vmem:[%s0 + $0x218] sm:$0xff]
  %v162 = vld [vmem:[%s0 + $0x220] sm:$0xff]
  %v163 = vld [vmem:[%s0 + $0x228] sm:$0xff]
  %v164 = vld [vmem:[%s0 + $0x230] sm:$0xff]
  %v165 = vld [vmem:[%s0 + $0x238] sm:$0xff]
  %v166 = vld [vmem:[%s0 + $0x240] sm:$0xff]
  %v167 = vld [vmem:[%s0 + $0x248] sm:$0xff]
  %v168 = vld [vmem:[%s0 + $0x250] sm:$0xff]
  %v169 = vld [vmem:[%s0 + $0x258] sm:$0xff]
  %v170 = vld [vmem:[%s0 + $0x260] sm:$0xff]
  %v171 = vld [vmem:[%s0 + $0x268] sm:$0xff]
  %v172 = vld [vmem:[%s0 + $0x270] sm:$0xff]
  %v173 = vld [vmem:[%s0 + $0x278] sm:$0xff]
  %v174 = vld [vmem:[%s0 + $0x280] sm:$0xff]
  %v175 = vld [vmem:[%s0 + $0x288] sm:$0xff]
  %v176 = vld [vmem:[%s0 + $0x290] sm:$0xff]
  %v177 = vld [vmem:[%s0 + $0x298] sm:$0xff]
  %v178 = vld [vmem:[%s0 + $0x2a0] sm:$0xff]
  %v179 = vld [vmem:[%s0 + $0x2a8] sm:$0xff]
  %v180 = vld [vmem:[%s0 + $0x2b0] sm:$0xff]
  %v181 = vld [vmem:[%s0 + $0x2b8] sm:$0xff]
  %v182 = vld [vmem:[%s0 + $0x2c0] sm:$0xff]
  %v183 = vld [vmem:[%s0 + $0x2c8] sm:$0xff]
  %v184 = vld [vmem:[%s0 + $0x2d0] sm:$0xff]
  %v185 = vld [vmem:[%s0 + $0x2d8] sm:$0xff]
  %v186 = vld [vmem:[%s0 + $0x2e0] sm:$0xff]
  %v187 = vld [vmem:[%s0 + $0x2e8] sm:$0xff]
  %v188 = vld [vmem:[%s0 + $0x2f0] sm:$0xff]
  %v189 = vld [vmem:[%s0 + $0x2f8] sm:$0xff]
  %v190 = vld [vmem:[%s0 + $0x300] sm:$0xff]
  %v191 = vld [vmem:[%s0 + $0x308] sm:$0xff]
  %vm192 = vcmask 72704
  %v194 = vsel %vm192, %v94, 0
  %v197 = vsel %vm192, %v95, 0
  %v200 = vsel %vm192, %v96, 0
  %v203 = vsel %vm192, %v97, 0
  %v206 = vsel %vm192, %v98, 0
  %v209 = vsel %vm192, %v99, 0
  %v212 = vsel %vm192, %v100, 0
  %v215 = vsel %vm192, %v101, 0
  %v218 = vsel %vm192, %v102, 0
  %v221 = vsel %vm192, %v103, 0
  %v224 = vsel %vm192, %v104, 0
  %v227 = vsel %vm192, %v105, 0
  %v230 = vsel %vm192, %v106, 0
  %v233 = vsel %vm192, %v107, 0
  %v236 = vsel %vm192, %v108, 0
  %v239 = vsel %vm192, %v109, 0
  %v242 = vsel %vm192, %v110, 0
  %v245 = vsel %vm192, %v111, 0
  %v248 = vsel %vm192, %v112, 0
  %v251 = vsel %vm192, %v113, 0
  %v254 = vsel %vm192, %v114, 0
  %v257 = vsel %vm192, %v115, 0
  %v260 = vsel %vm192, %v116, 0
  %v263 = vsel %vm192, %v117, 0
  %v266 = vsel %vm192, %v118, 0
  %v269 = vsel %vm192, %v119, 0
  %v272 = vsel %vm192, %v120, 0
  %v275 = vsel %vm192, %v121, 0
  %v278 = vsel %vm192, %v122, 0
  %v281 = vsel %vm192, %v123, 0
  %v284 = vsel %vm192, %v124, 0
  %v287 = vsel %vm192, %v125, 0
  %v290 = vsel %vm192, %v126, 0
  %v293 = vsel %vm192, %v127, 0
  %v296 = vsel %vm192, %v128, 0
  %v299 = vsel %vm192, %v129, 0
  %v302 = vsel %vm192, %v130, 0
  %v305 = vsel %vm192, %v131, 0
  %v308 = vsel %vm192, %v132, 0
  %v311 = vsel %vm192, %v133, 0
  %v314 = vsel %vm192, %v134, 0
  %v317 = vsel %vm192, %v135, 0
  %v320 = vsel %vm192, %v136, 0
  %v323 = vsel %vm192, %v137, 0
  %v326 = vsel %vm192, %v138, 0
  %v329 = vsel %vm192, %v139, 0
  %v332 = vsel %vm192, %v140, 0
  %v335 = vsel %vm192, %v141, 0
  %v338 = vsel %vm192, %v142, 0
  %v341 = vsel %vm192, %v143, 0
  %v344 = vsel %vm192, %v144, 0
  %v347 = vsel %vm192, %v145, 0
  %v350 = vsel %vm192, %v146, 0
  %v353 = vsel %vm192, %v147, 0
  %v356 = vsel %vm192, %v148, 0
  %v359 = vsel %vm192, %v149, 0
  %v362 = vsel %vm192, %v150, 0
  %v365 = vsel %vm192, %v151, 0
  %v368 = vsel %vm192, %v152, 0
  %v371 = vsel %vm192, %v153, 0
  %v374 = vsel %vm192, %v154, 0
  %v377 = vsel %vm192, %v155, 0
  %v380 = vsel %vm192, %v156, 0
  %v383 = vsel %vm192, %v157, 0
  %v386 = vsel %vm192, %v158, 0
  %v389 = vsel %vm192, %v159, 0
  %v392 = vsel %vm192, %v160, 0
  %v395 = vsel %vm192, %v161, 0
  %v398 = vsel %vm192, %v162, 0
  %v401 = vsel %vm192, %v163, 0
  %v404 = vsel %vm192, %v164, 0
  %v407 = vsel %vm192, %v165, 0
  %v410 = vsel %vm192, %v166, 0
  %v413 = vsel %vm192, %v167, 0
  %v416 = vsel %vm192, %v168, 0
  %v419 = vsel %vm192, %v169, 0
  %v422 = vsel %vm192, %v170, 0
  %v425 = vsel %vm192, %v171, 0
  %v428 = vsel %vm192, %v172, 0
  %v431 = vsel %vm192, %v173, 0
  %v434 = vsel %vm192, %v174, 0
  %v437 = vsel %vm192, %v175, 0
  %v440 = vsel %vm192, %v176, 0
  %v443 = vsel %vm192, %v177, 0
  %v446 = vsel %vm192, %v178, 0
  %v449 = vsel %vm192, %v179, 0
  %v452 = vsel %vm192, %v180, 0
  %v455 = vsel %vm192, %v181, 0
  %v458 = vsel %vm192, %v182, 0
  %v461 = vsel %vm192, %v183, 0
  %v464 = vsel %vm192, %v184, 0
  %v467 = vsel %vm192, %v185, 0
  %v470 = vsel %vm192, %v186, 0
  %v473 = vsel %vm192, %v187, 0
  %v476 = vsel %vm192, %v188, 0
  %v479 = vsel %vm192, %v189, 0
  %v482 = vsel %vm192, %v190, 0
  %v485 = vsel %vm192, %v191, 0
  %vm487 = vcmask 1040384
  %v489 = vsel %vm487, %v21, 0
  %491 = vmatpush.msra.mxu0 0.0
  %492 = vmatpush.msra.mxu0 0.0
  %493 = vmatpush.msra.mxu0 0.0
  %494 = vmatpush.msra.mxu0 0.0
  %495 = vmatpush.msra.mxu0 0.0
  %496 = vmatpush.msra.mxu0 0.0
  %497 = vmatpush.msra.mxu0 0.0
  %498 = vmatpush.msra.mxu0 0.0
  %499 = vmatpush.msra.mxu0 0.0
  %500 = vmatpush.msra.mxu0 0.0
  %501 = vmatpush.msra.mxu0 0.0
  %502 = vmatpush.msra.mxu0 0.0
  %503 = vmatpush.msra.mxu0 0.0
  %504 = vmatpush.msra.mxu0 0.0
  %505 = vmatpush.msra.mxu0 %v489
  %506 = vmatpush.msra.mxu0 %v20
  %507 = vmatmul.f32.gmra.mxu0 %v194
  %v508 = vpop.f32.mrf.mxu0
  %v509 = vadd.f32 0.0, %v508
  %510 = vmatmul.f32.gmra.mxu0 %v197
  %v511 = vpop.f32.mrf.mxu0
  %v512 = vadd.f32 0.0, %v511
  %513 = vmatmul.f32.gmra.mxu0 %v200
  %v514 = vpop.f32.mrf.mxu0
  %v515 = vadd.f32 0.0, %v514
  %516 = vmatmul.f32.gmra.mxu0 %v203
  %v517 = vpop.f32.mrf.mxu0
  %v518 = vadd.f32 0.0, %v517
  %519 = vmatmul.f32.gmra.mxu0 %v206
  %v520 = vpop.f32.mrf.mxu0
  %v521 = vadd.f32 0.0, %v520
  %522 = vmatmul.f32.gmra.mxu0 %v209
  %v523 = vpop.f32.mrf.mxu0
  %v524 = vadd.f32 0.0, %v523
  %525 = vmatmul.f32.gmra.mxu0 %v212
  %v526 = vpop.f32.mrf.mxu0
  %v527 = vadd.f32 0.0, %v526
  %528 = vmatmul.f32.gmra.mxu0 %v215
  %v529 = vpop.f32.mrf.mxu0
  %v530 = vadd.f32 0.0, %v529
  %531 = vmatmul.f32.gmra.mxu0 %v218
  %v532 = vpop.f32.mrf.mxu0
  %v533 = vadd.f32 0.0, %v532
  %534 = vmatmul.f32.gmra.mxu0 %v221
  %v535 = vpop.f32.mrf.mxu0
  %v536 = vadd.f32 0.0, %v535
  %537 = vmatmul.f32.gmra.mxu0 %v224
  %v538 = vpop.f32.mrf.mxu0
  %v539 = vadd.f32 0.0, %v538
  %540 = vmatmul.f32.gmra.mxu0 %v227
  %v541 = vpop.f32.mrf.mxu0
  %v542 = vadd.f32 0.0, %v541
  %543 = vmatmul.f32.gmra.mxu0 %v230
  %v544 = vpop.f32.mrf.mxu0
  %v545 = vadd.f32 0.0, %v544
  %546 = vmatmul.f32.gmra.mxu0 %v233
  %v547 = vpop.f32.mrf.mxu0
  %v548 = vadd.f32 0.0, %v547
  %549 = vmatmul.f32.gmra.mxu0 %v236
  %v550 = vpop.f32.mrf.mxu0
  %v551 = vadd.f32 0.0, %v550
  %552 = vmatmul.f32.gmra.mxu0 %v239
  %v553 = vpop.f32.mrf.mxu0
  %v554 = vadd.f32 0.0, %v553
  %555 = vmatmul.f32.gmra.mxu0 %v242
  %v556 = vpop.f32.mrf.mxu0
  %v557 = vadd.f32 0.0, %v556
  %558 = vmatmul.f32.gmra.mxu0 %v245
  %v559 = vpop.f32.mrf.mxu0
  %v560 = vadd.f32 0.0, %v559
  %561 = vmatmul.f32.gmra.mxu0 %v248
  %v562 = vpop.f32.mrf.mxu0
  %v563 = vadd.f32 0.0, %v562
  %564 = vmatmul.f32.gmra.mxu0 %v251
  %v565 = vpop.f32.mrf.mxu0
  %v566 = vadd.f32 0.0, %v565
  %567 = vmatmul.f32.gmra.mxu0 %v254
  %v568 = vpop.f32.mrf.mxu0
  %v569 = vadd.f32 0.0, %v568
  %570 = vmatmul.f32.gmra.mxu0 %v257
  %v571 = vpop.f32.mrf.mxu0
  %v572 = vadd.f32 0.0, %v571
  %573 = vmatmul.f32.gmra.mxu0 %v260
  %v574 = vpop.f32.mrf.mxu0
  %v575 = vadd.f32 0.0, %v574
  %576 = vmatmul.f32.gmra.mxu0 %v263
  %v577 = vpop.f32.mrf.mxu0
  %v578 = vadd.f32 0.0, %v577
  %579 = vmatmul.f32.gmra.mxu0 %v266
  %v580 = vpop.f32.mrf.mxu0
  %v581 = vadd.f32 0.0, %v580
  %582 = vmatmul.f32.gmra.mxu0 %v269
  %v583 = vpop.f32.mrf.mxu0
  %v584 = vadd.f32 0.0, %v583
  %585 = vmatmul.f32.gmra.mxu0 %v272
  %v586 = vpop.f32.mrf.mxu0
  %v587 = vadd.f32 0.0, %v586
  %588 = vmatmul.f32.gmra.mxu0 %v275
  %v589 = vpop.f32.mrf.mxu0
  %v590 = vadd.f32 0.0, %v589
  %591 = vmatmul.f32.gmra.mxu0 %v278
  %v592 = vpop.f32.mrf.mxu0
  %v593 = vadd.f32 0.0, %v592
  %594 = vmatmul.f32.gmra.mxu0 %v281
  %v595 = vpop.f32.mrf.mxu0
  %v596 = vadd.f32 0.0, %v595
  %597 = vmatmul.f32.gmra.mxu0 %v284
  %v598 = vpop.f32.mrf.mxu0
  %v599 = vadd.f32 0.0, %v598
  %600 = vmatmul.f32.gmra.mxu0 %v287
  %v601 = vpop.f32.mrf.mxu0
  %v602 = vadd.f32 0.0, %v601
  %603 = vmatmul.f32.gmra.mxu0 %v290
  %v604 = vpop.f32.mrf.mxu0
  %v605 = vadd.f32 0.0, %v604
  %606 = vmatmul.f32.gmra.mxu0 %v293
  %v607 = vpop.f32.mrf.mxu0
  %v608 = vadd.f32 0.0, %v607
  %609 = vmatmul.f32.gmra.mxu0 %v296
  %v610 = vpop.f32.mrf.mxu0
  %v611 = vadd.f32 0.0, %v610
  %612 = vmatmul.f32.gmra.mxu0 %v299
  %v613 = vpop.f32.mrf.mxu0
  %v614 = vadd.f32 0.0, %v613
  %615 = vmatmul.f32.gmra.mxu0 %v302
  %v616 = vpop.f32.mrf.mxu0
  %v617 = vadd.f32 0.0, %v616
  %618 = vmatmul.f32.gmra.mxu0 %v305
  %v619 = vpop.f32.mrf.mxu0
  %v620 = vadd.f32 0.0, %v619
  %621 = vmatmul.f32.gmra.mxu0 %v308
  %v622 = vpop.f32.mrf.mxu0
  %v623 = vadd.f32 0.0, %v622
  %624 = vmatmul.f32.gmra.mxu0 %v311
  %v625 = vpop.f32.mrf.mxu0
  %v626 = vadd.f32 0.0, %v625
  %627 = vmatmul.f32.gmra.mxu0 %v314
  %v628 = vpop.f32.mrf.mxu0
  %v629 = vadd.f32 0.0, %v628
  %630 = vmatmul.f32.gmra.mxu0 %v317
  %v631 = vpop.f32.mrf.mxu0
  %v632 = vadd.f32 0.0, %v631
  %633 = vmatmul.f32.gmra.mxu0 %v320
  %v634 = vpop.f32.mrf.mxu0
  %v635 = vadd.f32 0.0, %v634
  %636 = vmatmul.f32.gmra.mxu0 %v323
  %v637 = vpop.f32.mrf.mxu0
  %v638 = vadd.f32 0.0, %v637
  %639 = vmatmul.f32.gmra.mxu0 %v326
  %v640 = vpop.f32.mrf.mxu0
  %v641 = vadd.f32 0.0, %v640
  %642 = vmatmul.f32.gmra.mxu0 %v329
  %v643 = vpop.f32.mrf.mxu0
  %v644 = vadd.f32 0.0, %v643
  %645 = vmatmul.f32.gmra.mxu0 %v332
  %v646 = vpop.f32.mrf.mxu0
  %v647 = vadd.f32 0.0, %v646
  %648 = vmatmul.f32.gmra.mxu0 %v335
  %v649 = vpop.f32.mrf.mxu0
  %v650 = vadd.f32 0.0, %v649
  %651 = vmatmul.f32.gmra.mxu0 %v338
  %v652 = vpop.f32.mrf.mxu0
  %v653 = vadd.f32 0.0, %v652
  %654 = vmatmul.f32.gmra.mxu0 %v341
  %v655 = vpop.f32.mrf.mxu0
  %v656 = vadd.f32 0.0, %v655
  %657 = vmatmul.f32.gmra.mxu0 %v344
  %v658 = vpop.f32.mrf.mxu0
  %v659 = vadd.f32 0.0, %v658
  %660 = vmatmul.f32.gmra.mxu0 %v347
  %v661 = vpop.f32.mrf.mxu0
  %v662 = vadd.f32 0.0, %v661
  %663 = vmatmul.f32.gmra.mxu0 %v350
  %v664 = vpop.f32.mrf.mxu0
  %v665 = vadd.f32 0.0, %v664
  %666 = vmatmul.f32.gmra.mxu0 %v353
  %v667 = vpop.f32.mrf.mxu0
  %v668 = vadd.f32 0.0, %v667
  %669 = vmatmul.f32.gmra.mxu0 %v356
  %v670 = vpop.f32.mrf.mxu0
  %v671 = vadd.f32 0.0, %v670
  %672 = vmatmul.f32.gmra.mxu0 %v359
  %v673 = vpop.f32.mrf.mxu0
  %v674 = vadd.f32 0.0, %v673
  %675 = vmatmul.f32.gmra.mxu0 %v362
  %v676 = vpop.f32.mrf.mxu0
  %v677 = vadd.f32 0.0, %v676
  %678 = vmatmul.f32.gmra.mxu0 %v365
  %v679 = vpop.f32.mrf.mxu0
  %v680 = vadd.f32 0.0, %v679
  %681 = vmatmul.f32.gmra.mxu0 %v368
  %v682 = vpop.f32.mrf.mxu0
  %v683 = vadd.f32 0.0, %v682
  %684 = vmatmul.f32.gmra.mxu0 %v371
  %v685 = vpop.f32.mrf.mxu0
  %v686 = vadd.f32 0.0, %v685
  %687 = vmatmul.f32.gmra.mxu0 %v374
  %v688 = vpop.f32.mrf.mxu0
  %v689 = vadd.f32 0.0, %v688
  %690 = vmatmul.f32.gmra.mxu0 %v377
  %v691 = vpop.f32.mrf.mxu0
  %v692 = vadd.f32 0.0, %v691
  %693 = vmatmul.f32.gmra.mxu0 %v380
  %v694 = vpop.f32.mrf.mxu0
  %v695 = vadd.f32 0.0, %v694
  %696 = vmatmul.f32.gmra.mxu0 %v383
  %v697 = vpop.f32.mrf.mxu0
  %v698 = vadd.f32 0.0, %v697
  %699 = vmatmul.f32.gmra.mxu0 %v386
  %v700 = vpop.f32.mrf.mxu0
  %v701 = vadd.f32 0.0, %v700
  %702 = vmatmul.f32.gmra.mxu0 %v389
  %v703 = vpop.f32.mrf.mxu0
  %v704 = vadd.f32 0.0, %v703
  %705 = vmatmul.f32.gmra.mxu0 %v392
  %v706 = vpop.f32.mrf.mxu0
  %v707 = vadd.f32 0.0, %v706
  %708 = vmatmul.f32.gmra.mxu0 %v395
  %v709 = vpop.f32.mrf.mxu0
  %v710 = vadd.f32 0.0, %v709
  %711 = vmatmul.f32.gmra.mxu0 %v398
  %v712 = vpop.f32.mrf.mxu0
  %v713 = vadd.f32 0.0, %v712
  %714 = vmatmul.f32.gmra.mxu0 %v401
  %v715 = vpop.f32.mrf.mxu0
  %v716 = vadd.f32 0.0, %v715
  %717 = vmatmul.f32.gmra.mxu0 %v404
  %v718 = vpop.f32.mrf.mxu0
  %v719 = vadd.f32 0.0, %v718
  %720 = vmatmul.f32.gmra.mxu0 %v407
  %v721 = vpop.f32.mrf.mxu0
  %v722 = vadd.f32 0.0, %v721
  %723 = vmatmul.f32.gmra.mxu0 %v410
  %v724 = vpop.f32.mrf.mxu0
  %v725 = vadd.f32 0.0, %v724
  %726 = vmatmul.f32.gmra.mxu0 %v413
  %v727 = vpop.f32.mrf.mxu0
  %v728 = vadd.f32 0.0, %v727
  %729 = vmatmul.f32.gmra.mxu0 %v416
  %v730 = vpop.f32.mrf.mxu0
  %v731 = vadd.f32 0.0, %v730
  %732 = vmatmul.f32.gmra.mxu0 %v419
  %v733 = vpop.f32.mrf.mxu0
  %v734 = vadd.f32 0.0, %v733
  %735 = vmatmul.f32.gmra.mxu0 %v422
  %v736 = vpop.f32.mrf.mxu0
  %v737 = vadd.f32 0.0, %v736
  %738 = vmatmul.f32.gmra.mxu0 %v425
  %v739 = vpop.f32.mrf.mxu0
  %v740 = vadd.f32 0.0, %v739
  %741 = vmatmul.f32.gmra.mxu0 %v428
  %v742 = vpop.f32.mrf.mxu0
  %v743 = vadd.f32 0.0, %v742
  %744 = vmatmul.f32.gmra.mxu0 %v431
  %v745 = vpop.f32.mrf.mxu0
  %v746 = vadd.f32 0.0, %v745
  %747 = vmatmul.f32.gmra.mxu0 %v434
  %v748 = vpop.f32.mrf.mxu0
  %v749 = vadd.f32 0.0, %v748
  %750 = vmatmul.f32.gmra.mxu0 %v437
  %v751 = vpop.f32.mrf.mxu0
  %v752 = vadd.f32 0.0, %v751
  %753 = vmatmul.f32.gmra.mxu0 %v440
  %v754 = vpop.f32.mrf.mxu0
  %v755 = vadd.f32 0.0, %v754
  %756 = vmatmul.f32.gmra.mxu0 %v443
  %v757 = vpop.f32.mrf.mxu0
  %v758 = vadd.f32 0.0, %v757
  %759 = vmatmul.f32.gmra.mxu0 %v446
  %v760 = vpop.f32.mrf.mxu0
  %v761 = vadd.f32 0.0, %v760
  %762 = vmatmul.f32.gmra.mxu0 %v449
  %v763 = vpop.f32.mrf.mxu0
  %v764 = vadd.f32 0.0, %v763
  %765 = vmatmul.f32.gmra.mxu0 %v452
  %v766 = vpop.f32.mrf.mxu0
  %v767 = vadd.f32 0.0, %v766
  %768 = vmatmul.f32.gmra.mxu0 %v455
  %v769 = vpop.f32.mrf.mxu0
  %v770 = vadd.f32 0.0, %v769
  %771 = vmatmul.f32.gmra.mxu0 %v458
  %v772 = vpop.f32.mrf.mxu0
  %v773 = vadd.f32 0.0, %v772
  %774 = vmatmul.f32.gmra.mxu0 %v461
  %v775 = vpop.f32.mrf.mxu0
  %v776 = vadd.f32 0.0, %v775
  %777 = vmatmul.f32.gmra.mxu0 %v464
  %v778 = vpop.f32.mrf.mxu0
  %v779 = vadd.f32 0.0, %v778
  %780 = vmatmul.f32.gmra.mxu0 %v467
  %v781 = vpop.f32.mrf.mxu0
  %v782 = vadd.f32 0.0, %v781
  %783 = vmatmul.f32.gmra.mxu0 %v470
  %v784 = vpop.f32.mrf.mxu0
  %v785 = vadd.f32 0.0, %v784
  %786 = vmatmul.f32.gmra.mxu0 %v473
  %v787 = vpop.f32.mrf.mxu0
  %v788 = vadd.f32 0.0, %v787
  %789 = vmatmul.f32.gmra.mxu0 %v476
  %v790 = vpop.f32.mrf.mxu0
  %v791 = vadd.f32 0.0, %v790
  %792 = vmatmul.f32.gmra.mxu0 %v479
  %v793 = vpop.f32.mrf.mxu0
  %v794 = vadd.f32 0.0, %v793
  %795 = vmatmul.f32.gmra.mxu0 %v482
  %v796 = vpop.f32.mrf.mxu0
  %v797 = vadd.f32 0.0, %v796
  %798 = vmatmul.f32.gmra.mxu0 %v485
  %v799 = vpop.f32.mrf.mxu0
  %v800 = vadd.f32 0.0, %v799
  %801 = vdwg.mxu0
  %802 = vst.msk [vmem:[#allocation3] sm:$0xff] %vm60, %v509
  %803 = vst.msk [vmem:[#allocation3 + $0x8] sm:$0xff] %vm60, %v512
  %804 = vst.msk [vmem:[#allocation3 + $0x10] sm:$0xff] %vm60, %v515
  %805 = vst.msk [vmem:[#allocation3 + $0x18] sm:$0xff] %vm60, %v518
  %806 = vst.msk [vmem:[#allocation3 + $0x20] sm:$0xff] %vm60, %v521
  %807 = vst.msk [vmem:[#allocation3 + $0x28] sm:$0xff] %vm60, %v524
  %808 = vst.msk [vmem:[#allocation3 + $0x30] sm:$0xff] %vm60, %v527
  %809 = vst.msk [vmem:[#allocation3 + $0x38] sm:$0xff] %vm60, %v530
  %810 = vst.msk [vmem:[#allocation3 + $0x40] sm:$0xff] %vm60, %v533
  %811 = vst.msk [vmem:[#allocation3 + $0x48] sm:$0xff] %vm60, %v536
  %812 = vst.msk [vmem:[#allocation3 + $0x50] sm:$0xff] %vm60, %v539
  %813 = vst.msk [vmem:[#allocation3 + $0x58] sm:$0xff] %vm60, %v542
  %814 = vst.msk [vmem:[#allocation3 + $0x60] sm:$0xff] %vm60, %v545
  %815 = vst.msk [vmem:[#allocation3 + $0x68] sm:$0xff] %vm60, %v548
  %816 = vst.msk [vmem:[#allocation3 + $0x70] sm:$0xff] %vm60, %v551
  %817 = vst.msk [vmem:[#allocation3 + $0x78] sm:$0xff] %vm60, %v554
  %818 = vst.msk [vmem:[#allocation3 + $0x80] sm:$0xff] %vm60, %v557
  %819 = vst.msk [vmem:[#allocation3 + $0x88] sm:$0xff] %vm60, %v560
  %820 = vst.msk [vmem:[#allocation3 + $0x90] sm:$0xff] %vm60, %v563
  %821 = vst.msk [vmem:[#allocation3 + $0x98] sm:$0xff] %vm60, %v566
  %822 = vst.msk [vmem:[#allocation3 + $0xa0] sm:$0xff] %vm60, %v569
  %823 = vst.msk [vmem:[#allocation3 + $0xa8] sm:$0xff] %vm60, %v572
  %824 = vst.msk [vmem:[#allocation3 + $0xb0] sm:$0xff] %vm60, %v575
  %825 = vst.msk [vmem:[#allocation3 + $0xb8] sm:$0xff] %vm60, %v578
  %826 = vst.msk [vmem:[#allocation3 + $0xc0] sm:$0xff] %vm60, %v581
  %827 = vst.msk [vmem:[#allocation3 + $0xc8] sm:$0xff] %vm60, %v584
  %828 = vst.msk [vmem:[#allocation3 + $0xd0] sm:$0xff] %vm60, %v587
  %829 = vst.msk [vmem:[#allocation3 + $0xd8] sm:$0xff] %vm60, %v590
  %830 = vst.msk [vmem:[#allocation3 + $0xe0] sm:$0xff] %vm60, %v593
  %831 = vst.msk [vmem:[#allocation3 + $0xe8] sm:$0xff] %vm60, %v596
  %832 = vst.msk [vmem:[#allocation3 + $0xf0] sm:$0xff] %vm60, %v599
  %833 = vst.msk [vmem:[#allocation3 + $0xf8] sm:$0xff] %vm60, %v602
  %834 = vst.msk [vmem:[#allocation3 + $0x100] sm:$0xff] %vm60, %v605
  %835 = vst.msk [vmem:[#allocation3 + $0x108] sm:$0xff] %vm60, %v608
  %836 = vst.msk [vmem:[#allocation3 + $0x110] sm:$0xff] %vm60, %v611
  %837 = vst.msk [vmem:[#allocation3 + $0x118] sm:$0xff] %vm60, %v614
  %838 = vst.msk [vmem:[#allocation3 + $0x120] sm:$0xff] %vm60, %v617
  %839 = vst.msk [vmem:[#allocation3 + $0x128] sm:$0xff] %vm60, %v620
  %840 = vst.msk [vmem:[#allocation3 + $0x130] sm:$0xff] %vm60, %v623
  %841 = vst.msk [vmem:[#allocation3 + $0x138] sm:$0xff] %vm60, %v626
  %842 = vst.msk [vmem:[#allocation3 + $0x140] sm:$0xff] %vm60, %v629
  %843 = vst.msk [vmem:[#allocation3 + $0x148] sm:$0xff] %vm60, %v632
  %844 = vst.msk [vmem:[#allocation3 + $0x150] sm:$0xff] %vm60, %v635
  %845 = vst.msk [vmem:[#allocation3 + $0x158] sm:$0xff] %vm60, %v638
  %846 = vst.msk [vmem:[#allocation3 + $0x160] sm:$0xff] %vm60, %v641
  %847 = vst.msk [vmem:[#allocation3 + $0x168] sm:$0xff] %vm60, %v644
  %848 = vst.msk [vmem:[#allocation3 + $0x170] sm:$0xff] %vm60, %v647
  %849 = vst.msk [vmem:[#allocation3 + $0x178] sm:$0xff] %vm60, %v650
  %850 = vst.msk [vmem:[#allocation3 + $0x180] sm:$0xff] %vm60, %v653
  %851 = vst.msk [vmem:[#allocation3 + $0x188] sm:$0xff] %vm60, %v656
  %852 = vst.msk [vmem:[#allocation3 + $0x190] sm:$0xff] %vm60, %v659
  %853 = vst.msk [vmem:[#allocation3 + $0x198] sm:$0xff] %vm60, %v662
  %854 = vst.msk [vmem:[#allocation3 + $0x1a0] sm:$0xff] %vm60, %v665
  %855 = vst.msk [vmem:[#allocation3 + $0x1a8] sm:$0xff] %vm60, %v668
  %856 = vst.msk [vmem:[#allocation3 + $0x1b0] sm:$0xff] %vm60, %v671
  %857 = vst.msk [vmem:[#allocation3 + $0x1b8] sm:$0xff] %vm60, %v674
  %858 = vst.msk [vmem:[#allocation3 + $0x1c0] sm:$0xff] %vm60, %v677
  %859 = vst.msk [vmem:[#allocation3 + $0x1c8] sm:$0xff] %vm60, %v680
  %860 = vst.msk [vmem:[#allocation3 + $0x1d0] sm:$0xff] %vm60, %v683
  %861 = vst.msk [vmem:[#allocation3 + $0x1d8] sm:$0xff] %vm60, %v686
  %862 = vst.msk [vmem:[#allocation3 + $0x1e0] sm:$0xff] %vm60, %v689
  %863 = vst.msk [vmem:[#allocation3 + $0x1e8] sm:$0xff] %vm60, %v692
  %864 = vst.msk [vmem:[#allocation3 + $0x1f0] sm:$0xff] %vm60, %v695
  %865 = vst.msk [vmem:[#allocation3 + $0x1f8] sm:$0xff] %vm60, %v698
  %866 = vst.msk [vmem:[#allocation3 + $0x200] sm:$0xff] %vm60, %v701
  %867 = vst.msk [vmem:[#allocation3 + $0x208] sm:$0xff] %vm60, %v704
  %868 = vst.msk [vmem:[#allocation3 + $0x210] sm:$0xff] %vm60, %v707
  %869 = vst.msk [vmem:[#allocation3 + $0x218] sm:$0xff] %vm60, %v710
  %870 = vst.msk [vmem:[#allocation3 + $0x220] sm:$0xff] %vm60, %v713
  %871 = vst.msk [vmem:[#allocation3 + $0x228] sm:$0xff] %vm60, %v716
  %872 = vst.msk [vmem:[#allocation3 + $0x230] sm:$0xff] %vm60, %v719
  %873 = vst.msk [vmem:[#allocation3 + $0x238] sm:$0xff] %vm60, %v722
  %874 = vst.msk [vmem:[#allocation3 + $0x240] sm:$0xff] %vm60, %v725
  %875 = vst.msk [vmem:[#allocation3 + $0x248] sm:$0xff] %vm60, %v728
  %876 = vst.msk [vmem:[#allocation3 + $0x250] sm:$0xff] %vm60, %v731
  %877 = vst.msk [vmem:[#allocation3 + $0x258] sm:$0xff] %vm60, %v734
  %878 = vst.msk [vmem:[#allocation3 + $0x260] sm:$0xff] %vm60, %v737
  %879 = vst.msk [vmem:[#allocation3 + $0x268] sm:$0xff] %vm60, %v740
  %880 = vst.msk [vmem:[#allocation3 + $0x270] sm:$0xff] %vm60, %v743
  %881 = vst.msk [vmem:[#allocation3 + $0x278] sm:$0xff] %vm60, %v746
  %882 = vst.msk [vmem:[#allocation3 + $0x280] sm:$0xff] %vm60, %v749
  %883 = vst.msk [vmem:[#allocation3 + $0x288] sm:$0xff] %vm60, %v752
  %884 = vst.msk [vmem:[#allocation3 + $0x290] sm:$0xff] %vm60, %v755
  %885 = vst.msk [vmem:[#allocation3 + $0x298] sm:$0xff] %vm60, %v758
  %886 = vst.msk [vmem:[#allocation3 + $0x2a0] sm:$0xff] %vm60, %v761
  %887 = vst.msk [vmem:[#allocation3 + $0x2a8] sm:$0xff] %vm60, %v764
  %888 = vst.msk [vmem:[#allocation3 + $0x2b0] sm:$0xff] %vm60, %v767
  %889 = vst.msk [vmem:[#allocation3 + $0x2b8] sm:$0xff] %vm60, %v770
  %890 = vst.msk [vmem:[#allocation3 + $0x2c0] sm:$0xff] %vm60, %v773
  %891 = vst.msk [vmem:[#allocation3 + $0x2c8] sm:$0xff] %vm60, %v776
  %892 = vst.msk [vmem:[#allocation3 + $0x2d0] sm:$0xff] %vm60, %v779
  %893 = vst.msk [vmem:[#allocation3 + $0x2d8] sm:$0xff] %vm60, %v782
  %894 = vst.msk [vmem:[#allocation3 + $0x2e0] sm:$0xff] %vm60, %v785
  %895 = vst.msk [vmem:[#allocation3 + $0x2e8] sm:$0xff] %vm60, %v788
  %896 = vst.msk [vmem:[#allocation3 + $0x2f0] sm:$0xff] %vm60, %v791
  %897 = vst.msk [vmem:[#allocation3 + $0x2f8] sm:$0xff] %vm60, %v794
  %898 = vst.msk [vmem:[#allocation3 + $0x300] sm:$0xff] %vm60, %v797
  %899 = vst.msk [vmem:[#allocation3 + $0x308] sm:$0xff] %vm60, %v800
  %v900 = vld [vmem:[#allocation3] sm:$0xff]
  %v901 = vld [vmem:[#allocation3 + $0x8] sm:$0xff]
  %v902 = vld [vmem:[#allocation3 + $0x10] sm:$0xff]
  %v903 = vld [vmem:[#allocation3 + $0x18] sm:$0xf]
  %v904 = vld [vmem:[#allocation3 + $0x1c] sm:$0xff]
  %v905 = vld [vmem:[#allocation3 + $0x24] sm:$0xff]
  %v906 = vld [vmem:[#allocation3 + $0x2c] sm:$0xff]
  %v907 = vld [vmem:[#allocation3 + $0x34] sm:$0xf]
  %v908 = vmax.f32 %v900, %v904
  %v909 = vmax.f32 %v901, %v905
  %v910 = vmax.f32 %v902, %v906
  %v911 = vmax.f32 %v903, %v907
  %912 = vst.msk [vmem:[#allocation5] sm:$0xff] %vm60, %v908
  %913 = vst.msk [vmem:[#allocation5 + $0x8] sm:$0xff] %vm60, %v909
  %914 = vst.msk [vmem:[#allocation5 + $0x10] sm:$0xff] %vm60, %v910
  %vm915 = vcmask 257024
  %916 = vst.msk [vmem:[#allocation5 + $0x18] sm:$0xf] %vm915, %v911
  %v917 = vld [vmem:[#allocation5] ss:$2 sm:$0xff]
  %s918 = scalar_lea.vmem [#allocation5], 16
  %v919 = vld [vmem:[%s918] ss:$2 sm:$0x3f]
  %s920 = scalar_lea.vmem [#allocation5], 1
  %v921 = vld [vmem:[%s920] ss:$2 sm:$0xff]
  %s922 = scalar_lea.vmem [#allocation5], 17
  %v923 = vld [vmem:[%s922] ss:$2 sm:$0x3f]
  %v924 = vmax.f32 %v917, %v921
  %v925 = vmax.f32 %v919, %v923
  %v927 = vperm.slane %v22, 0
  %v929 = vadd.f32 %v924, %v927
  %v930 = vadd.f32 %v925, %v927
  %v931 = vmax.f32 %v929, 0.0
  %v932 = vmax.f32 %v930, 0.0
  %933 = vst.msk [vmem:[#allocation2 + $0x11] sm:$0xff] %vm60, %v931
  %vm934 = vcmask 259072
  %935 = vst.msk [vmem:[#allocation2 + $0x19] sm:$0x3f] %vm934, %v932
  %v936 = vld [vmem:[#allocation3 + $0x38] sm:$0xff]
  %v937 = vld [vmem:[#allocation3 + $0x40] sm:$0xff]
  %v938 = vld [vmem:[#allocation3 + $0x48] sm:$0xff]
  %v939 = vld [vmem:[#allocation3 + $0x50] sm:$0xf]
  %v940 = vld [vmem:[#allocation3 + $0x54] sm:$0xff]
  %v941 = vld [vmem:[#allocation3 + $0x5c] sm:$0xff]
  %v942 = vld [vmem:[#allocation3 + $0x64] sm:$0xff]
  %v943 = vld [vmem:[#allocation3 + $0x6c] sm:$0xf]
  %v944 = vmax.f32 %v936, %v940
  %v945 = vmax.f32 %v937, %v941
  %v946 = vmax.f32 %v938, %v942
  %v947 = vmax.f32 %v939, %v943
  %948 = vst.msk [vmem:[#allocation5] sm:$0xff] %vm60, %v944
  %949 = vst.msk [vmem:[#allocation5 + $0x8] sm:$0xff] %vm60, %v945
  %950 = vst.msk [vmem:[#allocation5 + $0x10] sm:$0xff] %vm60, %v946
  %951 = vst.msk [vmem:[#allocation5 + $0x18] sm:$0xf] %vm915, %v947
  %v952 = vld [vmem:[#allocation5] ss:$2 sm:$0xff]
  %v953 = vld [vmem:[%s918] ss:$2 sm:$0x3f]
  %v954 = vld [vmem:[%s920] ss:$2 sm:$0xff]
  %v955 = vld [vmem:[%s922] ss:$2 sm:$0x3f]
  %v956 = vmax.f32 %v952, %v954
  %v957 = vmax.f32 %v953, %v955
  %v958 = vadd.f32 %v956, %v927
  %v959 = vadd.f32 %v957, %v927
  %v960 = vmax.f32 %v958, 0.0
  %v961 = vmax.f32 %v959, 0.0
  %962 = vst.msk [vmem:[#allocation2 + $0x21] sm:$0xff] %vm60, %v960
  %963 = vst.msk [vmem:[#allocation2 + $0x29] sm:$0x3f] %vm934, %v961
  %v964 = vld [vmem:[#allocation3 + $0x70] sm:$0xff]
  %v965 = vld [vmem:[#allocation3 + $0x78] sm:$0xff]
  %v966 = vld [vmem:[#allocation3 + $0x80] sm:$0xff]
  %v967 = vld [vmem:[#allocation3 + $0x88] sm:$0xf]
  %v968 = vld [vmem:[#allocation3 + $0x8c] sm:$0xff]
  %v969 = vld [vmem:[#allocation3 + $0x94] sm:$0xff]
  %v970 = vld [vmem:[#allocation3 + $0x9c] sm:$0xff]
  %v971 = vld [vmem:[#allocation3 + $0xa4] sm:$0xf]
  %v972 = vmax.f32 %v964, %v968
  %v973 = vmax.f32 %v965, %v969
  %v974 = vmax.f32 %v966, %v970
  %v975 = vmax.f32 %v967, %v971
  %976 = vst.msk [vmem:[#allocation5] sm:$0xff] %vm60, %v972
  %977 = vst.msk [vmem:[#allocation5 + $0x8] sm:$0xff] %vm60, %v973
  %978 = vst.msk [vmem:[#allocation5 + $0x10] sm:$0xff] %vm60, %v974
  %979 = vst.msk [vmem:[#allocation5 + $0x18] sm:$0xf] %vm915, %v975
  %v980 = vld [vmem:[#allocation5] ss:$2 sm:$0xff]
  %v981 = vld [vmem:[%s918] ss:$2 sm:$0x3f]
  %v982 = vld [vmem:[%s920] ss:$2 sm:$0xff]
  %v983 = vld [vmem:[%s922] ss:$2 sm:$0x3f]
  %v984 = vmax.f32 %v980, %v982
  %v985 = vmax.f32 %v981, %v983
  %v986 = vadd.f32 %v984, %v927
  %v987 = vadd.f32 %v985, %v927
  %v988 = vmax.f32 %v986, 0.0
  %v989 = vmax.f32 %v987, 0.0
  %990 = vst.msk [vmem:[#allocation2 + $0x31] sm:$0xff] %vm60, %v988
  %991 = vst.msk [vmem:[#allocation2 + $0x39] sm:$0x3f] %vm934, %v989
  %v992 = vld [vmem:[#allocation3 + $0xa8] sm:$0xff]
  %v993 = vld [vmem:[#allocation3 + $0xb0] sm:$0xff]
  %v994 = vld [vmem:[#allocation3 + $0xb8] sm:$0xff]
  %v995 = vld [vmem:[#allocation3 + $0xc0] sm:$0xf]
  %v996 = vld [vmem:[#allocation3 + $0xc4] sm:$0xff]
  %v997 = vld [vmem:[#allocation3 + $0xcc] sm:$0xff]
  %v998 = vld [vmem:[#allocation3 + $0xd4] sm:$0xff]
  %v999 = vld [vmem:[#allocation3 + $0xdc] sm:$0xf]
  %v1000 = vmax.f32 %v992, %v996
  %v1001 = vmax.f32 %v993, %v997
  %v1002 = vmax.f32 %v994, %v998
  %v1003 = vmax.f32 %v995, %v999
  %1004 = vst.msk [vmem:[#allocation5] sm:$0xff] %vm60, %v1000
  %1005 = vst.msk [vmem:[#allocation5 + $0x8] sm:$0xff] %vm60, %v1001
  %1006 = vst.msk [vmem:[#allocation5 + $0x10] sm:$0xff] %vm60, %v1002
  %1007 = vst.msk [vmem:[#allocation5 + $0x18] sm:$0xf] %vm915, %v1003
  %v1008 = vld [vmem:[#allocation5] ss:$2 sm:$0xff]
  %v1009 = vld [vmem:[%s918] ss:$2 sm:$0x3f]
  %v1010 = vld [vmem:[%s920] ss:$2 sm:$0xff]
  %v1011 = vld [vmem:[%s922] ss:$2 sm:$0x3f]
  %v1012 = vmax.f32 %v1008, %v1010
  %v1013 = vmax.f32 %v1009, %v1011
  %v1014 = vadd.f32 %v1012, %v927
  %v1015 = vadd.f32 %v1013, %v927
  %v1016 = vmax.f32 %v1014, 0.0
  %v1017 = vmax.f32 %v1015, 0.0
  %1018 = vst.msk [vmem:[#allocation2 + $0x41] sm:$0xff] %vm60, %v1016
  %1019 = vst.msk [vmem:[#allocation2 + $0x49] sm:$0x3f] %vm934, %v1017
  %v1020 = vld [vmem:[#allocation3 + $0xe0] sm:$0xff]
  %v1021 = vld [vmem:[#allocation3 + $0xe8] sm:$0xff]
  %v1022 = vld [vmem:[#allocation3 + $0xf0] sm:$0xff]
  %v1023 = vld [vmem:[#allocation3 + $0xf8] sm:$0xf]
  %v1024 = vld [vmem:[#allocation3 + $0xfc] sm:$0xff]
  %v1025 = vld [vmem:[#allocation3 + $0x104] sm:$0xff]
  %v1026 = vld [vmem:[#allocation3 + $0x10c] sm:$0xff]
  %v1027 = vld [vmem:[#allocation3 + $0x114] sm:$0xf]
  %v1028 = vmax.f32 %v1020, %v1024
  %v1029 = vmax.f32 %v1021, %v1025
  %v1030 = vmax.f32 %v1022, %v1026
  %v1031 = vmax.f32 %v1023, %v1027
  %1032 = vst.msk [vmem:[#allocation5] sm:$0xff] %vm60, %v1028
  %1033 = vst.msk [vmem:[#allocation5 + $0x8] sm:$0xff] %vm60, %v1029
  %1034 = vst.msk [vmem:[#allocation5 + $0x10] sm:$0xff] %vm60, %v1030
  %1035 = vst.msk [vmem:[#allocation5 + $0x18] sm:$0xf] %vm915, %v1031
  %v1036 = vld [vmem:[#allocation5] ss:$2 sm:$0xff]
  %v1037 = vld [vmem:[%s918] ss:$2 sm:$0x3f]
  %v1038 = vld [vmem:[%s920] ss:$2 sm:$0xff]
  %v1039 = vld [vmem:[%s922] ss:$2 sm:$0x3f]
  %v1040 = vmax.f32 %v1036, %v1038
  %v1041 = vmax.f32 %v1037, %v1039
  %v1042 = vadd.f32 %v1040, %v927
  %v1043 = vadd.f32 %v1041, %v927
  %v1044 = vmax.f32 %v1042, 0.0
  %v1045 = vmax.f32 %v1043, 0.0
  %1046 = vst.msk [vmem:[#allocation2 + $0x51] sm:$0xff] %vm60, %v1044
  %1047 = vst.msk [vmem:[#allocation2 + $0x59] sm:$0x3f] %vm934, %v1045
  %v1048 = vld [vmem:[#allocation3 + $0x118] sm:$0xff]
  %v1049 = vld [vmem:[#allocation3 + $0x120] sm:$0xff]
  %v1050 = vld [vmem:[#allocation3 + $0x128] sm:$0xff]
  %v1051 = vld [vmem:[#allocation3 + $0x130] sm:$0xf]
  %v1052 = vld [vmem:[#allocation3 + $0x134] sm:$0xff]
  %v1053 = vld [vmem:[#allocation3 + $0x13c] sm:$0xff]
  %v1054 = vld [vmem:[#allocation3 + $0x144] sm:$0xff]
  %v1055 = vld [vmem:[#allocation3 + $0x14c] sm:$0xf]
  %v1056 = vmax.f32 %v1048, %v1052
  %v1057 = vmax.f32 %v1049, %v1053
  %v1058 = vmax.f32 %v1050, %v1054
  %v1059 = vmax.f32 %v1051, %v1055
  %1060 = vst.msk [vmem:[#allocation5] sm:$0xff] %vm60, %v1056
  %1061 = vst.msk [vmem:[#allocation5 + $0x8] sm:$0xff] %vm60, %v1057
  %1062 = vst.msk [vmem:[#allocation5 + $0x10] sm:$0xff] %vm60, %v1058
  %1063 = vst.msk [vmem:[#allocation5 + $0x18] sm:$0xf] %vm915, %v1059
  %v1064 = vld [vmem:[#allocation5] ss:$2 sm:$0xff]
  %v1065 = vld [vmem:[%s918] ss:$2 sm:$0x3f]
  %v1066 = vld [vmem:[%s920] ss:$2 sm:$0xff]
  %v1067 = vld [vmem:[%s922] ss:$2 sm:$0x3f]
  %v1068 = vmax.f32 %v1064, %v1066
  %v1069 = vmax.f32 %v1065, %v1067
  %v1070 = vadd.f32 %v1068, %v927
  %v1071 = vadd.f32 %v1069, %v927
  %v1072 = vmax.f32 %v1070, 0.0
  %v1073 = vmax.f32 %v1071, 0.0
  %1074 = vst.msk [vmem:[#allocation2 + $0x61] sm:$0xff] %vm60, %v1072
  %1075 = vst.msk [vmem:[#allocation2 + $0x69] sm:$0x3f] %vm934, %v1073
  %v1076 = vld [vmem:[#allocation3 + $0x150] sm:$0xff]
  %v1077 = vld [vmem:[#allocation3 + $0x158] sm:$0xff]
  %v1078 = vld [vmem:[#allocation3 + $0x160] sm:$0xff]
  %v1079 = vld [vmem:[#allocation3 + $0x168] sm:$0xf]
  %v1080 = vld [vmem:[#allocation3 + $0x16c] sm:$0xff]
  %v1081 = vld [vmem:[#allocation3 + $0x174] sm:$0xff]
  %v1082 = vld [vmem:[#allocation3 + $0x17c] sm:$0xff]
  %v1083 = vld [vmem:[#allocation3 + $0x184] sm:$0xf]
  %v1084 = vmax.f32 %v1076, %v1080
  %v1085 = vmax.f32 %v1077, %v1081
  %v1086 = vmax.f32 %v1078, %v1082
  %v1087 = vmax.f32 %v1079, %v1083
  %1088 = vst.msk [vmem:[#allocation5] sm:$0xff] %vm60, %v1084
  %1089 = vst.msk [vmem:[#allocation5 + $0x8] sm:$0xff] %vm60, %v1085
  %1090 = vst.msk [vmem:[#allocation5 + $0x10] sm:$0xff] %vm60, %v1086
  %1091 = vst.msk [vmem:[#allocation5 + $0x18] sm:$0xf] %vm915, %v1087
  %v1092 = vld [vmem:[#allocation5] ss:$2 sm:$0xff]
  %v1093 = vld [vmem:[%s918] ss:$2 sm:$0x3f]
  %v1094 = vld [vmem:[%s920] ss:$2 sm:$0xff]
  %v1095 = vld [vmem:[%s922] ss:$2 sm:$0x3f]
  %v1096 = vmax.f32 %v1092, %v1094
  %v1097 = vmax.f32 %v1093, %v1095
  %v1098 = vadd.f32 %v1096, %v927
  %v1099 = vadd.f32 %v1097, %v927
  %v1100 = vmax.f32 %v1098, 0.0
  %v1101 = vmax.f32 %v1099, 0.0
  %1102 = vst.msk [vmem:[#allocation2 + $0x71] sm:$0xff] %vm60, %v1100
  %1103 = vst.msk [vmem:[#allocation2 + $0x79] sm:$0x3f] %vm934, %v1101
  %v1104 = vld [vmem:[#allocation3 + $0x188] sm:$0xff]
  %v1105 = vld [vmem:[#allocation3 + $0x190] sm:$0xff]
  %v1106 = vld [vmem:[#allocation3 + $0x198] sm:$0xff]
  %v1107 = vld [vmem:[#allocation3 + $0x1a0] sm:$0xf]
  %v1108 = vld [vmem:[#allocation3 + $0x1a4] sm:$0xff]
  %v1109 = vld [vmem:[#allocation3 + $0x1ac] sm:$0xff]
  %v1110 = vld [vmem:[#allocation3 + $0x1b4] sm:$0xff]
  %v1111 = vld [vmem:[#allocation3 + $0x1bc] sm:$0xf]
  %v1112 = vmax.f32 %v1104, %v1108
  %v1113 = vmax.f32 %v1105, %v1109
  %v1114 = vmax.f32 %v1106, %v1110
  %v1115 = vmax.f32 %v1107, %v1111
  %1116 = vst.msk [vmem:[#allocation5] sm:$0xff] %vm60, %v1112
  %1117 = vst.msk [vmem:[#allocation5 + $0x8] sm:$0xff] %vm60, %v1113
  %1118 = vst.msk [vmem:[#allocation5 + $0x10] sm:$0xff] %vm60, %v1114
  %1119 = vst.msk [vmem:[#allocation5 + $0x18] sm:$0xf] %vm915, %v1115
  %v1120 = vld [vmem:[#allocation5] ss:$2 sm:$0xff]
  %v1121 = vld [vmem:[%s918] ss:$2 sm:$0x3f]
  %v1122 = vld [vmem:[%s920] ss:$2 sm:$0xff]
  %v1123 = vld [vmem:[%s922] ss:$2 sm:$0x3f]
  %v1124 = vmax.f32 %v1120, %v1122
  %v1125 = vmax.f32 %v1121, %v1123
  %v1126 = vadd.f32 %v1124, %v927
  %v1127 = vadd.f32 %v1125, %v927
  %v1128 = vmax.f32 %v1126, 0.0
  %v1129 = vmax.f32 %v1127, 0.0
  %1130 = vst.msk [vmem:[#allocation2 + $0x81] sm:$0xff] %vm60, %v1128
  %1131 = vst.msk [vmem:[#allocation2 + $0x89] sm:$0x3f] %vm934, %v1129
  %v1132 = vld [vmem:[#allocation3 + $0x1c0] sm:$0xff]
  %v1133 = vld [vmem:[#allocation3 + $0x1c8] sm:$0xff]
  %v1134 = vld [vmem:[#allocation3 + $0x1d0] sm:$0xff]
  %v1135 = vld [vmem:[#allocation3 + $0x1d8] sm:$0xf]
  %v1136 = vld [vmem:[#allocation3 + $0x1dc] sm:$0xff]
  %v1137 = vld [vmem:[#allocation3 + $0x1e4] sm:$0xff]
  %v1138 = vld [vmem:[#allocation3 + $0x1ec] sm:$0xff]
  %v1139 = vld [vmem:[#allocation3 + $0x1f4] sm:$0xf]
  %v1140 = vmax.f32 %v1132, %v1136
  %v1141 = vmax.f32 %v1133, %v1137
  %v1142 = vmax.f32 %v1134, %v1138
  %v1143 = vmax.f32 %v1135, %v1139
  %1144 = vst.msk [vmem:[#allocation5] sm:$0xff] %vm60, %v1140
  %1145 = vst.msk [vmem:[#allocation5 + $0x8] sm:$0xff] %vm60, %v1141
  %1146 = vst.msk [vmem:[#allocation5 + $0x10] sm:$0xff] %vm60, %v1142
  %1147 = vst.msk [vmem:[#allocation5 + $0x18] sm:$0xf] %vm915, %v1143
  %v1148 = vld [vmem:[#allocation5] ss:$2 sm:$0xff]
  %v1149 = vld [vmem:[%s918] ss:$2 sm:$0x3f]
  %v1150 = vld [vmem:[%s920] ss:$2 sm:$0xff]
  %v1151 = vld [vmem:[%s922] ss:$2 sm:$0x3f]
  %v1152 = vmax.f32 %v1148, %v1150
  %v1153 = vmax.f32 %v1149, %v1151
  %v1154 = vadd.f32 %v1152, %v927
  %v1155 = vadd.f32 %v1153, %v927
  %v1156 = vmax.f32 %v1154, 0.0
  %v1157 = vmax.f32 %v1155, 0.0
  %1158 = vst.msk [vmem:[#allocation2 + $0x91] sm:$0xff] %vm60, %v1156
  %1159 = vst.msk [vmem:[#allocation2 + $0x99] sm:$0x3f] %vm934, %v1157
  %v1160 = vld [vmem:[#allocation3 + $0x1f8] sm:$0xff]
  %v1161 = vld [vmem:[#allocation3 + $0x200] sm:$0xff]
  %v1162 = vld [vmem:[#allocation3 + $0x208] sm:$0xff]
  %v1163 = vld [vmem:[#allocation3 + $0x210] sm:$0xf]
  %v1164 = vld [vmem:[#allocation3 + $0x214] sm:$0xff]
  %v1165 = vld [vmem:[#allocation3 + $0x21c] sm:$0xff]
  %v1166 = vld [vmem:[#allocation3 + $0x224] sm:$0xff]
  %v1167 = vld [vmem:[#allocation3 + $0x22c] sm:$0xf]
  %v1168 = vmax.f32 %v1160, %v1164
  %v1169 = vmax.f32 %v1161, %v1165
  %v1170 = vmax.f32 %v1162, %v1166
  %v1171 = vmax.f32 %v1163, %v1167
  %1172 = vst.msk [vmem:[#allocation5] sm:$0xff] %vm60, %v1168
  %1173 = vst.msk [vmem:[#allocation5 + $0x8] sm:$0xff] %vm60, %v1169
  %1174 = vst.msk [vmem:[#allocation5 + $0x10] sm:$0xff] %vm60, %v1170
  %1175 = vst.msk [vmem:[#allocation5 + $0x18] sm:$0xf] %vm915, %v1171
  %v1176 = vld [vmem:[#allocation5] ss:$2 sm:$0xff]
  %v1177 = vld [vmem:[%s918] ss:$2 sm:$0x3f]
  %v1178 = vld [vmem:[%s920] ss:$2 sm:$0xff]
  %v1179 = vld [vmem:[%s922] ss:$2 sm:$0x3f]
  %v1180 = vmax.f32 %v1176, %v1178
  %v1181 = vmax.f32 %v1177, %v1179
  %v1182 = vadd.f32 %v1180, %v927
  %v1183 = vadd.f32 %v1181, %v927
  %v1184 = vmax.f32 %v1182, 0.0
  %v1185 = vmax.f32 %v1183, 0.0
  %1186 = vst.msk [vmem:[#allocation2 + $0xa1] sm:$0xff] %vm60, %v1184
  %1187 = vst.msk [vmem:[#allocation2 + $0xa9] sm:$0x3f] %vm934, %v1185
  %v1188 = vld [vmem:[#allocation3 + $0x230] sm:$0xff]
  %v1189 = vld [vmem:[#allocation3 + $0x238] sm:$0xff]
  %v1190 = vld [vmem:[#allocation3 + $0x240] sm:$0xff]
  %v1191 = vld [vmem:[#allocation3 + $0x248] sm:$0xf]
  %v1192 = vld [vmem:[#allocation3 + $0x24c] sm:$0xff]
  %v1193 = vld [vmem:[#allocation3 + $0x254] sm:$0xff]
  %v1194 = vld [vmem:[#allocation3 + $0x25c] sm:$0xff]
  %v1195 = vld [vmem:[#allocation3 + $0x264] sm:$0xf]
  %v1196 = vmax.f32 %v1188, %v1192
  %v1197 = vmax.f32 %v1189, %v1193
  %v1198 = vmax.f32 %v1190, %v1194
  %v1199 = vmax.f32 %v1191, %v1195
  %1200 = vst.msk [vmem:[#allocation5] sm:$0xff] %vm60, %v1196
  %1201 = vst.msk [vmem:[#allocation5 + $0x8] sm:$0xff] %vm60, %v1197
  %1202 = vst.msk [vmem:[#allocation5 + $0x10] sm:$0xff] %vm60, %v1198
  %1203 = vst.msk [vmem:[#allocation5 + $0x18] sm:$0xf] %vm915, %v1199
  %v1204 = vld [vmem:[#allocation5] ss:$2 sm:$0xff]
  %v1205 = vld [vmem:[%s918] ss:$2 sm:$0x3f]
  %v1206 = vld [vmem:[%s920] ss:$2 sm:$0xff]
  %v1207 = vld [vmem:[%s922] ss:$2 sm:$0x3f]
  %v1208 = vmax.f32 %v1204, %v1206
  %v1209 = vmax.f32 %v1205, %v1207
  %v1210 = vadd.f32 %v1208, %v927
  %v1211 = vadd.f32 %v1209, %v927
  %v1212 = vmax.f32 %v1210, 0.0
  %v1213 = vmax.f32 %v1211, 0.0
  %1214 = vst.msk [vmem:[#allocation2 + $0xb1] sm:$0xff] %vm60, %v1212
  %1215 = vst.msk [vmem:[#allocation2 + $0xb9] sm:$0x3f] %vm934, %v1213
  %v1216 = vld [vmem:[#allocation3 + $0x268] sm:$0xff]
  %v1217 = vld [vmem:[#allocation3 + $0x270] sm:$0xff]
  %v1218 = vld [vmem:[#allocation3 + $0x278] sm:$0xff]
  %v1219 = vld [vmem:[#allocation3 + $0x280] sm:$0xf]
  %v1220 = vld [vmem:[#allocation3 + $0x284] sm:$0xff]
  %v1221 = vld [vmem:[#allocation3 + $0x28c] sm:$0xff]
  %v1222 = vld [vmem:[#allocation3 + $0x294] sm:$0xff]
  %v1223 = vld [vmem:[#allocation3 + $0x29c] sm:$0xf]
  %v1224 = vmax.f32 %v1216, %v1220
  %v1225 = vmax.f32 %v1217, %v1221
  %v1226 = vmax.f32 %v1218, %v1222
  %v1227 = vmax.f32 %v1219, %v1223
  %1228 = vst.msk [vmem:[#allocation5] sm:$0xff] %vm60, %v1224
  %1229 = vst.msk [vmem:[#allocation5 + $0x8] sm:$0xff] %vm60, %v1225
  %1230 = vst.msk [vmem:[#allocation5 + $0x10] sm:$0xff] %vm60, %v1226
  %1231 = vst.msk [vmem:[#allocation5 + $0x18] sm:$0xf] %vm915, %v1227
  %v1232 = vld [vmem:[#allocation5] ss:$2 sm:$0xff]
  %v1233 = vld [vmem:[%s918] ss:$2 sm:$0x3f]
  %v1234 = vld [vmem:[%s920] ss:$2 sm:$0xff]
  %v1235 = vld [vmem:[%s922] ss:$2 sm:$0x3f]
  %v1236 = vmax.f32 %v1232, %v1234
  %v1237 = vmax.f32 %v1233, %v1235
  %v1238 = vadd.f32 %v1236, %v927
  %v1239 = vadd.f32 %v1237, %v927
  %v1240 = vmax.f32 %v1238, 0.0
  %v1241 = vmax.f32 %v1239, 0.0
  %1242 = vst.msk [vmem:[#allocation2 + $0xc1] sm:$0xff] %vm60, %v1240
  %1243 = vst.msk [vmem:[#allocation2 + $0xc9] sm:$0x3f] %vm934, %v1241
  %v1244 = vld [vmem:[#allocation3 + $0x2a0] sm:$0xff]
  %v1245 = vld [vmem:[#allocation3 + $0x2a8] sm:$0xff]
  %v1246 = vld [vmem:[#allocation3 + $0x2b0] sm:$0xff]
  %v1247 = vld [vmem:[#allocation3 + $0x2b8] sm:$0xf]
  %v1248 = vld [vmem:[#allocation3 + $0x2bc] sm:$0xff]
  %v1249 = vld [vmem:[#allocation3 + $0x2c4] sm:$0xff]
  %v1250 = vld [vmem:[#allocation3 + $0x2cc] sm:$0xff]
  %v1251 = vld [vmem:[#allocation3 + $0x2d4] sm:$0xf]
  %v1252 = vmax.f32 %v1244, %v1248
  %v1253 = vmax.f32 %v1245, %v1249
  %v1254 = vmax.f32 %v1246, %v1250
  %v1255 = vmax.f32 %v1247, %v1251
  %1256 = vst.msk [vmem:[#allocation5] sm:$0xff] %vm60, %v1252
  %1257 = vst.msk [vmem:[#allocation5 + $0x8] sm:$0xff] %vm60, %v1253
  %1258 = vst.msk [vmem:[#allocation5 + $0x10] sm:$0xff] %vm60, %v1254
  %1259 = vst.msk [vmem:[#allocation5 + $0x18] sm:$0xf] %vm915, %v1255
  %v1260 = vld [vmem:[#allocation5] ss:$2 sm:$0xff]
  %v1261 = vld [vmem:[%s918] ss:$2 sm:$0x3f]
  %v1262 = vld [vmem:[%s920] ss:$2 sm:$0xff]
  %v1263 = vld [vmem:[%s922] ss:$2 sm:$0x3f]
  %v1264 = vmax.f32 %v1260, %v1262
  %v1265 = vmax.f32 %v1261, %v1263
  %v1266 = vadd.f32 %v1264, %v927
  %v1267 = vadd.f32 %v1265, %v927
  %v1268 = vmax.f32 %v1266, 0.0
  %v1269 = vmax.f32 %v1267, 0.0
  %1270 = vst.msk [vmem:[#allocation2 + $0xd1] sm:$0xff] %vm60, %v1268
  %1271 = vst.msk [vmem:[#allocation2 + $0xd9] sm:$0x3f] %vm934, %v1269
  %v1272 = vld [vmem:[#allocation3 + $0x2d8] sm:$0xff]
  %v1273 = vld [vmem:[#allocation3 + $0x2e0] sm:$0xff]
  %v1274 = vld [vmem:[#allocation3 + $0x2e8] sm:$0xff]
  %v1275 = vld [vmem:[#allocation3 + $0x2f0] sm:$0xf]
  %v1276 = vld [vmem:[#allocation3 + $0x2f4] sm:$0xff]
  %v1277 = vld [vmem:[#allocation3 + $0x2fc] sm:$0xff]
  %v1278 = vld [vmem:[#allocation3 + $0x304] sm:$0xff]
  %v1279 = vld [vmem:[#allocation3 + $0x30c] sm:$0xf]
  %v1280 = vmax.f32 %v1272, %v1276
  %v1281 = vmax.f32 %v1273, %v1277
  %v1282 = vmax.f32 %v1274, %v1278
  %v1283 = vmax.f32 %v1275, %v1279
  %1284 = vst.msk [vmem:[#allocation5] sm:$0xff] %vm60, %v1280
  %1285 = vst.msk [vmem:[#allocation5 + $0x8] sm:$0xff] %vm60, %v1281
  %1286 = vst.msk [vmem:[#allocation5 + $0x10] sm:$0xff] %vm60, %v1282
  %1287 = vst.msk [vmem:[#allocation5 + $0x18] sm:$0xf] %vm915, %v1283
  %v1288 = vld [vmem:[#allocation5] ss:$2 sm:$0xff]
  %v1289 = vld [vmem:[%s918] ss:$2 sm:$0x3f]
  %v1290 = vld [vmem:[%s920] ss:$2 sm:$0xff]
  %v1291 = vld [vmem:[%s922] ss:$2 sm:$0x3f]
  %v1292 = vmax.f32 %v1288, %v1290
  %v1293 = vmax.f32 %v1289, %v1291
  %v1294 = vadd.f32 %v1292, %v927
  %v1295 = vadd.f32 %v1293, %v927
  %v1296 = vmax.f32 %v1294, 0.0
  %v1297 = vmax.f32 %v1295, 0.0
  %1298 = vst.msk [vmem:[#allocation2 + $0xe1] sm:$0xff] %vm60, %v1296
  %1299 = vst.msk [vmem:[#allocation2 + $0xe9] sm:$0x3f] %vm934, %v1297
  %v1300 = vld [vmem:[#allocation2] sm:$0xff]
  %v1301 = vld [vmem:[#allocation2 + $0x8] sm:$0xff]
  %v1302 = vld [vmem:[#allocation2 + $0x10] sm:$0xff]
  %v1303 = vld [vmem:[#allocation2 + $0x18] sm:$0xff]
  %v1304 = vld [vmem:[#allocation2 + $0x20] sm:$0xff]
  %v1305 = vld [vmem:[#allocation2 + $0x28] sm:$0xff]
  %v1306 = vld [vmem:[#allocation2 + $0x30] sm:$0xff]
  %v1307 = vld [vmem:[#allocation2 + $0x38] sm:$0xff]
  %v1308 = vld [vmem:[#allocation2 + $0x40] sm:$0xff]
  %v1309 = vld [vmem:[#allocation2 + $0x48] sm:$0xff]
  %v1310 = vld [vmem:[#allocation2 + $0x50] sm:$0xff]
  %v1311 = vld [vmem:[#allocation2 + $0x58] sm:$0xff]
  %v1312 = vld [vmem:[#allocation2 + $0x60] sm:$0xff]
  %v1313 = vld [vmem:[#allocation2 + $0x68] sm:$0xff]
  %v1314 = vld [vmem:[#allocation2 + $0x70] sm:$0xff]
  %v1315 = vld [vmem:[#allocation2 + $0x78] sm:$0xff]
  %v1316 = vld [vmem:[#allocation2 + $0x80] sm:$0xff]
  %v1317 = vld [vmem:[#allocation2 + $0x88] sm:$0xff]
  %v1318 = vld [vmem:[#allocation2 + $0x90] sm:$0xff]
  %v1319 = vld [vmem:[#allocation2 + $0x98] sm:$0xff]
  %v1320 = vld [vmem:[#allocation2 + $0xa0] sm:$0xff]
  %v1321 = vld [vmem:[#allocation2 + $0xa8] sm:$0xff]
  %v1322 = vld [vmem:[#allocation2 + $0xb0] sm:$0xff]
  %v1323 = vld [vmem:[#allocation2 + $0xb8] sm:$0xff]
  %v1324 = vld [vmem:[#allocation2 + $0xc0] sm:$0xff]
  %v1325 = vld [vmem:[#allocation2 + $0xc8] sm:$0xff]
  %v1326 = vld [vmem:[#allocation2 + $0xd0] sm:$0xff]
  %v1327 = vld [vmem:[#allocation2 + $0xd8] sm:$0xff]
  %v1328 = vld [vmem:[#allocation2 + $0x1] sm:$0xff]
  %v1329 = vld [vmem:[#allocation2 + $0x9] sm:$0xff]
  %v1330 = vld [vmem:[#allocation2 + $0x11] sm:$0xff]
  %v1331 = vld [vmem:[#allocation2 + $0x19] sm:$0xff]
  %v1332 = vld [vmem:[#allocation2 + $0x21] sm:$0xff]
  %v1333 = vld [vmem:[#allocation2 + $0x29] sm:$0xff]
  %v1334 = vld [vmem:[#allocation2 + $0x31] sm:$0xff]
  %v1335 = vld [vmem:[#allocation2 + $0x39] sm:$0xff]
  %v1336 = vld [vmem:[#allocation2 + $0x41] sm:$0xff]
  %v1337 = vld [vmem:[#allocation2 + $0x49] sm:$0xff]
  %v1338 = vld [vmem:[#allocation2 + $0x51] sm:$0xff]
  %v1339 = vld [vmem:[#allocation2 + $0x59] sm:$0xff]
  %v1340 = vld [vmem:[#allocation2 + $0x61] sm:$0xff]
  %v1341 = vld [vmem:[#allocation2 + $0x69] sm:$0xff]
  %v1342 = vld [vmem:[#allocation2 + $0x71] sm:$0xff]
  %v1343 = vld [vmem:[#allocation2 + $0x79] sm:$0xff]
  %v1344 = vld [vmem:[#allocation2 + $0x81] sm:$0xff]
  %v1345 = vld [vmem:[#allocation2 + $0x89] sm:$0xff]
  %v1346 = vld [vmem:[#allocation2 + $0x91] sm:$0xff]
  %v1347 = vld [vmem:[#allocation2 + $0x99] sm:$0xff]
  %v1348 = vld [vmem:[#allocation2 + $0xa1] sm:$0xff]
  %v1349 = vld [vmem:[#allocation2 + $0xa9] sm:$0xff]
  %v1350 = vld [vmem:[#allocation2 + $0xb1] sm:$0xff]
  %v1351 = vld [vmem:[#allocation2 + $0xb9] sm:$0xff]
  %v1352 = vld [vmem:[#allocation2 + $0xc1] sm:$0xff]
  %v1353 = vld [vmem:[#allocation2 + $0xc9] sm:$0xff]
  %v1354 = vld [vmem:[#allocation2 + $0xd1] sm:$0xff]
  %v1355 = vld [vmem:[#allocation2 + $0xd9] sm:$0xff]
  %v1356 = vld [vmem:[#allocation2 + $0x2] sm:$0xff]
  %v1357 = vld [vmem:[#allocation2 + $0xa] sm:$0xff]
  %v1358 = vld [vmem:[#allocation2 + $0x12] sm:$0xff]
  %v1359 = vld [vmem:[#allocation2 + $0x1a] sm:$0xff]
  %v1360 = vld [vmem:[#allocation2 + $0x22] sm:$0xff]
  %v1361 = vld [vmem:[#allocation2 + $0x2a] sm:$0xff]
  %v1362 = vld [vmem:[#allocation2 + $0x32] sm:$0xff]
  %v1363 = vld [vmem:[#allocation2 + $0x3a] sm:$0xff]
  %v1364 = vld [vmem:[#allocation2 + $0x42] sm:$0xff]
  %v1365 = vld [vmem:[#allocation2 + $0x4a] sm:$0xff]
  %v1366 = vld [vmem:[#allocation2 + $0x52] sm:$0xff]
  %v1367 = vld [vmem:[#allocation2 + $0x5a] sm:$0xff]
  %v1368 = vld [vmem:[#allocation2 + $0x62] sm:$0xff]
  %v1369 = vld [vmem:[#allocation2 + $0x6a] sm:$0xff]
  %v1370 = vld [vmem:[#allocation2 + $0x72] sm:$0xff]
  %v1371 = vld [vmem:[#allocation2 + $0x7a] sm:$0xff]
  %v1372 = vld [vmem:[#allocation2 + $0x82] sm:$0xff]
  %v1373 = vld [vmem:[#allocation2 + $0x8a] sm:$0xff]
  %v1374 = vld [vmem:[#allocation2 + $0x92] sm:$0xff]
  %v1375 = vld [vmem:[#allocation2 + $0x9a] sm:$0xff]
  %v1376 = vld [vmem:[#allocation2 + $0xa2] sm:$0xff]
  %v1377 = vld [vmem:[#allocation2 + $0xaa] sm:$0xff]
  %v1378 = vld [vmem:[#allocation2 + $0xb2] sm:$0xff]
  %v1379 = vld [vmem:[#allocation2 + $0xba] sm:$0xff]
  %v1380 = vld [vmem:[#allocation2 + $0xc2] sm:$0xff]
  %v1381 = vld [vmem:[#allocation2 + $0xca] sm:$0xff]
  %v1382 = vld [vmem:[#allocation2 + $0xd2] sm:$0xff]
  %v1383 = vld [vmem:[#allocation2 + $0xda] sm:$0xff]
  %v1384 = vld [vmem:[#allocation2 + $0xe0] sm:$0xff]
  %v1385 = vld [vmem:[#allocation2 + $0xe8] sm:$0xff]
  %v1386 = vld [vmem:[#allocation2 + $0xe1] sm:$0xff]
  %v1387 = vld [vmem:[#allocation2 + $0xe9] sm:$0xff]
  %v1388 = vld [vmem:[#allocation2 + $0xe2] sm:$0xff]
  %v1389 = vld [vmem:[#allocation2 + $0xea] sm:$0xff]
  %v1390 = vld [vmem:[#allocation2 + $0xf0] sm:$0xff]
  %v1391 = vld [vmem:[#allocation2 + $0xf8] sm:$0xff]
  %v1392 = vld [vmem:[#allocation2 + $0xf1] sm:$0xff]
  %v1393 = vld [vmem:[#allocation2 + $0xf9] sm:$0xff]
  %v1394 = vld [vmem:[#allocation2 + $0xf2] sm:$0xff]
  %v1395 = vld [vmem:[#allocation2 + $0xfa] sm:$0xff]
  %1424 = vrot.lane.b32.xlu0 %v1328, 32
  %v1425 = vpop.permute.xlu0 %1424
  %1426 = vrot.lane.b32.xlu0 %v1329, 32
  %v1427 = vpop.permute.xlu0 %1426
  %1428 = vrot.lane.b32.xlu0 %v1330, 32
  %v1429 = vpop.permute.xlu0 %1428
  %1430 = vrot.lane.b32.xlu0 %v1331, 32
  %v1431 = vpop.permute.xlu0 %1430
  %1432 = vrot.lane.b32.xlu0 %v1332, 32
  %v1433 = vpop.permute.xlu0 %1432
  %1434 = vrot.lane.b32.xlu0 %v1333, 32
  %v1435 = vpop.permute.xlu0 %1434
  %1436 = vrot.lane.b32.xlu0 %v1334, 32
  %v1437 = vpop.permute.xlu0 %1436
  %1438 = vrot.lane.b32.xlu0 %v1335, 32
  %v1439 = vpop.permute.xlu0 %1438
  %1440 = vrot.lane.b32.xlu0 %v1336, 32
  %v1441 = vpop.permute.xlu0 %1440
  %1442 = vrot.lane.b32.xlu0 %v1337, 32
  %v1443 = vpop.permute.xlu0 %1442
  %1444 = vrot.lane.b32.xlu0 %v1338, 32
  %v1445 = vpop.permute.xlu0 %1444
  %1446 = vrot.lane.b32.xlu0 %v1339, 32
  %v1447 = vpop.permute.xlu0 %1446
  %1448 = vrot.lane.b32.xlu0 %v1340, 32
  %v1449 = vpop.permute.xlu0 %1448
  %1450 = vrot.lane.b32.xlu0 %v1341, 32
  %v1451 = vpop.permute.xlu0 %1450
  %1452 = vrot.lane.b32.xlu0 %v1342, 32
  %v1453 = vpop.permute.xlu0 %1452
  %1454 = vrot.lane.b32.xlu0 %v1343, 32
  %v1455 = vpop.permute.xlu0 %1454
  %1456 = vrot.lane.b32.xlu0 %v1344, 32
  %v1457 = vpop.permute.xlu0 %1456
  %1458 = vrot.lane.b32.xlu0 %v1345, 32
  %v1459 = vpop.permute.xlu0 %1458
  %1460 = vrot.lane.b32.xlu0 %v1346, 32
  %v1461 = vpop.permute.xlu0 %1460
  %1462 = vrot.lane.b32.xlu0 %v1347, 32
  %v1463 = vpop.permute.xlu0 %1462
  %1464 = vrot.lane.b32.xlu0 %v1348, 32
  %v1465 = vpop.permute.xlu0 %1464
  %1466 = vrot.lane.b32.xlu0 %v1349, 32
  %v1467 = vpop.permute.xlu0 %1466
  %1468 = vrot.lane.b32.xlu0 %v1350, 32
  %v1469 = vpop.permute.xlu0 %1468
  %1470 = vrot.lane.b32.xlu0 %v1351, 32
  %v1471 = vpop.permute.xlu0 %1470
  %1472 = vrot.lane.b32.xlu0 %v1352, 32
  %v1473 = vpop.permute.xlu0 %1472
  %1474 = vrot.lane.b32.xlu0 %v1353, 32
  %v1475 = vpop.permute.xlu0 %1474
  %1476 = vrot.lane.b32.xlu0 %v1354, 32
  %v1477 = vpop.permute.xlu0 %1476
  %1478 = vrot.lane.b32.xlu0 %v1355, 32
  %v1479 = vpop.permute.xlu0 %1478
  %1536 = vrot.lane.b32.xlu0 %v1356, 64
  %v1537 = vpop.permute.xlu0 %1536
  %1538 = vrot.lane.b32.xlu0 %v1357, 64
  %v1539 = vpop.permute.xlu0 %1538
  %1540 = vrot.lane.b32.xlu0 %v1358, 64
  %v1541 = vpop.permute.xlu0 %1540
  %1542 = vrot.lane.b32.xlu0 %v1359, 64
  %v1543 = vpop.permute.xlu0 %1542
  %1544 = vrot.lane.b32.xlu0 %v1360, 64
  %v1545 = vpop.permute.xlu0 %1544
  %1546 = vrot.lane.b32.xlu0 %v1361, 64
  %v1547 = vpop.permute.xlu0 %1546
  %1548 = vrot.lane.b32.xlu0 %v1362, 64
  %v1549 = vpop.permute.xlu0 %1548
  %1550 = vrot.lane.b32.xlu0 %v1363, 64
  %v1551 = vpop.permute.xlu0 %1550
  %1552 = vrot.lane.b32.xlu0 %v1364, 64
  %v1553 = vpop.permute.xlu0 %1552
  %1554 = vrot.lane.b32.xlu0 %v1365, 64
  %v1555 = vpop.permute.xlu0 %1554
  %1556 = vrot.lane.b32.xlu0 %v1366, 64
  %v1557 = vpop.permute.xlu0 %1556
  %1558 = vrot.lane.b32.xlu0 %v1367, 64
  %v1559 = vpop.permute.xlu0 %1558
  %1560 = vrot.lane.b32.xlu0 %v1368, 64
  %v1561 = vpop.permute.xlu0 %1560
  %1562 = vrot.lane.b32.xlu0 %v1369, 64
  %v1563 = vpop.permute.xlu0 %1562
  %1564 = vrot.lane.b32.xlu0 %v1370, 64
  %v1565 = vpop.permute.xlu0 %1564
  %1566 = vrot.lane.b32.xlu0 %v1371, 64
  %v1567 = vpop.permute.xlu0 %1566
  %1568 = vrot.lane.b32.xlu0 %v1372, 64
  %v1569 = vpop.permute.xlu0 %1568
  %1570 = vrot.lane.b32.xlu0 %v1373, 64
  %v1571 = vpop.permute.xlu0 %1570
  %1572 = vrot.lane.b32.xlu0 %v1374, 64
  %v1573 = vpop.permute.xlu0 %1572
  %1574 = vrot.lane.b32.xlu0 %v1375, 64
  %v1575 = vpop.permute.xlu0 %1574
  %1576 = vrot.lane.b32.xlu0 %v1376, 64
  %v1577 = vpop.permute.xlu0 %1576
  %1578 = vrot.lane.b32.xlu0 %v1377, 64
  %v1579 = vpop.permute.xlu0 %1578
  %1580 = vrot.lane.b32.xlu0 %v1378, 64
  %v1581 = vpop.permute.xlu0 %1580
  %1582 = vrot.lane.b32.xlu0 %v1379, 64
  %v1583 = vpop.permute.xlu0 %1582
  %1584 = vrot.lane.b32.xlu0 %v1380, 64
  %v1585 = vpop.permute.xlu0 %1584
  %1586 = vrot.lane.b32.xlu0 %v1381, 64
  %v1587 = vpop.permute.xlu0 %1586
  %1588 = vrot.lane.b32.xlu0 %v1382, 64
  %v1589 = vpop.permute.xlu0 %1588
  %1590 = vrot.lane.b32.xlu0 %v1383, 64
  %v1591 = vpop.permute.xlu0 %1590
  %1648 = vrot.lane.b32.xlu0 %v1302, 96
  %v1649 = vpop.permute.xlu0 %1648
  %1650 = vrot.lane.b32.xlu0 %v1303, 96
  %v1651 = vpop.permute.xlu0 %1650
  %1652 = vrot.lane.b32.xlu0 %v1304, 96
  %v1653 = vpop.permute.xlu0 %1652
  %1654 = vrot.lane.b32.xlu0 %v1305, 96
  %v1655 = vpop.permute.xlu0 %1654
  %1656 = vrot.lane.b32.xlu0 %v1306, 96
  %v1657 = vpop.permute.xlu0 %1656
  %1658 = vrot.lane.b32.xlu0 %v1307, 96
  %v1659 = vpop.permute.xlu0 %1658
  %1660 = vrot.lane.b32.xlu0 %v1308, 96
  %v1661 = vpop.permute.xlu0 %1660
  %1662 = vrot.lane.b32.xlu0 %v1309, 96
  %v1663 = vpop.permute.xlu0 %1662
  %1664 = vrot.lane.b32.xlu0 %v1310, 96
  %v1665 = vpop.permute.xlu0 %1664
  %1666 = vrot.lane.b32.xlu0 %v1311, 96
  %v1667 = vpop.permute.xlu0 %1666
  %1668 = vrot.lane.b32.xlu0 %v1312, 96
  %v1669 = vpop.permute.xlu0 %1668
  %1670 = vrot.lane.b32.xlu0 %v1313, 96
  %v1671 = vpop.permute.xlu0 %1670
  %1672 = vrot.lane.b32.xlu0 %v1314, 96
  %v1673 = vpop.permute.xlu0 %1672
  %1674 = vrot.lane.b32.xlu0 %v1315, 96
  %v1675 = vpop.permute.xlu0 %1674
  %1676 = vrot.lane.b32.xlu0 %v1316, 96
  %v1677 = vpop.permute.xlu0 %1676
  %1678 = vrot.lane.b32.xlu0 %v1317, 96
  %v1679 = vpop.permute.xlu0 %1678
  %1680 = vrot.lane.b32.xlu0 %v1318, 96
  %v1681 = vpop.permute.xlu0 %1680
  %1682 = vrot.lane.b32.xlu0 %v1319, 96
  %v1683 = vpop.permute.xlu0 %1682
  %1684 = vrot.lane.b32.xlu0 %v1320, 96
  %v1685 = vpop.permute.xlu0 %1684
  %1686 = vrot.lane.b32.xlu0 %v1321, 96
  %v1687 = vpop.permute.xlu0 %1686
  %1688 = vrot.lane.b32.xlu0 %v1322, 96
  %v1689 = vpop.permute.xlu0 %1688
  %1690 = vrot.lane.b32.xlu0 %v1323, 96
  %v1691 = vpop.permute.xlu0 %1690
  %1692 = vrot.lane.b32.xlu0 %v1324, 96
  %v1693 = vpop.permute.xlu0 %1692
  %1694 = vrot.lane.b32.xlu0 %v1325, 96
  %v1695 = vpop.permute.xlu0 %1694
  %1696 = vrot.lane.b32.xlu0 %v1326, 96
  %v1697 = vpop.permute.xlu0 %1696
  %1698 = vrot.lane.b32.xlu0 %v1327, 96
  %v1699 = vpop.permute.xlu0 %1698
  %1700 = vrot.lane.b32.xlu0 %v1384, 96
  %v1701 = vpop.permute.xlu0 %1700
  %1702 = vrot.lane.b32.xlu0 %v1385, 96
  %v1703 = vpop.permute.xlu0 %1702
  %1734 = vrot.lane.b32.xlu0 %v1358, 32
  %v1735 = vpop.permute.xlu0 %1734
  %1736 = vrot.lane.b32.xlu0 %v1359, 32
  %v1737 = vpop.permute.xlu0 %1736
  %1738 = vrot.lane.b32.xlu0 %v1360, 32
  %v1739 = vpop.permute.xlu0 %1738
  %1740 = vrot.lane.b32.xlu0 %v1361, 32
  %v1741 = vpop.permute.xlu0 %1740
  %1742 = vrot.lane.b32.xlu0 %v1362, 32
  %v1743 = vpop.permute.xlu0 %1742
  %1744 = vrot.lane.b32.xlu0 %v1363, 32
  %v1745 = vpop.permute.xlu0 %1744
  %1746 = vrot.lane.b32.xlu0 %v1364, 32
  %v1747 = vpop.permute.xlu0 %1746
  %1748 = vrot.lane.b32.xlu0 %v1365, 32
  %v1749 = vpop.permute.xlu0 %1748
  %1750 = vrot.lane.b32.xlu0 %v1366, 32
  %v1751 = vpop.permute.xlu0 %1750
  %1752 = vrot.lane.b32.xlu0 %v1367, 32
  %v1753 = vpop.permute.xlu0 %1752
  %1754 = vrot.lane.b32.xlu0 %v1368, 32
  %v1755 = vpop.permute.xlu0 %1754
  %1756 = vrot.lane.b32.xlu0 %v1369, 32
  %v1757 = vpop.permute.xlu0 %1756
  %1758 = vrot.lane.b32.xlu0 %v1370, 32
  %v1759 = vpop.permute.xlu0 %1758
  %1760 = vrot.lane.b32.xlu0 %v1371, 32
  %v1761 = vpop.permute.xlu0 %1760
  %1762 = vrot.lane.b32.xlu0 %v1372, 32
  %v1763 = vpop.permute.xlu0 %1762
  %1764 = vrot.lane.b32.xlu0 %v1373, 32
  %v1765 = vpop.permute.xlu0 %1764
  %1766 = vrot.lane.b32.xlu0 %v1374, 32
  %v1767 = vpop.permute.xlu0 %1766
  %1768 = vrot.lane.b32.xlu0 %v1375, 32
  %v1769 = vpop.permute.xlu0 %1768
  %1770 = vrot.lane.b32.xlu0 %v1376, 32
  %v1771 = vpop.permute.xlu0 %1770
  %1772 = vrot.lane.b32.xlu0 %v1377, 32
  %v1773 = vpop.permute.xlu0 %1772
  %1774 = vrot.lane.b32.xlu0 %v1378, 32
  %v1775 = vpop.permute.xlu0 %1774
  %1776 = vrot.lane.b32.xlu0 %v1379, 32
  %v1777 = vpop.permute.xlu0 %1776
  %1778 = vrot.lane.b32.xlu0 %v1380, 32
  %v1779 = vpop.permute.xlu0 %1778
  %1780 = vrot.lane.b32.xlu0 %v1381, 32
  %v1781 = vpop.permute.xlu0 %1780
  %1782 = vrot.lane.b32.xlu0 %v1382, 32
  %v1783 = vpop.permute.xlu0 %1782
  %1784 = vrot.lane.b32.xlu0 %v1383, 32
  %v1785 = vpop.permute.xlu0 %1784
  %1786 = vrot.lane.b32.xlu0 %v1388, 32
  %v1787 = vpop.permute.xlu0 %1786
  %1788 = vrot.lane.b32.xlu0 %v1389, 32
  %v1789 = vpop.permute.xlu0 %1788
  %1820 = vrot.lane.b32.xlu0 %v1304, 64
  %v1821 = vpop.permute.xlu0 %1820
  %1822 = vrot.lane.b32.xlu0 %v1305, 64
  %v1823 = vpop.permute.xlu0 %1822
  %1824 = vrot.lane.b32.xlu0 %v1306, 64
  %v1825 = vpop.permute.xlu0 %1824
  %1826 = vrot.lane.b32.xlu0 %v1307, 64
  %v1827 = vpop.permute.xlu0 %1826
  %1828 = vrot.lane.b32.xlu0 %v1308, 64
  %v1829 = vpop.permute.xlu0 %1828
  %1830 = vrot.lane.b32.xlu0 %v1309, 64
  %v1831 = vpop.permute.xlu0 %1830
  %1832 = vrot.lane.b32.xlu0 %v1310, 64
  %v1833 = vpop.permute.xlu0 %1832
  %1834 = vrot.lane.b32.xlu0 %v1311, 64
  %v1835 = vpop.permute.xlu0 %1834
  %1836 = vrot.lane.b32.xlu0 %v1312, 64
  %v1837 = vpop.permute.xlu0 %1836
  %1838 = vrot.lane.b32.xlu0 %v1313, 64
  %v1839 = vpop.permute.xlu0 %1838
  %1840 = vrot.lane.b32.xlu0 %v1314, 64
  %v1841 = vpop.permute.xlu0 %1840
  %1842 = vrot.lane.b32.xlu0 %v1315, 64
  %v1843 = vpop.permute.xlu0 %1842
  %1844 = vrot.lane.b32.xlu0 %v1316, 64
  %v1845 = vpop.permute.xlu0 %1844
  %1846 = vrot.lane.b32.xlu0 %v1317, 64
  %v1847 = vpop.permute.xlu0 %1846
  %1848 = vrot.lane.b32.xlu0 %v1318, 64
  %v1849 = vpop.permute.xlu0 %1848
  %1850 = vrot.lane.b32.xlu0 %v1319, 64
  %v1851 = vpop.permute.xlu0 %1850
  %1852 = vrot.lane.b32.xlu0 %v1320, 64
  %v1853 = vpop.permute.xlu0 %1852
  %1854 = vrot.lane.b32.xlu0 %v1321, 64
  %v1855 = vpop.permute.xlu0 %1854
  %1856 = vrot.lane.b32.xlu0 %v1322, 64
  %v1857 = vpop.permute.xlu0 %1856
  %1858 = vrot.lane.b32.xlu0 %v1323, 64
  %v1859 = vpop.permute.xlu0 %1858
  %1860 = vrot.lane.b32.xlu0 %v1324, 64
  %v1861 = vpop.permute.xlu0 %1860
  %1862 = vrot.lane.b32.xlu0 %v1325, 64
  %v1863 = vpop.permute.xlu0 %1862
  %1864 = vrot.lane.b32.xlu0 %v1326, 64
  %v1865 = vpop.permute.xlu0 %1864
  %1866 = vrot.lane.b32.xlu0 %v1327, 64
  %v1867 = vpop.permute.xlu0 %1866
  %1868 = vrot.lane.b32.xlu0 %v1384, 64
  %v1869 = vpop.permute.xlu0 %1868
  %1870 = vrot.lane.b32.xlu0 %v1385, 64
  %v1871 = vpop.permute.xlu0 %1870
  %1872 = vrot.lane.b32.xlu0 %v1390, 64
  %v1873 = vpop.permute.xlu0 %1872
  %1874 = vrot.lane.b32.xlu0 %v1391, 64
  %v1875 = vpop.permute.xlu0 %1874
  %1908 = vrot.lane.b32.xlu0 %v1332, 96
  %v1909 = vpop.permute.xlu0 %1908
  %1910 = vrot.lane.b32.xlu0 %v1333, 96
  %v1911 = vpop.permute.xlu0 %1910
  %1912 = vrot.lane.b32.xlu0 %v1334, 96
  %v1913 = vpop.permute.xlu0 %1912
  %1914 = vrot.lane.b32.xlu0 %v1335, 96
  %v1915 = vpop.permute.xlu0 %1914
  %1916 = vrot.lane.b32.xlu0 %v1336, 96
  %v1917 = vpop.permute.xlu0 %1916
  %1918 = vrot.lane.b32.xlu0 %v1337, 96
  %v1919 = vpop.permute.xlu0 %1918
  %1920 = vrot.lane.b32.xlu0 %v1338, 96
  %v1921 = vpop.permute.xlu0 %1920
  %1922 = vrot.lane.b32.xlu0 %v1339, 96
  %v1923 = vpop.permute.xlu0 %1922
  %1924 = vrot.lane.b32.xlu0 %v1340, 96
  %v1925 = vpop.permute.xlu0 %1924
  %1926 = vrot.lane.b32.xlu0 %v1341, 96
  %v1927 = vpop.permute.xlu0 %1926
  %1928 = vrot.lane.b32.xlu0 %v1342, 96
  %v1929 = vpop.permute.xlu0 %1928
  %1930 = vrot.lane.b32.xlu0 %v1343, 96
  %v1931 = vpop.permute.xlu0 %1930
  %1932 = vrot.lane.b32.xlu0 %v1344, 96
  %v1933 = vpop.permute.xlu0 %1932
  %1934 = vrot.lane.b32.xlu0 %v1345, 96
  %v1935 = vpop.permute.xlu0 %1934
  %1936 = vrot.lane.b32.xlu0 %v1346, 96
  %v1937 = vpop.permute.xlu0 %1936
  %1938 = vrot.lane.b32.xlu0 %v1347, 96
  %v1939 = vpop.permute.xlu0 %1938
  %1940 = vrot.lane.b32.xlu0 %v1348, 96
  %v1941 = vpop.permute.xlu0 %1940
  %1942 = vrot.lane.b32.xlu0 %v1349, 96
  %v1943 = vpop.permute.xlu0 %1942
  %1944 = vrot.lane.b32.xlu0 %v1350, 96
  %v1945 = vpop.permute.xlu0 %1944
  %1946 = vrot.lane.b32.xlu0 %v1351, 96
  %v1947 = vpop.permute.xlu0 %1946
  %1948 = vrot.lane.b32.xlu0 %v1352, 96
  %v1949 = vpop.permute.xlu0 %1948
  %1950 = vrot.lane.b32.xlu0 %v1353, 96
  %v1951 = vpop.permute.xlu0 %1950
  %1952 = vrot.lane.b32.xlu0 %v1354, 96
  %v1953 = vpop.permute.xlu0 %1952
  %1954 = vrot.lane.b32.xlu0 %v1355, 96
  %v1955 = vpop.permute.xlu0 %1954
  %1956 = vrot.lane.b32.xlu0 %v1386, 96
  %v1957 = vpop.permute.xlu0 %1956
  %1958 = vrot.lane.b32.xlu0 %v1387, 96
  %v1959 = vpop.permute.xlu0 %1958
  %1960 = vrot.lane.b32.xlu0 %v1392, 96
  %v1961 = vpop.permute.xlu0 %1960
  %1962 = vrot.lane.b32.xlu0 %v1393, 96
  %v1963 = vpop.permute.xlu0 %1962
  %v1992 = vsel %vm60, %v1300, %v1425
  %v1993 = vsel %vm60, %v1301, %v1427
  %v1994 = vsel %vm60, %v1302, %v1429
  %v1995 = vsel %vm60, %v1303, %v1431
  %v1996 = vsel %vm60, %v1304, %v1433
  %v1997 = vsel %vm60, %v1305, %v1435
  %v1998 = vsel %vm60, %v1306, %v1437
  %v1999 = vsel %vm60, %v1307, %v1439
  %v2000 = vsel %vm60, %v1308, %v1441
  %v2001 = vsel %vm60, %v1309, %v1443
  %v2002 = vsel %vm60, %v1310, %v1445
  %v2003 = vsel %vm60, %v1311, %v1447
  %v2004 = vsel %vm60, %v1312, %v1449
  %v2005 = vsel %vm60, %v1313, %v1451
  %v2006 = vsel %vm60, %v1314, %v1453
  %v2007 = vsel %vm60, %v1315, %v1455
  %v2008 = vsel %vm60, %v1316, %v1457
  %v2009 = vsel %vm60, %v1317, %v1459
  %v2010 = vsel %vm60, %v1318, %v1461
  %v2011 = vsel %vm60, %v1319, %v1463
  %v2012 = vsel %vm60, %v1320, %v1465
  %v2013 = vsel %vm60, %v1321, %v1467
  %v2014 = vsel %vm60, %v1322, %v1469
  %v2015 = vsel %vm60, %v1323, %v1471
  %v2016 = vsel %vm60, %v1324, %v1473
  %v2017 = vsel %vm60, %v1325, %v1475
  %v2018 = vsel %vm60, %v1326, %v1477
  %v2019 = vsel %vm60, %v1327, %v1479
  %vm2020 = vcmask 523264
  %v2021 = vsel %vm2020, %v1992, %v1537
  %v2022 = vsel %vm2020, %v1993, %v1539
  %v2023 = vsel %vm2020, %v1994, %v1541
  %v2024 = vsel %vm2020, %v1995, %v1543
  %v2025 = vsel %vm2020, %v1996, %v1545
  %v2026 = vsel %vm2020, %v1997, %v1547
  %v2027 = vsel %vm2020, %v1998, %v1549
  %v2028 = vsel %vm2020, %v1999, %v1551
  %v2029 = vsel %vm2020, %v2000, %v1553
  %v2030 = vsel %vm2020, %v2001, %v1555
  %v2031 = vsel %vm2020, %v2002, %v1557
  %v2032 = vsel %vm2020, %v2003, %v1559
  %v2033 = vsel %vm2020, %v2004, %v1561
  %v2034 = vsel %vm2020, %v2005, %v1563
  %v2035 = vsel %vm2020, %v2006, %v1565
  %v2036 = vsel %vm2020, %v2007, %v1567
  %v2037 = vsel %vm2020, %v2008, %v1569
  %v2038 = vsel %vm2020, %v2009, %v1571
  %v2039 = vsel %vm2020, %v2010, %v1573
  %v2040 = vsel %vm2020, %v2011, %v1575
  %v2041 = vsel %vm2020, %v2012, %v1577
  %v2042 = vsel %vm2020, %v2013, %v1579
  %v2043 = vsel %vm2020, %v2014, %v1581
  %v2044 = vsel %vm2020, %v2015, %v1583
  %v2045 = vsel %vm2020, %v2016, %v1585
  %v2046 = vsel %vm2020, %v2017, %v1587
  %v2047 = vsel %vm2020, %v2018, %v1589
  %v2048 = vsel %vm2020, %v2019, %v1591
  %vm2049 = vcmask 785408
  %v2050 = vsel %vm2049, %v2021, %v1649
  %v2051 = vsel %vm2049, %v2022, %v1651
  %v2052 = vsel %vm2049, %v2023, %v1653
  %v2053 = vsel %vm2049, %v2024, %v1655
  %v2054 = vsel %vm2049, %v2025, %v1657
  %v2055 = vsel %vm2049, %v2026, %v1659
  %v2056 = vsel %vm2049, %v2027, %v1661
  %v2057 = vsel %vm2049, %v2028, %v1663
  %v2058 = vsel %vm2049, %v2029, %v1665
  %v2059 = vsel %vm2049, %v2030, %v1667
  %v2060 = vsel %vm2049, %v2031, %v1669
  %v2061 = vsel %vm2049, %v2032, %v1671
  %v2062 = vsel %vm2049, %v2033, %v1673
  %v2063 = vsel %vm2049, %v2034, %v1675
  %v2064 = vsel %vm2049, %v2035, %v1677
  %v2065 = vsel %vm2049, %v2036, %v1679
  %v2066 = vsel %vm2049, %v2037, %v1681
  %v2067 = vsel %vm2049, %v2038, %v1683
  %v2068 = vsel %vm2049, %v2039, %v1685
  %v2069 = vsel %vm2049, %v2040, %v1687
  %v2070 = vsel %vm2049, %v2041, %v1689
  %v2071 = vsel %vm2049, %v2042, %v1691
  %v2072 = vsel %vm2049, %v2043, %v1693
  %v2073 = vsel %vm2049, %v2044, %v1695
  %v2074 = vsel %vm2049, %v2045, %v1697
  %v2075 = vsel %vm2049, %v2046, %v1699
  %v2076 = vsel %vm2049, %v2047, %v1701
  %v2077 = vsel %vm2049, %v2048, %v1703
  %v2078 = vsel %vm60, %v1330, %v1735
  %v2079 = vsel %vm60, %v1331, %v1737
  %v2080 = vsel %vm60, %v1332, %v1739
  %v2081 = vsel %vm60, %v1333, %v1741
  %v2082 = vsel %vm60, %v1334, %v1743
  %v2083 = vsel %vm60, %v1335, %v1745
  %v2084 = vsel %vm60, %v1336, %v1747
  %v2085 = vsel %vm60, %v1337, %v1749
  %v2086 = vsel %vm60, %v1338, %v1751
  %v2087 = vsel %vm60, %v1339, %v1753
  %v2088 = vsel %vm60, %v1340, %v1755
  %v2089 = vsel %vm60, %v1341, %v1757
  %v2090 = vsel %vm60, %v1342, %v1759
  %v2091 = vsel %vm60, %v1343, %v1761
  %v2092 = vsel %vm60, %v1344, %v1763
  %v2093 = vsel %vm60, %v1345, %v1765
  %v2094 = vsel %vm60, %v1346, %v1767
  %v2095 = vsel %vm60, %v1347, %v1769
  %v2096 = vsel %vm60, %v1348, %v1771
  %v2097 = vsel %vm60, %v1349, %v1773
  %v2098 = vsel %vm60, %v1350, %v1775
  %v2099 = vsel %vm60, %v1351, %v1777
  %v2100 = vsel %vm60, %v1352, %v1779
  %v2101 = vsel %vm60, %v1353, %v1781
  %v2102 = vsel %vm60, %v1354, %v1783
  %v2103 = vsel %vm60, %v1355, %v1785
  %v2104 = vsel %vm60, %v1386, %v1787
  %v2105 = vsel %vm60, %v1387, %v1789
  %v2106 = vsel %vm2020, %v2078, %v1821
  %v2107 = vsel %vm2020, %v2079, %v1823
  %v2108 = vsel %vm2020, %v2080, %v1825
  %v2109 = vsel %vm2020, %v2081, %v1827
  %v2110 = vsel %vm2020, %v2082, %v1829
  %v2111 = vsel %vm2020, %v2083, %v1831
  %v2112 = vsel %vm2020, %v2084, %v1833
  %v2113 = vsel %vm2020, %v2085, %v1835
  %v2114 = vsel %vm2020, %v2086, %v1837
  %v2115 = vsel %vm2020, %v2087, %v1839
  %v2116 = vsel %vm2020, %v2088, %v1841
  %v2117 = vsel %vm2020, %v2089, %v1843
  %v2118 = vsel %vm2020, %v2090, %v1845
  %v2119 = vsel %vm2020, %v2091, %v1847
  %v2120 = vsel %vm2020, %v2092, %v1849
  %v2121 = vsel %vm2020, %v2093, %v1851
  %v2122 = vsel %vm2020, %v2094, %v1853
  %v2123 = vsel %vm2020, %v2095, %v1855
  %v2124 = vsel %vm2020, %v2096, %v1857
  %v2125 = vsel %vm2020, %v2097, %v1859
  %v2126 = vsel %vm2020, %v2098, %v1861
  %v2127 = vsel %vm2020, %v2099, %v1863
  %v2128 = vsel %vm2020, %v2100, %v1865
  %v2129 = vsel %vm2020, %v2101, %v1867
  %v2130 = vsel %vm2020, %v2102, %v1869
  %v2131 = vsel %vm2020, %v2103, %v1871
  %v2132 = vsel %vm2020, %v2104, %v1873
  %v2133 = vsel %vm2020, %v2105, %v1875
  %v2134 = vsel %vm2049, %v2106, %v1909
  %v2135 = vsel %vm2049, %v2107, %v1911
  %v2136 = vsel %vm2049, %v2108, %v1913
  %v2137 = vsel %vm2049, %v2109, %v1915
  %v2138 = vsel %vm2049, %v2110, %v1917
  %v2139 = vsel %vm2049, %v2111, %v1919
  %v2140 = vsel %vm2049, %v2112, %v1921
  %v2141 = vsel %vm2049, %v2113, %v1923
  %v2142 = vsel %vm2049, %v2114, %v1925
  %v2143 = vsel %vm2049, %v2115, %v1927
  %v2144 = vsel %vm2049, %v2116, %v1929
  %v2145 = vsel %vm2049, %v2117, %v1931
  %v2146 = vsel %vm2049, %v2118, %v1933
  %v2147 = vsel %vm2049, %v2119, %v1935
  %v2148 = vsel %vm2049, %v2120, %v1937
  %v2149 = vsel %vm2049, %v2121, %v1939
  %v2150 = vsel %vm2049, %v2122, %v1941
  %v2151 = vsel %vm2049, %v2123, %v1943
  %v2152 = vsel %vm2049, %v2124, %v1945
  %v2153 = vsel %vm2049, %v2125, %v1947
  %v2154 = vsel %vm2049, %v2126, %v1949
  %v2155 = vsel %vm2049, %v2127, %v1951
  %v2156 = vsel %vm2049, %v2128, %v1953
  %v2157 = vsel %vm2049, %v2129, %v1955
  %v2158 = vsel %vm2049, %v2130, %v1957
  %v2159 = vsel %vm2049, %v2131, %v1959
  %v2160 = vsel %vm2049, %v2132, %v1961
  %v2161 = vsel %vm2049, %v2133, %v1963
  %v2162 = vsel %vm60, %v1360, 0
  %v2164 = vsel %vm60, %v1361, 0
  %v2166 = vsel %vm60, %v1362, 0
  %v2168 = vsel %vm60, %v1363, 0
  %v2170 = vsel %vm60, %v1364, 0
  %v2172 = vsel %vm60, %v1365, 0
  %v2174 = vsel %vm60, %v1366, 0
  %v2176 = vsel %vm60, %v1367, 0
  %v2178 = vsel %vm60, %v1368, 0
  %v2180 = vsel %vm60, %v1369, 0
  %v2182 = vsel %vm60, %v1370, 0
  %v2184 = vsel %vm60, %v1371, 0
  %v2186 = vsel %vm60, %v1372, 0
  %v2188 = vsel %vm60, %v1373, 0
  %v2190 = vsel %vm60, %v1374, 0
  %v2192 = vsel %vm60, %v1375, 0
  %v2194 = vsel %vm60, %v1376, 0
  %v2196 = vsel %vm60, %v1377, 0
  %v2198 = vsel %vm60, %v1378, 0
  %v2200 = vsel %vm60, %v1379, 0
  %v2202 = vsel %vm60, %v1380, 0
  %v2204 = vsel %vm60, %v1381, 0
  %v2206 = vsel %vm60, %v1382, 0
  %v2208 = vsel %vm60, %v1383, 0
  %v2210 = vsel %vm60, %v1388, 0
  %v2212 = vsel %vm60, %v1389, 0
  %v2215 = vsel %vm60, %v1394, 0
  %v2218 = vsel %vm60, %v1395, 0
  %2220 = vmatpush.msra.mxu0 %v38
  %2221 = vmatpush.msra.mxu0 %v37
  %2222 = vmatpush.msra.mxu0 %v36
  %2223 = vmatpush.msra.mxu0 %v35
  %2224 = vmatpush.msra.mxu0 %v34
  %2225 = vmatpush.msra.mxu0 %v33
  %2226 = vmatpush.msra.mxu0 %v32
  %2227 = vmatpush.msra.mxu0 %v31
  %2228 = vmatpush.msra.mxu0 %v30
  %2229 = vmatpush.msra.mxu0 %v29
  %2230 = vmatpush.msra.mxu0 %v28
  %2231 = vmatpush.msra.mxu0 %v27
  %2232 = vmatpush.msra.mxu0 %v26
  %2233 = vmatpush.msra.mxu0 %v25
  %2234 = vmatpush.msra.mxu0 %v24
  %2235 = vmatpush.msra.mxu0 %v23
  %2236 = vmatmul.f32.gmra.mxu0 %v2050
  %v2237 = vpop.f32.mrf.mxu0
  %v2238 = vadd.f32 0.0, %v2237
  %2239 = vmatmul.f32.gmra.mxu0 %v2051
  %v2240 = vpop.f32.mrf.mxu0
  %v2241 = vadd.f32 0.0, %v2240
  %2242 = vmatmul.f32.gmra.mxu0 %v2052
  %v2243 = vpop.f32.mrf.mxu0
  %v2244 = vadd.f32 0.0, %v2243
  %2245 = vmatmul.f32.gmra.mxu0 %v2053
  %v2246 = vpop.f32.mrf.mxu0
  %v2247 = vadd.f32 0.0, %v2246
  %2248 = vmatmul.f32.gmra.mxu0 %v2054
  %v2249 = vpop.f32.mrf.mxu0
  %v2250 = vadd.f32 0.0, %v2249
  %2251 = vmatmul.f32.gmra.mxu0 %v2055
  %v2252 = vpop.f32.mrf.mxu0
  %v2253 = vadd.f32 0.0, %v2252
  %2254 = vmatmul.f32.gmra.mxu0 %v2056
  %v2255 = vpop.f32.mrf.mxu0
  %v2256 = vadd.f32 0.0, %v2255
  %2257 = vmatmul.f32.gmra.mxu0 %v2057
  %v2258 = vpop.f32.mrf.mxu0
  %v2259 = vadd.f32 0.0, %v2258
  %2260 = vmatmul.f32.gmra.mxu0 %v2058
  %v2261 = vpop.f32.mrf.mxu0
  %v2262 = vadd.f32 0.0, %v2261
  %2263 = vmatmul.f32.gmra.mxu0 %v2059
  %v2264 = vpop.f32.mrf.mxu0
  %v2265 = vadd.f32 0.0, %v2264
  %2266 = vmatmul.f32.gmra.mxu0 %v2060
  %v2267 = vpop.f32.mrf.mxu0
  %v2268 = vadd.f32 0.0, %v2267
  %2269 = vmatmul.f32.gmra.mxu0 %v2061
  %v2270 = vpop.f32.mrf.mxu0
  %v2271 = vadd.f32 0.0, %v2270
  %2272 = vmatmul.f32.gmra.mxu0 %v2062
  %v2273 = vpop.f32.mrf.mxu0
  %v2274 = vadd.f32 0.0, %v2273
  %2275 = vmatmul.f32.gmra.mxu0 %v2063
  %v2276 = vpop.f32.mrf.mxu0
  %v2277 = vadd.f32 0.0, %v2276
  %2278 = vmatmul.f32.gmra.mxu0 %v2064
  %v2279 = vpop.f32.mrf.mxu0
  %v2280 = vadd.f32 0.0, %v2279
  %2281 = vmatmul.f32.gmra.mxu0 %v2065
  %v2282 = vpop.f32.mrf.mxu0
  %v2283 = vadd.f32 0.0, %v2282
  %2284 = vmatmul.f32.gmra.mxu0 %v2066
  %v2285 = vpop.f32.mrf.mxu0
  %v2286 = vadd.f32 0.0, %v2285
  %2287 = vmatmul.f32.gmra.mxu0 %v2067
  %v2288 = vpop.f32.mrf.mxu0
  %v2289 = vadd.f32 0.0, %v2288
  %2290 = vmatmul.f32.gmra.mxu0 %v2068
  %v2291 = vpop.f32.mrf.mxu0
  %v2292 = vadd.f32 0.0, %v2291
  %2293 = vmatmul.f32.gmra.mxu0 %v2069
  %v2294 = vpop.f32.mrf.mxu0
  %v2295 = vadd.f32 0.0, %v2294
  %2296 = vmatmul.f32.gmra.mxu0 %v2070
  %v2297 = vpop.f32.mrf.mxu0
  %v2298 = vadd.f32 0.0, %v2297
  %2299 = vmatmul.f32.gmra.mxu0 %v2071
  %v2300 = vpop.f32.mrf.mxu0
  %v2301 = vadd.f32 0.0, %v2300
  %2302 = vmatmul.f32.gmra.mxu0 %v2072
  %v2303 = vpop.f32.mrf.mxu0
  %v2304 = vadd.f32 0.0, %v2303
  %2305 = vmatmul.f32.gmra.mxu0 %v2073
  %v2306 = vpop.f32.mrf.mxu0
  %v2307 = vadd.f32 0.0, %v2306
  %2308 = vmatmul.f32.gmra.mxu0 %v2074
  %v2309 = vpop.f32.mrf.mxu0
  %v2310 = vadd.f32 0.0, %v2309
  %2311 = vmatmul.f32.gmra.mxu0 %v2075
  %v2312 = vpop.f32.mrf.mxu0
  %v2313 = vadd.f32 0.0, %v2312
  %2314 = vmatmul.f32.gmra.mxu0 %v2076
  %v2315 = vpop.f32.mrf.mxu0
  %v2316 = vadd.f32 0.0, %v2315
  %2317 = vmatmul.f32.gmra.mxu0 %v2077
  %v2318 = vpop.f32.mrf.mxu0
  %v2319 = vadd.f32 0.0, %v2318
  %2320 = vdwg.mxu0
  %2321 = vmatpush.msra.mxu0 %v54
  %2322 = vmatpush.msra.mxu0 %v53
  %2323 = vmatpush.msra.mxu0 %v52
  %2324 = vmatpush.msra.mxu0 %v51
  %2325 = vmatpush.msra.mxu0 %v50
  %2326 = vmatpush.msra.mxu0 %v49
  %2327 = vmatpush.msra.mxu0 %v48
  %2328 = vmatpush.msra.mxu0 %v47
  %2329 = vmatpush.msra.mxu0 %v46
  %2330 = vmatpush.msra.mxu0 %v45
  %2331 = vmatpush.msra.mxu0 %v44
  %2332 = vmatpush.msra.mxu0 %v43
  %2333 = vmatpush.msra.mxu0 %v42
  %2334 = vmatpush.msra.mxu0 %v41
  %2335 = vmatpush.msra.mxu0 %v40
  %2336 = vmatpush.msra.mxu0 %v39
  %2337 = vmatmul.f32.gmra.mxu0 %v2134
  %v2338 = vpop.f32.mrf.mxu0
  %v2339 = vadd.f32 %v2238, %v2338
  %2340 = vmatmul.f32.gmra.mxu0 %v2135
  %v2341 = vpop.f32.mrf.mxu0
  %v2342 = vadd.f32 %v2241, %v2341
  %2343 = vmatmul.f32.gmra.mxu0 %v2136
  %v2344 = vpop.f32.mrf.mxu0
  %v2345 = vadd.f32 %v2244, %v2344
  %2346 = vmatmul.f32.gmra.mxu0 %v2137
  %v2347 = vpop.f32.mrf.mxu0
  %v2348 = vadd.f32 %v2247, %v2347
  %2349 = vmatmul.f32.gmra.mxu0 %v2138
  %v2350 = vpop.f32.mrf.mxu0
  %v2351 = vadd.f32 %v2250, %v2350
  %2352 = vmatmul.f32.gmra.mxu0 %v2139
  %v2353 = vpop.f32.mrf.mxu0
  %v2354 = vadd.f32 %v2253, %v2353
  %2355 = vmatmul.f32.gmra.mxu0 %v2140
  %v2356 = vpop.f32.mrf.mxu0
  %v2357 = vadd.f32 %v2256, %v2356
  %2358 = vmatmul.f32.gmra.mxu0 %v2141
  %v2359 = vpop.f32.mrf.mxu0
  %v2360 = vadd.f32 %v2259, %v2359
  %2361 = vmatmul.f32.gmra.mxu0 %v2142
  %v2362 = vpop.f32.mrf.mxu0
  %v2363 = vadd.f32 %v2262, %v2362
  %2364 = vmatmul.f32.gmra.mxu0 %v2143
  %v2365 = vpop.f32.mrf.mxu0
  %v2366 = vadd.f32 %v2265, %v2365
  %2367 = vmatmul.f32.gmra.mxu0 %v2144
  %v2368 = vpop.f32.mrf.mxu0
  %v2369 = vadd.f32 %v2268, %v2368
  %2370 = vmatmul.f32.gmra.mxu0 %v2145
  %v2371 = vpop.f32.mrf.mxu0
  %v2372 = vadd.f32 %v2271, %v2371
  %2373 = vmatmul.f32.gmra.mxu0 %v2146
  %v2374 = vpop.f32.mrf.mxu0
  %v2375 = vadd.f32 %v2274, %v2374
  %2376 = vmatmul.f32.gmra.mxu0 %v2147
  %v2377 = vpop.f32.mrf.mxu0
  %v2378 = vadd.f32 %v2277, %v2377
  %2379 = vmatmul.f32.gmra.mxu0 %v2148
  %v2380 = vpop.f32.mrf.mxu0
  %v2381 = vadd.f32 %v2280, %v2380
  %2382 = vmatmul.f32.gmra.mxu0 %v2149
  %v2383 = vpop.f32.mrf.mxu0
  %v2384 = vadd.f32 %v2283, %v2383
  %2385 = vmatmul.f32.gmra.mxu0 %v2150
  %v2386 = vpop.f32.mrf.mxu0
  %v2387 = vadd.f32 %v2286, %v2386
  %2388 = vmatmul.f32.gmra.mxu0 %v2151
  %v2389 = vpop.f32.mrf.mxu0
  %v2390 = vadd.f32 %v2289, %v2389
  %2391 = vmatmul.f32.gmra.mxu0 %v2152
  %v2392 = vpop.f32.mrf.mxu0
  %v2393 = vadd.f32 %v2292, %v2392
  %2394 = vmatmul.f32.gmra.mxu0 %v2153
  %v2395 = vpop.f32.mrf.mxu0
  %v2396 = vadd.f32 %v2295, %v2395
  %2397 = vmatmul.f32.gmra.mxu0 %v2154
  %v2398 = vpop.f32.mrf.mxu0
  %v2399 = vadd.f32 %v2298, %v2398
  %2400 = vmatmul.f32.gmra.mxu0 %v2155
  %v2401 = vpop.f32.mrf.mxu0
  %v2402 = vadd.f32 %v2301, %v2401
  %2403 = vmatmul.f32.gmra.mxu0 %v2156
  %v2404 = vpop.f32.mrf.mxu0
  %v2405 = vadd.f32 %v2304, %v2404
  %2406 = vmatmul.f32.gmra.mxu0 %v2157
  %v2407 = vpop.f32.mrf.mxu0
  %v2408 = vadd.f32 %v2307, %v2407
  %2409 = vmatmul.f32.gmra.mxu0 %v2158
  %v2410 = vpop.f32.mrf.mxu0
  %v2411 = vadd.f32 %v2310, %v2410
  %2412 = vmatmul.f32.gmra.mxu0 %v2159
  %v2413 = vpop.f32.mrf.mxu0
  %v2414 = vadd.f32 %v2313, %v2413
  %2415 = vmatmul.f32.gmra.mxu0 %v2160
  %v2416 = vpop.f32.mrf.mxu0
  %v2417 = vadd.f32 %v2316, %v2416
  %2418 = vmatmul.f32.gmra.mxu0 %v2161
  %v2419 = vpop.f32.mrf.mxu0
  %v2420 = vadd.f32 %v2319, %v2419
  %2421 = vdwg.mxu0
  %2422 = vmatpush.msra.mxu0 0.0
  %2423 = vmatpush.msra.mxu0 0.0
  %2424 = vmatpush.msra.mxu0 0.0
  %2425 = vmatpush.msra.mxu0 0.0
  %2426 = vmatpush.msra.mxu0 0.0
  %2427 = vmatpush.msra.mxu0 0.0
  %2428 = vmatpush.msra.mxu0 0.0
  %2429 = vmatpush.msra.mxu0 0.0
  %2430 = vmatpush.msra.mxu0 0.0
  %2431 = vmatpush.msra.mxu0 0.0
  %2432 = vmatpush.msra.mxu0 0.0
  %2433 = vmatpush.msra.mxu0 0.0
  %2434 = vmatpush.msra.mxu0 %v58
  %2435 = vmatpush.msra.mxu0 %v57
  %2436 = vmatpush.msra.mxu0 %v56
  %2437 = vmatpush.msra.mxu0 %v55
  %2438 = vmatmul.f32.gmra.mxu0 %v2162
  %v2439 = vpop.f32.mrf.mxu0
  %v2440 = vadd.f32 %v2339, %v2439
  %2441 = vmatmul.f32.gmra.mxu0 %v2164
  %v2442 = vpop.f32.mrf.mxu0
  %v2443 = vadd.f32 %v2342, %v2442
  %2444 = vmatmul.f32.gmra.mxu0 %v2166
  %v2445 = vpop.f32.mrf.mxu0
  %v2446 = vadd.f32 %v2345, %v2445
  %2447 = vmatmul.f32.gmra.mxu0 %v2168
  %v2448 = vpop.f32.mrf.mxu0
  %v2449 = vadd.f32 %v2348, %v2448
  %2450 = vmatmul.f32.gmra.mxu0 %v2170
  %v2451 = vpop.f32.mrf.mxu0
  %v2452 = vadd.f32 %v2351, %v2451
  %2453 = vmatmul.f32.gmra.mxu0 %v2172
  %v2454 = vpop.f32.mrf.mxu0
  %v2455 = vadd.f32 %v2354, %v2454
  %2456 = vmatmul.f32.gmra.mxu0 %v2174
  %v2457 = vpop.f32.mrf.mxu0
  %v2458 = vadd.f32 %v2357, %v2457
  %2459 = vmatmul.f32.gmra.mxu0 %v2176
  %v2460 = vpop.f32.mrf.mxu0
  %v2461 = vadd.f32 %v2360, %v2460
  %2462 = vmatmul.f32.gmra.mxu0 %v2178
  %v2463 = vpop.f32.mrf.mxu0
  %v2464 = vadd.f32 %v2363, %v2463
  %2465 = vmatmul.f32.gmra.mxu0 %v2180
  %v2466 = vpop.f32.mrf.mxu0
  %v2467 = vadd.f32 %v2366, %v2466
  %2468 = vmatmul.f32.gmra.mxu0 %v2182
  %v2469 = vpop.f32.mrf.mxu0
  %v2470 = vadd.f32 %v2369, %v2469
  %2471 = vmatmul.f32.gmra.mxu0 %v2184
  %v2472 = vpop.f32.mrf.mxu0
  %v2473 = vadd.f32 %v2372, %v2472
  %2474 = vmatmul.f32.gmra.mxu0 %v2186
  %v2475 = vpop.f32.mrf.mxu0
  %v2476 = vadd.f32 %v2375, %v2475
  %2477 = vmatmul.f32.gmra.mxu0 %v2188
  %v2478 = vpop.f32.mrf.mxu0
  %v2479 = vadd.f32 %v2378, %v2478
  %2480 = vmatmul.f32.gmra.mxu0 %v2190
  %v2481 = vpop.f32.mrf.mxu0
  %v2482 = vadd.f32 %v2381, %v2481
  %2483 = vmatmul.f32.gmra.mxu0 %v2192
  %v2484 = vpop.f32.mrf.mxu0
  %v2485 = vadd.f32 %v2384, %v2484
  %2486 = vmatmul.f32.gmra.mxu0 %v2194
  %v2487 = vpop.f32.mrf.mxu0
  %v2488 = vadd.f32 %v2387, %v2487
  %2489 = vmatmul.f32.gmra.mxu0 %v2196
  %v2490 = vpop.f32.mrf.mxu0
  %v2491 = vadd.f32 %v2390, %v2490
  %2492 = vmatmul.f32.gmra.mxu0 %v2198
  %v2493 = vpop.f32.mrf.mxu0
  %v2494 = vadd.f32 %v2393, %v2493
  %2495 = vmatmul.f32.gmra.mxu0 %v2200
  %v2496 = vpop.f32.mrf.mxu0
  %v2497 = vadd.f32 %v2396, %v2496
  %2498 = vmatmul.f32.gmra.mxu0 %v2202
  %v2499 = vpop.f32.mrf.mxu0
  %v2500 = vadd.f32 %v2399, %v2499
  %2501 = vmatmul.f32.gmra.mxu0 %v2204
  %v2502 = vpop.f32.mrf.mxu0
  %v2503 = vadd.f32 %v2402, %v2502
  %2504 = vmatmul.f32.gmra.mxu0 %v2206
  %v2505 = vpop.f32.mrf.mxu0
  %v2506 = vadd.f32 %v2405, %v2505
  %2507 = vmatmul.f32.gmra.mxu0 %v2208
  %v2508 = vpop.f32.mrf.mxu0
  %v2509 = vadd.f32 %v2408, %v2508
  %2510 = vmatmul.f32.gmra.mxu0 %v2210
  %v2511 = vpop.f32.mrf.mxu0
  %v2512 = vadd.f32 %v2411, %v2511
  %2513 = vmatmul.f32.gmra.mxu0 %v2212
  %v2514 = vpop.f32.mrf.mxu0
  %v2515 = vadd.f32 %v2414, %v2514
  %2516 = vmatmul.f32.gmra.mxu0 %v2215
  %v2517 = vpop.f32.mrf.mxu0
  %v2518 = vadd.f32 %v2417, %v2517
  %2519 = vmatmul.f32.gmra.mxu0 %v2218
  %v2520 = vpop.f32.mrf.mxu0
  %v2521 = vadd.f32 %v2420, %v2520
  %2522 = vdwg.mxu0
  %2523 = vst.msk [vmem:[#allocation4] sm:$0xff] %vm2020, %v2440
  %2524 = vst.msk [vmem:[#allocation4 + $0x8] sm:$0xff] %vm2020, %v2443
  %2525 = vst.msk [vmem:[#allocation4 + $0x10] sm:$0xff] %vm2020, %v2446
  %2526 = vst.msk [vmem:[#allocation4 + $0x18] sm:$0xff] %vm2020, %v2449
  %2527 = vst.msk [vmem:[#allocation4 + $0x20] sm:$0xff] %vm2020, %v2452
  %2528 = vst.msk [vmem:[#allocation4 + $0x28] sm:$0xff] %vm2020, %v2455
  %2529 = vst.msk [vmem:[#allocation4 + $0x30] sm:$0xff] %vm2020, %v2458
  %2530 = vst.msk [vmem:[#allocation4 + $0x38] sm:$0xff] %vm2020, %v2461
  %2531 = vst.msk [vmem:[#allocation4 + $0x40] sm:$0xff] %vm2020, %v2464
  %2532 = vst.msk [vmem:[#allocation4 + $0x48] sm:$0xff] %vm2020, %v2467
  %2533 = vst.msk [vmem:[#allocation4 + $0x50] sm:$0xff] %vm2020, %v2470
  %2534 = vst.msk [vmem:[#allocation4 + $0x58] sm:$0xff] %vm2020, %v2473
  %2535 = vst.msk [vmem:[#allocation4 + $0x60] sm:$0xff] %vm2020, %v2476
  %2536 = vst.msk [vmem:[#allocation4 + $0x68] sm:$0xff] %vm2020, %v2479
  %2537 = vst.msk [vmem:[#allocation4 + $0x70] sm:$0xff] %vm2020, %v2482
  %2538 = vst.msk [vmem:[#allocation4 + $0x78] sm:$0xff] %vm2020, %v2485
  %2539 = vst.msk [vmem:[#allocation4 + $0x80] sm:$0xff] %vm2020, %v2488
  %2540 = vst.msk [vmem:[#allocation4 + $0x88] sm:$0xff] %vm2020, %v2491
  %2541 = vst.msk [vmem:[#allocation4 + $0x90] sm:$0xff] %vm2020, %v2494
  %2542 = vst.msk [vmem:[#allocation4 + $0x98] sm:$0xff] %vm2020, %v2497
  %2543 = vst.msk [vmem:[#allocation4 + $0xa0] sm:$0xff] %vm2020, %v2500
  %2544 = vst.msk [vmem:[#allocation4 + $0xa8] sm:$0xff] %vm2020, %v2503
  %2545 = vst.msk [vmem:[#allocation4 + $0xb0] sm:$0xff] %vm2020, %v2506
  %2546 = vst.msk [vmem:[#allocation4 + $0xb8] sm:$0xff] %vm2020, %v2509
  %2547 = vst.msk [vmem:[#allocation4 + $0xc0] sm:$0xff] %vm2020, %v2512
  %2548 = vst.msk [vmem:[#allocation4 + $0xc8] sm:$0xff] %vm2020, %v2515
  %2549 = vst.msk [vmem:[#allocation4 + $0xd0] sm:$0xff] %vm2020, %v2518
  %2550 = vst.msk [vmem:[#allocation4 + $0xd8] sm:$0xff] %vm2020, %v2521
  %v2551 = vld [vmem:[#allocation4] sm:$0xff]
  %v2552 = vld [vmem:[#allocation4 + $0x8] sm:$0x3f]
  %v2553 = vld [vmem:[#allocation4 + $0x10] sm:$0xff]
  %v2554 = vld [vmem:[#allocation4 + $0x18] sm:$0x3f]
  %v2555 = vmax.f32 %v2551, %v2553
  %v2556 = vmax.f32 %v2552, %v2554
  %2557 = vst.msk [vmem:[#allocation6] sm:$0xff] %vm2020, %v2555
  %vm2558 = vcmask 521216
  %2559 = vst.msk [vmem:[#allocation6 + $0x8] sm:$0x3f] %vm2558, %v2556
  %v2560 = vld [vmem:[#allocation6] ss:$2 sm:$0x7f]
  %s2561 = scalar_lea.vmem [#allocation6], 1
  %v2562 = vld [vmem:[%s2561] ss:$2 sm:$0x7f]
  %v2563 = vmax.f32 %v2560, %v2562
  %v2565 = vperm.slane %v59, 0
  %v2567 = vadd.f32 %v2563, %v2565
  %v2568 = vmax.f32 %v2567, 0.0
  %vm2569 = vcmask 522240
  %2570 = vst.msk [vmem:[%s5] sm:$0x7f] %vm2569, %v2568
  %v2571 = vld [vmem:[#allocation4 + $0x20] sm:$0xff]
  %v2572 = vld [vmem:[#allocation4 + $0x28] sm:$0x3f]
  %v2573 = vld [vmem:[#allocation4 + $0x30] sm:$0xff]
  %v2574 = vld [vmem:[#allocation4 + $0x38] sm:$0x3f]
  %v2575 = vmax.f32 %v2571, %v2573
  %v2576 = vmax.f32 %v2572, %v2574
  %2577 = vst.msk [vmem:[#allocation6] sm:$0xff] %vm2020, %v2575
  %2578 = vst.msk [vmem:[#allocation6 + $0x8] sm:$0x3f] %vm2558, %v2576
  %v2579 = vld [vmem:[#allocation6] ss:$2 sm:$0x7f]
  %v2580 = vld [vmem:[%s2561] ss:$2 sm:$0x7f]
  %v2581 = vmax.f32 %v2579, %v2580
  %v2582 = vadd.f32 %v2581, %v2565
  %v2583 = vmax.f32 %v2582, 0.0
  %s2584 = scalar_lea.vmem %s5, 8
  %2585 = vst.msk [vmem:[%s2584] sm:$0x7f] %vm2569, %v2583
  %v2586 = vld [vmem:[#allocation4 + $0x40] sm:$0xff]
  %v2587 = vld [vmem:[#allocation4 + $0x48] sm:$0x3f]
  %v2588 = vld [vmem:[#allocation4 + $0x50] sm:$0xff]
  %v2589 = vld [vmem:[#allocation4 + $0x58] sm:$0x3f]
  %v2590 = vmax.f32 %v2586, %v2588
  %v2591 = vmax.f32 %v2587, %v2589
  %2592 = vst.msk [vmem:[#allocation6] sm:$0xff] %vm2020, %v2590
  %2593 = vst.msk [vmem:[#allocation6 + $0x8] sm:$0x3f] %vm2558, %v2591
  %v2594 = vld [vmem:[#allocation6] ss:$2 sm:$0x7f]
  %v2595 = vld [vmem:[%s2561] ss:$2 sm:$0x7f]
  %v2596 = vmax.f32 %v2594, %v2595
  %v2597 = vadd.f32 %v2596, %v2565
  %v2598 = vmax.f32 %v2597, 0.0
  %s2599 = scalar_lea.vmem %s5, 16
  %2600 = vst.msk [vmem:[%s2599] sm:$0x7f] %vm2569, %v2598
  %v2601 = vld [vmem:[#allocation4 + $0x60] sm:$0xff]
  %v2602 = vld [vmem:[#allocation4 + $0x68] sm:$0x3f]
  %v2603 = vld [vmem:[#allocation4 + $0x70] sm:$0xff]
  %v2604 = vld [vmem:[#allocation4 + $0x78] sm:$0x3f]
  %v2605 = vmax.f32 %v2601, %v2603
  %v2606 = vmax.f32 %v2602, %v2604
  %2607 = vst.msk [vmem:[#allocation6] sm:$0xff] %vm2020, %v2605
  %2608 = vst.msk [vmem:[#allocation6 + $0x8] sm:$0x3f] %vm2558, %v2606
  %v2609 = vld [vmem:[#allocation6] ss:$2 sm:$0x7f]
  %v2610 = vld [vmem:[%s2561] ss:$2 sm:$0x7f]
  %v2611 = vmax.f32 %v2609, %v2610
  %v2612 = vadd.f32 %v2611, %v2565
  %v2613 = vmax.f32 %v2612, 0.0
  %s2614 = scalar_lea.vmem %s5, 24
  %2615 = vst.msk [vmem:[%s2614] sm:$0x7f] %vm2569, %v2613
  %v2616 = vld [vmem:[#allocation4 + $0x80] sm:$0xff]
  %v2617 = vld [vmem:[#allocation4 + $0x88] sm:$0x3f]
  %v2618 = vld [vmem:[#allocation4 + $0x90] sm:$0xff]
  %v2619 = vld [vmem:[#allocation4 + $0x98] sm:$0x3f]
  %v2620 = vmax.f32 %v2616, %v2618
  %v2621 = vmax.f32 %v2617, %v2619
  %2622 = vst.msk [vmem:[#allocation6] sm:$0xff] %vm2020, %v2620
  %2623 = vst.msk [vmem:[#allocation6 + $0x8] sm:$0x3f] %vm2558, %v2621
  %v2624 = vld [vmem:[#allocation6] ss:$2 sm:$0x7f]
  %v2625 = vld [vmem:[%s2561] ss:$2 sm:$0x7f]
  %v2626 = vmax.f32 %v2624, %v2625
  %v2627 = vadd.f32 %v2626, %v2565
  %v2628 = vmax.f32 %v2627, 0.0
  %s2629 = scalar_lea.vmem %s5, 32
  %2630 = vst.msk [vmem:[%s2629] sm:$0x7f] %vm2569, %v2628
  %v2631 = vld [vmem:[#allocation4 + $0xa0] sm:$0xff]
  %v2632 = vld [vmem:[#allocation4 + $0xa8] sm:$0x3f]
  %v2633 = vld [vmem:[#allocation4 + $0xb0] sm:$0xff]
  %v2634 = vld [vmem:[#allocation4 + $0xb8] sm:$0x3f]
  %v2635 = vmax.f32 %v2631, %v2633
  %v2636 = vmax.f32 %v2632, %v2634
  %2637 = vst.msk [vmem:[#allocation6] sm:$0xff] %vm2020, %v2635
  %2638 = vst.msk [vmem:[#allocation6 + $0x8] sm:$0x3f] %vm2558, %v2636
  %v2639 = vld [vmem:[#allocation6] ss:$2 sm:$0x7f]
  %v2640 = vld [vmem:[%s2561] ss:$2 sm:$0x7f]
  %v2641 = vmax.f32 %v2639, %v2640
  %v2642 = vadd.f32 %v2641, %v2565
  %v2643 = vmax.f32 %v2642, 0.0
  %s2644 = scalar_lea.vmem %s5, 40
  %2645 = vst.msk [vmem:[%s2644] sm:$0x7f] %vm2569, %v2643
  %v2646 = vld [vmem:[#allocation4 + $0xc0] sm:$0xff]
  %v2647 = vld [vmem:[#allocation4 + $0xc8] sm:$0x3f]
  %v2648 = vld [vmem:[#allocation4 + $0xd0] sm:$0xff]
  %v2649 = vld [vmem:[#allocation4 + $0xd8] sm:$0x3f]
  %v2650 = vmax.f32 %v2646, %v2648
  %v2651 = vmax.f32 %v2647, %v2649
  %2652 = vst.msk [vmem:[#allocation6] sm:$0xff] %vm2020, %v2650
  %2653 = vst.msk [vmem:[#allocation6 + $0x8] sm:$0x3f] %vm2558, %v2651
  %v2654 = vld [vmem:[#allocation6] ss:$2 sm:$0x7f]
  %v2655 = vld [vmem:[%s2561] ss:$2 sm:$0x7f]
  %v2656 = vmax.f32 %v2654, %v2655
  %v2657 = vadd.f32 %v2656, %v2565
  %v2658 = vmax.f32 %v2657, 0.0
  %s2659 = scalar_lea.vmem %s5, 48
  %2660 = vst.msk [vmem:[%s2659] sm:$0x7f] %vm2569, %v2658
  %s2661 = scalar_lea.vmem %s0, 784
  %v2662 = vld [vmem:[%s2661] sm:$0xff]
  %v2663 = vld [vmem:[%s2661 + $0x8] sm:$0xff]
  %v2664 = vld [vmem:[%s2661 + $0x10] sm:$0xff]
  %v2665 = vld [vmem:[%s2661 + $0x18] sm:$0xff]
  %v2666 = vld [vmem:[%s2661 + $0x20] sm:$0xff]
  %v2667 = vld [vmem:[%s2661 + $0x28] sm:$0xff]
  %v2668 = vld [vmem:[%s2661 + $0x30] sm:$0xff]
  %v2669 = vld [vmem:[%s2661 + $0x38] sm:$0xff]
  %v2670 = vld [vmem:[%s2661 + $0x40] sm:$0xff]
  %v2671 = vld [vmem:[%s2661 + $0x48] sm:$0xff]
  %v2672 = vld [vmem:[%s2661 + $0x50] sm:$0xff]
  %v2673 = vld [vmem:[%s2661 + $0x58] sm:$0xff]
  %v2674 = vld [vmem:[%s2661 + $0x60] sm:$0xff]
  %v2675 = vld [vmem:[%s2661 + $0x68] sm:$0xff]
  %v2676 = vld [vmem:[%s2661 + $0x70] sm:$0xff]
  %v2677 = vld [vmem:[%s2661 + $0x78] sm:$0xff]
  %v2678 = vld [vmem:[%s2661 + $0x80] sm:$0xff]
  %v2679 = vld [vmem:[%s2661 + $0x88] sm:$0xff]
  %v2680 = vld [vmem:[%s2661 + $0x90] sm:$0xff]
  %v2681 = vld [vmem:[%s2661 + $0x98] sm:$0xff]
  %v2682 = vld [vmem:[%s2661 + $0xa0] sm:$0xff]
  %v2683 = vld [vmem:[%s2661 + $0xa8] sm:$0xff]
  %v2684 = vld [vmem:[%s2661 + $0xb0] sm:$0xff]
  %v2685 = vld [vmem:[%s2661 + $0xb8] sm:$0xff]
  %v2686 = vld [vmem:[%s2661 + $0xc0] sm:$0xff]
  %v2687 = vld [vmem:[%s2661 + $0xc8] sm:$0xff]
  %v2688 = vld [vmem:[%s2661 + $0xd0] sm:$0xff]
  %v2689 = vld [vmem:[%s2661 + $0xd8] sm:$0xff]
  %v2690 = vld [vmem:[%s2661 + $0xe0] sm:$0xff]
  %v2691 = vld [vmem:[%s2661 + $0xe8] sm:$0xff]
  %v2692 = vld [vmem:[%s2661 + $0xf0] sm:$0xff]
  %v2693 = vld [vmem:[%s2661 + $0xf8] sm:$0xff]
  %v2694 = vld [vmem:[%s2661 + $0x100] sm:$0xff]
  %v2695 = vld [vmem:[%s2661 + $0x108] sm:$0xff]
  %v2696 = vld [vmem:[%s2661 + $0x110] sm:$0xff]
  %v2697 = vld [vmem:[%s2661 + $0x118] sm:$0xff]
  %v2698 = vld [vmem:[%s2661 + $0x120] sm:$0xff]
  %v2699 = vld [vmem:[%s2661 + $0x128] sm:$0xff]
  %v2700 = vld [vmem:[%s2661 + $0x130] sm:$0xff]
  %v2701 = vld [vmem:[%s2661 + $0x138] sm:$0xff]
  %v2702 = vld [vmem:[%s2661 + $0x140] sm:$0xff]
  %v2703 = vld [vmem:[%s2661 + $0x148] sm:$0xff]
  %v2704 = vld [vmem:[%s2661 + $0x150] sm:$0xff]
  %v2705 = vld [vmem:[%s2661 + $0x158] sm:$0xff]
  %v2706 = vld [vmem:[%s2661 + $0x160] sm:$0xff]
  %v2707 = vld [vmem:[%s2661 + $0x168] sm:$0xff]
  %v2708 = vld [vmem:[%s2661 + $0x170] sm:$0xff]
  %v2709 = vld [vmem:[%s2661 + $0x178] sm:$0xff]
  %v2710 = vld [vmem:[%s2661 + $0x180] sm:$0xff]
  %v2711 = vld [vmem:[%s2661 + $0x188] sm:$0xff]
  %v2712 = vld [vmem:[%s2661 + $0x190] sm:$0xff]
  %v2713 = vld [vmem:[%s2661 + $0x198] sm:$0xff]
  %v2714 = vld [vmem:[%s2661 + $0x1a0] sm:$0xff]
  %v2715 = vld [vmem:[%s2661 + $0x1a8] sm:$0xff]
  %v2716 = vld [vmem:[%s2661 + $0x1b0] sm:$0xff]
  %v2717 = vld [vmem:[%s2661 + $0x1b8] sm:$0xff]
  %v2718 = vld [vmem:[%s2661 + $0x1c0] sm:$0xff]
  %v2719 = vld [vmem:[%s2661 + $0x1c8] sm:$0xff]
  %v2720 = vld [vmem:[%s2661 + $0x1d0] sm:$0xff]
  %v2721 = vld [vmem:[%s2661 + $0x1d8] sm:$0xff]
  %v2722 = vld [vmem:[%s2661 + $0x1e0] sm:$0xff]
  %v2723 = vld [vmem:[%s2661 + $0x1e8] sm:$0xff]
  %v2724 = vld [vmem:[%s2661 + $0x1f0] sm:$0xff]
  %v2725 = vld [vmem:[%s2661 + $0x1f8] sm:$0xff]
  %v2726 = vld [vmem:[%s2661 + $0x200] sm:$0xff]
  %v2727 = vld [vmem:[%s2661 + $0x208] sm:$0xff]
  %v2728 = vld [vmem:[%s2661 + $0x210] sm:$0xff]
  %v2729 = vld [vmem:[%s2661 + $0x218] sm:$0xff]
  %v2730 = vld [vmem:[%s2661 + $0x220] sm:$0xff]
  %v2731 = vld [vmem:[%s2661 + $0x228] sm:$0xff]
  %v2732 = vld [vmem:[%s2661 + $0x230] sm:$0xff]
  %v2733 = vld [vmem:[%s2661 + $0x238] sm:$0xff]
  %v2734 = vld [vmem:[%s2661 + $0x240] sm:$0xff]
  %v2735 = vld [vmem:[%s2661 + $0x248] sm:$0xff]
  %v2736 = vld [vmem:[%s2661 + $0x250] sm:$0xff]
  %v2737 = vld [vmem:[%s2661 + $0x258] sm:$0xff]
  %v2738 = vld [vmem:[%s2661 + $0x260] sm:$0xff]
  %v2739 = vld [vmem:[%s2661 + $0x268] sm:$0xff]
  %v2740 = vld [vmem:[%s2661 + $0x270] sm:$0xff]
  %v2741 = vld [vmem:[%s2661 + $0x278] sm:$0xff]
  %v2742 = vld [vmem:[%s2661 + $0x280] sm:$0xff]
  %v2743 = vld [vmem:[%s2661 + $0x288] sm:$0xff]
  %v2744 = vld [vmem:[%s2661 + $0x290] sm:$0xff]
  %v2745 = vld [vmem:[%s2661 + $0x298] sm:$0xff]
  %v2746 = vld [vmem:[%s2661 + $0x2a0] sm:$0xff]
  %v2747 = vld [vmem:[%s2661 + $0x2a8] sm:$0xff]
  %v2748 = vld [vmem:[%s2661 + $0x2b0] sm:$0xff]
  %v2749 = vld [vmem:[%s2661 + $0x2b8] sm:$0xff]
  %v2750 = vld [vmem:[%s2661 + $0x2c0] sm:$0xff]
  %v2751 = vld [vmem:[%s2661 + $0x2c8] sm:$0xff]
  %v2752 = vld [vmem:[%s2661 + $0x2d0] sm:$0xff]
  %v2753 = vld [vmem:[%s2661 + $0x2d8] sm:$0xff]
  %v2754 = vld [vmem:[%s2661 + $0x2e0] sm:$0xff]
  %v2755 = vld [vmem:[%s2661 + $0x2e8] sm:$0xff]
  %v2756 = vld [vmem:[%s2661 + $0x2f0] sm:$0xff]
  %v2757 = vld [vmem:[%s2661 + $0x2f8] sm:$0xff]
  %v2758 = vld [vmem:[%s2661 + $0x300] sm:$0xff]
  %v2759 = vld [vmem:[%s2661 + $0x308] sm:$0xff]
  %v2761 = vsel %vm192, %v2662, 0
  %v2764 = vsel %vm192, %v2663, 0
  %v2767 = vsel %vm192, %v2664, 0
  %v2770 = vsel %vm192, %v2665, 0
  %v2773 = vsel %vm192, %v2666, 0
  %v2776 = vsel %vm192, %v2667, 0
  %v2779 = vsel %vm192, %v2668, 0
  %v2782 = vsel %vm192, %v2669, 0
  %v2785 = vsel %vm192, %v2670, 0
  %v2788 = vsel %vm192, %v2671, 0
  %v2791 = vsel %vm192, %v2672, 0
  %v2794 = vsel %vm192, %v2673, 0
  %v2797 = vsel %vm192, %v2674, 0
  %v2800 = vsel %vm192, %v2675, 0
  %v2803 = vsel %vm192, %v2676, 0
  %v2806 = vsel %vm192, %v2677, 0
  %v2809 = vsel %vm192, %v2678, 0
  %v2812 = vsel %vm192, %v2679, 0
  %v2815 = vsel %vm192, %v2680, 0
  %v2818 = vsel %vm192, %v2681, 0
  %v2821 = vsel %vm192, %v2682, 0
  %v2824 = vsel %vm192, %v2683, 0
  %v2827 = vsel %vm192, %v2684, 0
  %v2830 = vsel %vm192, %v2685, 0
  %v2833 = vsel %vm192, %v2686, 0
  %v2836 = vsel %vm192, %v2687, 0
  %v2839 = vsel %vm192, %v2688, 0
  %v2842 = vsel %vm192, %v2689, 0
  %v2845 = vsel %vm192, %v2690, 0
  %v2848 = vsel %vm192, %v2691, 0
  %v2851 = vsel %vm192, %v2692, 0
  %v2854 = vsel %vm192, %v2693, 0
  %v2857 = vsel %vm192, %v2694, 0
  %v2860 = vsel %vm192, %v2695, 0
  %v2863 = vsel %vm192, %v2696, 0
  %v2866 = vsel %vm192, %v2697, 0
  %v2869 = vsel %vm192, %v2698, 0
  %v2872 = vsel %vm192, %v2699, 0
  %v2875 = vsel %vm192, %v2700, 0
  %v2878 = vsel %vm192, %v2701, 0
  %v2881 = vsel %vm192, %v2702, 0
  %v2884 = vsel %vm192, %v2703, 0
  %v2887 = vsel %vm192, %v2704, 0
  %v2890 = vsel %vm192, %v2705, 0
  %v2893 = vsel %vm192, %v2706, 0
  %v2896 = vsel %vm192, %v2707, 0
  %v2899 = vsel %vm192, %v2708, 0
  %v2902 = vsel %vm192, %v2709, 0
  %v2905 = vsel %vm192, %v2710, 0
  %v2908 = vsel %vm192, %v2711, 0
  %v2911 = vsel %vm192, %v2712, 0
  %v2914 = vsel %vm192, %v2713, 0
  %v2917 = vsel %vm192, %v2714, 0
  %v2920 = vsel %vm192, %v2715, 0
  %v2923 = vsel %vm192, %v2716, 0
  %v2926 = vsel %vm192, %v2717, 0
  %v2929 = vsel %vm192, %v2718, 0
  %v2932 = vsel %vm192, %v2719, 0
  %v2935 = vsel %vm192, %v2720, 0
  %v2938 = vsel %vm192, %v2721, 0
  %v2941 = vsel %vm192, %v2722, 0
  %v2944 = vsel %vm192, %v2723, 0
  %v2947 = vsel %vm192, %v2724, 0
  %v2950 = vsel %vm192, %v2725, 0
  %v2953 = vsel %vm192, %v2726, 0
  %v2956 = vsel %vm192, %v2727, 0
  %v2959 = vsel %vm192, %v2728, 0
  %v2962 = vsel %vm192, %v2729, 0
  %v2965 = vsel %vm192, %v2730, 0
  %v2968 = vsel %vm192, %v2731, 0
  %v2971 = vsel %vm192, %v2732, 0
  %v2974 = vsel %vm192, %v2733, 0
  %v2977 = vsel %vm192, %v2734, 0
  %v2980 = vsel %vm192, %v2735, 0
  %v2983 = vsel %vm192, %v2736, 0
  %v2986 = vsel %vm192, %v2737, 0
  %v2989 = vsel %vm192, %v2738, 0
  %v2992 = vsel %vm192, %v2739, 0
  %v2995 = vsel %vm192, %v2740, 0
  %v2998 = vsel %vm192, %v2741, 0
  %v3001 = vsel %vm192, %v2742, 0
  %v3004 = vsel %vm192, %v2743, 0
  %v3007 = vsel %vm192, %v2744, 0
  %v3010 = vsel %vm192, %v2745, 0
  %v3013 = vsel %vm192, %v2746, 0
  %v3016 = vsel %vm192, %v2747, 0
  %v3019 = vsel %vm192, %v2748, 0
  %v3022 = vsel %vm192, %v2749, 0
  %v3025 = vsel %vm192, %v2750, 0
  %v3028 = vsel %vm192, %v2751, 0
  %v3031 = vsel %vm192, %v2752, 0
  %v3034 = vsel %vm192, %v2753, 0
  %v3037 = vsel %vm192, %v2754, 0
  %v3040 = vsel %vm192, %v2755, 0
  %v3043 = vsel %vm192, %v2756, 0
  %v3046 = vsel %vm192, %v2757, 0
  %v3049 = vsel %vm192, %v2758, 0
  %v3052 = vsel %vm192, %v2759, 0
  %3054 = vmatpush.msra.mxu0 0.0
  %3055 = vmatpush.msra.mxu0 0.0
  %3056 = vmatpush.msra.mxu0 0.0
  %3057 = vmatpush.msra.mxu0 0.0
  %3058 = vmatpush.msra.mxu0 0.0
  %3059 = vmatpush.msra.mxu0 0.0
  %3060 = vmatpush.msra.mxu0 0.0
  %3061 = vmatpush.msra.mxu0 0.0
  %3062 = vmatpush.msra.mxu0 0.0
  %3063 = vmatpush.msra.mxu0 0.0
  %3064 = vmatpush.msra.mxu0 0.0
  %3065 = vmatpush.msra.mxu0 0.0
  %3066 = vmatpush.msra.mxu0 0.0
  %3067 = vmatpush.msra.mxu0 0.0
  %3068 = vmatpush.msra.mxu0 %v489
  %3069 = vmatpush.msra.mxu0 %v20
  %3070 = vmatmul.f32.gmra.mxu0 %v2761
  %v3071 = vpop.f32.mrf.mxu0
  %v3072 = vadd.f32 0.0, %v3071
  %3073 = vmatmul.f32.gmra.mxu0 %v2764
  %v3074 = vpop.f32.mrf.mxu0
  %v3075 = vadd.f32 0.0, %v3074
  %3076 = vmatmul.f32.gmra.mxu0 %v2767
  %v3077 = vpop.f32.mrf.mxu0
  %v3078 = vadd.f32 0.0, %v3077
  %3079 = vmatmul.f32.gmra.mxu0 %v2770
  %v3080 = vpop.f32.mrf.mxu0
  %v3081 = vadd.f32 0.0, %v3080
  %3082 = vmatmul.f32.gmra.mxu0 %v2773
  %v3083 = vpop.f32.mrf.mxu0
  %v3084 = vadd.f32 0.0, %v3083
  %3085 = vmatmul.f32.gmra.mxu0 %v2776
  %v3086 = vpop.f32.mrf.mxu0
  %v3087 = vadd.f32 0.0, %v3086
  %3088 = vmatmul.f32.gmra.mxu0 %v2779
  %v3089 = vpop.f32.mrf.mxu0
  %v3090 = vadd.f32 0.0, %v3089
  %3091 = vmatmul.f32.gmra.mxu0 %v2782
  %v3092 = vpop.f32.mrf.mxu0
  %v3093 = vadd.f32 0.0, %v3092
  %3094 = vmatmul.f32.gmra.mxu0 %v2785
  %v3095 = vpop.f32.mrf.mxu0
  %v3096 = vadd.f32 0.0, %v3095
  %3097 = vmatmul.f32.gmra.mxu0 %v2788
  %v3098 = vpop.f32.mrf.mxu0
  %v3099 = vadd.f32 0.0, %v3098
  %3100 = vmatmul.f32.gmra.mxu0 %v2791
  %v3101 = vpop.f32.mrf.mxu0
  %v3102 = vadd.f32 0.0, %v3101
  %3103 = vmatmul.f32.gmra.mxu0 %v2794
  %v3104 = vpop.f32.mrf.mxu0
  %v3105 = vadd.f32 0.0, %v3104
  %3106 = vmatmul.f32.gmra.mxu0 %v2797
  %v3107 = vpop.f32.mrf.mxu0
  %v3108 = vadd.f32 0.0, %v3107
  %3109 = vmatmul.f32.gmra.mxu0 %v2800
  %v3110 = vpop.f32.mrf.mxu0
  %v3111 = vadd.f32 0.0, %v3110
  %3112 = vmatmul.f32.gmra.mxu0 %v2803
  %v3113 = vpop.f32.mrf.mxu0
  %v3114 = vadd.f32 0.0, %v3113
  %3115 = vmatmul.f32.gmra.mxu0 %v2806
  %v3116 = vpop.f32.mrf.mxu0
  %v3117 = vadd.f32 0.0, %v3116
  %3118 = vmatmul.f32.gmra.mxu0 %v2809
  %v3119 = vpop.f32.mrf.mxu0
  %v3120 = vadd.f32 0.0, %v3119
  %3121 = vmatmul.f32.gmra.mxu0 %v2812
  %v3122 = vpop.f32.mrf.mxu0
  %v3123 = vadd.f32 0.0, %v3122
  %3124 = vmatmul.f32.gmra.mxu0 %v2815
  %v3125 = vpop.f32.mrf.mxu0
  %v3126 = vadd.f32 0.0, %v3125
  %3127 = vmatmul.f32.gmra.mxu0 %v2818
  %v3128 = vpop.f32.mrf.mxu0
  %v3129 = vadd.f32 0.0, %v3128
  %3130 = vmatmul.f32.gmra.mxu0 %v2821
  %v3131 = vpop.f32.mrf.mxu0
  %v3132 = vadd.f32 0.0, %v3131
  %3133 = vmatmul.f32.gmra.mxu0 %v2824
  %v3134 = vpop.f32.mrf.mxu0
  %v3135 = vadd.f32 0.0, %v3134
  %3136 = vmatmul.f32.gmra.mxu0 %v2827
  %v3137 = vpop.f32.mrf.mxu0
  %v3138 = vadd.f32 0.0, %v3137
  %3139 = vmatmul.f32.gmra.mxu0 %v2830
  %v3140 = vpop.f32.mrf.mxu0
  %v3141 = vadd.f32 0.0, %v3140
  %3142 = vmatmul.f32.gmra.mxu0 %v2833
  %v3143 = vpop.f32.mrf.mxu0
  %v3144 = vadd.f32 0.0, %v3143
  %3145 = vmatmul.f32.gmra.mxu0 %v2836
  %v3146 = vpop.f32.mrf.mxu0
  %v3147 = vadd.f32 0.0, %v3146
  %3148 = vmatmul.f32.gmra.mxu0 %v2839
  %v3149 = vpop.f32.mrf.mxu0
  %v3150 = vadd.f32 0.0, %v3149
  %3151 = vmatmul.f32.gmra.mxu0 %v2842
  %v3152 = vpop.f32.mrf.mxu0
  %v3153 = vadd.f32 0.0, %v3152
  %3154 = vmatmul.f32.gmra.mxu0 %v2845
  %v3155 = vpop.f32.mrf.mxu0
  %v3156 = vadd.f32 0.0, %v3155
  %3157 = vmatmul.f32.gmra.mxu0 %v2848
  %v3158 = vpop.f32.mrf.mxu0
  %v3159 = vadd.f32 0.0, %v3158
  %3160 = vmatmul.f32.gmra.mxu0 %v2851
  %v3161 = vpop.f32.mrf.mxu0
  %v3162 = vadd.f32 0.0, %v3161
  %3163 = vmatmul.f32.gmra.mxu0 %v2854
  %v3164 = vpop.f32.mrf.mxu0
  %v3165 = vadd.f32 0.0, %v3164
  %3166 = vmatmul.f32.gmra.mxu0 %v2857
  %v3167 = vpop.f32.mrf.mxu0
  %v3168 = vadd.f32 0.0, %v3167
  %3169 = vmatmul.f32.gmra.mxu0 %v2860
  %v3170 = vpop.f32.mrf.mxu0
  %v3171 = vadd.f32 0.0, %v3170
  %3172 = vmatmul.f32.gmra.mxu0 %v2863
  %v3173 = vpop.f32.mrf.mxu0
  %v3174 = vadd.f32 0.0, %v3173
  %3175 = vmatmul.f32.gmra.mxu0 %v2866
  %v3176 = vpop.f32.mrf.mxu0
  %v3177 = vadd.f32 0.0, %v3176
  %3178 = vmatmul.f32.gmra.mxu0 %v2869
  %v3179 = vpop.f32.mrf.mxu0
  %v3180 = vadd.f32 0.0, %v3179
  %3181 = vmatmul.f32.gmra.mxu0 %v2872
  %v3182 = vpop.f32.mrf.mxu0
  %v3183 = vadd.f32 0.0, %v3182
  %3184 = vmatmul.f32.gmra.mxu0 %v2875
  %v3185 = vpop.f32.mrf.mxu0
  %v3186 = vadd.f32 0.0, %v3185
  %3187 = vmatmul.f32.gmra.mxu0 %v2878
  %v3188 = vpop.f32.mrf.mxu0
  %v3189 = vadd.f32 0.0, %v3188
  %3190 = vmatmul.f32.gmra.mxu0 %v2881
  %v3191 = vpop.f32.mrf.mxu0
  %v3192 = vadd.f32 0.0, %v3191
  %3193 = vmatmul.f32.gmra.mxu0 %v2884
  %v3194 = vpop.f32.mrf.mxu0
  %v3195 = vadd.f32 0.0, %v3194
  %3196 = vmatmul.f32.gmra.mxu0 %v2887
  %v3197 = vpop.f32.mrf.mxu0
  %v3198 = vadd.f32 0.0, %v3197
  %3199 = vmatmul.f32.gmra.mxu0 %v2890
  %v3200 = vpop.f32.mrf.mxu0
  %v3201 = vadd.f32 0.0, %v3200
  %3202 = vmatmul.f32.gmra.mxu0 %v2893
  %v3203 = vpop.f32.mrf.mxu0
  %v3204 = vadd.f32 0.0, %v3203
  %3205 = vmatmul.f32.gmra.mxu0 %v2896
  %v3206 = vpop.f32.mrf.mxu0
  %v3207 = vadd.f32 0.0, %v3206
  %3208 = vmatmul.f32.gmra.mxu0 %v2899
  %v3209 = vpop.f32.mrf.mxu0
  %v3210 = vadd.f32 0.0, %v3209
  %3211 = vmatmul.f32.gmra.mxu0 %v2902
  %v3212 = vpop.f32.mrf.mxu0
  %v3213 = vadd.f32 0.0, %v3212
  %3214 = vmatmul.f32.gmra.mxu0 %v2905
  %v3215 = vpop.f32.mrf.mxu0
  %v3216 = vadd.f32 0.0, %v3215
  %3217 = vmatmul.f32.gmra.mxu0 %v2908
  %v3218 = vpop.f32.mrf.mxu0
  %v3219 = vadd.f32 0.0, %v3218
  %3220 = vmatmul.f32.gmra.mxu0 %v2911
  %v3221 = vpop.f32.mrf.mxu0
  %v3222 = vadd.f32 0.0, %v3221
  %3223 = vmatmul.f32.gmra.mxu0 %v2914
  %v3224 = vpop.f32.mrf.mxu0
  %v3225 = vadd.f32 0.0, %v3224
  %3226 = vmatmul.f32.gmra.mxu0 %v2917
  %v3227 = vpop.f32.mrf.mxu0
  %v3228 = vadd.f32 0.0, %v3227
  %3229 = vmatmul.f32.gmra.mxu0 %v2920
  %v3230 = vpop.f32.mrf.mxu0
  %v3231 = vadd.f32 0.0, %v3230
  %3232 = vmatmul.f32.gmra.mxu0 %v2923
  %v3233 = vpop.f32.mrf.mxu0
  %v3234 = vadd.f32 0.0, %v3233
  %3235 = vmatmul.f32.gmra.mxu0 %v2926
  %v3236 = vpop.f32.mrf.mxu0
  %v3237 = vadd.f32 0.0, %v3236
  %3238 = vmatmul.f32.gmra.mxu0 %v2929
  %v3239 = vpop.f32.mrf.mxu0
  %v3240 = vadd.f32 0.0, %v3239
  %3241 = vmatmul.f32.gmra.mxu0 %v2932
  %v3242 = vpop.f32.mrf.mxu0
  %v3243 = vadd.f32 0.0, %v3242
  %3244 = vmatmul.f32.gmra.mxu0 %v2935
  %v3245 = vpop.f32.mrf.mxu0
  %v3246 = vadd.f32 0.0, %v3245
  %3247 = vmatmul.f32.gmra.mxu0 %v2938
  %v3248 = vpop.f32.mrf.mxu0
  %v3249 = vadd.f32 0.0, %v3248
  %3250 = vmatmul.f32.gmra.mxu0 %v2941
  %v3251 = vpop.f32.mrf.mxu0
  %v3252 = vadd.f32 0.0, %v3251
  %3253 = vmatmul.f32.gmra.mxu0 %v2944
  %v3254 = vpop.f32.mrf.mxu0
  %v3255 = vadd.f32 0.0, %v3254
  %3256 = vmatmul.f32.gmra.mxu0 %v2947
  %v3257 = vpop.f32.mrf.mxu0
  %v3258 = vadd.f32 0.0, %v3257
  %3259 = vmatmul.f32.gmra.mxu0 %v2950
  %v3260 = vpop.f32.mrf.mxu0
  %v3261 = vadd.f32 0.0, %v3260
  %3262 = vmatmul.f32.gmra.mxu0 %v2953
  %v3263 = vpop.f32.mrf.mxu0
  %v3264 = vadd.f32 0.0, %v3263
  %3265 = vmatmul.f32.gmra.mxu0 %v2956
  %v3266 = vpop.f32.mrf.mxu0
  %v3267 = vadd.f32 0.0, %v3266
  %3268 = vmatmul.f32.gmra.mxu0 %v2959
  %v3269 = vpop.f32.mrf.mxu0
  %v3270 = vadd.f32 0.0, %v3269
  %3271 = vmatmul.f32.gmra.mxu0 %v2962
  %v3272 = vpop.f32.mrf.mxu0
  %v3273 = vadd.f32 0.0, %v3272
  %3274 = vmatmul.f32.gmra.mxu0 %v2965
  %v3275 = vpop.f32.mrf.mxu0
  %v3276 = vadd.f32 0.0, %v3275
  %3277 = vmatmul.f32.gmra.mxu0 %v2968
  %v3278 = vpop.f32.mrf.mxu0
  %v3279 = vadd.f32 0.0, %v3278
  %3280 = vmatmul.f32.gmra.mxu0 %v2971
  %v3281 = vpop.f32.mrf.mxu0
  %v3282 = vadd.f32 0.0, %v3281
  %3283 = vmatmul.f32.gmra.mxu0 %v2974
  %v3284 = vpop.f32.mrf.mxu0
  %v3285 = vadd.f32 0.0, %v3284
  %3286 = vmatmul.f32.gmra.mxu0 %v2977
  %v3287 = vpop.f32.mrf.mxu0
  %v3288 = vadd.f32 0.0, %v3287
  %3289 = vmatmul.f32.gmra.mxu0 %v2980
  %v3290 = vpop.f32.mrf.mxu0
  %v3291 = vadd.f32 0.0, %v3290
  %3292 = vmatmul.f32.gmra.mxu0 %v2983
  %v3293 = vpop.f32.mrf.mxu0
  %v3294 = vadd.f32 0.0, %v3293
  %3295 = vmatmul.f32.gmra.mxu0 %v2986
  %v3296 = vpop.f32.mrf.mxu0
  %v3297 = vadd.f32 0.0, %v3296
  %3298 = vmatmul.f32.gmra.mxu0 %v2989
  %v3299 = vpop.f32.mrf.mxu0
  %v3300 = vadd.f32 0.0, %v3299
  %3301 = vmatmul.f32.gmra.mxu0 %v2992
  %v3302 = vpop.f32.mrf.mxu0
  %v3303 = vadd.f32 0.0, %v3302
  %3304 = vmatmul.f32.gmra.mxu0 %v2995
  %v3305 = vpop.f32.mrf.mxu0
  %v3306 = vadd.f32 0.0, %v3305
  %3307 = vmatmul.f32.gmra.mxu0 %v2998
  %v3308 = vpop.f32.mrf.mxu0
  %v3309 = vadd.f32 0.0, %v3308
  %3310 = vmatmul.f32.gmra.mxu0 %v3001
  %v3311 = vpop.f32.mrf.mxu0
  %v3312 = vadd.f32 0.0, %v3311
  %3313 = vmatmul.f32.gmra.mxu0 %v3004
  %v3314 = vpop.f32.mrf.mxu0
  %v3315 = vadd.f32 0.0, %v3314
  %3316 = vmatmul.f32.gmra.mxu0 %v3007
  %v3317 = vpop.f32.mrf.mxu0
  %v3318 = vadd.f32 0.0, %v3317
  %3319 = vmatmul.f32.gmra.mxu0 %v3010
  %v3320 = vpop.f32.mrf.mxu0
  %v3321 = vadd.f32 0.0, %v3320
  %3322 = vmatmul.f32.gmra.mxu0 %v3013
  %v3323 = vpop.f32.mrf.mxu0
  %v3324 = vadd.f32 0.0, %v3323
  %3325 = vmatmul.f32.gmra.mxu0 %v3016
  %v3326 = vpop.f32.mrf.mxu0
  %v3327 = vadd.f32 0.0, %v3326
  %3328 = vmatmul.f32.gmra.mxu0 %v3019
  %v3329 = vpop.f32.mrf.mxu0
  %v3330 = vadd.f32 0.0, %v3329
  %3331 = vmatmul.f32.gmra.mxu0 %v3022
  %v3332 = vpop.f32.mrf.mxu0
  %v3333 = vadd.f32 0.0, %v3332
  %3334 = vmatmul.f32.gmra.mxu0 %v3025
  %v3335 = vpop.f32.mrf.mxu0
  %v3336 = vadd.f32 0.0, %v3335
  %3337 = vmatmul.f32.gmra.mxu0 %v3028
  %v3338 = vpop.f32.mrf.mxu0
  %v3339 = vadd.f32 0.0, %v3338
  %3340 = vmatmul.f32.gmra.mxu0 %v3031
  %v3341 = vpop.f32.mrf.mxu0
  %v3342 = vadd.f32 0.0, %v3341
  %3343 = vmatmul.f32.gmra.mxu0 %v3034
  %v3344 = vpop.f32.mrf.mxu0
  %v3345 = vadd.f32 0.0, %v3344
  %3346 = vmatmul.f32.gmra.mxu0 %v3037
  %v3347 = vpop.f32.mrf.mxu0
  %v3348 = vadd.f32 0.0, %v3347
  %3349 = vmatmul.f32.gmra.mxu0 %v3040
  %v3350 = vpop.f32.mrf.mxu0
  %v3351 = vadd.f32 0.0, %v3350
  %3352 = vmatmul.f32.gmra.mxu0 %v3043
  %v3353 = vpop.f32.mrf.mxu0
  %v3354 = vadd.f32 0.0, %v3353
  %3355 = vmatmul.f32.gmra.mxu0 %v3046
  %v3356 = vpop.f32.mrf.mxu0
  %v3357 = vadd.f32 0.0, %v3356
  %3358 = vmatmul.f32.gmra.mxu0 %v3049
  %v3359 = vpop.f32.mrf.mxu0
  %v3360 = vadd.f32 0.0, %v3359
  %3361 = vmatmul.f32.gmra.mxu0 %v3052
  %v3362 = vpop.f32.mrf.mxu0
  %v3363 = vadd.f32 0.0, %v3362
  %3364 = vdwg.mxu0
  %3365 = vst.msk [vmem:[#allocation3] sm:$0xff] %vm60, %v3072
  %3366 = vst.msk [vmem:[#allocation3 + $0x8] sm:$0xff] %vm60, %v3075
  %3367 = vst.msk [vmem:[#allocation3 + $0x10] sm:$0xff] %vm60, %v3078
  %3368 = vst.msk [vmem:[#allocation3 + $0x18] sm:$0xff] %vm60, %v3081
  %3369 = vst.msk [vmem:[#allocation3 + $0x20] sm:$0xff] %vm60, %v3084
  %3370 = vst.msk [vmem:[#allocation3 + $0x28] sm:$0xff] %vm60, %v3087
  %3371 = vst.msk [vmem:[#allocation3 + $0x30] sm:$0xff] %vm60, %v3090
  %3372 = vst.msk [vmem:[#allocation3 + $0x38] sm:$0xff] %vm60, %v3093
  %3373 = vst.msk [vmem:[#allocation3 + $0x40] sm:$0xff] %vm60, %v3096
  %3374 = vst.msk [vmem:[#allocation3 + $0x48] sm:$0xff] %vm60, %v3099
  %3375 = vst.msk [vmem:[#allocation3 + $0x50] sm:$0xff] %vm60, %v3102
  %3376 = vst.msk [vmem:[#allocation3 + $0x58] sm:$0xff] %vm60, %v3105
  %3377 = vst.msk [vmem:[#allocation3 + $0x60] sm:$0xff] %vm60, %v3108
  %3378 = vst.msk [vmem:[#allocation3 + $0x68] sm:$0xff] %vm60, %v3111
  %3379 = vst.msk [vmem:[#allocation3 + $0x70] sm:$0xff] %vm60, %v3114
  %3380 = vst.msk [vmem:[#allocation3 + $0x78] sm:$0xff] %vm60, %v3117
  %3381 = vst.msk [vmem:[#allocation3 + $0x80] sm:$0xff] %vm60, %v3120
  %3382 = vst.msk [vmem:[#allocation3 + $0x88] sm:$0xff] %vm60, %v3123
  %3383 = vst.msk [vmem:[#allocation3 + $0x90] sm:$0xff] %vm60, %v3126
  %3384 = vst.msk [vmem:[#allocation3 + $0x98] sm:$0xff] %vm60, %v3129
  %3385 = vst.msk [vmem:[#allocation3 + $0xa0] sm:$0xff] %vm60, %v3132
  %3386 = vst.msk [vmem:[#allocation3 + $0xa8] sm:$0xff] %vm60, %v3135
  %3387 = vst.msk [vmem:[#allocation3 + $0xb0] sm:$0xff] %vm60, %v3138
  %3388 = vst.msk [vmem:[#allocation3 + $0xb8] sm:$0xff] %vm60, %v3141
  %3389 = vst.msk [vmem:[#allocation3 + $0xc0] sm:$0xff] %vm60, %v3144
  %3390 = vst.msk [vmem:[#allocation3 + $0xc8] sm:$0xff] %vm60, %v3147
  %3391 = vst.msk [vmem:[#allocation3 + $0xd0] sm:$0xff] %vm60, %v3150
  %3392 = vst.msk [vmem:[#allocation3 + $0xd8] sm:$0xff] %vm60, %v3153
  %3393 = vst.msk [vmem:[#allocation3 + $0xe0] sm:$0xff] %vm60, %v3156
  %3394 = vst.msk [vmem:[#allocation3 + $0xe8] sm:$0xff] %vm60, %v3159
  %3395 = vst.msk [vmem:[#allocation3 + $0xf0] sm:$0xff] %vm60, %v3162
  %3396 = vst.msk [vmem:[#allocation3 + $0xf8] sm:$0xff] %vm60, %v3165
  %3397 = vst.msk [vmem:[#allocation3 + $0x100] sm:$0xff] %vm60, %v3168
  %3398 = vst.msk [vmem:[#allocation3 + $0x108] sm:$0xff] %vm60, %v3171
  %3399 = vst.msk [vmem:[#allocation3 + $0x110] sm:$0xff] %vm60, %v3174
  %3400 = vst.msk [vmem:[#allocation3 + $0x118] sm:$0xff] %vm60, %v3177
  %3401 = vst.msk [vmem:[#allocation3 + $0x120] sm:$0xff] %vm60, %v3180
  %3402 = vst.msk [vmem:[#allocation3 + $0x128] sm:$0xff] %vm60, %v3183
  %3403 = vst.msk [vmem:[#allocation3 + $0x130] sm:$0xff] %vm60, %v3186
  %3404 = vst.msk [vmem:[#allocation3 + $0x138] sm:$0xff] %vm60, %v3189
  %3405 = vst.msk [vmem:[#allocation3 + $0x140] sm:$0xff] %vm60, %v3192
  %3406 = vst.msk [vmem:[#allocation3 + $0x148] sm:$0xff] %vm60, %v3195
  %3407 = vst.msk [vmem:[#allocation3 + $0x150] sm:$0xff] %vm60, %v3198
  %3408 = vst.msk [vmem:[#allocation3 + $0x158] sm:$0xff] %vm60, %v3201
  %3409 = vst.msk [vmem:[#allocation3 + $0x160] sm:$0xff] %vm60, %v3204
  %3410 = vst.msk [vmem:[#allocation3 + $0x168] sm:$0xff] %vm60, %v3207
  %3411 = vst.msk [vmem:[#allocation3 + $0x170] sm:$0xff] %vm60, %v3210
  %3412 = vst.msk [vmem:[#allocation3 + $0x178] sm:$0xff] %vm60, %v3213
  %3413 = vst.msk [vmem:[#allocation3 + $0x180] sm:$0xff] %vm60, %v3216
  %3414 = vst.msk [vmem:[#allocation3 + $0x188] sm:$0xff] %vm60, %v3219
  %3415 = vst.msk [vmem:[#allocation3 + $0x190] sm:$0xff] %vm60, %v3222
  %3416 = vst.msk [vmem:[#allocation3 + $0x198] sm:$0xff] %vm60, %v3225
  %3417 = vst.msk [vmem:[#allocation3 + $0x1a0] sm:$0xff] %vm60, %v3228
  %3418 = vst.msk [vmem:[#allocation3 + $0x1a8] sm:$0xff] %vm60, %v3231
  %3419 = vst.msk [vmem:[#allocation3 + $0x1b0] sm:$0xff] %vm60, %v3234
  %3420 = vst.msk [vmem:[#allocation3 + $0x1b8] sm:$0xff] %vm60, %v3237
  %3421 = vst.msk [vmem:[#allocation3 + $0x1c0] sm:$0xff] %vm60, %v3240
  %3422 = vst.msk [vmem:[#allocation3 + $0x1c8] sm:$0xff] %vm60, %v3243
  %3423 = vst.msk [vmem:[#allocation3 + $0x1d0] sm:$0xff] %vm60, %v3246
  %3424 = vst.msk [vmem:[#allocation3 + $0x1d8] sm:$0xff] %vm60, %v3249
  %3425 = vst.msk [vmem:[#allocation3 + $0x1e0] sm:$0xff] %vm60, %v3252
  %3426 = vst.msk [vmem:[#allocation3 + $0x1e8] sm:$0xff] %vm60, %v3255
  %3427 = vst.msk [vmem:[#allocation3 + $0x1f0] sm:$0xff] %vm60, %v3258
  %3428 = vst.msk [vmem:[#allocation3 + $0x1f8] sm:$0xff] %vm60, %v3261
  %3429 = vst.msk [vmem:[#allocation3 + $0x200] sm:$0xff] %vm60, %v3264
  %3430 = vst.msk [vmem:[#allocation3 + $0x208] sm:$0xff] %vm60, %v3267
  %3431 = vst.msk [vmem:[#allocation3 + $0x210] sm:$0xff] %vm60, %v3270
  %3432 = vst.msk [vmem:[#allocation3 + $0x218] sm:$0xff] %vm60, %v3273
  %3433 = vst.msk [vmem:[#allocation3 + $0x220] sm:$0xff] %vm60, %v3276
  %3434 = vst.msk [vmem:[#allocation3 + $0x228] sm:$0xff] %vm60, %v3279
  %3435 = vst.msk [vmem:[#allocation3 + $0x230] sm:$0xff] %vm60, %v3282
  %3436 = vst.msk [vmem:[#allocation3 + $0x238] sm:$0xff] %vm60, %v3285
  %3437 = vst.msk [vmem:[#allocation3 + $0x240] sm:$0xff] %vm60, %v3288
  %3438 = vst.msk [vmem:[#allocation3 + $0x248] sm:$0xff] %vm60, %v3291
  %3439 = vst.msk [vmem:[#allocation3 + $0x250] sm:$0xff] %vm60, %v3294
  %3440 = vst.msk [vmem:[#allocation3 + $0x258] sm:$0xff] %vm60, %v3297
  %3441 = vst.msk [vmem:[#allocation3 + $0x260] sm:$0xff] %vm60, %v3300
  %3442 = vst.msk [vmem:[#allocation3 + $0x268] sm:$0xff] %vm60, %v3303
  %3443 = vst.msk [vmem:[#allocation3 + $0x270] sm:$0xff] %vm60, %v3306
  %3444 = vst.msk [vmem:[#allocation3 + $0x278] sm:$0xff] %vm60, %v3309
  %3445 = vst.msk [vmem:[#allocation3 + $0x280] sm:$0xff] %vm60, %v3312
  %3446 = vst.msk [vmem:[#allocation3 + $0x288] sm:$0xff] %vm60, %v3315
  %3447 = vst.msk [vmem:[#allocation3 + $0x290] sm:$0xff] %vm60, %v3318
  %3448 = vst.msk [vmem:[#allocation3 + $0x298] sm:$0xff] %vm60, %v3321
  %3449 = vst.msk [vmem:[#allocation3 + $0x2a0] sm:$0xff] %vm60, %v3324
  %3450 = vst.msk [vmem:[#allocation3 + $0x2a8] sm:$0xff] %vm60, %v3327
  %3451 = vst.msk [vmem:[#allocation3 + $0x2b0] sm:$0xff] %vm60, %v3330
  %3452 = vst.msk [vmem:[#allocation3 + $0x2b8] sm:$0xff] %vm60, %v3333
  %3453 = vst.msk [vmem:[#allocation3 + $0x2c0] sm:$0xff] %vm60, %v3336
  %3454 = vst.msk [vmem:[#allocation3 + $0x2c8] sm:$0xff] %vm60, %v3339
  %3455 = vst.msk [vmem:[#allocation3 + $0x2d0] sm:$0xff] %vm60, %v3342
  %3456 = vst.msk [vmem:[#allocation3 + $0x2d8] sm:$0xff] %vm60, %v3345
  %3457 = vst.msk [vmem:[#allocation3 + $0x2e0] sm:$0xff] %vm60, %v3348
  %3458 = vst.msk [vmem:[#allocation3 + $0x2e8] sm:$0xff] %vm60, %v3351
  %3459 = vst.msk [vmem:[#allocation3 + $0x2f0] sm:$0xff] %vm60, %v3354
  %3460 = vst.msk [vmem:[#allocation3 + $0x2f8] sm:$0xff] %vm60, %v3357
  %3461 = vst.msk [vmem:[#allocation3 + $0x300] sm:$0xff] %vm60, %v3360
  %3462 = vst.msk [vmem:[#allocation3 + $0x308] sm:$0xff] %vm60, %v3363
  %v3463 = vld [vmem:[#allocation3] sm:$0xff]
  %v3464 = vld [vmem:[#allocation3 + $0x8] sm:$0xff]
  %v3465 = vld [vmem:[#allocation3 + $0x10] sm:$0xff]
  %v3466 = vld [vmem:[#allocation3 + $0x18] sm:$0xf]
  %v3467 = vld [vmem:[#allocation3 + $0x1c] sm:$0xff]
  %v3468 = vld [vmem:[#allocation3 + $0x24] sm:$0xff]
  %v3469 = vld [vmem:[#allocation3 + $0x2c] sm:$0xff]
  %v3470 = vld [vmem:[#allocation3 + $0x34] sm:$0xf]
  %v3471 = vmax.f32 %v3463, %v3467
  %v3472 = vmax.f32 %v3464, %v3468
  %v3473 = vmax.f32 %v3465, %v3469
  %v3474 = vmax.f32 %v3466, %v3470
  %3475 = vst.msk [vmem:[#allocation5] sm:$0xff] %vm60, %v3471
  %3476 = vst.msk [vmem:[#allocation5 + $0x8] sm:$0xff] %vm60, %v3472
  %3477 = vst.msk [vmem:[#allocation5 + $0x10] sm:$0xff] %vm60, %v3473
  %3478 = vst.msk [vmem:[#allocation5 + $0x18] sm:$0xf] %vm915, %v3474
  %v3479 = vld [vmem:[#allocation5] ss:$2 sm:$0xff]
  %v3480 = vld [vmem:[%s918] ss:$2 sm:$0x3f]
  %v3481 = vld [vmem:[%s920] ss:$2 sm:$0xff]
  %v3482 = vld [vmem:[%s922] ss:$2 sm:$0x3f]
  %v3483 = vmax.f32 %v3479, %v3481
  %v3484 = vmax.f32 %v3480, %v3482
  %v3485 = vadd.f32 %v3483, %v927
  %v3486 = vadd.f32 %v3484, %v927
  %v3487 = vmax.f32 %v3485, 0.0
  %v3488 = vmax.f32 %v3486, 0.0
  %3489 = vst.msk [vmem:[#allocation2 + $0x11] sm:$0xff] %vm60, %v3487
  %3490 = vst.msk [vmem:[#allocation2 + $0x19] sm:$0x3f] %vm934, %v3488
  %v3491 = vld [vmem:[#allocation3 + $0x38] sm:$0xff]
  %v3492 = vld [vmem:[#allocation3 + $0x40] sm:$0xff]
  %v3493 = vld [vmem:[#allocation3 + $0x48] sm:$0xff]
  %v3494 = vld [vmem:[#allocation3 + $0x50] sm:$0xf]
  %v3495 = vld [vmem:[#allocation3 + $0x54] sm:$0xff]
  %v3496 = vld [vmem:[#allocation3 + $0x5c] sm:$0xff]
  %v3497 = vld [vmem:[#allocation3 + $0x64] sm:$0xff]
  %v3498 = vld [vmem:[#allocation3 + $0x6c] sm:$0xf]
  %v3499 = vmax.f32 %v3491, %v3495
  %v3500 = vmax.f32 %v3492, %v3496
  %v3501 = vmax.f32 %v3493, %v3497
  %v3502 = vmax.f32 %v3494, %v3498
  %3503 = vst.msk [vmem:[#allocation5] sm:$0xff] %vm60, %v3499
  %3504 = vst.msk [vmem:[#allocation5 + $0x8] sm:$0xff] %vm60, %v3500
  %3505 = vst.msk [vmem:[#allocation5 + $0x10] sm:$0xff] %vm60, %v3501
  %3506 = vst.msk [vmem:[#allocation5 + $0x18] sm:$0xf] %vm915, %v3502
  %v3507 = vld [vmem:[#allocation5] ss:$2 sm:$0xff]
  %v3508 = vld [vmem:[%s918] ss:$2 sm:$0x3f]
  %v3509 = vld [vmem:[%s920] ss:$2 sm:$0xff]
  %v3510 = vld [vmem:[%s922] ss:$2 sm:$0x3f]
  %v3511 = vmax.f32 %v3507, %v3509
  %v3512 = vmax.f32 %v3508, %v3510
  %v3513 = vadd.f32 %v3511, %v927
  %v3514 = vadd.f32 %v3512, %v927
  %v3515 = vmax.f32 %v3513, 0.0
  %v3516 = vmax.f32 %v3514, 0.0
  %3517 = vst.msk [vmem:[#allocation2 + $0x21] sm:$0xff] %vm60, %v3515
  %3518 = vst.msk [vmem:[#allocation2 + $0x29] sm:$0x3f] %vm934, %v3516
  %v3519 = vld [vmem:[#allocation3 + $0x70] sm:$0xff]
  %v3520 = vld [vmem:[#allocation3 + $0x78] sm:$0xff]
  %v3521 = vld [vmem:[#allocation3 + $0x80] sm:$0xff]
  %v3522 = vld [vmem:[#allocation3 + $0x88] sm:$0xf]
  %v3523 = vld [vmem:[#allocation3 + $0x8c] sm:$0xff]
  %v3524 = vld [vmem:[#allocation3 + $0x94] sm:$0xff]
  %v3525 = vld [vmem:[#allocation3 + $0x9c] sm:$0xff]
  %v3526 = vld [vmem:[#allocation3 + $0xa4] sm:$0xf]
  %v3527 = vmax.f32 %v3519, %v3523
  %v3528 = vmax.f32 %v3520, %v3524
  %v3529 = vmax.f32 %v3521, %v3525
  %v3530 = vmax.f32 %v3522, %v3526
  %3531 = vst.msk [vmem:[#allocation5] sm:$0xff] %vm60, %v3527
  %3532 = vst.msk [vmem:[#allocation5 + $0x8] sm:$0xff] %vm60, %v3528
  %3533 = vst.msk [vmem:[#allocation5 + $0x10] sm:$0xff] %vm60, %v3529
  %3534 = vst.msk [vmem:[#allocation5 + $0x18] sm:$0xf] %vm915, %v3530
  %v3535 = vld [vmem:[#allocation5] ss:$2 sm:$0xff]
  %v3536 = vld [vmem:[%s918] ss:$2 sm:$0x3f]
  %v3537 = vld [vmem:[%s920] ss:$2 sm:$0xff]
  %v3538 = vld [vmem:[%s922] ss:$2 sm:$0x3f]
  %v3539 = vmax.f32 %v3535, %v3537
  %v3540 = vmax.f32 %v3536, %v3538
  %v3541 = vadd.f32 %v3539, %v927
  %v3542 = vadd.f32 %v3540, %v927
  %v3543 = vmax.f32 %v3541, 0.0
  %v3544 = vmax.f32 %v3542, 0.0
  %3545 = vst.msk [vmem:[#allocation2 + $0x31] sm:$0xff] %vm60, %v3543
  %3546 = vst.msk [vmem:[#allocation2 + $0x39] sm:$0x3f] %vm934, %v3544
  %v3547 = vld [vmem:[#allocation3 + $0xa8] sm:$0xff]
  %v3548 = vld [vmem:[#allocation3 + $0xb0] sm:$0xff]
  %v3549 = vld [vmem:[#allocation3 + $0xb8] sm:$0xff]
  %v3550 = vld [vmem:[#allocation3 + $0xc0] sm:$0xf]
  %v3551 = vld [vmem:[#allocation3 + $0xc4] sm:$0xff]
  %v3552 = vld [vmem:[#allocation3 + $0xcc] sm:$0xff]
  %v3553 = vld [vmem:[#allocation3 + $0xd4] sm:$0xff]
  %v3554 = vld [vmem:[#allocation3 + $0xdc] sm:$0xf]
  %v3555 = vmax.f32 %v3547, %v3551
  %v3556 = vmax.f32 %v3548, %v3552
  %v3557 = vmax.f32 %v3549, %v3553
  %v3558 = vmax.f32 %v3550, %v3554
  %3559 = vst.msk [vmem:[#allocation5] sm:$0xff] %vm60, %v3555
  %3560 = vst.msk [vmem:[#allocation5 + $0x8] sm:$0xff] %vm60, %v3556
  %3561 = vst.msk [vmem:[#allocation5 + $0x10] sm:$0xff] %vm60, %v3557
  %3562 = vst.msk [vmem:[#allocation5 + $0x18] sm:$0xf] %vm915, %v3558
  %v3563 = vld [vmem:[#allocation5] ss:$2 sm:$0xff]
  %v3564 = vld [vmem:[%s918] ss:$2 sm:$0x3f]
  %v3565 = vld [vmem:[%s920] ss:$2 sm:$0xff]
  %v3566 = vld [vmem:[%s922] ss:$2 sm:$0x3f]
  %v3567 = vmax.f32 %v3563, %v3565
  %v3568 = vmax.f32 %v3564, %v3566
  %v3569 = vadd.f32 %v3567, %v927
  %v3570 = vadd.f32 %v3568, %v927
  %v3571 = vmax.f32 %v3569, 0.0
  %v3572 = vmax.f32 %v3570, 0.0
  %3573 = vst.msk [vmem:[#allocation2 + $0x41] sm:$0xff] %vm60, %v3571
  %3574 = vst.msk [vmem:[#allocation2 + $0x49] sm:$0x3f] %vm934, %v3572
  %v3575 = vld [vmem:[#allocation3 + $0xe0] sm:$0xff]
  %v3576 = vld [vmem:[#allocation3 + $0xe8] sm:$0xff]
  %v3577 = vld [vmem:[#allocation3 + $0xf0] sm:$0xff]
  %v3578 = vld [vmem:[#allocation3 + $0xf8] sm:$0xf]
  %v3579 = vld [vmem:[#allocation3 + $0xfc] sm:$0xff]
  %v3580 = vld [vmem:[#allocation3 + $0x104] sm:$0xff]
  %v3581 = vld [vmem:[#allocation3 + $0x10c] sm:$0xff]
  %v3582 = vld [vmem:[#allocation3 + $0x114] sm:$0xf]
  %v3583 = vmax.f32 %v3575, %v3579
  %v3584 = vmax.f32 %v3576, %v3580
  %v3585 = vmax.f32 %v3577, %v3581
  %v3586 = vmax.f32 %v3578, %v3582
  %3587 = vst.msk [vmem:[#allocation5] sm:$0xff] %vm60, %v3583
  %3588 = vst.msk [vmem:[#allocation5 + $0x8] sm:$0xff] %vm60, %v3584
  %3589 = vst.msk [vmem:[#allocation5 + $0x10] sm:$0xff] %vm60, %v3585
  %3590 = vst.msk [vmem:[#allocation5 + $0x18] sm:$0xf] %vm915, %v3586
  %v3591 = vld [vmem:[#allocation5] ss:$2 sm:$0xff]
  %v3592 = vld [vmem:[%s918] ss:$2 sm:$0x3f]
  %v3593 = vld [vmem:[%s920] ss:$2 sm:$0xff]
  %v3594 = vld [vmem:[%s922] ss:$2 sm:$0x3f]
  %v3595 = vmax.f32 %v3591, %v3593
  %v3596 = vmax.f32 %v3592, %v3594
  %v3597 = vadd.f32 %v3595, %v927
  %v3598 = vadd.f32 %v3596, %v927
  %v3599 = vmax.f32 %v3597, 0.0
  %v3600 = vmax.f32 %v3598, 0.0
  %3601 = vst.msk [vmem:[#allocation2 + $0x51] sm:$0xff] %vm60, %v3599
  %3602 = vst.msk [vmem:[#allocation2 + $0x59] sm:$0x3f] %vm934, %v3600
  %v3603 = vld [vmem:[#allocation3 + $0x118] sm:$0xff]
  %v3604 = vld [vmem:[#allocation3 + $0x120] sm:$0xff]
  %v3605 = vld [vmem:[#allocation3 + $0x128] sm:$0xff]
  %v3606 = vld [vmem:[#allocation3 + $0x130] sm:$0xf]
  %v3607 = vld [vmem:[#allocation3 + $0x134] sm:$0xff]
  %v3608 = vld [vmem:[#allocation3 + $0x13c] sm:$0xff]
  %v3609 = vld [vmem:[#allocation3 + $0x144] sm:$0xff]
  %v3610 = vld [vmem:[#allocation3 + $0x14c] sm:$0xf]
  %v3611 = vmax.f32 %v3603, %v3607
  %v3612 = vmax.f32 %v3604, %v3608
  %v3613 = vmax.f32 %v3605, %v3609
  %v3614 = vmax.f32 %v3606, %v3610
  %3615 = vst.msk [vmem:[#allocation5] sm:$0xff] %vm60, %v3611
  %3616 = vst.msk [vmem:[#allocation5 + $0x8] sm:$0xff] %vm60, %v3612
  %3617 = vst.msk [vmem:[#allocation5 + $0x10] sm:$0xff] %vm60, %v3613
  %3618 = vst.msk [vmem:[#allocation5 + $0x18] sm:$0xf] %vm915, %v3614
  %v3619 = vld [vmem:[#allocation5] ss:$2 sm:$0xff]
  %v3620 = vld [vmem:[%s918] ss:$2 sm:$0x3f]
  %v3621 = vld [vmem:[%s920] ss:$2 sm:$0xff]
  %v3622 = vld [vmem:[%s922] ss:$2 sm:$0x3f]
  %v3623 = vmax.f32 %v3619, %v3621
  %v3624 = vmax.f32 %v3620, %v3622
  %v3625 = vadd.f32 %v3623, %v927
  %v3626 = vadd.f32 %v3624, %v927
  %v3627 = vmax.f32 %v3625, 0.0
  %v3628 = vmax.f32 %v3626, 0.0
  %3629 = vst.msk [vmem:[#allocation2 + $0x61] sm:$0xff] %vm60, %v3627
  %3630 = vst.msk [vmem:[#allocation2 + $0x69] sm:$0x3f] %vm934, %v3628
  %v3631 = vld [vmem:[#allocation3 + $0x150] sm:$0xff]
  %v3632 = vld [vmem:[#allocation3 + $0x158] sm:$0xff]
  %v3633 = vld [vmem:[#allocation3 + $0x160] sm:$0xff]
  %v3634 = vld [vmem:[#allocation3 + $0x168] sm:$0xf]
  %v3635 = vld [vmem:[#allocation3 + $0x16c] sm:$0xff]
  %v3636 = vld [vmem:[#allocation3 + $0x174] sm:$0xff]
  %v3637 = vld [vmem:[#allocation3 + $0x17c] sm:$0xff]
  %v3638 = vld [vmem:[#allocation3 + $0x184] sm:$0xf]
  %v3639 = vmax.f32 %v3631, %v3635
  %v3640 = vmax.f32 %v3632, %v3636
  %v3641 = vmax.f32 %v3633, %v3637
  %v3642 = vmax.f32 %v3634, %v3638
  %3643 = vst.msk [vmem:[#allocation5] sm:$0xff] %vm60, %v3639
  %3644 = vst.msk [vmem:[#allocation5 + $0x8] sm:$0xff] %vm60, %v3640
  %3645 = vst.msk [vmem:[#allocation5 + $0x10] sm:$0xff] %vm60, %v3641
  %3646 = vst.msk [vmem:[#allocation5 + $0x18] sm:$0xf] %vm915, %v3642
  %v3647 = vld [vmem:[#allocation5] ss:$2 sm:$0xff]
  %v3648 = vld [vmem:[%s918] ss:$2 sm:$0x3f]
  %v3649 = vld [vmem:[%s920] ss:$2 sm:$0xff]
  %v3650 = vld [vmem:[%s922] ss:$2 sm:$0x3f]
  %v3651 = vmax.f32 %v3647, %v3649
  %v3652 = vmax.f32 %v3648, %v3650
  %v3653 = vadd.f32 %v3651, %v927
  %v3654 = vadd.f32 %v3652, %v927
  %v3655 = vmax.f32 %v3653, 0.0
  %v3656 = vmax.f32 %v3654, 0.0
  %3657 = vst.msk [vmem:[#allocation2 + $0x71] sm:$0xff] %vm60, %v3655
  %3658 = vst.msk [vmem:[#allocation2 + $0x79] sm:$0x3f] %vm934, %v3656
  %v3659 = vld [vmem:[#allocation3 + $0x188] sm:$0xff]
  %v3660 = vld [vmem:[#allocation3 + $0x190] sm:$0xff]
  %v3661 = vld [vmem:[#allocation3 + $0x198] sm:$0xff]
  %v3662 = vld [vmem:[#allocation3 + $0x1a0] sm:$0xf]
  %v3663 = vld [vmem:[#allocation3 + $0x1a4] sm:$0xff]
  %v3664 = vld [vmem:[#allocation3 + $0x1ac] sm:$0xff]
  %v3665 = vld [vmem:[#allocation3 + $0x1b4] sm:$0xff]
  %v3666 = vld [vmem:[#allocation3 + $0x1bc] sm:$0xf]
  %v3667 = vmax.f32 %v3659, %v3663
  %v3668 = vmax.f32 %v3660, %v3664
  %v3669 = vmax.f32 %v3661, %v3665
  %v3670 = vmax.f32 %v3662, %v3666
  %3671 = vst.msk [vmem:[#allocation5] sm:$0xff] %vm60, %v3667
  %3672 = vst.msk [vmem:[#allocation5 + $0x8] sm:$0xff] %vm60, %v3668
  %3673 = vst.msk [vmem:[#allocation5 + $0x10] sm:$0xff] %vm60, %v3669
  %3674 = vst.msk [vmem:[#allocation5 + $0x18] sm:$0xf] %vm915, %v3670
  %v3675 = vld [vmem:[#allocation5] ss:$2 sm:$0xff]
  %v3676 = vld [vmem:[%s918] ss:$2 sm:$0x3f]
  %v3677 = vld [vmem:[%s920] ss:$2 sm:$0xff]
  %v3678 = vld [vmem:[%s922] ss:$2 sm:$0x3f]
  %v3679 = vmax.f32 %v3675, %v3677
  %v3680 = vmax.f32 %v3676, %v3678
  %v3681 = vadd.f32 %v3679, %v927
  %v3682 = vadd.f32 %v3680, %v927
  %v3683 = vmax.f32 %v3681, 0.0
  %v3684 = vmax.f32 %v3682, 0.0
  %3685 = vst.msk [vmem:[#allocation2 + $0x81] sm:$0xff] %vm60, %v3683
  %3686 = vst.msk [vmem:[#allocation2 + $0x89] sm:$0x3f] %vm934, %v3684
  %v3687 = vld [vmem:[#allocation3 + $0x1c0] sm:$0xff]
  %v3688 = vld [vmem:[#allocation3 + $0x1c8] sm:$0xff]
  %v3689 = vld [vmem:[#allocation3 + $0x1d0] sm:$0xff]
  %v3690 = vld [vmem:[#allocation3 + $0x1d8] sm:$0xf]
  %v3691 = vld [vmem:[#allocation3 + $0x1dc] sm:$0xff]
  %v3692 = vld [vmem:[#allocation3 + $0x1e4] sm:$0xff]
  %v3693 = vld [vmem:[#allocation3 + $0x1ec] sm:$0xff]
  %v3694 = vld [vmem:[#allocation3 + $0x1f4] sm:$0xf]
  %v3695 = vmax.f32 %v3687, %v3691
  %v3696 = vmax.f32 %v3688, %v3692
  %v3697 = vmax.f32 %v3689, %v3693
  %v3698 = vmax.f32 %v3690, %v3694
  %3699 = vst.msk [vmem:[#allocation5] sm:$0xff] %vm60, %v3695
  %3700 = vst.msk [vmem:[#allocation5 + $0x8] sm:$0xff] %vm60, %v3696
  %3701 = vst.msk [vmem:[#allocation5 + $0x10] sm:$0xff] %vm60, %v3697
  %3702 = vst.msk [vmem:[#allocation5 + $0x18] sm:$0xf] %vm915, %v3698
  %v3703 = vld [vmem:[#allocation5] ss:$2 sm:$0xff]
  %v3704 = vld [vmem:[%s918] ss:$2 sm:$0x3f]
  %v3705 = vld [vmem:[%s920] ss:$2 sm:$0xff]
  %v3706 = vld [vmem:[%s922] ss:$2 sm:$0x3f]
  %v3707 = vmax.f32 %v3703, %v3705
  %v3708 = vmax.f32 %v3704, %v3706
  %v3709 = vadd.f32 %v3707, %v927
  %v3710 = vadd.f32 %v3708, %v927
  %v3711 = vmax.f32 %v3709, 0.0
  %v3712 = vmax.f32 %v3710, 0.0
  %3713 = vst.msk [vmem:[#allocation2 + $0x91] sm:$0xff] %vm60, %v3711
  %3714 = vst.msk [vmem:[#allocation2 + $0x99] sm:$0x3f] %vm934, %v3712
  %v3715 = vld [vmem:[#allocation3 + $0x1f8] sm:$0xff]
  %v3716 = vld [vmem:[#allocation3 + $0x200] sm:$0xff]
  %v3717 = vld [vmem:[#allocation3 + $0x208] sm:$0xff]
  %v3718 = vld [vmem:[#allocation3 + $0x210] sm:$0xf]
  %v3719 = vld [vmem:[#allocation3 + $0x214] sm:$0xff]
  %v3720 = vld [vmem:[#allocation3 + $0x21c] sm:$0xff]
  %v3721 = vld [vmem:[#allocation3 + $0x224] sm:$0xff]
  %v3722 = vld [vmem:[#allocation3 + $0x22c] sm:$0xf]
  %v3723 = vmax.f32 %v3715, %v3719
  %v3724 = vmax.f32 %v3716, %v3720
  %v3725 = vmax.f32 %v3717, %v3721
  %v3726 = vmax.f32 %v3718, %v3722
  %3727 = vst.msk [vmem:[#allocation5] sm:$0xff] %vm60, %v3723
  %3728 = vst.msk [vmem:[#allocation5 + $0x8] sm:$0xff] %vm60, %v3724
  %3729 = vst.msk [vmem:[#allocation5 + $0x10] sm:$0xff] %vm60, %v3725
  %3730 = vst.msk [vmem:[#allocation5 + $0x18] sm:$0xf] %vm915, %v3726
  %v3731 = vld [vmem:[#allocation5] ss:$2 sm:$0xff]
  %v3732 = vld [vmem:[%s918] ss:$2 sm:$0x3f]
  %v3733 = vld [vmem:[%s920] ss:$2 sm:$0xff]
  %v3734 = vld [vmem:[%s922] ss:$2 sm:$0x3f]
  %v3735 = vmax.f32 %v3731, %v3733
  %v3736 = vmax.f32 %v3732, %v3734
  %v3737 = vadd.f32 %v3735, %v927
  %v3738 = vadd.f32 %v3736, %v927
  %v3739 = vmax.f32 %v3737, 0.0
  %v3740 = vmax.f32 %v3738, 0.0
  %3741 = vst.msk [vmem:[#allocation2 + $0xa1] sm:$0xff] %vm60, %v3739
  %3742 = vst.msk [vmem:[#allocation2 + $0xa9] sm:$0x3f] %vm934, %v3740
  %v3743 = vld [vmem:[#allocation3 + $0x230] sm:$0xff]
  %v3744 = vld [vmem:[#allocation3 + $0x238] sm:$0xff]
  %v3745 = vld [vmem:[#allocation3 + $0x240] sm:$0xff]
  %v3746 = vld [vmem:[#allocation3 + $0x248] sm:$0xf]
  %v3747 = vld [vmem:[#allocation3 + $0x24c] sm:$0xff]
  %v3748 = vld [vmem:[#allocation3 + $0x254] sm:$0xff]
  %v3749 = vld [vmem:[#allocation3 + $0x25c] sm:$0xff]
  %v3750 = vld [vmem:[#allocation3 + $0x264] sm:$0xf]
  %v3751 = vmax.f32 %v3743, %v3747
  %v3752 = vmax.f32 %v3744, %v3748
  %v3753 = vmax.f32 %v3745, %v3749
  %v3754 = vmax.f32 %v3746, %v3750
  %3755 = vst.msk [vmem:[#allocation5] sm:$0xff] %vm60, %v3751
  %3756 = vst.msk [vmem:[#allocation5 + $0x8] sm:$0xff] %vm60, %v3752
  %3757 = vst.msk [vmem:[#allocation5 + $0x10] sm:$0xff] %vm60, %v3753
  %3758 = vst.msk [vmem:[#allocation5 + $0x18] sm:$0xf] %vm915, %v3754
  %v3759 = vld [vmem:[#allocation5] ss:$2 sm:$0xff]
  %v3760 = vld [vmem:[%s918] ss:$2 sm:$0x3f]
  %v3761 = vld [vmem:[%s920] ss:$2 sm:$0xff]
  %v3762 = vld [vmem:[%s922] ss:$2 sm:$0x3f]
  %v3763 = vmax.f32 %v3759, %v3761
  %v3764 = vmax.f32 %v3760, %v3762
  %v3765 = vadd.f32 %v3763, %v927
  %v3766 = vadd.f32 %v3764, %v927
  %v3767 = vmax.f32 %v3765, 0.0
  %v3768 = vmax.f32 %v3766, 0.0
  %3769 = vst.msk [vmem:[#allocation2 + $0xb1] sm:$0xff] %vm60, %v3767
  %3770 = vst.msk [vmem:[#allocation2 + $0xb9] sm:$0x3f] %vm934, %v3768
  %v3771 = vld [vmem:[#allocation3 + $0x268] sm:$0xff]
  %v3772 = vld [vmem:[#allocation3 + $0x270] sm:$0xff]
  %v3773 = vld [vmem:[#allocation3 + $0x278] sm:$0xff]
  %v3774 = vld [vmem:[#allocation3 + $0x280] sm:$0xf]
  %v3775 = vld [vmem:[#allocation3 + $0x284] sm:$0xff]
  %v3776 = vld [vmem:[#allocation3 + $0x28c] sm:$0xff]
  %v3777 = vld [vmem:[#allocation3 + $0x294] sm:$0xff]
  %v3778 = vld [vmem:[#allocation3 + $0x29c] sm:$0xf]
  %v3779 = vmax.f32 %v3771, %v3775
  %v3780 = vmax.f32 %v3772, %v3776
  %v3781 = vmax.f32 %v3773, %v3777
  %v3782 = vmax.f32 %v3774, %v3778
  %3783 = vst.msk [vmem:[#allocation5] sm:$0xff] %vm60, %v3779
  %3784 = vst.msk [vmem:[#allocation5 + $0x8] sm:$0xff] %vm60, %v3780
  %3785 = vst.msk [vmem:[#allocation5 + $0x10] sm:$0xff] %vm60, %v3781
  %3786 = vst.msk [vmem:[#allocation5 + $0x18] sm:$0xf] %vm915, %v3782
  %v3787 = vld [vmem:[#allocation5] ss:$2 sm:$0xff]
  %v3788 = vld [vmem:[%s918] ss:$2 sm:$0x3f]
  %v3789 = vld [vmem:[%s920] ss:$2 sm:$0xff]
  %v3790 = vld [vmem:[%s922] ss:$2 sm:$0x3f]
  %v3791 = vmax.f32 %v3787, %v3789
  %v3792 = vmax.f32 %v3788, %v3790
  %v3793 = vadd.f32 %v3791, %v927
  %v3794 = vadd.f32 %v3792, %v927
  %v3795 = vmax.f32 %v3793, 0.0
  %v3796 = vmax.f32 %v3794, 0.0
  %3797 = vst.msk [vmem:[#allocation2 + $0xc1] sm:$0xff] %vm60, %v3795
  %3798 = vst.msk [vmem:[#allocation2 + $0xc9] sm:$0x3f] %vm934, %v3796
  %v3799 = vld [vmem:[#allocation3 + $0x2a0] sm:$0xff]
  %v3800 = vld [vmem:[#allocation3 + $0x2a8] sm:$0xff]
  %v3801 = vld [vmem:[#allocation3 + $0x2b0] sm:$0xff]
  %v3802 = vld [vmem:[#allocation3 + $0x2b8] sm:$0xf]
  %v3803 = vld [vmem:[#allocation3 + $0x2bc] sm:$0xff]
  %v3804 = vld [vmem:[#allocation3 + $0x2c4] sm:$0xff]
  %v3805 = vld [vmem:[#allocation3 + $0x2cc] sm:$0xff]
  %v3806 = vld [vmem:[#allocation3 + $0x2d4] sm:$0xf]
  %v3807 = vmax.f32 %v3799, %v3803
  %v3808 = vmax.f32 %v3800, %v3804
  %v3809 = vmax.f32 %v3801, %v3805
  %v3810 = vmax.f32 %v3802, %v3806
  %3811 = vst.msk [vmem:[#allocation5] sm:$0xff] %vm60, %v3807
  %3812 = vst.msk [vmem:[#allocation5 + $0x8] sm:$0xff] %vm60, %v3808
  %3813 = vst.msk [vmem:[#allocation5 + $0x10] sm:$0xff] %vm60, %v3809
  %3814 = vst.msk [vmem:[#allocation5 + $0x18] sm:$0xf] %vm915, %v3810
  %v3815 = vld [vmem:[#allocation5] ss:$2 sm:$0xff]
  %v3816 = vld [vmem:[%s918] ss:$2 sm:$0x3f]
  %v3817 = vld [vmem:[%s920] ss:$2 sm:$0xff]
  %v3818 = vld [vmem:[%s922] ss:$2 sm:$0x3f]
  %v3819 = vmax.f32 %v3815, %v3817
  %v3820 = vmax.f32 %v3816, %v3818
  %v3821 = vadd.f32 %v3819, %v927
  %v3822 = vadd.f32 %v3820, %v927
  %v3823 = vmax.f32 %v3821, 0.0
  %v3824 = vmax.f32 %v3822, 0.0
  %3825 = vst.msk [vmem:[#allocation2 + $0xd1] sm:$0xff] %vm60, %v3823
  %3826 = vst.msk [vmem:[#allocation2 + $0xd9] sm:$0x3f] %vm934, %v3824
  %v3827 = vld [vmem:[#allocation3 + $0x2d8] sm:$0xff]
  %v3828 = vld [vmem:[#allocation3 + $0x2e0] sm:$0xff]
  %v3829 = vld [vmem:[#allocation3 + $0x2e8] sm:$0xff]
  %v3830 = vld [vmem:[#allocation3 + $0x2f0] sm:$0xf]
  %v3831 = vld [vmem:[#allocation3 + $0x2f4] sm:$0xff]
  %v3832 = vld [vmem:[#allocation3 + $0x2fc] sm:$0xff]
  %v3833 = vld [vmem:[#allocation3 + $0x304] sm:$0xff]
  %v3834 = vld [vmem:[#allocation3 + $0x30c] sm:$0xf]
  %v3835 = vmax.f32 %v3827, %v3831
  %v3836 = vmax.f32 %v3828, %v3832
  %v3837 = vmax.f32 %v3829, %v3833
  %v3838 = vmax.f32 %v3830, %v3834
  %3839 = vst.msk [vmem:[#allocation5] sm:$0xff] %vm60, %v3835
  %3840 = vst.msk [vmem:[#allocation5 + $0x8] sm:$0xff] %vm60, %v3836
  %3841 = vst.msk [vmem:[#allocation5 + $0x10] sm:$0xff] %vm60, %v3837
  %3842 = vst.msk [vmem:[#allocation5 + $0x18] sm:$0xf] %vm915, %v3838
  %v3843 = vld [vmem:[#allocation5] ss:$2 sm:$0xff]
  %v3844 = vld [vmem:[%s918] ss:$2 sm:$0x3f]
  %v3845 = vld [vmem:[%s920] ss:$2 sm:$0xff]
  %v3846 = vld [vmem:[%s922] ss:$2 sm:$0x3f]
  %v3847 = vmax.f32 %v3843, %v3845
  %v3848 = vmax.f32 %v3844, %v3846
  %v3849 = vadd.f32 %v3847, %v927
  %v3850 = vadd.f32 %v3848, %v927
  %v3851 = vmax.f32 %v3849, 0.0
  %v3852 = vmax.f32 %v3850, 0.0
  %3853 = vst.msk [vmem:[#allocation2 + $0xe1] sm:$0xff] %vm60, %v3851
  %3854 = vst.msk [vmem:[#allocation2 + $0xe9] sm:$0x3f] %vm934, %v3852
  %v3855 = vld [vmem:[#allocation2] sm:$0xff]
  %v3856 = vld [vmem:[#allocation2 + $0x8] sm:$0xff]
  %v3857 = vld [vmem:[#allocation2 + $0x10] sm:$0xff]
  %v3858 = vld [vmem:[#allocation2 + $0x18] sm:$0xff]
  %v3859 = vld [vmem:[#allocation2 + $0x20] sm:$0xff]
  %v3860 = vld [vmem:[#allocation2 + $0x28] sm:$0xff]
  %v3861 = vld [vmem:[#allocation2 + $0x30] sm:$0xff]
  %v3862 = vld [vmem:[#allocation2 + $0x38] sm:$0xff]
  %v3863 = vld [vmem:[#allocation2 + $0x40] sm:$0xff]
  %v3864 = vld [vmem:[#allocation2 + $0x48] sm:$0xff]
  %v3865 = vld [vmem:[#allocation2 + $0x50] sm:$0xff]
  %v3866 = vld [vmem:[#allocation2 + $0x58] sm:$0xff]
  %v3867 = vld [vmem:[#allocation2 + $0x60] sm:$0xff]
  %v3868 = vld [vmem:[#allocation2 + $0x68] sm:$0xff]
  %v3869 = vld [vmem:[#allocation2 + $0x70] sm:$0xff]
  %v3870 = vld [vmem:[#allocation2 + $0x78] sm:$0xff]
  %v3871 = vld [vmem:[#allocation2 + $0x80] sm:$0xff]
  %v3872 = vld [vmem:[#allocation2 + $0x88] sm:$0xff]
  %v3873 = vld [vmem:[#allocation2 + $0x90] sm:$0xff]
  %v3874 = vld [vmem:[#allocation2 + $0x98] sm:$0xff]
  %v3875 = vld [vmem:[#allocation2 + $0xa0] sm:$0xff]
  %v3876 = vld [vmem:[#allocation2 + $0xa8] sm:$0xff]
  %v3877 = vld [vmem:[#allocation2 + $0xb0] sm:$0xff]
  %v3878 = vld [vmem:[#allocation2 + $0xb8] sm:$0xff]
  %v3879 = vld [vmem:[#allocation2 + $0xc0] sm:$0xff]
  %v3880 = vld [vmem:[#allocation2 + $0xc8] sm:$0xff]
  %v3881 = vld [vmem:[#allocation2 + $0xd0] sm:$0xff]
  %v3882 = vld [vmem:[#allocation2 + $0xd8] sm:$0xff]
  %v3883 = vld [vmem:[#allocation2 + $0x1] sm:$0xff]
  %v3884 = vld [vmem:[#allocation2 + $0x9] sm:$0xff]
  %v3885 = vld [vmem:[#allocation2 + $0x11] sm:$0xff]
  %v3886 = vld [vmem:[#allocation2 + $0x19] sm:$0xff]
  %v3887 = vld [vmem:[#allocation2 + $0x21] sm:$0xff]
  %v3888 = vld [vmem:[#allocation2 + $0x29] sm:$0xff]
  %v3889 = vld [vmem:[#allocation2 + $0x31] sm:$0xff]
  %v3890 = vld [vmem:[#allocation2 + $0x39] sm:$0xff]
  %v3891 = vld [vmem:[#allocation2 + $0x41] sm:$0xff]
  %v3892 = vld [vmem:[#allocation2 + $0x49] sm:$0xff]
  %v3893 = vld [vmem:[#allocation2 + $0x51] sm:$0xff]
  %v3894 = vld [vmem:[#allocation2 + $0x59] sm:$0xff]
  %v3895 = vld [vmem:[#allocation2 + $0x61] sm:$0xff]
  %v3896 = vld [vmem:[#allocation2 + $0x69] sm:$0xff]
  %v3897 = vld [vmem:[#allocation2 + $0x71] sm:$0xff]
  %v3898 = vld [vmem:[#allocation2 + $0x79] sm:$0xff]
  %v3899 = vld [vmem:[#allocation2 + $0x81] sm:$0xff]
  %v3900 = vld [vmem:[#allocation2 + $0x89] sm:$0xff]
  %v3901 = vld [vmem:[#allocation2 + $0x91] sm:$0xff]
  %v3902 = vld [vmem:[#allocation2 + $0x99] sm:$0xff]
  %v3903 = vld [vmem:[#allocation2 + $0xa1] sm:$0xff]
  %v3904 = vld [vmem:[#allocation2 + $0xa9] sm:$0xff]
  %v3905 = vld [vmem:[#allocation2 + $0xb1] sm:$0xff]
  %v3906 = vld [vmem:[#allocation2 + $0xb9] sm:$0xff]
  %v3907 = vld [vmem:[#allocation2 + $0xc1] sm:$0xff]
  %v3908 = vld [vmem:[#allocation2 + $0xc9] sm:$0xff]
  %v3909 = vld [vmem:[#allocation2 + $0xd1] sm:$0xff]
  %v3910 = vld [vmem:[#allocation2 + $0xd9] sm:$0xff]
  %v3911 = vld [vmem:[#allocation2 + $0x2] sm:$0xff]
  %v3912 = vld [vmem:[#allocation2 + $0xa] sm:$0xff]
  %v3913 = vld [vmem:[#allocation2 + $0x12] sm:$0xff]
  %v3914 = vld [vmem:[#allocation2 + $0x1a] sm:$0xff]
  %v3915 = vld [vmem:[#allocation2 + $0x22] sm:$0xff]
  %v3916 = vld [vmem:[#allocation2 + $0x2a] sm:$0xff]
  %v3917 = vld [vmem:[#allocation2 + $0x32] sm:$0xff]
  %v3918 = vld [vmem:[#allocation2 + $0x3a] sm:$0xff]
  %v3919 = vld [vmem:[#allocation2 + $0x42] sm:$0xff]
  %v3920 = vld [vmem:[#allocation2 + $0x4a] sm:$0xff]
  %v3921 = vld [vmem:[#allocation2 + $0x52] sm:$0xff]
  %v3922 = vld [vmem:[#allocation2 + $0x5a] sm:$0xff]
  %v3923 = vld [vmem:[#allocation2 + $0x62] sm:$0xff]
  %v3924 = vld [vmem:[#allocation2 + $0x6a] sm:$0xff]
  %v3925 = vld [vmem:[#allocation2 + $0x72] sm:$0xff]
  %v3926 = vld [vmem:[#allocation2 + $0x7a] sm:$0xff]
  %v3927 = vld [vmem:[#allocation2 + $0x82] sm:$0xff]
  %v3928 = vld [vmem:[#allocation2 + $0x8a] sm:$0xff]
  %v3929 = vld [vmem:[#allocation2 + $0x92] sm:$0xff]
  %v3930 = vld [vmem:[#allocation2 + $0x9a] sm:$0xff]
  %v3931 = vld [vmem:[#allocation2 + $0xa2] sm:$0xff]
  %v3932 = vld [vmem:[#allocation2 + $0xaa] sm:$0xff]
  %v3933 = vld [vmem:[#allocation2 + $0xb2] sm:$0xff]
  %v3934 = vld [vmem:[#allocation2 + $0xba] sm:$0xff]
  %v3935 = vld [vmem:[#allocation2 + $0xc2] sm:$0xff]
  %v3936 = vld [vmem:[#allocation2 + $0xca] sm:$0xff]
  %v3937 = vld [vmem:[#allocation2 + $0xd2] sm:$0xff]
  %v3938 = vld [vmem:[#allocation2 + $0xda] sm:$0xff]
  %v3939 = vld [vmem:[#allocation2 + $0xe0] sm:$0xff]
  %v3940 = vld [vmem:[#allocation2 + $0xe8] sm:$0xff]
  %v3941 = vld [vmem:[#allocation2 + $0xe1] sm:$0xff]
  %v3942 = vld [vmem:[#allocation2 + $0xe9] sm:$0xff]
  %v3943 = vld [vmem:[#allocation2 + $0xe2] sm:$0xff]
  %v3944 = vld [vmem:[#allocation2 + $0xea] sm:$0xff]
  %v3945 = vld [vmem:[#allocation2 + $0xf0] sm:$0xff]
  %v3946 = vld [vmem:[#allocation2 + $0xf8] sm:$0xff]
  %v3947 = vld [vmem:[#allocation2 + $0xf1] sm:$0xff]
  %v3948 = vld [vmem:[#allocation2 + $0xf9] sm:$0xff]
  %v3949 = vld [vmem:[#allocation2 + $0xf2] sm:$0xff]
  %v3950 = vld [vmem:[#allocation2 + $0xfa] sm:$0xff]
  %3979 = vrot.lane.b32.xlu0 %v3883, 32
  %v3980 = vpop.permute.xlu0 %3979
  %3981 = vrot.lane.b32.xlu0 %v3884, 32
  %v3982 = vpop.permute.xlu0 %3981
  %3983 = vrot.lane.b32.xlu0 %v3885, 32
  %v3984 = vpop.permute.xlu0 %3983
  %3985 = vrot.lane.b32.xlu0 %v3886, 32
  %v3986 = vpop.permute.xlu0 %3985
  %3987 = vrot.lane.b32.xlu0 %v3887, 32
  %v3988 = vpop.permute.xlu0 %3987
  %3989 = vrot.lane.b32.xlu0 %v3888, 32
  %v3990 = vpop.permute.xlu0 %3989
  %3991 = vrot.lane.b32.xlu0 %v3889, 32
  %v3992 = vpop.permute.xlu0 %3991
  %3993 = vrot.lane.b32.xlu0 %v3890, 32
  %v3994 = vpop.permute.xlu0 %3993
  %3995 = vrot.lane.b32.xlu0 %v3891, 32
  %v3996 = vpop.permute.xlu0 %3995
  %3997 = vrot.lane.b32.xlu0 %v3892, 32
  %v3998 = vpop.permute.xlu0 %3997
  %3999 = vrot.lane.b32.xlu0 %v3893, 32
  %v4000 = vpop.permute.xlu0 %3999
  %4001 = vrot.lane.b32.xlu0 %v3894, 32
  %v4002 = vpop.permute.xlu0 %4001
  %4003 = vrot.lane.b32.xlu0 %v3895, 32
  %v4004 = vpop.permute.xlu0 %4003
  %4005 = vrot.lane.b32.xlu0 %v3896, 32
  %v4006 = vpop.permute.xlu0 %4005
  %4007 = vrot.lane.b32.xlu0 %v3897, 32
  %v4008 = vpop.permute.xlu0 %4007
  %4009 = vrot.lane.b32.xlu0 %v3898, 32
  %v4010 = vpop.permute.xlu0 %4009
  %4011 = vrot.lane.b32.xlu0 %v3899, 32
  %v4012 = vpop.permute.xlu0 %4011
  %4013 = vrot.lane.b32.xlu0 %v3900, 32
  %v4014 = vpop.permute.xlu0 %4013
  %4015 = vrot.lane.b32.xlu0 %v3901, 32
  %v4016 = vpop.permute.xlu0 %4015
  %4017 = vrot.lane.b32.xlu0 %v3902, 32
  %v4018 = vpop.permute.xlu0 %4017
  %4019 = vrot.lane.b32.xlu0 %v3903, 32
  %v4020 = vpop.permute.xlu0 %4019
  %4021 = vrot.lane.b32.xlu0 %v3904, 32
  %v4022 = vpop.permute.xlu0 %4021
  %4023 = vrot.lane.b32.xlu0 %v3905, 32
  %v4024 = vpop.permute.xlu0 %4023
  %4025 = vrot.lane.b32.xlu0 %v3906, 32
  %v4026 = vpop.permute.xlu0 %4025
  %4027 = vrot.lane.b32.xlu0 %v3907, 32
  %v4028 = vpop.permute.xlu0 %4027
  %4029 = vrot.lane.b32.xlu0 %v3908, 32
  %v4030 = vpop.permute.xlu0 %4029
  %4031 = vrot.lane.b32.xlu0 %v3909, 32
  %v4032 = vpop.permute.xlu0 %4031
  %4033 = vrot.lane.b32.xlu0 %v3910, 32
  %v4034 = vpop.permute.xlu0 %4033
  %4091 = vrot.lane.b32.xlu0 %v3911, 64
  %v4092 = vpop.permute.xlu0 %4091
  %4093 = vrot.lane.b32.xlu0 %v3912, 64
  %v4094 = vpop.permute.xlu0 %4093
  %4095 = vrot.lane.b32.xlu0 %v3913, 64
  %v4096 = vpop.permute.xlu0 %4095
  %4097 = vrot.lane.b32.xlu0 %v3914, 64
  %v4098 = vpop.permute.xlu0 %4097
  %4099 = vrot.lane.b32.xlu0 %v3915, 64
  %v4100 = vpop.permute.xlu0 %4099
  %4101 = vrot.lane.b32.xlu0 %v3916, 64
  %v4102 = vpop.permute.xlu0 %4101
  %4103 = vrot.lane.b32.xlu0 %v3917, 64
  %v4104 = vpop.permute.xlu0 %4103
  %4105 = vrot.lane.b32.xlu0 %v3918, 64
  %v4106 = vpop.permute.xlu0 %4105
  %4107 = vrot.lane.b32.xlu0 %v3919, 64
  %v4108 = vpop.permute.xlu0 %4107
  %4109 = vrot.lane.b32.xlu0 %v3920, 64
  %v4110 = vpop.permute.xlu0 %4109
  %4111 = vrot.lane.b32.xlu0 %v3921, 64
  %v4112 = vpop.permute.xlu0 %4111
  %4113 = vrot.lane.b32.xlu0 %v3922, 64
  %v4114 = vpop.permute.xlu0 %4113
  %4115 = vrot.lane.b32.xlu0 %v3923, 64
  %v4116 = vpop.permute.xlu0 %4115
  %4117 = vrot.lane.b32.xlu0 %v3924, 64
  %v4118 = vpop.permute.xlu0 %4117
  %4119 = vrot.lane.b32.xlu0 %v3925, 64
  %v4120 = vpop.permute.xlu0 %4119
  %4121 = vrot.lane.b32.xlu0 %v3926, 64
  %v4122 = vpop.permute.xlu0 %4121
  %4123 = vrot.lane.b32.xlu0 %v3927, 64
  %v4124 = vpop.permute.xlu0 %4123
  %4125 = vrot.lane.b32.xlu0 %v3928, 64
  %v4126 = vpop.permute.xlu0 %4125
  %4127 = vrot.lane.b32.xlu0 %v3929, 64
  %v4128 = vpop.permute.xlu0 %4127
  %4129 = vrot.lane.b32.xlu0 %v3930, 64
  %v4130 = vpop.permute.xlu0 %4129
  %4131 = vrot.lane.b32.xlu0 %v3931, 64
  %v4132 = vpop.permute.xlu0 %4131
  %4133 = vrot.lane.b32.xlu0 %v3932, 64
  %v4134 = vpop.permute.xlu0 %4133
  %4135 = vrot.lane.b32.xlu0 %v3933, 64
  %v4136 = vpop.permute.xlu0 %4135
  %4137 = vrot.lane.b32.xlu0 %v3934, 64
  %v4138 = vpop.permute.xlu0 %4137
  %4139 = vrot.lane.b32.xlu0 %v3935, 64
  %v4140 = vpop.permute.xlu0 %4139
  %4141 = vrot.lane.b32.xlu0 %v3936, 64
  %v4142 = vpop.permute.xlu0 %4141
  %4143 = vrot.lane.b32.xlu0 %v3937, 64
  %v4144 = vpop.permute.xlu0 %4143
  %4145 = vrot.lane.b32.xlu0 %v3938, 64
  %v4146 = vpop.permute.xlu0 %4145
  %4203 = vrot.lane.b32.xlu0 %v3857, 96
  %v4204 = vpop.permute.xlu0 %4203
  %4205 = vrot.lane.b32.xlu0 %v3858, 96
  %v4206 = vpop.permute.xlu0 %4205
  %4207 = vrot.lane.b32.xlu0 %v3859, 96
  %v4208 = vpop.permute.xlu0 %4207
  %4209 = vrot.lane.b32.xlu0 %v3860, 96
  %v4210 = vpop.permute.xlu0 %4209
  %4211 = vrot.lane.b32.xlu0 %v3861, 96
  %v4212 = vpop.permute.xlu0 %4211
  %4213 = vrot.lane.b32.xlu0 %v3862, 96
  %v4214 = vpop.permute.xlu0 %4213
  %4215 = vrot.lane.b32.xlu0 %v3863, 96
  %v4216 = vpop.permute.xlu0 %4215
  %4217 = vrot.lane.b32.xlu0 %v3864, 96
  %v4218 = vpop.permute.xlu0 %4217
  %4219 = vrot.lane.b32.xlu0 %v3865, 96
  %v4220 = vpop.permute.xlu0 %4219
  %4221 = vrot.lane.b32.xlu0 %v3866, 96
  %v4222 = vpop.permute.xlu0 %4221
  %4223 = vrot.lane.b32.xlu0 %v3867, 96
  %v4224 = vpop.permute.xlu0 %4223
  %4225 = vrot.lane.b32.xlu0 %v3868, 96
  %v4226 = vpop.permute.xlu0 %4225
  %4227 = vrot.lane.b32.xlu0 %v3869, 96
  %v4228 = vpop.permute.xlu0 %4227
  %4229 = vrot.lane.b32.xlu0 %v3870, 96
  %v4230 = vpop.permute.xlu0 %4229
  %4231 = vrot.lane.b32.xlu0 %v3871, 96
  %v4232 = vpop.permute.xlu0 %4231
  %4233 = vrot.lane.b32.xlu0 %v3872, 96
  %v4234 = vpop.permute.xlu0 %4233
  %4235 = vrot.lane.b32.xlu0 %v3873, 96
  %v4236 = vpop.permute.xlu0 %4235
  %4237 = vrot.lane.b32.xlu0 %v3874, 96
  %v4238 = vpop.permute.xlu0 %4237
  %4239 = vrot.lane.b32.xlu0 %v3875, 96
  %v4240 = vpop.permute.xlu0 %4239
  %4241 = vrot.lane.b32.xlu0 %v3876, 96
  %v4242 = vpop.permute.xlu0 %4241
  %4243 = vrot.lane.b32.xlu0 %v3877, 96
  %v4244 = vpop.permute.xlu0 %4243
  %4245 = vrot.lane.b32.xlu0 %v3878, 96
  %v4246 = vpop.permute.xlu0 %4245
  %4247 = vrot.lane.b32.xlu0 %v3879, 96
  %v4248 = vpop.permute.xlu0 %4247
  %4249 = vrot.lane.b32.xlu0 %v3880, 96
  %v4250 = vpop.permute.xlu0 %4249
  %4251 = vrot.lane.b32.xlu0 %v3881, 96
  %v4252 = vpop.permute.xlu0 %4251
  %4253 = vrot.lane.b32.xlu0 %v3882, 96
  %v4254 = vpop.permute.xlu0 %4253
  %4255 = vrot.lane.b32.xlu0 %v3939, 96
  %v4256 = vpop.permute.xlu0 %4255
  %4257 = vrot.lane.b32.xlu0 %v3940, 96
  %v4258 = vpop.permute.xlu0 %4257
  %4289 = vrot.lane.b32.xlu0 %v3913, 32
  %v4290 = vpop.permute.xlu0 %4289
  %4291 = vrot.lane.b32.xlu0 %v3914, 32
  %v4292 = vpop.permute.xlu0 %4291
  %4293 = vrot.lane.b32.xlu0 %v3915, 32
  %v4294 = vpop.permute.xlu0 %4293
  %4295 = vrot.lane.b32.xlu0 %v3916, 32
  %v4296 = vpop.permute.xlu0 %4295
  %4297 = vrot.lane.b32.xlu0 %v3917, 32
  %v4298 = vpop.permute.xlu0 %4297
  %4299 = vrot.lane.b32.xlu0 %v3918, 32
  %v4300 = vpop.permute.xlu0 %4299
  %4301 = vrot.lane.b32.xlu0 %v3919, 32
  %v4302 = vpop.permute.xlu0 %4301
  %4303 = vrot.lane.b32.xlu0 %v3920, 32
  %v4304 = vpop.permute.xlu0 %4303
  %4305 = vrot.lane.b32.xlu0 %v3921, 32
  %v4306 = vpop.permute.xlu0 %4305
  %4307 = vrot.lane.b32.xlu0 %v3922, 32
  %v4308 = vpop.permute.xlu0 %4307
  %4309 = vrot.lane.b32.xlu0 %v3923, 32
  %v4310 = vpop.permute.xlu0 %4309
  %4311 = vrot.lane.b32.xlu0 %v3924, 32
  %v4312 = vpop.permute.xlu0 %4311
  %4313 = vrot.lane.b32.xlu0 %v3925, 32
  %v4314 = vpop.permute.xlu0 %4313
  %4315 = vrot.lane.b32.xlu0 %v3926, 32
  %v4316 = vpop.permute.xlu0 %4315
  %4317 = vrot.lane.b32.xlu0 %v3927, 32
  %v4318 = vpop.permute.xlu0 %4317
  %4319 = vrot.lane.b32.xlu0 %v3928, 32
  %v4320 = vpop.permute.xlu0 %4319
  %4321 = vrot.lane.b32.xlu0 %v3929, 32
  %v4322 = vpop.permute.xlu0 %4321
  %4323 = vrot.lane.b32.xlu0 %v3930, 32
  %v4324 = vpop.permute.xlu0 %4323
  %4325 = vrot.lane.b32.xlu0 %v3931, 32
  %v4326 = vpop.permute.xlu0 %4325
  %4327 = vrot.lane.b32.xlu0 %v3932, 32
  %v4328 = vpop.permute.xlu0 %4327
  %4329 = vrot.lane.b32.xlu0 %v3933, 32
  %v4330 = vpop.permute.xlu0 %4329
  %4331 = vrot.lane.b32.xlu0 %v3934, 32
  %v4332 = vpop.permute.xlu0 %4331
  %4333 = vrot.lane.b32.xlu0 %v3935, 32
  %v4334 = vpop.permute.xlu0 %4333
  %4335 = vrot.lane.b32.xlu0 %v3936, 32
  %v4336 = vpop.permute.xlu0 %4335
  %4337 = vrot.lane.b32.xlu0 %v3937, 32
  %v4338 = vpop.permute.xlu0 %4337
  %4339 = vrot.lane.b32.xlu0 %v3938, 32
  %v4340 = vpop.permute.xlu0 %4339
  %4341 = vrot.lane.b32.xlu0 %v3943, 32
  %v4342 = vpop.permute.xlu0 %4341
  %4343 = vrot.lane.b32.xlu0 %v3944, 32
  %v4344 = vpop.permute.xlu0 %4343
  %4375 = vrot.lane.b32.xlu0 %v3859, 64
  %v4376 = vpop.permute.xlu0 %4375
  %4377 = vrot.lane.b32.xlu0 %v3860, 64
  %v4378 = vpop.permute.xlu0 %4377
  %4379 = vrot.lane.b32.xlu0 %v3861, 64
  %v4380 = vpop.permute.xlu0 %4379
  %4381 = vrot.lane.b32.xlu0 %v3862, 64
  %v4382 = vpop.permute.xlu0 %4381
  %4383 = vrot.lane.b32.xlu0 %v3863, 64
  %v4384 = vpop.permute.xlu0 %4383
  %4385 = vrot.lane.b32.xlu0 %v3864, 64
  %v4386 = vpop.permute.xlu0 %4385
  %4387 = vrot.lane.b32.xlu0 %v3865, 64
  %v4388 = vpop.permute.xlu0 %4387
  %4389 = vrot.lane.b32.xlu0 %v3866, 64
  %v4390 = vpop.permute.xlu0 %4389
  %4391 = vrot.lane.b32.xlu0 %v3867, 64
  %v4392 = vpop.permute.xlu0 %4391
  %4393 = vrot.lane.b32.xlu0 %v3868, 64
  %v4394 = vpop.permute.xlu0 %4393
  %4395 = vrot.lane.b32.xlu0 %v3869, 64
  %v4396 = vpop.permute.xlu0 %4395
  %4397 = vrot.lane.b32.xlu0 %v3870, 64
  %v4398 = vpop.permute.xlu0 %4397
  %4399 = vrot.lane.b32.xlu0 %v3871, 64
  %v4400 = vpop.permute.xlu0 %4399
  %4401 = vrot.lane.b32.xlu0 %v3872, 64
  %v4402 = vpop.permute.xlu0 %4401
  %4403 = vrot.lane.b32.xlu0 %v3873, 64
  %v4404 = vpop.permute.xlu0 %4403
  %4405 = vrot.lane.b32.xlu0 %v3874, 64
  %v4406 = vpop.permute.xlu0 %4405
  %4407 = vrot.lane.b32.xlu0 %v3875, 64
  %v4408 = vpop.permute.xlu0 %4407
  %4409 = vrot.lane.b32.xlu0 %v3876, 64
  %v4410 = vpop.permute.xlu0 %4409
  %4411 = vrot.lane.b32.xlu0 %v3877, 64
  %v4412 = vpop.permute.xlu0 %4411
  %4413 = vrot.lane.b32.xlu0 %v3878, 64
  %v4414 = vpop.permute.xlu0 %4413
  %4415 = vrot.lane.b32.xlu0 %v3879, 64
  %v4416 = vpop.permute.xlu0 %4415
  %4417 = vrot.lane.b32.xlu0 %v3880, 64
  %v4418 = vpop.permute.xlu0 %4417
  %4419 = vrot.lane.b32.xlu0 %v3881, 64
  %v4420 = vpop.permute.xlu0 %4419
  %4421 = vrot.lane.b32.xlu0 %v3882, 64
  %v4422 = vpop.permute.xlu0 %4421
  %4423 = vrot.lane.b32.xlu0 %v3939, 64
  %v4424 = vpop.permute.xlu0 %4423
  %4425 = vrot.lane.b32.xlu0 %v3940, 64
  %v4426 = vpop.permute.xlu0 %4425
  %4427 = vrot.lane.b32.xlu0 %v3945, 64
  %v4428 = vpop.permute.xlu0 %4427
  %4429 = vrot.lane.b32.xlu0 %v3946, 64
  %v4430 = vpop.permute.xlu0 %4429
  %4463 = vrot.lane.b32.xlu0 %v3887, 96
  %v4464 = vpop.permute.xlu0 %4463
  %4465 = vrot.lane.b32.xlu0 %v3888, 96
  %v4466 = vpop.permute.xlu0 %4465
  %4467 = vrot.lane.b32.xlu0 %v3889, 96
  %v4468 = vpop.permute.xlu0 %4467
  %4469 = vrot.lane.b32.xlu0 %v3890, 96
  %v4470 = vpop.permute.xlu0 %4469
  %4471 = vrot.lane.b32.xlu0 %v3891, 96
  %v4472 = vpop.permute.xlu0 %4471
  %4473 = vrot.lane.b32.xlu0 %v3892, 96
  %v4474 = vpop.permute.xlu0 %4473
  %4475 = vrot.lane.b32.xlu0 %v3893, 96
  %v4476 = vpop.permute.xlu0 %4475
  %4477 = vrot.lane.b32.xlu0 %v3894, 96
  %v4478 = vpop.permute.xlu0 %4477
  %4479 = vrot.lane.b32.xlu0 %v3895, 96
  %v4480 = vpop.permute.xlu0 %4479
  %4481 = vrot.lane.b32.xlu0 %v3896, 96
  %v4482 = vpop.permute.xlu0 %4481
  %4483 = vrot.lane.b32.xlu0 %v3897, 96
  %v4484 = vpop.permute.xlu0 %4483
  %4485 = vrot.lane.b32.xlu0 %v3898, 96
  %v4486 = vpop.permute.xlu0 %4485
  %4487 = vrot.lane.b32.xlu0 %v3899, 96
  %v4488 = vpop.permute.xlu0 %4487
  %4489 = vrot.lane.b32.xlu0 %v3900, 96
  %v4490 = vpop.permute.xlu0 %4489
  %4491 = vrot.lane.b32.xlu0 %v3901, 96
  %v4492 = vpop.permute.xlu0 %4491
  %4493 = vrot.lane.b32.xlu0 %v3902, 96
  %v4494 = vpop.permute.xlu0 %4493
  %4495 = vrot.lane.b32.xlu0 %v3903, 96
  %v4496 = vpop.permute.xlu0 %4495
  %4497 = vrot.lane.b32.xlu0 %v3904, 96
  %v4498 = vpop.permute.xlu0 %4497
  %4499 = vrot.lane.b32.xlu0 %v3905, 96
  %v4500 = vpop.permute.xlu0 %4499
  %4501 = vrot.lane.b32.xlu0 %v3906, 96
  %v4502 = vpop.permute.xlu0 %4501
  %4503 = vrot.lane.b32.xlu0 %v3907, 96
  %v4504 = vpop.permute.xlu0 %4503
  %4505 = vrot.lane.b32.xlu0 %v3908, 96
  %v4506 = vpop.permute.xlu0 %4505
  %4507 = vrot.lane.b32.xlu0 %v3909, 96
  %v4508 = vpop.permute.xlu0 %4507
  %4509 = vrot.lane.b32.xlu0 %v3910, 96
  %v4510 = vpop.permute.xlu0 %4509
  %4511 = vrot.lane.b32.xlu0 %v3941, 96
  %v4512 = vpop.permute.xlu0 %4511
  %4513 = vrot.lane.b32.xlu0 %v3942, 96
  %v4514 = vpop.permute.xlu0 %4513
  %4515 = vrot.lane.b32.xlu0 %v3947, 96
  %v4516 = vpop.permute.xlu0 %4515
  %4517 = vrot.lane.b32.xlu0 %v3948, 96
  %v4518 = vpop.permute.xlu0 %4517
  %v4547 = vsel %vm60, %v3855, %v3980
  %v4548 = vsel %vm60, %v3856, %v3982
  %v4549 = vsel %vm60, %v3857, %v3984
  %v4550 = vsel %vm60, %v3858, %v3986
  %v4551 = vsel %vm60, %v3859, %v3988
  %v4552 = vsel %vm60, %v3860, %v3990
  %v4553 = vsel %vm60, %v3861, %v3992
  %v4554 = vsel %vm60, %v3862, %v3994
  %v4555 = vsel %vm60, %v3863, %v3996
  %v4556 = vsel %vm60, %v3864, %v3998
  %v4557 = vsel %vm60, %v3865, %v4000
  %v4558 = vsel %vm60, %v3866, %v4002
  %v4559 = vsel %vm60, %v3867, %v4004
  %v4560 = vsel %vm60, %v3868, %v4006
  %v4561 = vsel %vm60, %v3869, %v4008
  %v4562 = vsel %vm60, %v3870, %v4010
  %v4563 = vsel %vm60, %v3871, %v4012
  %v4564 = vsel %vm60, %v3872, %v4014
  %v4565 = vsel %vm60, %v3873, %v4016
  %v4566 = vsel %vm60, %v3874, %v4018
  %v4567 = vsel %vm60, %v3875, %v4020
  %v4568 = vsel %vm60, %v3876, %v4022
  %v4569 = vsel %vm60, %v3877, %v4024
  %v4570 = vsel %vm60, %v3878, %v4026
  %v4571 = vsel %vm60, %v3879, %v4028
  %v4572 = vsel %vm60, %v3880, %v4030
  %v4573 = vsel %vm60, %v3881, %v4032
  %v4574 = vsel %vm60, %v3882, %v4034
  %v4575 = vsel %vm2020, %v4547, %v4092
  %v4576 = vsel %vm2020, %v4548, %v4094
  %v4577 = vsel %vm2020, %v4549, %v4096
  %v4578 = vsel %vm2020, %v4550, %v4098
  %v4579 = vsel %vm2020, %v4551, %v4100
  %v4580 = vsel %vm2020, %v4552, %v4102
  %v4581 = vsel %vm2020, %v4553, %v4104
  %v4582 = vsel %vm2020, %v4554, %v4106
  %v4583 = vsel %vm2020, %v4555, %v4108
  %v4584 = vsel %vm2020, %v4556, %v4110
  %v4585 = vsel %vm2020, %v4557, %v4112
  %v4586 = vsel %vm2020, %v4558, %v4114
  %v4587 = vsel %vm2020, %v4559, %v4116
  %v4588 = vsel %vm2020, %v4560, %v4118
  %v4589 = vsel %vm2020, %v4561, %v4120
  %v4590 = vsel %vm2020, %v4562, %v4122
  %v4591 = vsel %vm2020, %v4563, %v4124
  %v4592 = vsel %vm2020, %v4564, %v4126
  %v4593 = vsel %vm2020, %v4565, %v4128
  %v4594 = vsel %vm2020, %v4566, %v4130
  %v4595 = vsel %vm2020, %v4567, %v4132
  %v4596 = vsel %vm2020, %v4568, %v4134
  %v4597 = vsel %vm2020, %v4569, %v4136
  %v4598 = vsel %vm2020, %v4570, %v4138
  %v4599 = vsel %vm2020, %v4571, %v4140
  %v4600 = vsel %vm2020, %v4572, %v4142
  %v4601 = vsel %vm2020, %v4573, %v4144
  %v4602 = vsel %vm2020, %v4574, %v4146
  %v4603 = vsel %vm2049, %v4575, %v4204
  %v4604 = vsel %vm2049, %v4576, %v4206
  %v4605 = vsel %vm2049, %v4577, %v4208
  %v4606 = vsel %vm2049, %v4578, %v4210
  %v4607 = vsel %vm2049, %v4579, %v4212
  %v4608 = vsel %vm2049, %v4580, %v4214
  %v4609 = vsel %vm2049, %v4581, %v4216
  %v4610 = vsel %vm2049, %v4582, %v4218
  %v4611 = vsel %vm2049, %v4583, %v4220
  %v4612 = vsel %vm2049, %v4584, %v4222
  %v4613 = vsel %vm2049, %v4585, %v4224
  %v4614 = vsel %vm2049, %v4586, %v4226
  %v4615 = vsel %vm2049, %v4587, %v4228
  %v4616 = vsel %vm2049, %v4588, %v4230
  %v4617 = vsel %vm2049, %v4589, %v4232
  %v4618 = vsel %vm2049, %v4590, %v4234
  %v4619 = vsel %vm2049, %v4591, %v4236
  %v4620 = vsel %vm2049, %v4592, %v4238
  %v4621 = vsel %vm2049, %v4593, %v4240
  %v4622 = vsel %vm2049, %v4594, %v4242
  %v4623 = vsel %vm2049, %v4595, %v4244
  %v4624 = vsel %vm2049, %v4596, %v4246
  %v4625 = vsel %vm2049, %v4597, %v4248
  %v4626 = vsel %vm2049, %v4598, %v4250
  %v4627 = vsel %vm2049, %v4599, %v4252
  %v4628 = vsel %vm2049, %v4600, %v4254
  %v4629 = vsel %vm2049, %v4601, %v4256
  %v4630 = vsel %vm2049, %v4602, %v4258
  %v4631 = vsel %vm60, %v3885, %v4290
  %v4632 = vsel %vm60, %v3886, %v4292
  %v4633 = vsel %vm60, %v3887, %v4294
  %v4634 = vsel %vm60, %v3888, %v4296
  %v4635 = vsel %vm60, %v3889, %v4298
  %v4636 = vsel %vm60, %v3890, %v4300
  %v4637 = vsel %vm60, %v3891, %v4302
  %v4638 = vsel %vm60, %v3892, %v4304
  %v4639 = vsel %vm60, %v3893, %v4306
  %v4640 = vsel %vm60, %v3894, %v4308
  %v4641 = vsel %vm60, %v3895, %v4310
  %v4642 = vsel %vm60, %v3896, %v4312
  %v4643 = vsel %vm60, %v3897, %v4314
  %v4644 = vsel %vm60, %v3898, %v4316
  %v4645 = vsel %vm60, %v3899, %v4318
  %v4646 = vsel %vm60, %v3900, %v4320
  %v4647 = vsel %vm60, %v3901, %v4322
  %v4648 = vsel %vm60, %v3902, %v4324
  %v4649 = vsel %vm60, %v3903, %v4326
  %v4650 = vsel %vm60, %v3904, %v4328
  %v4651 = vsel %vm60, %v3905, %v4330
  %v4652 = vsel %vm60, %v3906, %v4332
  %v4653 = vsel %vm60, %v3907, %v4334
  %v4654 = vsel %vm60, %v3908, %v4336
  %v4655 = vsel %vm60, %v3909, %v4338
  %v4656 = vsel %vm60, %v3910, %v4340
  %v4657 = vsel %vm60, %v3941, %v4342
  %v4658 = vsel %vm60, %v3942, %v4344
  %v4659 = vsel %vm2020, %v4631, %v4376
  %v4660 = vsel %vm2020, %v4632, %v4378
  %v4661 = vsel %vm2020, %v4633, %v4380
  %v4662 = vsel %vm2020, %v4634, %v4382
  %v4663 = vsel %vm2020, %v4635, %v4384
  %v4664 = vsel %vm2020, %v4636, %v4386
  %v4665 = vsel %vm2020, %v4637, %v4388
  %v4666 = vsel %vm2020, %v4638, %v4390
  %v4667 = vsel %vm2020, %v4639, %v4392
  %v4668 = vsel %vm2020, %v4640, %v4394
  %v4669 = vsel %vm2020, %v4641, %v4396
  %v4670 = vsel %vm2020, %v4642, %v4398
  %v4671 = vsel %vm2020, %v4643, %v4400
  %v4672 = vsel %vm2020, %v4644, %v4402
  %v4673 = vsel %vm2020, %v4645, %v4404
  %v4674 = vsel %vm2020, %v4646, %v4406
  %v4675 = vsel %vm2020, %v4647, %v4408
  %v4676 = vsel %vm2020, %v4648, %v4410
  %v4677 = vsel %vm2020, %v4649, %v4412
  %v4678 = vsel %vm2020, %v4650, %v4414
  %v4679 = vsel %vm2020, %v4651, %v4416
  %v4680 = vsel %vm2020, %v4652, %v4418
  %v4681 = vsel %vm2020, %v4653, %v4420
  %v4682 = vsel %vm2020, %v4654, %v4422
  %v4683 = vsel %vm2020, %v4655, %v4424
  %v4684 = vsel %vm2020, %v4656, %v4426
  %v4685 = vsel %vm2020, %v4657, %v4428
  %v4686 = vsel %vm2020, %v4658, %v4430
  %v4687 = vsel %vm2049, %v4659, %v4464
  %v4688 = vsel %vm2049, %v4660, %v4466
  %v4689 = vsel %vm2049, %v4661, %v4468
  %v4690 = vsel %vm2049, %v4662, %v4470
  %v4691 = vsel %vm2049, %v4663, %v4472
  %v4692 = vsel %vm2049, %v4664, %v4474
  %v4693 = vsel %vm2049, %v4665, %v4476
  %v4694 = vsel %vm2049, %v4666, %v4478
  %v4695 = vsel %vm2049, %v4667, %v4480
  %v4696 = vsel %vm2049, %v4668, %v4482
  %v4697 = vsel %vm2049, %v4669, %v4484
  %v4698 = vsel %vm2049, %v4670, %v4486
  %v4699 = vsel %vm2049, %v4671, %v4488
  %v4700 = vsel %vm2049, %v4672, %v4490
  %v4701 = vsel %vm2049, %v4673, %v4492
  %v4702 = vsel %vm2049, %v4674, %v4494
  %v4703 = vsel %vm2049, %v4675, %v4496
  %v4704 = vsel %vm2049, %v4676, %v4498
  %v4705 = vsel %vm2049, %v4677, %v4500
  %v4706 = vsel %vm2049, %v4678, %v4502
  %v4707 = vsel %vm2049, %v4679, %v4504
  %v4708 = vsel %vm2049, %v4680, %v4506
  %v4709 = vsel %vm2049, %v4681, %v4508
  %v4710 = vsel %vm2049, %v4682, %v4510
  %v4711 = vsel %vm2049, %v4683, %v4512
  %v4712 = vsel %vm2049, %v4684, %v4514
  %v4713 = vsel %vm2049, %v4685, %v4516
  %v4714 = vsel %vm2049, %v4686, %v4518
  %v4715 = vsel %vm60, %v3915, 0
  %v4717 = vsel %vm60, %v3916, 0
  %v4719 = vsel %vm60, %v3917, 0
  %v4721 = vsel %vm60, %v3918, 0
  %v4723 = vsel %vm60, %v3919, 0
  %v4725 = vsel %vm60, %v3920, 0
  %v4727 = vsel %vm60, %v3921, 0
  %v4729 = vsel %vm60, %v3922, 0
  %v4731 = vsel %vm60, %v3923, 0
  %v4733 = vsel %vm60, %v3924, 0
  %v4735 = vsel %vm60, %v3925, 0
  %v4737 = vsel %vm60, %v3926, 0
  %v4739 = vsel %vm60, %v3927, 0
  %v4741 = vsel %vm60, %v3928, 0
  %v4743 = vsel %vm60, %v3929, 0
  %v4745 = vsel %vm60, %v3930, 0
  %v4747 = vsel %vm60, %v3931, 0
  %v4749 = vsel %vm60, %v3932, 0
  %v4751 = vsel %vm60, %v3933, 0
  %v4753 = vsel %vm60, %v3934, 0
  %v4755 = vsel %vm60, %v3935, 0
  %v4757 = vsel %vm60, %v3936, 0
  %v4759 = vsel %vm60, %v3937, 0
  %v4761 = vsel %vm60, %v3938, 0
  %v4763 = vsel %vm60, %v3943, 0
  %v4765 = vsel %vm60, %v3944, 0
  %v4768 = vsel %vm60, %v3949, 0
  %v4771 = vsel %vm60, %v3950, 0
  %4773 = vmatpush.msra.mxu0 %v38
  %4774 = vmatpush.msra.mxu0 %v37
  %4775 = vmatpush.msra.mxu0 %v36
  %4776 = vmatpush.msra.mxu0 %v35
  %4777 = vmatpush.msra.mxu0 %v34
  %4778 = vmatpush.msra.mxu0 %v33
  %4779 = vmatpush.msra.mxu0 %v32
  %4780 = vmatpush.msra.mxu0 %v31
  %4781 = vmatpush.msra.mxu0 %v30
  %4782 = vmatpush.msra.mxu0 %v29
  %4783 = vmatpush.msra.mxu0 %v28
  %4784 = vmatpush.msra.mxu0 %v27
  %4785 = vmatpush.msra.mxu0 %v26
  %4786 = vmatpush.msra.mxu0 %v25
  %4787 = vmatpush.msra.mxu0 %v24
  %4788 = vmatpush.msra.mxu0 %v23
  %4789 = vmatmul.f32.gmra.mxu0 %v4603
  %v4790 = vpop.f32.mrf.mxu0
  %v4791 = vadd.f32 0.0, %v4790
  %4792 = vmatmul.f32.gmra.mxu0 %v4604
  %v4793 = vpop.f32.mrf.mxu0
  %v4794 = vadd.f32 0.0, %v4793
  %4795 = vmatmul.f32.gmra.mxu0 %v4605
  %v4796 = vpop.f32.mrf.mxu0
  %v4797 = vadd.f32 0.0, %v4796
  %4798 = vmatmul.f32.gmra.mxu0 %v4606
  %v4799 = vpop.f32.mrf.mxu0
  %v4800 = vadd.f32 0.0, %v4799
  %4801 = vmatmul.f32.gmra.mxu0 %v4607
  %v4802 = vpop.f32.mrf.mxu0
  %v4803 = vadd.f32 0.0, %v4802
  %4804 = vmatmul.f32.gmra.mxu0 %v4608
  %v4805 = vpop.f32.mrf.mxu0
  %v4806 = vadd.f32 0.0, %v4805
  %4807 = vmatmul.f32.gmra.mxu0 %v4609
  %v4808 = vpop.f32.mrf.mxu0
  %v4809 = vadd.f32 0.0, %v4808
  %4810 = vmatmul.f32.gmra.mxu0 %v4610
  %v4811 = vpop.f32.mrf.mxu0
  %v4812 = vadd.f32 0.0, %v4811
  %4813 = vmatmul.f32.gmra.mxu0 %v4611
  %v4814 = vpop.f32.mrf.mxu0
  %v4815 = vadd.f32 0.0, %v4814
  %4816 = vmatmul.f32.gmra.mxu0 %v4612
  %v4817 = vpop.f32.mrf.mxu0
  %v4818 = vadd.f32 0.0, %v4817
  %4819 = vmatmul.f32.gmra.mxu0 %v4613
  %v4820 = vpop.f32.mrf.mxu0
  %v4821 = vadd.f32 0.0, %v4820
  %4822 = vmatmul.f32.gmra.mxu0 %v4614
  %v4823 = vpop.f32.mrf.mxu0
  %v4824 = vadd.f32 0.0, %v4823
  %4825 = vmatmul.f32.gmra.mxu0 %v4615
  %v4826 = vpop.f32.mrf.mxu0
  %v4827 = vadd.f32 0.0, %v4826
  %4828 = vmatmul.f32.gmra.mxu0 %v4616
  %v4829 = vpop.f32.mrf.mxu0
  %v4830 = vadd.f32 0.0, %v4829
  %4831 = vmatmul.f32.gmra.mxu0 %v4617
  %v4832 = vpop.f32.mrf.mxu0
  %v4833 = vadd.f32 0.0, %v4832
  %4834 = vmatmul.f32.gmra.mxu0 %v4618
  %v4835 = vpop.f32.mrf.mxu0
  %v4836 = vadd.f32 0.0, %v4835
  %4837 = vmatmul.f32.gmra.mxu0 %v4619
  %v4838 = vpop.f32.mrf.mxu0
  %v4839 = vadd.f32 0.0, %v4838
  %4840 = vmatmul.f32.gmra.mxu0 %v4620
  %v4841 = vpop.f32.mrf.mxu0
  %v4842 = vadd.f32 0.0, %v4841
  %4843 = vmatmul.f32.gmra.mxu0 %v4621
  %v4844 = vpop.f32.mrf.mxu0
  %v4845 = vadd.f32 0.0, %v4844
  %4846 = vmatmul.f32.gmra.mxu0 %v4622
  %v4847 = vpop.f32.mrf.mxu0
  %v4848 = vadd.f32 0.0, %v4847
  %4849 = vmatmul.f32.gmra.mxu0 %v4623
  %v4850 = vpop.f32.mrf.mxu0
  %v4851 = vadd.f32 0.0, %v4850
  %4852 = vmatmul.f32.gmra.mxu0 %v4624
  %v4853 = vpop.f32.mrf.mxu0
  %v4854 = vadd.f32 0.0, %v4853
  %4855 = vmatmul.f32.gmra.mxu0 %v4625
  %v4856 = vpop.f32.mrf.mxu0
  %v4857 = vadd.f32 0.0, %v4856
  %4858 = vmatmul.f32.gmra.mxu0 %v4626
  %v4859 = vpop.f32.mrf.mxu0
  %v4860 = vadd.f32 0.0, %v4859
  %4861 = vmatmul.f32.gmra.mxu0 %v4627
  %v4862 = vpop.f32.mrf.mxu0
  %v4863 = vadd.f32 0.0, %v4862
  %4864 = vmatmul.f32.gmra.mxu0 %v4628
  %v4865 = vpop.f32.mrf.mxu0
  %v4866 = vadd.f32 0.0, %v4865
  %4867 = vmatmul.f32.gmra.mxu0 %v4629
  %v4868 = vpop.f32.mrf.mxu0
  %v4869 = vadd.f32 0.0, %v4868
  %4870 = vmatmul.f32.gmra.mxu0 %v4630
  %v4871 = vpop.f32.mrf.mxu0
  %v4872 = vadd.f32 0.0, %v4871
  %4873 = vdwg.mxu0
  %4874 = vmatpush.msra.mxu0 %v54
  %4875 = vmatpush.msra.mxu0 %v53
  %4876 = vmatpush.msra.mxu0 %v52
  %4877 = vmatpush.msra.mxu0 %v51
  %4878 = vmatpush.msra.mxu0 %v50
  %4879 = vmatpush.msra.mxu0 %v49
  %4880 = vmatpush.msra.mxu0 %v48
  %4881 = vmatpush.msra.mxu0 %v47
  %4882 = vmatpush.msra.mxu0 %v46
  %4883 = vmatpush.msra.mxu0 %v45
  %4884 = vmatpush.msra.mxu0 %v44
  %4885 = vmatpush.msra.mxu0 %v43
  %4886 = vmatpush.msra.mxu0 %v42
  %4887 = vmatpush.msra.mxu0 %v41
  %4888 = vmatpush.msra.mxu0 %v40
  %4889 = vmatpush.msra.mxu0 %v39
  %4890 = vmatmul.f32.gmra.mxu0 %v4687
  %v4891 = vpop.f32.mrf.mxu0
  %v4892 = vadd.f32 %v4791, %v4891
  %4893 = vmatmul.f32.gmra.mxu0 %v4688
  %v4894 = vpop.f32.mrf.mxu0
  %v4895 = vadd.f32 %v4794, %v4894
  %4896 = vmatmul.f32.gmra.mxu0 %v4689
  %v4897 = vpop.f32.mrf.mxu0
  %v4898 = vadd.f32 %v4797, %v4897
  %4899 = vmatmul.f32.gmra.mxu0 %v4690
  %v4900 = vpop.f32.mrf.mxu0
  %v4901 = vadd.f32 %v4800, %v4900
  %4902 = vmatmul.f32.gmra.mxu0 %v4691
  %v4903 = vpop.f32.mrf.mxu0
  %v4904 = vadd.f32 %v4803, %v4903
  %4905 = vmatmul.f32.gmra.mxu0 %v4692
  %v4906 = vpop.f32.mrf.mxu0
  %v4907 = vadd.f32 %v4806, %v4906
  %4908 = vmatmul.f32.gmra.mxu0 %v4693
  %v4909 = vpop.f32.mrf.mxu0
  %v4910 = vadd.f32 %v4809, %v4909
  %4911 = vmatmul.f32.gmra.mxu0 %v4694
  %v4912 = vpop.f32.mrf.mxu0
  %v4913 = vadd.f32 %v4812, %v4912
  %4914 = vmatmul.f32.gmra.mxu0 %v4695
  %v4915 = vpop.f32.mrf.mxu0
  %v4916 = vadd.f32 %v4815, %v4915
  %4917 = vmatmul.f32.gmra.mxu0 %v4696
  %v4918 = vpop.f32.mrf.mxu0
  %v4919 = vadd.f32 %v4818, %v4918
  %4920 = vmatmul.f32.gmra.mxu0 %v4697
  %v4921 = vpop.f32.mrf.mxu0
  %v4922 = vadd.f32 %v4821, %v4921
  %4923 = vmatmul.f32.gmra.mxu0 %v4698
  %v4924 = vpop.f32.mrf.mxu0
  %v4925 = vadd.f32 %v4824, %v4924
  %4926 = vmatmul.f32.gmra.mxu0 %v4699
  %v4927 = vpop.f32.mrf.mxu0
  %v4928 = vadd.f32 %v4827, %v4927
  %4929 = vmatmul.f32.gmra.mxu0 %v4700
  %v4930 = vpop.f32.mrf.mxu0
  %v4931 = vadd.f32 %v4830, %v4930
  %4932 = vmatmul.f32.gmra.mxu0 %v4701
  %v4933 = vpop.f32.mrf.mxu0
  %v4934 = vadd.f32 %v4833, %v4933
  %4935 = vmatmul.f32.gmra.mxu0 %v4702
  %v4936 = vpop.f32.mrf.mxu0
  %v4937 = vadd.f32 %v4836, %v4936
  %4938 = vmatmul.f32.gmra.mxu0 %v4703
  %v4939 = vpop.f32.mrf.mxu0
  %v4940 = vadd.f32 %v4839, %v4939
  %4941 = vmatmul.f32.gmra.mxu0 %v4704
  %v4942 = vpop.f32.mrf.mxu0
  %v4943 = vadd.f32 %v4842, %v4942
  %4944 = vmatmul.f32.gmra.mxu0 %v4705
  %v4945 = vpop.f32.mrf.mxu0
  %v4946 = vadd.f32 %v4845, %v4945
  %4947 = vmatmul.f32.gmra.mxu0 %v4706
  %v4948 = vpop.f32.mrf.mxu0
  %v4949 = vadd.f32 %v4848, %v4948
  %4950 = vmatmul.f32.gmra.mxu0 %v4707
  %v4951 = vpop.f32.mrf.mxu0
  %v4952 = vadd.f32 %v4851, %v4951
  %4953 = vmatmul.f32.gmra.mxu0 %v4708
  %v4954 = vpop.f32.mrf.mxu0
  %v4955 = vadd.f32 %v4854, %v4954
  %4956 = vmatmul.f32.gmra.mxu0 %v4709
  %v4957 = vpop.f32.mrf.mxu0
  %v4958 = vadd.f32 %v4857, %v4957
  %4959 = vmatmul.f32.gmra.mxu0 %v4710
  %v4960 = vpop.f32.mrf.mxu0
  %v4961 = vadd.f32 %v4860, %v4960
  %4962 = vmatmul.f32.gmra.mxu0 %v4711
  %v4963 = vpop.f32.mrf.mxu0
  %v4964 = vadd.f32 %v4863, %v4963
  %4965 = vmatmul.f32.gmra.mxu0 %v4712
  %v4966 = vpop.f32.mrf.mxu0
  %v4967 = vadd.f32 %v4866, %v4966
  %4968 = vmatmul.f32.gmra.mxu0 %v4713
  %v4969 = vpop.f32.mrf.mxu0
  %v4970 = vadd.f32 %v4869, %v4969
  %4971 = vmatmul.f32.gmra.mxu0 %v4714
  %v4972 = vpop.f32.mrf.mxu0
  %v4973 = vadd.f32 %v4872, %v4972
  %4974 = vdwg.mxu0
  %4975 = vmatpush.msra.mxu0 0.0
  %4976 = vmatpush.msra.mxu0 0.0
  %4977 = vmatpush.msra.mxu0 0.0
  %4978 = vmatpush.msra.mxu0 0.0
  %4979 = vmatpush.msra.mxu0 0.0
  %4980 = vmatpush.msra.mxu0 0.0
  %4981 = vmatpush.msra.mxu0 0.0
  %4982 = vmatpush.msra.mxu0 0.0
  %4983 = vmatpush.msra.mxu0 0.0
  %4984 = vmatpush.msra.mxu0 0.0
  %4985 = vmatpush.msra.mxu0 0.0
  %4986 = vmatpush.msra.mxu0 0.0
  %4987 = vmatpush.msra.mxu0 %v58
  %4988 = vmatpush.msra.mxu0 %v57
  %4989 = vmatpush.msra.mxu0 %v56
  %4990 = vmatpush.msra.mxu0 %v55
  %4991 = vmatmul.f32.gmra.mxu0 %v4715
  %v4992 = vpop.f32.mrf.mxu0
  %v4993 = vadd.f32 %v4892, %v4992
  %4994 = vmatmul.f32.gmra.mxu0 %v4717
  %v4995 = vpop.f32.mrf.mxu0
  %v4996 = vadd.f32 %v4895, %v4995
  %4997 = vmatmul.f32.gmra.mxu0 %v4719
  %v4998 = vpop.f32.mrf.mxu0
  %v4999 = vadd.f32 %v4898, %v4998
  %5000 = vmatmul.f32.gmra.mxu0 %v4721
  %v5001 = vpop.f32.mrf.mxu0
  %v5002 = vadd.f32 %v4901, %v5001
  %5003 = vmatmul.f32.gmra.mxu0 %v4723
  %v5004 = vpop.f32.mrf.mxu0
  %v5005 = vadd.f32 %v4904, %v5004
  %5006 = vmatmul.f32.gmra.mxu0 %v4725
  %v5007 = vpop.f32.mrf.mxu0
  %v5008 = vadd.f32 %v4907, %v5007
  %5009 = vmatmul.f32.gmra.mxu0 %v4727
  %v5010 = vpop.f32.mrf.mxu0
  %v5011 = vadd.f32 %v4910, %v5010
  %5012 = vmatmul.f32.gmra.mxu0 %v4729
  %v5013 = vpop.f32.mrf.mxu0
  %v5014 = vadd.f32 %v4913, %v5013
  %5015 = vmatmul.f32.gmra.mxu0 %v4731
  %v5016 = vpop.f32.mrf.mxu0
  %v5017 = vadd.f32 %v4916, %v5016
  %5018 = vmatmul.f32.gmra.mxu0 %v4733
  %v5019 = vpop.f32.mrf.mxu0
  %v5020 = vadd.f32 %v4919, %v5019
  %5021 = vmatmul.f32.gmra.mxu0 %v4735
  %v5022 = vpop.f32.mrf.mxu0
  %v5023 = vadd.f32 %v4922, %v5022
  %5024 = vmatmul.f32.gmra.mxu0 %v4737
  %v5025 = vpop.f32.mrf.mxu0
  %v5026 = vadd.f32 %v4925, %v5025
  %5027 = vmatmul.f32.gmra.mxu0 %v4739
  %v5028 = vpop.f32.mrf.mxu0
  %v5029 = vadd.f32 %v4928, %v5028
  %5030 = vmatmul.f32.gmra.mxu0 %v4741
  %v5031 = vpop.f32.mrf.mxu0
  %v5032 = vadd.f32 %v4931, %v5031
  %5033 = vmatmul.f32.gmra.mxu0 %v4743
  %v5034 = vpop.f32.mrf.mxu0
  %v5035 = vadd.f32 %v4934, %v5034
  %5036 = vmatmul.f32.gmra.mxu0 %v4745
  %v5037 = vpop.f32.mrf.mxu0
  %v5038 = vadd.f32 %v4937, %v5037
  %5039 = vmatmul.f32.gmra.mxu0 %v4747
  %v5040 = vpop.f32.mrf.mxu0
  %v5041 = vadd.f32 %v4940, %v5040
  %5042 = vmatmul.f32.gmra.mxu0 %v4749
  %v5043 = vpop.f32.mrf.mxu0
  %v5044 = vadd.f32 %v4943, %v5043
  %5045 = vmatmul.f32.gmra.mxu0 %v4751
  %v5046 = vpop.f32.mrf.mxu0
  %v5047 = vadd.f32 %v4946, %v5046
  %5048 = vmatmul.f32.gmra.mxu0 %v4753
  %v5049 = vpop.f32.mrf.mxu0
  %v5050 = vadd.f32 %v4949, %v5049
  %5051 = vmatmul.f32.gmra.mxu0 %v4755
  %v5052 = vpop.f32.mrf.mxu0
  %v5053 = vadd.f32 %v4952, %v5052
  %5054 = vmatmul.f32.gmra.mxu0 %v4757
  %v5055 = vpop.f32.mrf.mxu0
  %v5056 = vadd.f32 %v4955, %v5055
  %5057 = vmatmul.f32.gmra.mxu0 %v4759
  %v5058 = vpop.f32.mrf.mxu0
  %v5059 = vadd.f32 %v4958, %v5058
  %5060 = vmatmul.f32.gmra.mxu0 %v4761
  %v5061 = vpop.f32.mrf.mxu0
  %v5062 = vadd.f32 %v4961, %v5061
  %5063 = vmatmul.f32.gmra.mxu0 %v4763
  %v5064 = vpop.f32.mrf.mxu0
  %v5065 = vadd.f32 %v4964, %v5064
  %5066 = vmatmul.f32.gmra.mxu0 %v4765
  %v5067 = vpop.f32.mrf.mxu0
  %v5068 = vadd.f32 %v4967, %v5067
  %5069 = vmatmul.f32.gmra.mxu0 %v4768
  %v5070 = vpop.f32.mrf.mxu0
  %v5071 = vadd.f32 %v4970, %v5070
  %5072 = vmatmul.f32.gmra.mxu0 %v4771
  %v5073 = vpop.f32.mrf.mxu0
  %v5074 = vadd.f32 %v4973, %v5073
  %5075 = vdwg.mxu0
  %5076 = vst.msk [vmem:[#allocation4] sm:$0xff] %vm2020, %v4993
  %5077 = vst.msk [vmem:[#allocation4 + $0x8] sm:$0xff] %vm2020, %v4996
  %5078 = vst.msk [vmem:[#allocation4 + $0x10] sm:$0xff] %vm2020, %v4999
  %5079 = vst.msk [vmem:[#allocation4 + $0x18] sm:$0xff] %vm2020, %v5002
  %5080 = vst.msk [vmem:[#allocation4 + $0x20] sm:$0xff] %vm2020, %v5005
  %5081 = vst.msk [vmem:[#allocation4 + $0x28] sm:$0xff] %vm2020, %v5008
  %5082 = vst.msk [vmem:[#allocation4 + $0x30] sm:$0xff] %vm2020, %v5011
  %5083 = vst.msk [vmem:[#allocation4 + $0x38] sm:$0xff] %vm2020, %v5014
  %5084 = vst.msk [vmem:[#allocation4 + $0x40] sm:$0xff] %vm2020, %v5017
  %5085 = vst.msk [vmem:[#allocation4 + $0x48] sm:$0xff] %vm2020, %v5020
  %5086 = vst.msk [vmem:[#allocation4 + $0x50] sm:$0xff] %vm2020, %v5023
  %5087 = vst.msk [vmem:[#allocation4 + $0x58] sm:$0xff] %vm2020, %v5026
  %5088 = vst.msk [vmem:[#allocation4 + $0x60] sm:$0xff] %vm2020, %v5029
  %5089 = vst.msk [vmem:[#allocation4 + $0x68] sm:$0xff] %vm2020, %v5032
  %5090 = vst.msk [vmem:[#allocation4 + $0x70] sm:$0xff] %vm2020, %v5035
  %5091 = vst.msk [vmem:[#allocation4 + $0x78] sm:$0xff] %vm2020, %v5038
  %5092 = vst.msk [vmem:[#allocation4 + $0x80] sm:$0xff] %vm2020, %v5041
  %5093 = vst.msk [vmem:[#allocation4 + $0x88] sm:$0xff] %vm2020, %v5044
  %5094 = vst.msk [vmem:[#allocation4 + $0x90] sm:$0xff] %vm2020, %v5047
  %5095 = vst.msk [vmem:[#allocation4 + $0x98] sm:$0xff] %vm2020, %v5050
  %5096 = vst.msk [vmem:[#allocation4 + $0xa0] sm:$0xff] %vm2020, %v5053
  %5097 = vst.msk [vmem:[#allocation4 + $0xa8] sm:$0xff] %vm2020, %v5056
  %5098 = vst.msk [vmem:[#allocation4 + $0xb0] sm:$0xff] %vm2020, %v5059
  %5099 = vst.msk [vmem:[#allocation4 + $0xb8] sm:$0xff] %vm2020, %v5062
  %5100 = vst.msk [vmem:[#allocation4 + $0xc0] sm:$0xff] %vm2020, %v5065
  %5101 = vst.msk [vmem:[#allocation4 + $0xc8] sm:$0xff] %vm2020, %v5068
  %5102 = vst.msk [vmem:[#allocation4 + $0xd0] sm:$0xff] %vm2020, %v5071
  %5103 = vst.msk [vmem:[#allocation4 + $0xd8] sm:$0xff] %vm2020, %v5074
  %v5104 = vld [vmem:[#allocation4] sm:$0xff]
  %v5105 = vld [vmem:[#allocation4 + $0x8] sm:$0x3f]
  %v5106 = vld [vmem:[#allocation4 + $0x10] sm:$0xff]
  %v5107 = vld [vmem:[#allocation4 + $0x18] sm:$0x3f]
  %v5108 = vmax.f32 %v5104, %v5106
  %v5109 = vmax.f32 %v5105, %v5107
  %5110 = vst.msk [vmem:[#allocation6] sm:$0xff] %vm2020, %v5108
  %5111 = vst.msk [vmem:[#allocation6 + $0x8] sm:$0x3f] %vm2558, %v5109
  %v5112 = vld [vmem:[#allocation6] ss:$2 sm:$0x7f]
  %v5113 = vld [vmem:[%s2561] ss:$2 sm:$0x7f]
  %v5114 = vmax.f32 %v5112, %v5113
  %v5115 = vadd.f32 %v5114, %v2565
  %v5116 = vmax.f32 %v5115, 0.0
  %s5117 = scalar_lea.vmem %s5, 56
  %5118 = vst.msk [vmem:[%s5117] sm:$0x7f] %vm2569, %v5116
  %v5119 = vld [vmem:[#allocation4 + $0x20] sm:$0xff]
  %v5120 = vld [vmem:[#allocation4 + $0x28] sm:$0x3f]
  %v5121 = vld [vmem:[#allocation4 + $0x30] sm:$0xff]
  %v5122 = vld [vmem:[#allocation4 + $0x38] sm:$0x3f]
  %v5123 = vmax.f32 %v5119, %v5121
  %v5124 = vmax.f32 %v5120, %v5122
  %5125 = vst.msk [vmem:[#allocation6] sm:$0xff] %vm2020, %v5123
  %5126 = vst.msk [vmem:[#allocation6 + $0x8] sm:$0x3f] %vm2558, %v5124
  %v5127 = vld [vmem:[#allocation6] ss:$2 sm:$0x7f]
  %v5128 = vld [vmem:[%s2561] ss:$2 sm:$0x7f]
  %v5129 = vmax.f32 %v5127, %v5128
  %v5130 = vadd.f32 %v5129, %v2565
  %v5131 = vmax.f32 %v5130, 0.0
  %s5132 = scalar_lea.vmem %s5, 64
  %5133 = vst.msk [vmem:[%s5132] sm:$0x7f] %vm2569, %v5131
  %v5134 = vld [vmem:[#allocation4 + $0x40] sm:$0xff]
  %v5135 = vld [vmem:[#allocation4 + $0x48] sm:$0x3f]
  %v5136 = vld [vmem:[#allocation4 + $0x50] sm:$0xff]
  %v5137 = vld [vmem:[#allocation4 + $0x58] sm:$0x3f]
  %v5138 = vmax.f32 %v5134, %v5136
  %v5139 = vmax.f32 %v5135, %v5137
  %5140 = vst.msk [vmem:[#allocation6] sm:$0xff] %vm2020, %v5138
  %5141 = vst.msk [vmem:[#allocation6 + $0x8] sm:$0x3f] %vm2558, %v5139
  %v5142 = vld [vmem:[#allocation6] ss:$2 sm:$0x7f]
  %v5143 = vld [vmem:[%s2561] ss:$2 sm:$0x7f]
  %v5144 = vmax.f32 %v5142, %v5143
  %v5145 = vadd.f32 %v5144, %v2565
  %v5146 = vmax.f32 %v5145, 0.0
  %s5147 = scalar_lea.vmem %s5, 72
  %5148 = vst.msk [vmem:[%s5147] sm:$0x7f] %vm2569, %v5146
  %v5149 = vld [vmem:[#allocation4 + $0x60] sm:$0xff]
  %v5150 = vld [vmem:[#allocation4 + $0x68] sm:$0x3f]
  %v5151 = vld [vmem:[#allocation4 + $0x70] sm:$0xff]
  %v5152 = vld [vmem:[#allocation4 + $0x78] sm:$0x3f]
  %v5153 = vmax.f32 %v5149, %v5151
  %v5154 = vmax.f32 %v5150, %v5152
  %5155 = vst.msk [vmem:[#allocation6] sm:$0xff] %vm2020, %v5153
  %5156 = vst.msk [vmem:[#allocation6 + $0x8] sm:$0x3f] %vm2558, %v5154
  %v5157 = vld [vmem:[#allocation6] ss:$2 sm:$0x7f]
  %v5158 = vld [vmem:[%s2561] ss:$2 sm:$0x7f]
  %v5159 = vmax.f32 %v5157, %v5158
  %v5160 = vadd.f32 %v5159, %v2565
  %v5161 = vmax.f32 %v5160, 0.0
  %s5162 = scalar_lea.vmem %s5, 80
  %5163 = vst.msk [vmem:[%s5162] sm:$0x7f] %vm2569, %v5161
  %v5164 = vld [vmem:[#allocation4 + $0x80] sm:$0xff]
  %v5165 = vld [vmem:[#allocation4 + $0x88] sm:$0x3f]
  %v5166 = vld [vmem:[#allocation4 + $0x90] sm:$0xff]
  %v5167 = vld [vmem:[#allocation4 + $0x98] sm:$0x3f]
  %v5168 = vmax.f32 %v5164, %v5166
  %v5169 = vmax.f32 %v5165, %v5167
  %5170 = vst.msk [vmem:[#allocation6] sm:$0xff] %vm2020, %v5168
  %5171 = vst.msk [vmem:[#allocation6 + $0x8] sm:$0x3f] %vm2558, %v5169
  %v5172 = vld [vmem:[#allocation6] ss:$2 sm:$0x7f]
  %v5173 = vld [vmem:[%s2561] ss:$2 sm:$0x7f]
  %v5174 = vmax.f32 %v5172, %v5173
  %v5175 = vadd.f32 %v5174, %v2565
  %v5176 = vmax.f32 %v5175, 0.0
  %s5177 = scalar_lea.vmem %s5, 88
  %5178 = vst.msk [vmem:[%s5177] sm:$0x7f] %vm2569, %v5176
  %v5179 = vld [vmem:[#allocation4 + $0xa0] sm:$0xff]
  %v5180 = vld [vmem:[#allocation4 + $0xa8] sm:$0x3f]
  %v5181 = vld [vmem:[#allocation4 + $0xb0] sm:$0xff]
  %v5182 = vld [vmem:[#allocation4 + $0xb8] sm:$0x3f]
  %v5183 = vmax.f32 %v5179, %v5181
  %v5184 = vmax.f32 %v5180, %v5182
  %5185 = vst.msk [vmem:[#allocation6] sm:$0xff] %vm2020, %v5183
  %5186 = vst.msk [vmem:[#allocation6 + $0x8] sm:$0x3f] %vm2558, %v5184
  %v5187 = vld [vmem:[#allocation6] ss:$2 sm:$0x7f]
  %v5188 = vld [vmem:[%s2561] ss:$2 sm:$0x7f]
  %v5189 = vmax.f32 %v5187, %v5188
  %v5190 = vadd.f32 %v5189, %v2565
  %v5191 = vmax.f32 %v5190, 0.0
  %s5192 = scalar_lea.vmem %s5, 96
  %5193 = vst.msk [vmem:[%s5192] sm:$0x7f] %vm2569, %v5191
  %v5194 = vld [vmem:[#allocation4 + $0xc0] sm:$0xff]
  %v5195 = vld [vmem:[#allocation4 + $0xc8] sm:$0x3f]
  %v5196 = vld [vmem:[#allocation4 + $0xd0] sm:$0xff]
  %v5197 = vld [vmem:[#allocation4 + $0xd8] sm:$0x3f]
  %v5198 = vmax.f32 %v5194, %v5196
  %v5199 = vmax.f32 %v5195, %v5197
  %5200 = vst.msk [vmem:[#allocation6] sm:$0xff] %vm2020, %v5198
  %5201 = vst.msk [vmem:[#allocation6 + $0x8] sm:$0x3f] %vm2558, %v5199
  %v5202 = vld [vmem:[#allocation6] ss:$2 sm:$0x7f]
  %v5203 = vld [vmem:[%s2561] ss:$2 sm:$0x7f]
  %v5204 = vmax.f32 %v5202, %v5203
  %v5205 = vadd.f32 %v5204, %v2565
  %v5206 = vmax.f32 %v5205, 0.0
  %s5207 = scalar_lea.vmem %s5, 104
  %5208 = vst.msk [vmem:[%s5207] sm:$0x7f] %vm2569, %v5206
  // Predicated region
  $region22: #{big_forward_pallas.2} parent=0 // pred_check
    _
  $region23: #{big_forward_pallas.2} parent=0 // pred_check_branch
    %5210 = sbr.rel (0) target = $region25
  $region24: #{big_forward_pallas.2} parent=0 // pred_region
    _
  $region25: #{big_forward_pallas.2} parent=0 // pred_fallthru
    _
  // Predicated region
  $region26: #{big_forward_pallas.2} parent=0 // pred_check
    _
  $region27: #{big_forward_pallas.2} parent=0 // pred_check_branch
    %5212 = sbr.rel (0) target = $region29
  $region28: #{big_forward_pallas.2} parent=0 // pred_region
    _
  $region29: #{big_forward_pallas.2} parent=0 // pred_fallthru
    _

</llo_original>
